<compile_context>
chip_gen: v7x
topology: tpu7x:2x2x1
jax: 0.10.0
libtpu: 0.0.40
codegen_flags: <defaults>
</compile_context>

<pallas_src>
import functools
import math

import jax
import jax.numpy as jnp
from jax import lax
from jax.experimental import pallas as pl
from jax.experimental.pallas import tpu as pltpu


# ----------------------------------------------------------------------------
# Fused Pallas kernel: GRU layer 1 -> GRU layer 2 -> Linear head
# ----------------------------------------------------------------------------
def fused_gru_kernel(T, B,
                     x_ref,                                   # (T*B, D) time-major flat
                     w_ih1_ref, w_hh1_ref, b_ih1_ref, b_hh1_ref,  # (3,D,H),(3,H,H),(3,1,H),(3,1,H)
                     w_ih2_ref, w_hh2_ref, b_ih2_ref, b_hh2_ref,  # (3,H,H),(3,H,H),(3,1,H),(3,1,H)
                     lin_w_ref, lin_b_ref,                    # (H, Opad), (1, Opad)
                     out_ref,                                 # (T, B, Opad)
                     gi2_r_scr, gi2_z_scr, gi2_n_scr):        # (T, B, H) each, VMEM
    H = w_hh1_ref.shape[-1]
    f32 = jnp.float32

    def mm(a, b):
        return jnp.dot(a, b, preferred_element_type=f32)

    # ---- Phase A: layer-1 input projection, hoisted out of the time loop ----
    x_flat = x_ref[...]                                       # (T*B, D)
    gi1_r = mm(x_flat, w_ih1_ref[0]) + b_ih1_ref[0]           # (T*B, H)
    gi1_z = mm(x_flat, w_ih1_ref[1]) + b_ih1_ref[1]
    gi1_n = mm(x_flat, w_ih1_ref[2]) + b_ih1_ref[2]

    # ---- Phase B: layer-1 recurrence (+ layer-2 input projection, off-path) ----
    w1_r, w1_z, w1_n = w_hh1_ref[0], w_hh1_ref[1], w_hh1_ref[2]
    bh1_r = jnp.broadcast_to(b_hh1_ref[0], (B, H))
    bh1_z = jnp.broadcast_to(b_hh1_ref[1], (B, H))
    bh1_n = jnp.broadcast_to(b_hh1_ref[2], (B, H))
    w2i_r, w2i_z, w2i_n = w_ih2_ref[0], w_ih2_ref[1], w_ih2_ref[2]
    bi2_r = jnp.broadcast_to(b_ih2_ref[0], (B, H))
    bi2_z = jnp.broadcast_to(b_ih2_ref[1], (B, H))
    bi2_n = jnp.broadcast_to(b_ih2_ref[2], (B, H))

    h1 = jnp.zeros((B, H), f32)          # vreg-resident carry, h0 = 0 (PyTorch default)
    for t in range(T):                   # static unroll
        r0, r1 = t * B, (t + 1) * B
        hr = mm(h1, w1_r) + bh1_r
        hz = mm(h1, w1_z) + bh1_z
        hn = mm(h1, w1_n) + bh1_n
        r = jax.nn.sigmoid(gi1_r[r0:r1] + hr)
        z = jax.nn.sigmoid(gi1_z[r0:r1] + hz)
        n = jnp.tanh(gi1_n[r0:r1] + r * hn)
        h1 = (1.0 - z) * n + z * h1
        # Layer-2 input projection for this step: consumes h1_t but is NOT on
        # layer-1's recurrent dependency chain, so it overlaps under unroll.
        gi2_r_scr[t] = mm(h1, w2i_r) + bi2_r
        gi2_z_scr[t] = mm(h1, w2i_z) + bi2_z
        gi2_n_scr[t] = mm(h1, w2i_n) + bi2_n

    # ---- Phase C: layer-2 recurrence + fused Linear head (lane-dense write) ----
    w2_r, w2_z, w2_n = w_hh2_ref[0], w_hh2_ref[1], w_hh2_ref[2]
    bh2_r = jnp.broadcast_to(b_hh2_ref[0], (B, H))
    bh2_z = jnp.broadcast_to(b_hh2_ref[1], (B, H))
    bh2_n = jnp.broadcast_to(b_hh2_ref[2], (B, H))
    lin_w = lin_w_ref[...]
    lin_b = jnp.broadcast_to(lin_b_ref[...], (B, lin_w_ref.shape[-1]))

    h2 = jnp.zeros((B, H), f32)
    for t in range(T):                   # static unroll
        hr = mm(h2, w2_r) + bh2_r
        hz = mm(h2, w2_z) + bh2_z
        hn = mm(h2, w2_n) + bh2_n
        r = jax.nn.sigmoid(gi2_r_scr[t] + hr)
        z = jax.nn.sigmoid(gi2_z_scr[t] + hz)
        n = jnp.tanh(gi2_n_scr[t] + r * hn)
        h2 = (1.0 - z) * n + z * h2
        # 128-lane-padded head write; off the recurrent chain.
        out_ref[t] = (mm(h2, lin_w) + lin_b).astype(out_ref.dtype)


# ----------------------------------------------------------------------------
# Wrapper
# ----------------------------------------------------------------------------
def gru_module_forward(x_btd, params):
    """x_btd: (B, T, input_dim) batch_first.  Returns (B, T, output_dim)."""
    B, T, D = x_btd.shape
    layers = params["gru_layers"]
    assert len(layers) == 2, "fused kernel is specialized for num_layers=2"
    l1, l2 = layers
    H = l1["w_hh_t"].shape[-1]
    Opad = params["lin_w_pad"].shape[1]
    O = params["output_dim"]

    # batch_first -> time-major flat (T*B, D) so the kernel can hoist the
    # layer-1 input projection out of the recurrent loop.
    x_flat = jnp.transpose(x_btd, (1, 0, 2)).reshape(T * B, D)

    def full_spec(shape):
        n = len(shape)
        return pl.BlockSpec(shape, lambda i, _n=n: (0,) * _n)

    kernel = functools.partial(fused_gru_kernel, T, B)

    y = pl.pallas_call(
        kernel,
        out_shape=jax.ShapeDtypeStruct((T, B, Opad), jnp.float32),
        grid=(1,),
        in_specs=[
            full_spec((T * B, D)),
            full_spec((3, D, H)), full_spec((3, H, H)),
            full_spec((3, 1, H)), full_spec((3, 1, H)),
            full_spec((3, H, H)), full_spec((3, H, H)),
            full_spec((3, 1, H)), full_spec((3, 1, H)),
            full_spec((H, Opad)), full_spec((1, Opad)),
        ],
        out_specs=full_spec((T, B, Opad)),
        scratch_shapes=[pltpu.VMEM((T, B, H), jnp.float32)] * 3,
        compiler_params=pltpu.CompilerParams(
            dimension_semantics=("arbitrary",)),
    )(x_flat,
      l1["w_ih_t"], l1["w_hh_t"], l1["b_ih"], l1["b_hh"],
      l2["w_ih_t"], l2["w_hh_t"], l2["b_ih"], l2["b_hh"],
      params["lin_w_pad"], params["lin_b_pad"])

    return jnp.transpose(y[:, :, :O], (1, 0, 2))      # (B, T, output_dim)


# ----------------------------------------------------------------------------
# Deterministic parameter init (PyTorch nn.GRU / nn.Linear shapes & init range,
# stored per-gate pre-transposed; gate order [r, z, n]).
# ----------------------------------------------------------------------------
def init_params(key, input_dim, hidden_dim, output_dim, num_layers=2):
    H = hidden_dim
    bound = 1.0 / math.sqrt(H)
    params = {"gru_layers": [], "hidden_dim": H, "output_dim": output_dim}
    for layer in range(num_layers):
        d_in = input_dim if layer == 0 else H
        key, k1, k2, k3, k4 = jax.random.split(key, 5)
        w_ih = jax.random.uniform(k1, (3 * H, d_in), minval=-bound, maxval=bound,
                                  dtype=jnp.float32)
        w_hh = jax.random.uniform(k2, (3 * H, H), minval=-bound, maxval=bound,
                                  dtype=jnp.float32)
        b_ih = jax.random.uniform(k3, (3 * H,), minval=-bound, maxval=bound,
                                  dtype=jnp.float32)
        b_hh = jax.random.uniform(k4, (3 * H,), minval=-bound, maxval=bound,
                                  dtype=jnp.float32)
        params["gru_layers"].append({
            # per-gate, pre-transposed: (3, Din, H) / (3, H, H)
            "w_ih_t": jnp.transpose(w_ih.reshape(3, H, d_in), (0, 2, 1)),
            "w_hh_t": jnp.transpose(w_hh.reshape(3, H, H), (0, 2, 1)),
            "b_ih": b_ih.reshape(3, 1, H),
            "b_hh": b_hh.reshape(3, 1, H),
        })
    key, k5, k6 = jax.random.split(key, 3)
    lin_w = jax.random.uniform(k5, (output_dim, H), minval=-bound, maxval=bound,
                               dtype=jnp.float32)
    lin_b = jax.random.uniform(k6, (output_dim,), minval=-bound, maxval=bound,
                               dtype=jnp.float32)
    # Lane-dense head: zero-pad output dim up to a multiple of 128 lanes.
    o_pad = max(128, ((output_dim + 127) // 128) * 128)
    params["lin_w_pad"] = jnp.zeros((H, o_pad), jnp.float32).at[:, :output_dim].set(lin_w.T)
    params["lin_b_pad"] = jnp.zeros((1, o_pad), jnp.float32).at[:, :output_dim].set(
        lin_b.reshape(1, -1))
    return params


# ----------------------------------------------------------------------------
# Pure-JAX reference (correctness check)
# ----------------------------------------------------------------------------
def gru_module_reference(x_btd, params):
    h_seq = jnp.transpose(x_btd, (1, 0, 2))          # (T, B, D)
    for layer in params["gru_layers"]:
        w_ih, w_hh = layer["w_ih_t"], layer["w_hh_t"]
        b_ih, b_hh = layer["b_ih"], layer["b_hh"]
        H = w_hh.shape[-1]
        B = h_seq.shape[1]

        def step(h_prev, x_t):
            i_r = x_t @ w_ih[0] + b_ih[0]
            i_z = x_t @ w_ih[1] + b_ih[1]
            i_n = x_t @ w_ih[2] + b_ih[2]
            h_r = h_prev @ w_hh[0] + b_hh[0]
            h_z = h_prev @ w_hh[1] + b_hh[1]
            h_n = h_prev @ w_hh[2] + b_hh[2]
            r = jax.nn.sigmoid(i_r + h_r)
            z = jax.nn.sigmoid(i_z + h_z)
            n = jnp.tanh(i_n + r * h_n)
            h_new = (1.0 - z) * n + z * h_prev
            return h_new, h_new

        h0 = jnp.zeros((B, H), jnp.float32)
        _, h_seq = lax.scan(step, h0, h_seq)
    O = params["output_dim"]
    y = h_seq @ params["lin_w_pad"][:, :O] + params["lin_b_pad"][:, :O]
    return jnp.transpose(y, (1, 0, 2))               # (B, T, O)


# ----------------------------------------------------------------------------
if __name__ == "__main__":
    batch, seq = 2, 8
    input_dim, hidden_dim, output_dim, num_layers = 16, 32, 1, 2

    key = jax.random.PRNGKey(0)
    key, kx, kp = jax.random.split(key, 3)

    x = jax.random.normal(kx, (batch, seq, input_dim), dtype=jnp.float32)
    params = init_params(kp, input_dim, hidden_dim, output_dim, num_layers)

    y = jax.block_until_ready(gru_module_forward(x, params))
    y_ref = jax.block_until_ready(gru_module_reference(x, params))

    assert y.shape == (batch, seq, output_dim), y.shape
    assert jnp.allclose(y, y_ref, atol=1e-5, rtol=1e-5), (
        float(jnp.max(jnp.abs(y - y_ref))))

    print("KERNEL_OK")
</pallas_src>

<mosaic_0001>
module attributes {stable_mosaic.version = 11 : i64} {
  func.func @fused_gru_kernel(%arg0: i32, %arg1: memref<16x16xf32, #tpu.memory_space<vmem>>, %arg2: memref<3x16x32xf32, #tpu.memory_space<vmem>>, %arg3: memref<3x32x32xf32, #tpu.memory_space<vmem>>, %arg4: memref<3x1x32xf32, #tpu.memory_space<vmem>>, %arg5: memref<3x1x32xf32, #tpu.memory_space<vmem>>, %arg6: memref<3x32x32xf32, #tpu.memory_space<vmem>>, %arg7: memref<3x32x32xf32, #tpu.memory_space<vmem>>, %arg8: memref<3x1x32xf32, #tpu.memory_space<vmem>>, %arg9: memref<3x1x32xf32, #tpu.memory_space<vmem>>, %arg10: memref<32x128xf32, #tpu.memory_space<vmem>>, %arg11: memref<1x128xf32, #tpu.memory_space<vmem>>, %arg12: memref<8x2x128xf32, #tpu.memory_space<vmem>>, %arg13: memref<8x2x32xf32, #tpu.memory_space<vmem>>, %arg14: memref<8x2x32xf32, #tpu.memory_space<vmem>>, %arg15: memref<8x2x32xf32, #tpu.memory_space<vmem>>) attributes {dimension_semantics = [#tpu.dimension_semantics<arbitrary>], iteration_bounds = array<i64: 1>, scalar_prefetch = 0 : i64, scratch_operands = 3 : i64, tpu.core_type = #tpu.core_type<tc>, window_params = [{pipeline_mode = #tpu.pipeline_mode<synchronous>, transform_indices = @transform_0, window_bounds = array<i64: 16, 16>}, {pipeline_mode = #tpu.pipeline_mode<synchronous>, transform_indices = @transform_1, window_bounds = array<i64: 3, 16, 32>}, {pipeline_mode = #tpu.pipeline_mode<synchronous>, transform_indices = @transform_2, window_bounds = array<i64: 3, 32, 32>}, {pipeline_mode = #tpu.pipeline_mode<synchronous>, transform_indices = @transform_3, window_bounds = array<i64: 3, 1, 32>}, {pipeline_mode = #tpu.pipeline_mode<synchronous>, transform_indices = @transform_4, window_bounds = array<i64: 3, 1, 32>}, {pipeline_mode = #tpu.pipeline_mode<synchronous>, transform_indices = @transform_5, window_bounds = array<i64: 3, 32, 32>}, {pipeline_mode = #tpu.pipeline_mode<synchronous>, transform_indices = @transform_6, window_bounds = array<i64: 3, 32, 32>}, {pipeline_mode = #tpu.pipeline_mode<synchronous>, transform_indices = @transform_7, window_bounds = array<i64: 3, 1, 32>}, {pipeline_mode = #tpu.pipeline_mode<synchronous>, transform_indices = @transform_8, window_bounds = array<i64: 3, 1, 32>}, {pipeline_mode = #tpu.pipeline_mode<synchronous>, transform_indices = @transform_9, window_bounds = array<i64: 32, 128>}, {pipeline_mode = #tpu.pipeline_mode<synchronous>, transform_indices = @transform_10, window_bounds = array<i64: 1, 128>}, {pipeline_mode = #tpu.pipeline_mode<synchronous>, transform_indices = @transform_11, window_bounds = array<i64: 8, 2, 128>}]} {
    %c0 = arith.constant 0 : index
    %c0_0 = arith.constant 0 : index
    %0 = vector.load %arg1[%c0, %c0_0] : memref<16x16xf32, #tpu.memory_space<vmem>>, vector<16x16xf32>
    %c0_1 = arith.constant 0 : index
    %c0_2 = arith.constant 0 : index
    %c0_3 = arith.constant 0 : index
    %1 = vector.load %arg2[%c0_1, %c0_2, %c0_3] : memref<3x16x32xf32, #tpu.memory_space<vmem>>, vector<1x16x32xf32>
    %2 = vector.shape_cast %1 : vector<1x16x32xf32> to vector<16x32xf32>
    %cst = arith.constant dense<0.000000e+00> : vector<16x32xf32>
    %3 = tpu.matmul %0, %2, %cst {dimension_numbers = #tpu.dot_dimension_numbers<[1], [0], [0], [1], [0, 0, 1, 1], [], []>} : vector<16x16xf32>, vector<16x32xf32>, vector<16x32xf32> -> vector<16x32xf32>
    %c0_4 = arith.constant 0 : index
    %c0_5 = arith.constant 0 : index
    %c0_6 = arith.constant 0 : index
    %4 = vector.load %arg4[%c0_4, %c0_5, %c0_6] : memref<3x1x32xf32, #tpu.memory_space<vmem>>, vector<1x1x32xf32>
    %5 = vector.shape_cast %4 : vector<1x1x32xf32> to vector<1x32xf32>
    %6 = vector.broadcast %5 : vector<1x32xf32> to vector<16x32xf32>
    %7 = arith.addf %3, %6 : vector<16x32xf32>
    %c1 = arith.constant 1 : index
    %c0_7 = arith.constant 0 : index
    %c0_8 = arith.constant 0 : index
    %8 = vector.load %arg2[%c1, %c0_7, %c0_8] : memref<3x16x32xf32, #tpu.memory_space<vmem>>, vector<1x16x32xf32>
    %9 = vector.shape_cast %8 : vector<1x16x32xf32> to vector<16x32xf32>
    %cst_9 = arith.constant dense<0.000000e+00> : vector<16x32xf32>
    %10 = tpu.matmul %0, %9, %cst_9 {dimension_numbers = #tpu.dot_dimension_numbers<[1], [0], [0], [1], [0, 0, 1, 1], [], []>} : vector<16x16xf32>, vector<16x32xf32>, vector<16x32xf32> -> vector<16x32xf32>
    %c1_10 = arith.constant 1 : index
    %c0_11 = arith.constant 0 : index
    %c0_12 = arith.constant 0 : index
    %11 = vector.load %arg4[%c1_10, %c0_11, %c0_12] : memref<3x1x32xf32, #tpu.memory_space<vmem>>, vector<1x1x32xf32>
    %12 = vector.shape_cast %11 : vector<1x1x32xf32> to vector<1x32xf32>
    %13 = vector.broadcast %12 : vector<1x32xf32> to vector<16x32xf32>
    %14 = arith.addf %10, %13 : vector<16x32xf32>
    %c2 = arith.constant 2 : index
    %c0_13 = arith.constant 0 : index
    %c0_14 = arith.constant 0 : index
    %15 = vector.load %arg2[%c2, %c0_13, %c0_14] : memref<3x16x32xf32, #tpu.memory_space<vmem>>, vector<1x16x32xf32>
    %16 = vector.shape_cast %15 : vector<1x16x32xf32> to vector<16x32xf32>
    %cst_15 = arith.constant dense<0.000000e+00> : vector<16x32xf32>
    %17 = tpu.matmul %0, %16, %cst_15 {dimension_numbers = #tpu.dot_dimension_numbers<[1], [0], [0], [1], [0, 0, 1, 1], [], []>} : vector<16x16xf32>, vector<16x32xf32>, vector<16x32xf32> -> vector<16x32xf32>
    %c2_16 = arith.constant 2 : index
    %c0_17 = arith.constant 0 : index
    %c0_18 = arith.constant 0 : index
    %18 = vector.load %arg4[%c2_16, %c0_17, %c0_18] : memref<3x1x32xf32, #tpu.memory_space<vmem>>, vector<1x1x32xf32>
    %19 = vector.shape_cast %18 : vector<1x1x32xf32> to vector<1x32xf32>
    %20 = vector.broadcast %19 : vector<1x32xf32> to vector<16x32xf32>
    %21 = arith.addf %17, %20 : vector<16x32xf32>
    %c0_19 = arith.constant 0 : index
    %c0_20 = arith.constant 0 : index
    %c0_21 = arith.constant 0 : index
    %22 = vector.load %arg3[%c0_19, %c0_20, %c0_21] : memref<3x32x32xf32, #tpu.memory_space<vmem>>, vector<1x32x32xf32>
    %23 = vector.shape_cast %22 : vector<1x32x32xf32> to vector<32x32xf32>
    %c1_22 = arith.constant 1 : index
    %c0_23 = arith.constant 0 : index
    %c0_24 = arith.constant 0 : index
    %24 = vector.load %arg3[%c1_22, %c0_23, %c0_24] : memref<3x32x32xf32, #tpu.memory_space<vmem>>, vector<1x32x32xf32>
    %25 = vector.shape_cast %24 : vector<1x32x32xf32> to vector<32x32xf32>
    %c2_25 = arith.constant 2 : index
    %c0_26 = arith.constant 0 : index
    %c0_27 = arith.constant 0 : index
    %26 = vector.load %arg3[%c2_25, %c0_26, %c0_27] : memref<3x32x32xf32, #tpu.memory_space<vmem>>, vector<1x32x32xf32>
    %27 = vector.shape_cast %26 : vector<1x32x32xf32> to vector<32x32xf32>
    %c0_28 = arith.constant 0 : index
    %c0_29 = arith.constant 0 : index
    %c0_30 = arith.constant 0 : index
    %28 = vector.load %arg5[%c0_28, %c0_29, %c0_30] : memref<3x1x32xf32, #tpu.memory_space<vmem>>, vector<1x1x32xf32>
    %29 = vector.shape_cast %28 : vector<1x1x32xf32> to vector<1x32xf32>
    %30 = vector.shape_cast %29 : vector<1x32xf32> to vector<1x32xf32>
    %31 = vector.broadcast %30 : vector<1x32xf32> to vector<2x32xf32>
    %c1_31 = arith.constant 1 : index
    %c0_32 = arith.constant 0 : index
    %c0_33 = arith.constant 0 : index
    %32 = vector.load %arg5[%c1_31, %c0_32, %c0_33] : memref<3x1x32xf32, #tpu.memory_space<vmem>>, vector<1x1x32xf32>
    %33 = vector.shape_cast %32 : vector<1x1x32xf32> to vector<1x32xf32>
    %34 = vector.shape_cast %33 : vector<1x32xf32> to vector<1x32xf32>
    %35 = vector.broadcast %34 : vector<1x32xf32> to vector<2x32xf32>
    %c2_34 = arith.constant 2 : index
    %c0_35 = arith.constant 0 : index
    %c0_36 = arith.constant 0 : index
    %36 = vector.load %arg5[%c2_34, %c0_35, %c0_36] : memref<3x1x32xf32, #tpu.memory_space<vmem>>, vector<1x1x32xf32>
    %37 = vector.shape_cast %36 : vector<1x1x32xf32> to vector<1x32xf32>
    %38 = vector.shape_cast %37 : vector<1x32xf32> to vector<1x32xf32>
    %39 = vector.broadcast %38 : vector<1x32xf32> to vector<2x32xf32>
    %c0_37 = arith.constant 0 : index
    %c0_38 = arith.constant 0 : index
    %c0_39 = arith.constant 0 : index
    %40 = vector.load %arg6[%c0_37, %c0_38, %c0_39] : memref<3x32x32xf32, #tpu.memory_space<vmem>>, vector<1x32x32xf32>
    %41 = vector.shape_cast %40 : vector<1x32x32xf32> to vector<32x32xf32>
    %c1_40 = arith.constant 1 : index
    %c0_41 = arith.constant 0 : index
    %c0_42 = arith.constant 0 : index
    %42 = vector.load %arg6[%c1_40, %c0_41, %c0_42] : memref<3x32x32xf32, #tpu.memory_space<vmem>>, vector<1x32x32xf32>
    %43 = vector.shape_cast %42 : vector<1x32x32xf32> to vector<32x32xf32>
    %c2_43 = arith.constant 2 : index
    %c0_44 = arith.constant 0 : index
    %c0_45 = arith.constant 0 : index
    %44 = vector.load %arg6[%c2_43, %c0_44, %c0_45] : memref<3x32x32xf32, #tpu.memory_space<vmem>>, vector<1x32x32xf32>
    %45 = vector.shape_cast %44 : vector<1x32x32xf32> to vector<32x32xf32>
    %c0_46 = arith.constant 0 : index
    %c0_47 = arith.constant 0 : index
    %c0_48 = arith.constant 0 : index
    %46 = vector.load %arg8[%c0_46, %c0_47, %c0_48] : memref<3x1x32xf32, #tpu.memory_space<vmem>>, vector<1x1x32xf32>
    %47 = vector.shape_cast %46 : vector<1x1x32xf32> to vector<1x32xf32>
    %48 = vector.shape_cast %47 : vector<1x32xf32> to vector<1x32xf32>
    %49 = vector.broadcast %48 : vector<1x32xf32> to vector<2x32xf32>
    %c1_49 = arith.constant 1 : index
    %c0_50 = arith.constant 0 : index
    %c0_51 = arith.constant 0 : index
    %50 = vector.load %arg8[%c1_49, %c0_50, %c0_51] : memref<3x1x32xf32, #tpu.memory_space<vmem>>, vector<1x1x32xf32>
    %51 = vector.shape_cast %50 : vector<1x1x32xf32> to vector<1x32xf32>
    %52 = vector.shape_cast %51 : vector<1x32xf32> to vector<1x32xf32>
    %53 = vector.broadcast %52 : vector<1x32xf32> to vector<2x32xf32>
    %c2_52 = arith.constant 2 : index
    %c0_53 = arith.constant 0 : index
    %c0_54 = arith.constant 0 : index
    %54 = vector.load %arg8[%c2_52, %c0_53, %c0_54] : memref<3x1x32xf32, #tpu.memory_space<vmem>>, vector<1x1x32xf32>
    %55 = vector.shape_cast %54 : vector<1x1x32xf32> to vector<1x32xf32>
    %56 = vector.shape_cast %55 : vector<1x32xf32> to vector<1x32xf32>
    %57 = vector.broadcast %56 : vector<1x32xf32> to vector<2x32xf32>
    %cst_55 = arith.constant 0.000000e+00 : f32
    %58 = vector.broadcast %cst_55 : f32 to vector<2x32xf32>
    %cst_56 = arith.constant dense<0.000000e+00> : vector<2x32xf32>
    %59 = tpu.matmul %58, %23, %cst_56 {dimension_numbers = #tpu.dot_dimension_numbers<[1], [0], [0], [1], [0, 0, 1, 1], [], []>} : vector<2x32xf32>, vector<32x32xf32>, vector<2x32xf32> -> vector<2x32xf32>
    %60 = arith.addf %59, %31 : vector<2x32xf32>
    %cst_57 = arith.constant dense<0.000000e+00> : vector<2x32xf32>
    %61 = tpu.matmul %58, %25, %cst_57 {dimension_numbers = #tpu.dot_dimension_numbers<[1], [0], [0], [1], [0, 0, 1, 1], [], []>} : vector<2x32xf32>, vector<32x32xf32>, vector<2x32xf32> -> vector<2x32xf32>
    %62 = arith.addf %61, %35 : vector<2x32xf32>
    %cst_58 = arith.constant dense<0.000000e+00> : vector<2x32xf32>
    %63 = tpu.matmul %58, %27, %cst_58 {dimension_numbers = #tpu.dot_dimension_numbers<[1], [0], [0], [1], [0, 0, 1, 1], [], []>} : vector<2x32xf32>, vector<32x32xf32>, vector<2x32xf32> -> vector<2x32xf32>
    %64 = arith.addf %63, %39 : vector<2x32xf32>
    %65 = vector.extract_strided_slice %7 {offsets = [0, 0], sizes = [2, 32], strides = [1, 1]} : vector<16x32xf32> to vector<2x32xf32>
    %66 = arith.addf %65, %60 : vector<2x32xf32>
    %67 = arith.negf %66 : vector<2x32xf32>
    %68 = math.exp %67 : vector<2x32xf32>
    %cst_59 = arith.constant 1.000000e+00 : f32
    %69 = vector.broadcast %cst_59 : f32 to vector<2x32xf32>
    %70 = arith.addf %69, %68 : vector<2x32xf32>
    %71 = arith.divf %69, %70 : vector<2x32xf32>
    %72 = vector.extract_strided_slice %14 {offsets = [0, 0], sizes = [2, 32], strides = [1, 1]} : vector<16x32xf32> to vector<2x32xf32>
    %73 = arith.addf %72, %62 : vector<2x32xf32>
    %74 = arith.negf %73 : vector<2x32xf32>
    %75 = math.exp %74 : vector<2x32xf32>
    %cst_60 = arith.constant 1.000000e+00 : f32
    %76 = vector.broadcast %cst_60 : f32 to vector<2x32xf32>
    %77 = arith.addf %76, %75 : vector<2x32xf32>
    %78 = arith.divf %76, %77 : vector<2x32xf32>
    %79 = vector.extract_strided_slice %21 {offsets = [0, 0], sizes = [2, 32], strides = [1, 1]} : vector<16x32xf32> to vector<2x32xf32>
    %80 = arith.mulf %71, %64 : vector<2x32xf32>
    %81 = arith.addf %79, %80 : vector<2x32xf32>
    %82 = math.tanh %81 : vector<2x32xf32>
    %cst_61 = arith.constant 1.000000e+00 : f32
    %83 = vector.broadcast %cst_61 : f32 to vector<2x32xf32>
    %84 = arith.subf %83, %78 : vector<2x32xf32>
    %85 = arith.mulf %84, %82 : vector<2x32xf32>
    %86 = arith.mulf %78, %58 : vector<2x32xf32>
    %87 = arith.addf %85, %86 : vector<2x32xf32>
    %cst_62 = arith.constant dense<0.000000e+00> : vector<2x32xf32>
    %88 = tpu.matmul %87, %41, %cst_62 {dimension_numbers = #tpu.dot_dimension_numbers<[1], [0], [0], [1], [0, 0, 1, 1], [], []>} : vector<2x32xf32>, vector<32x32xf32>, vector<2x32xf32> -> vector<2x32xf32>
    %89 = arith.addf %88, %49 : vector<2x32xf32>
    %c0_63 = arith.constant 0 : index
    %c0_64 = arith.constant 0 : index
    %c0_65 = arith.constant 0 : index
    %90 = vector.load %arg13[%c0_63, %c0_64, %c0_65] : memref<8x2x32xf32, #tpu.memory_space<vmem>>, vector<1x2x32xf32>
    %91 = vector.shape_cast %90 : vector<1x2x32xf32> to vector<2x32xf32>
    %92 = vector.shape_cast %89 : vector<2x32xf32> to vector<1x2x32xf32>
    tpu.vector_store %arg13[%c0_63, %c0_64, %c0_65], %92 {strides = array<i32>} : memref<8x2x32xf32, #tpu.memory_space<vmem>>, vector<1x2x32xf32>,
    %cst_66 = arith.constant dense<0.000000e+00> : vector<2x32xf32>
    %93 = tpu.matmul %87, %43, %cst_66 {dimension_numbers = #tpu.dot_dimension_numbers<[1], [0], [0], [1], [0, 0, 1, 1], [], []>} : vector<2x32xf32>, vector<32x32xf32>, vector<2x32xf32> -> vector<2x32xf32>
    %94 = arith.addf %93, %53 : vector<2x32xf32>
    %c0_67 = arith.constant 0 : index
    %c0_68 = arith.constant 0 : index
    %c0_69 = arith.constant 0 : index
    %95 = vector.load %arg14[%c0_67, %c0_68, %c0_69] : memref<8x2x32xf32, #tpu.memory_space<vmem>>, vector<1x2x32xf32>
    %96 = vector.shape_cast %95 : vector<1x2x32xf32> to vector<2x32xf32>
    %97 = vector.shape_cast %94 : vector<2x32xf32> to vector<1x2x32xf32>
    tpu.vector_store %arg14[%c0_67, %c0_68, %c0_69], %97 {strides = array<i32>} : memref<8x2x32xf32, #tpu.memory_space<vmem>>, vector<1x2x32xf32>,
    %cst_70 = arith.constant dense<0.000000e+00> : vector<2x32xf32>
    %98 = tpu.matmul %87, %45, %cst_70 {dimension_numbers = #tpu.dot_dimension_numbers<[1], [0], [0], [1], [0, 0, 1, 1], [], []>} : vector<2x32xf32>, vector<32x32xf32>, vector<2x32xf32> -> vector<2x32xf32>
    %99 = arith.addf %98, %57 : vector<2x32xf32>
    %c0_71 = arith.constant 0 : index
    %c0_72 = arith.constant 0 : index
    %c0_73 = arith.constant 0 : index
    %100 = vector.load %arg15[%c0_71, %c0_72, %c0_73] : memref<8x2x32xf32, #tpu.memory_space<vmem>>, vector<1x2x32xf32>
    %101 = vector.shape_cast %100 : vector<1x2x32xf32> to vector<2x32xf32>
    %102 = vector.shape_cast %99 : vector<2x32xf32> to vector<1x2x32xf32>
    tpu.vector_store %arg15[%c0_71, %c0_72, %c0_73], %102 {strides = array<i32>} : memref<8x2x32xf32, #tpu.memory_space<vmem>>, vector<1x2x32xf32>,
    %cst_74 = arith.constant dense<0.000000e+00> : vector<2x32xf32>
    %103 = tpu.matmul %87, %23, %cst_74 {dimension_numbers = #tpu.dot_dimension_numbers<[1], [0], [0], [1], [0, 0, 1, 1], [], []>} : vector<2x32xf32>, vector<32x32xf32>, vector<2x32xf32> -> vector<2x32xf32>
    %104 = arith.addf %103, %31 : vector<2x32xf32>
    %cst_75 = arith.constant dense<0.000000e+00> : vector<2x32xf32>
    %105 = tpu.matmul %87, %25, %cst_75 {dimension_numbers = #tpu.dot_dimension_numbers<[1], [0], [0], [1], [0, 0, 1, 1], [], []>} : vector<2x32xf32>, vector<32x32xf32>, vector<2x32xf32> -> vector<2x32xf32>
    %106 = arith.addf %105, %35 : vector<2x32xf32>
    %cst_76 = arith.constant dense<0.000000e+00> : vector<2x32xf32>
    %107 = tpu.matmul %87, %27, %cst_76 {dimension_numbers = #tpu.dot_dimension_numbers<[1], [0], [0], [1], [0, 0, 1, 1], [], []>} : vector<2x32xf32>, vector<32x32xf32>, vector<2x32xf32> -> vector<2x32xf32>
    %108 = arith.addf %107, %39 : vector<2x32xf32>
    %109 = vector.extract_strided_slice %7 {offsets = [2, 0], sizes = [2, 32], strides = [1, 1]} : vector<16x32xf32> to vector<2x32xf32>
    %110 = arith.addf %109, %104 : vector<2x32xf32>
    %111 = arith.negf %110 : vector<2x32xf32>
    %112 = math.exp %111 : vector<2x32xf32>
    %cst_77 = arith.constant 1.000000e+00 : f32
    %113 = vector.broadcast %cst_77 : f32 to vector<2x32xf32>
    %114 = arith.addf %113, %112 : vector<2x32xf32>
    %115 = arith.divf %113, %114 : vector<2x32xf32>
    %116 = vector.extract_strided_slice %14 {offsets = [2, 0], sizes = [2, 32], strides = [1, 1]} : vector<16x32xf32> to vector<2x32xf32>
    %117 = arith.addf %116, %106 : vector<2x32xf32>
    %118 = arith.negf %117 : vector<2x32xf32>
    %119 = math.exp %118 : vector<2x32xf32>
    %cst_78 = arith.constant 1.000000e+00 : f32
    %120 = vector.broadcast %cst_78 : f32 to vector<2x32xf32>
    %121 = arith.addf %120, %119 : vector<2x32xf32>
    %122 = arith.divf %120, %121 : vector<2x32xf32>
    %123 = vector.extract_strided_slice %21 {offsets = [2, 0], sizes = [2, 32], strides = [1, 1]} : vector<16x32xf32> to vector<2x32xf32>
    %124 = arith.mulf %115, %108 : vector<2x32xf32>
    %125 = arith.addf %123, %124 : vector<2x32xf32>
    %126 = math.tanh %125 : vector<2x32xf32>
    %cst_79 = arith.constant 1.000000e+00 : f32
    %127 = vector.broadcast %cst_79 : f32 to vector<2x32xf32>
    %128 = arith.subf %127, %122 : vector<2x32xf32>
    %129 = arith.mulf %128, %126 : vector<2x32xf32>
    %130 = arith.mulf %122, %87 : vector<2x32xf32>
    %131 = arith.addf %129, %130 : vector<2x32xf32>
    %cst_80 = arith.constant dense<0.000000e+00> : vector<2x32xf32>
    %132 = tpu.matmul %131, %41, %cst_80 {dimension_numbers = #tpu.dot_dimension_numbers<[1], [0], [0], [1], [0, 0, 1, 1], [], []>} : vector<2x32xf32>, vector<32x32xf32>, vector<2x32xf32> -> vector<2x32xf32>
    %133 = arith.addf %132, %49 : vector<2x32xf32>
    %c1_81 = arith.constant 1 : index
    %c0_82 = arith.constant 0 : index
    %c0_83 = arith.constant 0 : index
    %134 = vector.load %arg13[%c1_81, %c0_82, %c0_83] : memref<8x2x32xf32, #tpu.memory_space<vmem>>, vector<1x2x32xf32>
    %135 = vector.shape_cast %134 : vector<1x2x32xf32> to vector<2x32xf32>
    %136 = vector.shape_cast %133 : vector<2x32xf32> to vector<1x2x32xf32>
    tpu.vector_store %arg13[%c1_81, %c0_82, %c0_83], %136 {strides = array<i32>} : memref<8x2x32xf32, #tpu.memory_space<vmem>>, vector<1x2x32xf32>,
    %cst_84 = arith.constant dense<0.000000e+00> : vector<2x32xf32>
    %137 = tpu.matmul %131, %43, %cst_84 {dimension_numbers = #tpu.dot_dimension_numbers<[1], [0], [0], [1], [0, 0, 1, 1], [], []>} : vector<2x32xf32>, vector<32x32xf32>, vector<2x32xf32> -> vector<2x32xf32>
    %138 = arith.addf %137, %53 : vector<2x32xf32>
    %c1_85 = arith.constant 1 : index
    %c0_86 = arith.constant 0 : index
    %c0_87 = arith.constant 0 : index
    %139 = vector.load %arg14[%c1_85, %c0_86, %c0_87] : memref<8x2x32xf32, #tpu.memory_space<vmem>>, vector<1x2x32xf32>
    %140 = vector.shape_cast %139 : vector<1x2x32xf32> to vector<2x32xf32>
    %141 = vector.shape_cast %138 : vector<2x32xf32> to vector<1x2x32xf32>
    tpu.vector_store %arg14[%c1_85, %c0_86, %c0_87], %141 {strides = array<i32>} : memref<8x2x32xf32, #tpu.memory_space<vmem>>, vector<1x2x32xf32>,
    %cst_88 = arith.constant dense<0.000000e+00> : vector<2x32xf32>
    %142 = tpu.matmul %131, %45, %cst_88 {dimension_numbers = #tpu.dot_dimension_numbers<[1], [0], [0], [1], [0, 0, 1, 1], [], []>} : vector<2x32xf32>, vector<32x32xf32>, vector<2x32xf32> -> vector<2x32xf32>
    %143 = arith.addf %142, %57 : vector<2x32xf32>
    %c1_89 = arith.constant 1 : index
    %c0_90 = arith.constant 0 : index
    %c0_91 = arith.constant 0 : index
    %144 = vector.load %arg15[%c1_89, %c0_90, %c0_91] : memref<8x2x32xf32, #tpu.memory_space<vmem>>, vector<1x2x32xf32>
    %145 = vector.shape_cast %144 : vector<1x2x32xf32> to vector<2x32xf32>
    %146 = vector.shape_cast %143 : vector<2x32xf32> to vector<1x2x32xf32>
    tpu.vector_store %arg15[%c1_89, %c0_90, %c0_91], %146 {strides = array<i32>} : memref<8x2x32xf32, #tpu.memory_space<vmem>>, vector<1x2x32xf32>,
    %cst_92 = arith.constant dense<0.000000e+00> : vector<2x32xf32>
    %147 = tpu.matmul %131, %23, %cst_92 {dimension_numbers = #tpu.dot_dimension_numbers<[1], [0], [0], [1], [0, 0, 1, 1], [], []>} : vector<2x32xf32>, vector<32x32xf32>, vector<2x32xf32> -> vector<2x32xf32>
    %148 = arith.addf %147, %31 : vector<2x32xf32>
    %cst_93 = arith.constant dense<0.000000e+00> : vector<2x32xf32>
    %149 = tpu.matmul %131, %25, %cst_93 {dimension_numbers = #tpu.dot_dimension_numbers<[1], [0], [0], [1], [0, 0, 1, 1], [], []>} : vector<2x32xf32>, vector<32x32xf32>, vector<2x32xf32> -> vector<2x32xf32>
    %150 = arith.addf %149, %35 : vector<2x32xf32>
    %cst_94 = arith.constant dense<0.000000e+00> : vector<2x32xf32>
    %151 = tpu.matmul %131, %27, %cst_94 {dimension_numbers = #tpu.dot_dimension_numbers<[1], [0], [0], [1], [0, 0, 1, 1], [], []>} : vector<2x32xf32>, vector<32x32xf32>, vector<2x32xf32> -> vector<2x32xf32>
    %152 = arith.addf %151, %39 : vector<2x32xf32>
    %153 = vector.extract_strided_slice %7 {offsets = [4, 0], sizes = [2, 32], strides = [1, 1]} : vector<16x32xf32> to vector<2x32xf32>
    %154 = arith.addf %153, %148 : vector<2x32xf32>
    %155 = arith.negf %154 : vector<2x32xf32>
    %156 = math.exp %155 : vector<2x32xf32>
    %cst_95 = arith.constant 1.000000e+00 : f32
    %157 = vector.broadcast %cst_95 : f32 to vector<2x32xf32>
    %158 = arith.addf %157, %156 : vector<2x32xf32>
    %159 = arith.divf %157, %158 : vector<2x32xf32>
    %160 = vector.extract_strided_slice %14 {offsets = [4, 0], sizes = [2, 32], strides = [1, 1]} : vector<16x32xf32> to vector<2x32xf32>
    %161 = arith.addf %160, %150 : vector<2x32xf32>
    %162 = arith.negf %161 : vector<2x32xf32>
    %163 = math.exp %162 : vector<2x32xf32>
    %cst_96 = arith.constant 1.000000e+00 : f32
    %164 = vector.broadcast %cst_96 : f32 to vector<2x32xf32>
    %165 = arith.addf %164, %163 : vector<2x32xf32>
    %166 = arith.divf %164, %165 : vector<2x32xf32>
    %167 = vector.extract_strided_slice %21 {offsets = [4, 0], sizes = [2, 32], strides = [1, 1]} : vector<16x32xf32> to vector<2x32xf32>
    %168 = arith.mulf %159, %152 : vector<2x32xf32>
    %169 = arith.addf %167, %168 : vector<2x32xf32>
    %170 = math.tanh %169 : vector<2x32xf32>
    %cst_97 = arith.constant 1.000000e+00 : f32
    %171 = vector.broadcast %cst_97 : f32 to vector<2x32xf32>
    %172 = arith.subf %171, %166 : vector<2x32xf32>
    %173 = arith.mulf %172, %170 : vector<2x32xf32>
    %174 = arith.mulf %166, %131 : vector<2x32xf32>
    %175 = arith.addf %173, %174 : vector<2x32xf32>
    %cst_98 = arith.constant dense<0.000000e+00> : vector<2x32xf32>
    %176 = tpu.matmul %175, %41, %cst_98 {dimension_numbers = #tpu.dot_dimension_numbers<[1], [0], [0], [1], [0, 0, 1, 1], [], []>} : vector<2x32xf32>, vector<32x32xf32>, vector<2x32xf32> -> vector<2x32xf32>
    %177 = arith.addf %176, %49 : vector<2x32xf32>
    %c2_99 = arith.constant 2 : index
    %c0_100 = arith.constant 0 : index
    %c0_101 = arith.constant 0 : index
    %178 = vector.load %arg13[%c2_99, %c0_100, %c0_101] : memref<8x2x32xf32, #tpu.memory_space<vmem>>, vector<1x2x32xf32>
    %179 = vector.shape_cast %178 : vector<1x2x32xf32> to vector<2x32xf32>
    %180 = vector.shape_cast %177 : vector<2x32xf32> to vector<1x2x32xf32>
    tpu.vector_store %arg13[%c2_99, %c0_100, %c0_101], %180 {strides = array<i32>} : memref<8x2x32xf32, #tpu.memory_space<vmem>>, vector<1x2x32xf32>,
    %cst_102 = arith.constant dense<0.000000e+00> : vector<2x32xf32>
    %181 = tpu.matmul %175, %43, %cst_102 {dimension_numbers = #tpu.dot_dimension_numbers<[1], [0], [0], [1], [0, 0, 1, 1], [], []>} : vector<2x32xf32>, vector<32x32xf32>, vector<2x32xf32> -> vector<2x32xf32>
    %182 = arith.addf %181, %53 : vector<2x32xf32>
    %c2_103 = arith.constant 2 : index
    %c0_104 = arith.constant 0 : index
    %c0_105 = arith.constant 0 : index
    %183 = vector.load %arg14[%c2_103, %c0_104, %c0_105] : memref<8x2x32xf32, #tpu.memory_space<vmem>>, vector<1x2x32xf32>
    %184 = vector.shape_cast %183 : vector<1x2x32xf32> to vector<2x32xf32>
    %185 = vector.shape_cast %182 : vector<2x32xf32> to vector<1x2x32xf32>
    tpu.vector_store %arg14[%c2_103, %c0_104, %c0_105], %185 {strides = array<i32>} : memref<8x2x32xf32, #tpu.memory_space<vmem>>, vector<1x2x32xf32>,
    %cst_106 = arith.constant dense<0.000000e+00> : vector<2x32xf32>
    %186 = tpu.matmul %175, %45, %cst_106 {dimension_numbers = #tpu.dot_dimension_numbers<[1], [0], [0], [1], [0, 0, 1, 1], [], []>} : vector<2x32xf32>, vector<32x32xf32>, vector<2x32xf32> -> vector<2x32xf32>
    %187 = arith.addf %186, %57 : vector<2x32xf32>
    %c2_107 = arith.constant 2 : index
    %c0_108 = arith.constant 0 : index
    %c0_109 = arith.constant 0 : index
    %188 = vector.load %arg15[%c2_107, %c0_108, %c0_109] : memref<8x2x32xf32, #tpu.memory_space<vmem>>, vector<1x2x32xf32>
    %189 = vector.shape_cast %188 : vector<1x2x32xf32> to vector<2x32xf32>
    %190 = vector.shape_cast %187 : vector<2x32xf32> to vector<1x2x32xf32>
    tpu.vector_store %arg15[%c2_107, %c0_108, %c0_109], %190 {strides = array<i32>} : memref<8x2x32xf32, #tpu.memory_space<vmem>>, vector<1x2x32xf32>,
    %cst_110 = arith.constant dense<0.000000e+00> : vector<2x32xf32>
    %191 = tpu.matmul %175, %23, %cst_110 {dimension_numbers = #tpu.dot_dimension_numbers<[1], [0], [0], [1], [0, 0, 1, 1], [], []>} : vector<2x32xf32>, vector<32x32xf32>, vector<2x32xf32> -> vector<2x32xf32>
    %192 = arith.addf %191, %31 : vector<2x32xf32>
    %cst_111 = arith.constant dense<0.000000e+00> : vector<2x32xf32>
    %193 = tpu.matmul %175, %25, %cst_111 {dimension_numbers = #tpu.dot_dimension_numbers<[1], [0], [0], [1], [0, 0, 1, 1], [], []>} : vector<2x32xf32>, vector<32x32xf32>, vector<2x32xf32> -> vector<2x32xf32>
    %194 = arith.addf %193, %35 : vector<2x32xf32>
    %cst_112 = arith.constant dense<0.000000e+00> : vector<2x32xf32>
    %195 = tpu.matmul %175, %27, %cst_112 {dimension_numbers = #tpu.dot_dimension_numbers<[1], [0], [0], [1], [0, 0, 1, 1], [], []>} : vector<2x32xf32>, vector<32x32xf32>, vector<2x32xf32> -> vector<2x32xf32>
    %196 = arith.addf %195, %39 : vector<2x32xf32>
    %197 = vector.extract_strided_slice %7 {offsets = [6, 0], sizes = [2, 32], strides = [1, 1]} : vector<16x32xf32> to vector<2x32xf32>
    %198 = arith.addf %197, %192 : vector<2x32xf32>
    %199 = arith.negf %198 : vector<2x32xf32>
    %200 = math.exp %199 : vector<2x32xf32>
    %cst_113 = arith.constant 1.000000e+00 : f32
    %201 = vector.broadcast %cst_113 : f32 to vector<2x32xf32>
    %202 = arith.addf %201, %200 : vector<2x32xf32>
    %203 = arith.divf %201, %202 : vector<2x32xf32>
    %204 = vector.extract_strided_slice %14 {offsets = [6, 0], sizes = [2, 32], strides = [1, 1]} : vector<16x32xf32> to vector<2x32xf32>
    %205 = arith.addf %204, %194 : vector<2x32xf32>
    %206 = arith.negf %205 : vector<2x32xf32>
    %207 = math.exp %206 : vector<2x32xf32>
    %cst_114 = arith.constant 1.000000e+00 : f32
    %208 = vector.broadcast %cst_114 : f32 to vector<2x32xf32>
    %209 = arith.addf %208, %207 : vector<2x32xf32>
    %210 = arith.divf %208, %209 : vector<2x32xf32>
    %211 = vector.extract_strided_slice %21 {offsets = [6, 0], sizes = [2, 32], strides = [1, 1]} : vector<16x32xf32> to vector<2x32xf32>
    %212 = arith.mulf %203, %196 : vector<2x32xf32>
    %213 = arith.addf %211, %212 : vector<2x32xf32>
    %214 = math.tanh %213 : vector<2x32xf32>
    %cst_115 = arith.constant 1.000000e+00 : f32
    %215 = vector.broadcast %cst_115 : f32 to vector<2x32xf32>
    %216 = arith.subf %215, %210 : vector<2x32xf32>
    %217 = arith.mulf %216, %214 : vector<2x32xf32>
    %218 = arith.mulf %210, %175 : vector<2x32xf32>
    %219 = arith.addf %217, %218 : vector<2x32xf32>
    %cst_116 = arith.constant dense<0.000000e+00> : vector<2x32xf32>
    %220 = tpu.matmul %219, %41, %cst_116 {dimension_numbers = #tpu.dot_dimension_numbers<[1], [0], [0], [1], [0, 0, 1, 1], [], []>} : vector<2x32xf32>, vector<32x32xf32>, vector<2x32xf32> -> vector<2x32xf32>
    %221 = arith.addf %220, %49 : vector<2x32xf32>
    %c3 = arith.constant 3 : index
    %c0_117 = arith.constant 0 : index
    %c0_118 = arith.constant 0 : index
    %222 = vector.load %arg13[%c3, %c0_117, %c0_118] : memref<8x2x32xf32, #tpu.memory_space<vmem>>, vector<1x2x32xf32>
    %223 = vector.shape_cast %222 : vector<1x2x32xf32> to vector<2x32xf32>
    %224 = vector.shape_cast %221 : vector<2x32xf32> to vector<1x2x32xf32>
    tpu.vector_store %arg13[%c3, %c0_117, %c0_118], %224 {strides = array<i32>} : memref<8x2x32xf32, #tpu.memory_space<vmem>>, vector<1x2x32xf32>,
    %cst_119 = arith.constant dense<0.000000e+00> : vector<2x32xf32>
    %225 = tpu.matmul %219, %43, %cst_119 {dimension_numbers = #tpu.dot_dimension_numbers<[1], [0], [0], [1], [0, 0, 1, 1], [], []>} : vector<2x32xf32>, vector<32x32xf32>, vector<2x32xf32> -> vector<2x32xf32>
    %226 = arith.addf %225, %53 : vector<2x32xf32>
    %c3_120 = arith.constant 3 : index
    %c0_121 = arith.constant 0 : index
    %c0_122 = arith.constant 0 : index
    %227 = vector.load %arg14[%c3_120, %c0_121, %c0_122] : memref<8x2x32xf32, #tpu.memory_space<vmem>>, vector<1x2x32xf32>
    %228 = vector.shape_cast %227 : vector<1x2x32xf32> to vector<2x32xf32>
    %229 = vector.shape_cast %226 : vector<2x32xf32> to vector<1x2x32xf32>
    tpu.vector_store %arg14[%c3_120, %c0_121, %c0_122], %229 {strides = array<i32>} : memref<8x2x32xf32, #tpu.memory_space<vmem>>, vector<1x2x32xf32>,
    %cst_123 = arith.constant dense<0.000000e+00> : vector<2x32xf32>
    %230 = tpu.matmul %219, %45, %cst_123 {dimension_numbers = #tpu.dot_dimension_numbers<[1], [0], [0], [1], [0, 0, 1, 1], [], []>} : vector<2x32xf32>, vector<32x32xf32>, vector<2x32xf32> -> vector<2x32xf32>
    %231 = arith.addf %230, %57 : vector<2x32xf32>
    %c3_124 = arith.constant 3 : index
    %c0_125 = arith.constant 0 : index
    %c0_126 = arith.constant 0 : index
    %232 = vector.load %arg15[%c3_124, %c0_125, %c0_126] : memref<8x2x32xf32, #tpu.memory_space<vmem>>, vector<1x2x32xf32>
    %233 = vector.shape_cast %232 : vector<1x2x32xf32> to vector<2x32xf32>
    %234 = vector.shape_cast %231 : vector<2x32xf32> to vector<1x2x32xf32>
    tpu.vector_store %arg15[%c3_124, %c0_125, %c0_126], %234 {strides = array<i32>} : memref<8x2x32xf32, #tpu.memory_space<vmem>>, vector<1x2x32xf32>,
    %cst_127 = arith.constant dense<0.000000e+00> : vector<2x32xf32>
    %235 = tpu.matmul %219, %23, %cst_127 {dimension_numbers = #tpu.dot_dimension_numbers<[1], [0], [0], [1], [0, 0, 1, 1], [], []>} : vector<2x32xf32>, vector<32x32xf32>, vector<2x32xf32> -> vector<2x32xf32>
    %236 = arith.addf %235, %31 : vector<2x32xf32>
    %cst_128 = arith.constant dense<0.000000e+00> : vector<2x32xf32>
    %237 = tpu.matmul %219, %25, %cst_128 {dimension_numbers = #tpu.dot_dimension_numbers<[1], [0], [0], [1], [0, 0, 1, 1], [], []>} : vector<2x32xf32>, vector<32x32xf32>, vector<2x32xf32> -> vector<2x32xf32>
    %238 = arith.addf %237, %35 : vector<2x32xf32>
    %cst_129 = arith.constant dense<0.000000e+00> : vector<2x32xf32>
    %239 = tpu.matmul %219, %27, %cst_129 {dimension_numbers = #tpu.dot_dimension_numbers<[1], [0], [0], [1], [0, 0, 1, 1], [], []>} : vector<2x32xf32>, vector<32x32xf32>, vector<2x32xf32> -> vector<2x32xf32>
    %240 = arith.addf %239, %39 : vector<2x32xf32>
    %241 = vector.extract_strided_slice %7 {offsets = [8, 0], sizes = [2, 32], strides = [1, 1]} : vector<16x32xf32> to vector<2x32xf32>
    %242 = arith.addf %241, %236 : vector<2x32xf32>
    %243 = arith.negf %242 : vector<2x32xf32>
    %244 = math.exp %243 : vector<2x32xf32>
    %cst_130 = arith.constant 1.000000e+00 : f32
    %245 = vector.broadcast %cst_130 : f32 to vector<2x32xf32>
    %246 = arith.addf %245, %244 : vector<2x32xf32>
    %247 = arith.divf %245, %246 : vector<2x32xf32>
    %248 = vector.extract_strided_slice %14 {offsets = [8, 0], sizes = [2, 32], strides = [1, 1]} : vector<16x32xf32> to vector<2x32xf32>
    %249 = arith.addf %248, %238 : vector<2x32xf32>
    %250 = arith.negf %249 : vector<2x32xf32>
    %251 = math.exp %250 : vector<2x32xf32>
    %cst_131 = arith.constant 1.000000e+00 : f32
    %252 = vector.broadcast %cst_131 : f32 to vector<2x32xf32>
    %253 = arith.addf %252, %251 : vector<2x32xf32>
    %254 = arith.divf %252, %253 : vector<2x32xf32>
    %255 = vector.extract_strided_slice %21 {offsets = [8, 0], sizes = [2, 32], strides = [1, 1]} : vector<16x32xf32> to vector<2x32xf32>
    %256 = arith.mulf %247, %240 : vector<2x32xf32>
    %257 = arith.addf %255, %256 : vector<2x32xf32>
    %258 = math.tanh %257 : vector<2x32xf32>
    %cst_132 = arith.constant 1.000000e+00 : f32
    %259 = vector.broadcast %cst_132 : f32 to vector<2x32xf32>
    %260 = arith.subf %259, %254 : vector<2x32xf32>
    %261 = arith.mulf %260, %258 : vector<2x32xf32>
    %262 = arith.mulf %254, %219 : vector<2x32xf32>
    %263 = arith.addf %261, %262 : vector<2x32xf32>
    %cst_133 = arith.constant dense<0.000000e+00> : vector<2x32xf32>
    %264 = tpu.matmul %263, %41, %cst_133 {dimension_numbers = #tpu.dot_dimension_numbers<[1], [0], [0], [1], [0, 0, 1, 1], [], []>} : vector<2x32xf32>, vector<32x32xf32>, vector<2x32xf32> -> vector<2x32xf32>
    %265 = arith.addf %264, %49 : vector<2x32xf32>
    %c4 = arith.constant 4 : index
    %c0_134 = arith.constant 0 : index
    %c0_135 = arith.constant 0 : index
    %266 = vector.load %arg13[%c4, %c0_134, %c0_135] : memref<8x2x32xf32, #tpu.memory_space<vmem>>, vector<1x2x32xf32>
    %267 = vector.shape_cast %266 : vector<1x2x32xf32> to vector<2x32xf32>
    %268 = vector.shape_cast %265 : vector<2x32xf32> to vector<1x2x32xf32>
    tpu.vector_store %arg13[%c4, %c0_134, %c0_135], %268 {strides = array<i32>} : memref<8x2x32xf32, #tpu.memory_space<vmem>>, vector<1x2x32xf32>,
    %cst_136 = arith.constant dense<0.000000e+00> : vector<2x32xf32>
    %269 = tpu.matmul %263, %43, %cst_136 {dimension_numbers = #tpu.dot_dimension_numbers<[1], [0], [0], [1], [0, 0, 1, 1], [], []>} : vector<2x32xf32>, vector<32x32xf32>, vector<2x32xf32> -> vector<2x32xf32>
    %270 = arith.addf %269, %53 : vector<2x32xf32>
    %c4_137 = arith.constant 4 : index
    %c0_138 = arith.constant 0 : index
    %c0_139 = arith.constant 0 : index
    %271 = vector.load %arg14[%c4_137, %c0_138, %c0_139] : memref<8x2x32xf32, #tpu.memory_space<vmem>>, vector<1x2x32xf32>
    %272 = vector.shape_cast %271 : vector<1x2x32xf32> to vector<2x32xf32>
    %273 = vector.shape_cast %270 : vector<2x32xf32> to vector<1x2x32xf32>
    tpu.vector_store %arg14[%c4_137, %c0_138, %c0_139], %273 {strides = array<i32>} : memref<8x2x32xf32, #tpu.memory_space<vmem>>, vector<1x2x32xf32>,
    %cst_140 = arith.constant dense<0.000000e+00> : vector<2x32xf32>
    %274 = tpu.matmul %263, %45, %cst_140 {dimension_numbers = #tpu.dot_dimension_numbers<[1], [0], [0], [1], [0, 0, 1, 1], [], []>} : vector<2x32xf32>, vector<32x32xf32>, vector<2x32xf32> -> vector<2x32xf32>
    %275 = arith.addf %274, %57 : vector<2x32xf32>
    %c4_141 = arith.constant 4 : index
    %c0_142 = arith.constant 0 : index
    %c0_143 = arith.constant 0 : index
    %276 = vector.load %arg15[%c4_141, %c0_142, %c0_143] : memref<8x2x32xf32, #tpu.memory_space<vmem>>, vector<1x2x32xf32>
    %277 = vector.shape_cast %276 : vector<1x2x32xf32> to vector<2x32xf32>
    %278 = vector.shape_cast %275 : vector<2x32xf32> to vector<1x2x32xf32>
    tpu.vector_store %arg15[%c4_141, %c0_142, %c0_143], %278 {strides = array<i32>} : memref<8x2x32xf32, #tpu.memory_space<vmem>>, vector<1x2x32xf32>,
    %cst_144 = arith.constant dense<0.000000e+00> : vector<2x32xf32>
    %279 = tpu.matmul %263, %23, %cst_144 {dimension_numbers = #tpu.dot_dimension_numbers<[1], [0], [0], [1], [0, 0, 1, 1], [], []>} : vector<2x32xf32>, vector<32x32xf32>, vector<2x32xf32> -> vector<2x32xf32>
    %280 = arith.addf %279, %31 : vector<2x32xf32>
    %cst_145 = arith.constant dense<0.000000e+00> : vector<2x32xf32>
    %281 = tpu.matmul %263, %25, %cst_145 {dimension_numbers = #tpu.dot_dimension_numbers<[1], [0], [0], [1], [0, 0, 1, 1], [], []>} : vector<2x32xf32>, vector<32x32xf32>, vector<2x32xf32> -> vector<2x32xf32>
    %282 = arith.addf %281, %35 : vector<2x32xf32>
    %cst_146 = arith.constant dense<0.000000e+00> : vector<2x32xf32>
    %283 = tpu.matmul %263, %27, %cst_146 {dimension_numbers = #tpu.dot_dimension_numbers<[1], [0], [0], [1], [0, 0, 1, 1], [], []>} : vector<2x32xf32>, vector<32x32xf32>, vector<2x32xf32> -> vector<2x32xf32>
    %284 = arith.addf %283, %39 : vector<2x32xf32>
    %285 = vector.extract_strided_slice %7 {offsets = [10, 0], sizes = [2, 32], strides = [1, 1]} : vector<16x32xf32> to vector<2x32xf32>
    %286 = arith.addf %285, %280 : vector<2x32xf32>
    %287 = arith.negf %286 : vector<2x32xf32>
    %288 = math.exp %287 : vector<2x32xf32>
    %cst_147 = arith.constant 1.000000e+00 : f32
    %289 = vector.broadcast %cst_147 : f32 to vector<2x32xf32>
    %290 = arith.addf %289, %288 : vector<2x32xf32>
    %291 = arith.divf %289, %290 : vector<2x32xf32>
    %292 = vector.extract_strided_slice %14 {offsets = [10, 0], sizes = [2, 32], strides = [1, 1]} : vector<16x32xf32> to vector<2x32xf32>
    %293 = arith.addf %292, %282 : vector<2x32xf32>
    %294 = arith.negf %293 : vector<2x32xf32>
    %295 = math.exp %294 : vector<2x32xf32>
    %cst_148 = arith.constant 1.000000e+00 : f32
    %296 = vector.broadcast %cst_148 : f32 to vector<2x32xf32>
    %297 = arith.addf %296, %295 : vector<2x32xf32>
    %298 = arith.divf %296, %297 : vector<2x32xf32>
    %299 = vector.extract_strided_slice %21 {offsets = [10, 0], sizes = [2, 32], strides = [1, 1]} : vector<16x32xf32> to vector<2x32xf32>
    %300 = arith.mulf %291, %284 : vector<2x32xf32>
    %301 = arith.addf %299, %300 : vector<2x32xf32>
    %302 = math.tanh %301 : vector<2x32xf32>
    %cst_149 = arith.constant 1.000000e+00 : f32
    %303 = vector.broadcast %cst_149 : f32 to vector<2x32xf32>
    %304 = arith.subf %303, %298 : vector<2x32xf32>
    %305 = arith.mulf %304, %302 : vector<2x32xf32>
    %306 = arith.mulf %298, %263 : vector<2x32xf32>
    %307 = arith.addf %305, %306 : vector<2x32xf32>
    %cst_150 = arith.constant dense<0.000000e+00> : vector<2x32xf32>
    %308 = tpu.matmul %307, %41, %cst_150 {dimension_numbers = #tpu.dot_dimension_numbers<[1], [0], [0], [1], [0, 0, 1, 1], [], []>} : vector<2x32xf32>, vector<32x32xf32>, vector<2x32xf32> -> vector<2x32xf32>
    %309 = arith.addf %308, %49 : vector<2x32xf32>
    %c5 = arith.constant 5 : index
    %c0_151 = arith.constant 0 : index
    %c0_152 = arith.constant 0 : index
    %310 = vector.load %arg13[%c5, %c0_151, %c0_152] : memref<8x2x32xf32, #tpu.memory_space<vmem>>, vector<1x2x32xf32>
    %311 = vector.shape_cast %310 : vector<1x2x32xf32> to vector<2x32xf32>
    %312 = vector.shape_cast %309 : vector<2x32xf32> to vector<1x2x32xf32>
    tpu.vector_store %arg13[%c5, %c0_151, %c0_152], %312 {strides = array<i32>} : memref<8x2x32xf32, #tpu.memory_space<vmem>>, vector<1x2x32xf32>,
    %cst_153 = arith.constant dense<0.000000e+00> : vector<2x32xf32>
    %313 = tpu.matmul %307, %43, %cst_153 {dimension_numbers = #tpu.dot_dimension_numbers<[1], [0], [0], [1], [0, 0, 1, 1], [], []>} : vector<2x32xf32>, vector<32x32xf32>, vector<2x32xf32> -> vector<2x32xf32>
    %314 = arith.addf %313, %53 : vector<2x32xf32>
    %c5_154 = arith.constant 5 : index
    %c0_155 = arith.constant 0 : index
    %c0_156 = arith.constant 0 : index
    %315 = vector.load %arg14[%c5_154, %c0_155, %c0_156] : memref<8x2x32xf32, #tpu.memory_space<vmem>>, vector<1x2x32xf32>
    %316 = vector.shape_cast %315 : vector<1x2x32xf32> to vector<2x32xf32>
    %317 = vector.shape_cast %314 : vector<2x32xf32> to vector<1x2x32xf32>
    tpu.vector_store %arg14[%c5_154, %c0_155, %c0_156], %317 {strides = array<i32>} : memref<8x2x32xf32, #tpu.memory_space<vmem>>, vector<1x2x32xf32>,
    %cst_157 = arith.constant dense<0.000000e+00> : vector<2x32xf32>
    %318 = tpu.matmul %307, %45, %cst_157 {dimension_numbers = #tpu.dot_dimension_numbers<[1], [0], [0], [1], [0, 0, 1, 1], [], []>} : vector<2x32xf32>, vector<32x32xf32>, vector<2x32xf32> -> vector<2x32xf32>
    %319 = arith.addf %318, %57 : vector<2x32xf32>
    %c5_158 = arith.constant 5 : index
    %c0_159 = arith.constant 0 : index
    %c0_160 = arith.constant 0 : index
    %320 = vector.load %arg15[%c5_158, %c0_159, %c0_160] : memref<8x2x32xf32, #tpu.memory_space<vmem>>, vector<1x2x32xf32>
    %321 = vector.shape_cast %320 : vector<1x2x32xf32> to vector<2x32xf32>
    %322 = vector.shape_cast %319 : vector<2x32xf32> to vector<1x2x32xf32>
    tpu.vector_store %arg15[%c5_158, %c0_159, %c0_160], %322 {strides = array<i32>} : memref<8x2x32xf32, #tpu.memory_space<vmem>>, vector<1x2x32xf32>,
    %cst_161 = arith.constant dense<0.000000e+00> : vector<2x32xf32>
    %323 = tpu.matmul %307, %23, %cst_161 {dimension_numbers = #tpu.dot_dimension_numbers<[1], [0], [0], [1], [0, 0, 1, 1], [], []>} : vector<2x32xf32>, vector<32x32xf32>, vector<2x32xf32> -> vector<2x32xf32>
    %324 = arith.addf %323, %31 : vector<2x32xf32>
    %cst_162 = arith.constant dense<0.000000e+00> : vector<2x32xf32>
    %325 = tpu.matmul %307, %25, %cst_162 {dimension_numbers = #tpu.dot_dimension_numbers<[1], [0], [0], [1], [0, 0, 1, 1], [], []>} : vector<2x32xf32>, vector<32x32xf32>, vector<2x32xf32> -> vector<2x32xf32>
    %326 = arith.addf %325, %35 : vector<2x32xf32>
    %cst_163 = arith.constant dense<0.000000e+00> : vector<2x32xf32>
    %327 = tpu.matmul %307, %27, %cst_163 {dimension_numbers = #tpu.dot_dimension_numbers<[1], [0], [0], [1], [0, 0, 1, 1], [], []>} : vector<2x32xf32>, vector<32x32xf32>, vector<2x32xf32> -> vector<2x32xf32>
    %328 = arith.addf %327, %39 : vector<2x32xf32>
    %329 = vector.extract_strided_slice %7 {offsets = [12, 0], sizes = [2, 32], strides = [1, 1]} : vector<16x32xf32> to vector<2x32xf32>
    %330 = arith.addf %329, %324 : vector<2x32xf32>
    %331 = arith.negf %330 : vector<2x32xf32>
    %332 = math.exp %331 : vector<2x32xf32>
    %cst_164 = arith.constant 1.000000e+00 : f32
    %333 = vector.broadcast %cst_164 : f32 to vector<2x32xf32>
    %334 = arith.addf %333, %332 : vector<2x32xf32>
    %335 = arith.divf %333, %334 : vector<2x32xf32>
    %336 = vector.extract_strided_slice %14 {offsets = [12, 0], sizes = [2, 32], strides = [1, 1]} : vector<16x32xf32> to vector<2x32xf32>
    %337 = arith.addf %336, %326 : vector<2x32xf32>
    %338 = arith.negf %337 : vector<2x32xf32>
    %339 = math.exp %338 : vector<2x32xf32>
    %cst_165 = arith.constant 1.000000e+00 : f32
    %340 = vector.broadcast %cst_165 : f32 to vector<2x32xf32>
    %341 = arith.addf %340, %339 : vector<2x32xf32>
    %342 = arith.divf %340, %341 : vector<2x32xf32>
    %343 = vector.extract_strided_slice %21 {offsets = [12, 0], sizes = [2, 32], strides = [1, 1]} : vector<16x32xf32> to vector<2x32xf32>
    %344 = arith.mulf %335, %328 : vector<2x32xf32>
    %345 = arith.addf %343, %344 : vector<2x32xf32>
    %346 = math.tanh %345 : vector<2x32xf32>
    %cst_166 = arith.constant 1.000000e+00 : f32
    %347 = vector.broadcast %cst_166 : f32 to vector<2x32xf32>
    %348 = arith.subf %347, %342 : vector<2x32xf32>
    %349 = arith.mulf %348, %346 : vector<2x32xf32>
    %350 = arith.mulf %342, %307 : vector<2x32xf32>
    %351 = arith.addf %349, %350 : vector<2x32xf32>
    %cst_167 = arith.constant dense<0.000000e+00> : vector<2x32xf32>
    %352 = tpu.matmul %351, %41, %cst_167 {dimension_numbers = #tpu.dot_dimension_numbers<[1], [0], [0], [1], [0, 0, 1, 1], [], []>} : vector<2x32xf32>, vector<32x32xf32>, vector<2x32xf32> -> vector<2x32xf32>
    %353 = arith.addf %352, %49 : vector<2x32xf32>
    %c6 = arith.constant 6 : index
    %c0_168 = arith.constant 0 : index
    %c0_169 = arith.constant 0 : index
    %354 = vector.load %arg13[%c6, %c0_168, %c0_169] : memref<8x2x32xf32, #tpu.memory_space<vmem>>, vector<1x2x32xf32>
    %355 = vector.shape_cast %354 : vector<1x2x32xf32> to vector<2x32xf32>
    %356 = vector.shape_cast %353 : vector<2x32xf32> to vector<1x2x32xf32>
    tpu.vector_store %arg13[%c6, %c0_168, %c0_169], %356 {strides = array<i32>} : memref<8x2x32xf32, #tpu.memory_space<vmem>>, vector<1x2x32xf32>,
    %cst_170 = arith.constant dense<0.000000e+00> : vector<2x32xf32>
    %357 = tpu.matmul %351, %43, %cst_170 {dimension_numbers = #tpu.dot_dimension_numbers<[1], [0], [0], [1], [0, 0, 1, 1], [], []>} : vector<2x32xf32>, vector<32x32xf32>, vector<2x32xf32> -> vector<2x32xf32>
    %358 = arith.addf %357, %53 : vector<2x32xf32>
    %c6_171 = arith.constant 6 : index
    %c0_172 = arith.constant 0 : index
    %c0_173 = arith.constant 0 : index
    %359 = vector.load %arg14[%c6_171, %c0_172, %c0_173] : memref<8x2x32xf32, #tpu.memory_space<vmem>>, vector<1x2x32xf32>
    %360 = vector.shape_cast %359 : vector<1x2x32xf32> to vector<2x32xf32>
    %361 = vector.shape_cast %358 : vector<2x32xf32> to vector<1x2x32xf32>
    tpu.vector_store %arg14[%c6_171, %c0_172, %c0_173], %361 {strides = array<i32>} : memref<8x2x32xf32, #tpu.memory_space<vmem>>, vector<1x2x32xf32>,
    %cst_174 = arith.constant dense<0.000000e+00> : vector<2x32xf32>
    %362 = tpu.matmul %351, %45, %cst_174 {dimension_numbers = #tpu.dot_dimension_numbers<[1], [0], [0], [1], [0, 0, 1, 1], [], []>} : vector<2x32xf32>, vector<32x32xf32>, vector<2x32xf32> -> vector<2x32xf32>
    %363 = arith.addf %362, %57 : vector<2x32xf32>
    %c6_175 = arith.constant 6 : index
    %c0_176 = arith.constant 0 : index
    %c0_177 = arith.constant 0 : index
    %364 = vector.load %arg15[%c6_175, %c0_176, %c0_177] : memref<8x2x32xf32, #tpu.memory_space<vmem>>, vector<1x2x32xf32>
    %365 = vector.shape_cast %364 : vector<1x2x32xf32> to vector<2x32xf32>
    %366 = vector.shape_cast %363 : vector<2x32xf32> to vector<1x2x32xf32>
    tpu.vector_store %arg15[%c6_175, %c0_176, %c0_177], %366 {strides = array<i32>} : memref<8x2x32xf32, #tpu.memory_space<vmem>>, vector<1x2x32xf32>,
    %cst_178 = arith.constant dense<0.000000e+00> : vector<2x32xf32>
    %367 = tpu.matmul %351, %23, %cst_178 {dimension_numbers = #tpu.dot_dimension_numbers<[1], [0], [0], [1], [0, 0, 1, 1], [], []>} : vector<2x32xf32>, vector<32x32xf32>, vector<2x32xf32> -> vector<2x32xf32>
    %368 = arith.addf %367, %31 : vector<2x32xf32>
    %cst_179 = arith.constant dense<0.000000e+00> : vector<2x32xf32>
    %369 = tpu.matmul %351, %25, %cst_179 {dimension_numbers = #tpu.dot_dimension_numbers<[1], [0], [0], [1], [0, 0, 1, 1], [], []>} : vector<2x32xf32>, vector<32x32xf32>, vector<2x32xf32> -> vector<2x32xf32>
    %370 = arith.addf %369, %35 : vector<2x32xf32>
    %cst_180 = arith.constant dense<0.000000e+00> : vector<2x32xf32>
    %371 = tpu.matmul %351, %27, %cst_180 {dimension_numbers = #tpu.dot_dimension_numbers<[1], [0], [0], [1], [0, 0, 1, 1], [], []>} : vector<2x32xf32>, vector<32x32xf32>, vector<2x32xf32> -> vector<2x32xf32>
    %372 = arith.addf %371, %39 : vector<2x32xf32>
    %373 = vector.extract_strided_slice %7 {offsets = [14, 0], sizes = [2, 32], strides = [1, 1]} : vector<16x32xf32> to vector<2x32xf32>
    %374 = arith.addf %373, %368 : vector<2x32xf32>
    %375 = arith.negf %374 : vector<2x32xf32>
    %376 = math.exp %375 : vector<2x32xf32>
    %cst_181 = arith.constant 1.000000e+00 : f32
    %377 = vector.broadcast %cst_181 : f32 to vector<2x32xf32>
    %378 = arith.addf %377, %376 : vector<2x32xf32>
    %379 = arith.divf %377, %378 : vector<2x32xf32>
    %380 = vector.extract_strided_slice %14 {offsets = [14, 0], sizes = [2, 32], strides = [1, 1]} : vector<16x32xf32> to vector<2x32xf32>
    %381 = arith.addf %380, %370 : vector<2x32xf32>
    %382 = arith.negf %381 : vector<2x32xf32>
    %383 = math.exp %382 : vector<2x32xf32>
    %cst_182 = arith.constant 1.000000e+00 : f32
    %384 = vector.broadcast %cst_182 : f32 to vector<2x32xf32>
    %385 = arith.addf %384, %383 : vector<2x32xf32>
    %386 = arith.divf %384, %385 : vector<2x32xf32>
    %387 = vector.extract_strided_slice %21 {offsets = [14, 0], sizes = [2, 32], strides = [1, 1]} : vector<16x32xf32> to vector<2x32xf32>
    %388 = arith.mulf %379, %372 : vector<2x32xf32>
    %389 = arith.addf %387, %388 : vector<2x32xf32>
    %390 = math.tanh %389 : vector<2x32xf32>
    %cst_183 = arith.constant 1.000000e+00 : f32
    %391 = vector.broadcast %cst_183 : f32 to vector<2x32xf32>
    %392 = arith.subf %391, %386 : vector<2x32xf32>
    %393 = arith.mulf %392, %390 : vector<2x32xf32>
    %394 = arith.mulf %386, %351 : vector<2x32xf32>
    %395 = arith.addf %393, %394 : vector<2x32xf32>
    %cst_184 = arith.constant dense<0.000000e+00> : vector<2x32xf32>
    %396 = tpu.matmul %395, %41, %cst_184 {dimension_numbers = #tpu.dot_dimension_numbers<[1], [0], [0], [1], [0, 0, 1, 1], [], []>} : vector<2x32xf32>, vector<32x32xf32>, vector<2x32xf32> -> vector<2x32xf32>
    %397 = arith.addf %396, %49 : vector<2x32xf32>
    %c7 = arith.constant 7 : index
    %c0_185 = arith.constant 0 : index
    %c0_186 = arith.constant 0 : index
    %398 = vector.load %arg13[%c7, %c0_185, %c0_186] : memref<8x2x32xf32, #tpu.memory_space<vmem>>, vector<1x2x32xf32>
    %399 = vector.shape_cast %398 : vector<1x2x32xf32> to vector<2x32xf32>
    %400 = vector.shape_cast %397 : vector<2x32xf32> to vector<1x2x32xf32>
    tpu.vector_store %arg13[%c7, %c0_185, %c0_186], %400 {strides = array<i32>} : memref<8x2x32xf32, #tpu.memory_space<vmem>>, vector<1x2x32xf32>,
    %cst_187 = arith.constant dense<0.000000e+00> : vector<2x32xf32>
    %401 = tpu.matmul %395, %43, %cst_187 {dimension_numbers = #tpu.dot_dimension_numbers<[1], [0], [0], [1], [0, 0, 1, 1], [], []>} : vector<2x32xf32>, vector<32x32xf32>, vector<2x32xf32> -> vector<2x32xf32>
    %402 = arith.addf %401, %53 : vector<2x32xf32>
    %c7_188 = arith.constant 7 : index
    %c0_189 = arith.constant 0 : index
    %c0_190 = arith.constant 0 : index
    %403 = vector.load %arg14[%c7_188, %c0_189, %c0_190] : memref<8x2x32xf32, #tpu.memory_space<vmem>>, vector<1x2x32xf32>
    %404 = vector.shape_cast %403 : vector<1x2x32xf32> to vector<2x32xf32>
    %405 = vector.shape_cast %402 : vector<2x32xf32> to vector<1x2x32xf32>
    tpu.vector_store %arg14[%c7_188, %c0_189, %c0_190], %405 {strides = array<i32>} : memref<8x2x32xf32, #tpu.memory_space<vmem>>, vector<1x2x32xf32>,
    %cst_191 = arith.constant dense<0.000000e+00> : vector<2x32xf32>
    %406 = tpu.matmul %395, %45, %cst_191 {dimension_numbers = #tpu.dot_dimension_numbers<[1], [0], [0], [1], [0, 0, 1, 1], [], []>} : vector<2x32xf32>, vector<32x32xf32>, vector<2x32xf32> -> vector<2x32xf32>
    %407 = arith.addf %406, %57 : vector<2x32xf32>
    %c7_192 = arith.constant 7 : index
    %c0_193 = arith.constant 0 : index
    %c0_194 = arith.constant 0 : index
    %408 = vector.load %arg15[%c7_192, %c0_193, %c0_194] : memref<8x2x32xf32, #tpu.memory_space<vmem>>, vector<1x2x32xf32>
    %409 = vector.shape_cast %408 : vector<1x2x32xf32> to vector<2x32xf32>
    %410 = vector.shape_cast %407 : vector<2x32xf32> to vector<1x2x32xf32>
    tpu.vector_store %arg15[%c7_192, %c0_193, %c0_194], %410 {strides = array<i32>} : memref<8x2x32xf32, #tpu.memory_space<vmem>>, vector<1x2x32xf32>,
    %c0_195 = arith.constant 0 : index
    %c0_196 = arith.constant 0 : index
    %c0_197 = arith.constant 0 : index
    %411 = vector.load %arg7[%c0_195, %c0_196, %c0_197] : memref<3x32x32xf32, #tpu.memory_space<vmem>>, vector<1x32x32xf32>
    %412 = vector.shape_cast %411 : vector<1x32x32xf32> to vector<32x32xf32>
    %c1_198 = arith.constant 1 : index
    %c0_199 = arith.constant 0 : index
    %c0_200 = arith.constant 0 : index
    %413 = vector.load %arg7[%c1_198, %c0_199, %c0_200] : memref<3x32x32xf32, #tpu.memory_space<vmem>>, vector<1x32x32xf32>
    %414 = vector.shape_cast %413 : vector<1x32x32xf32> to vector<32x32xf32>
    %c2_201 = arith.constant 2 : index
    %c0_202 = arith.constant 0 : index
    %c0_203 = arith.constant 0 : index
    %415 = vector.load %arg7[%c2_201, %c0_202, %c0_203] : memref<3x32x32xf32, #tpu.memory_space<vmem>>, vector<1x32x32xf32>
    %416 = vector.shape_cast %415 : vector<1x32x32xf32> to vector<32x32xf32>
    %c0_204 = arith.constant 0 : index
    %c0_205 = arith.constant 0 : index
    %c0_206 = arith.constant 0 : index
    %417 = vector.load %arg9[%c0_204, %c0_205, %c0_206] : memref<3x1x32xf32, #tpu.memory_space<vmem>>, vector<1x1x32xf32>
    %418 = vector.shape_cast %417 : vector<1x1x32xf32> to vector<1x32xf32>
    %419 = vector.shape_cast %418 : vector<1x32xf32> to vector<1x32xf32>
    %420 = vector.broadcast %419 : vector<1x32xf32> to vector<2x32xf32>
    %c1_207 = arith.constant 1 : index
    %c0_208 = arith.constant 0 : index
    %c0_209 = arith.constant 0 : index
    %421 = vector.load %arg9[%c1_207, %c0_208, %c0_209] : memref<3x1x32xf32, #tpu.memory_space<vmem>>, vector<1x1x32xf32>
    %422 = vector.shape_cast %421 : vector<1x1x32xf32> to vector<1x32xf32>
    %423 = vector.shape_cast %422 : vector<1x32xf32> to vector<1x32xf32>
    %424 = vector.broadcast %423 : vector<1x32xf32> to vector<2x32xf32>
    %c2_210 = arith.constant 2 : index
    %c0_211 = arith.constant 0 : index
    %c0_212 = arith.constant 0 : index
    %425 = vector.load %arg9[%c2_210, %c0_211, %c0_212] : memref<3x1x32xf32, #tpu.memory_space<vmem>>, vector<1x1x32xf32>
    %426 = vector.shape_cast %425 : vector<1x1x32xf32> to vector<1x32xf32>
    %427 = vector.shape_cast %426 : vector<1x32xf32> to vector<1x32xf32>
    %428 = vector.broadcast %427 : vector<1x32xf32> to vector<2x32xf32>
    %c0_213 = arith.constant 0 : index
    %c0_214 = arith.constant 0 : index
    %429 = vector.load %arg10[%c0_213, %c0_214] : memref<32x128xf32, #tpu.memory_space<vmem>>, vector<32x128xf32>
    %c0_215 = arith.constant 0 : index
    %c0_216 = arith.constant 0 : index
    %430 = vector.load %arg11[%c0_215, %c0_216] : memref<1x128xf32, #tpu.memory_space<vmem>>, vector<1x128xf32>
    %431 = vector.shape_cast %430 : vector<1x128xf32> to vector<1x128xf32>
    %432 = vector.broadcast %431 : vector<1x128xf32> to vector<2x128xf32>
    %cst_217 = arith.constant 0.000000e+00 : f32
    %433 = vector.broadcast %cst_217 : f32 to vector<2x32xf32>
    %cst_218 = arith.constant dense<0.000000e+00> : vector<2x32xf32>
    %434 = tpu.matmul %433, %412, %cst_218 {dimension_numbers = #tpu.dot_dimension_numbers<[1], [0], [0], [1], [0, 0, 1, 1], [], []>} : vector<2x32xf32>, vector<32x32xf32>, vector<2x32xf32> -> vector<2x32xf32>
    %435 = arith.addf %434, %420 : vector<2x32xf32>
    %cst_219 = arith.constant dense<0.000000e+00> : vector<2x32xf32>
    %436 = tpu.matmul %433, %414, %cst_219 {dimension_numbers = #tpu.dot_dimension_numbers<[1], [0], [0], [1], [0, 0, 1, 1], [], []>} : vector<2x32xf32>, vector<32x32xf32>, vector<2x32xf32> -> vector<2x32xf32>
    %437 = arith.addf %436, %424 : vector<2x32xf32>
    %cst_220 = arith.constant dense<0.000000e+00> : vector<2x32xf32>
    %438 = tpu.matmul %433, %416, %cst_220 {dimension_numbers = #tpu.dot_dimension_numbers<[1], [0], [0], [1], [0, 0, 1, 1], [], []>} : vector<2x32xf32>, vector<32x32xf32>, vector<2x32xf32> -> vector<2x32xf32>
    %439 = arith.addf %438, %428 : vector<2x32xf32>
    %c0_221 = arith.constant 0 : index
    %c0_222 = arith.constant 0 : index
    %c0_223 = arith.constant 0 : index
    %440 = vector.load %arg13[%c0_221, %c0_222, %c0_223] : memref<8x2x32xf32, #tpu.memory_space<vmem>>, vector<1x2x32xf32>
    %441 = vector.shape_cast %440 : vector<1x2x32xf32> to vector<2x32xf32>
    %442 = arith.addf %441, %435 : vector<2x32xf32>
    %443 = arith.negf %442 : vector<2x32xf32>
    %444 = math.exp %443 : vector<2x32xf32>
    %cst_224 = arith.constant 1.000000e+00 : f32
    %445 = vector.broadcast %cst_224 : f32 to vector<2x32xf32>
    %446 = arith.addf %445, %444 : vector<2x32xf32>
    %447 = arith.divf %445, %446 : vector<2x32xf32>
    %c0_225 = arith.constant 0 : index
    %c0_226 = arith.constant 0 : index
    %c0_227 = arith.constant 0 : index
    %448 = vector.load %arg14[%c0_225, %c0_226, %c0_227] : memref<8x2x32xf32, #tpu.memory_space<vmem>>, vector<1x2x32xf32>
    %449 = vector.shape_cast %448 : vector<1x2x32xf32> to vector<2x32xf32>
    %450 = arith.addf %449, %437 : vector<2x32xf32>
    %451 = arith.negf %450 : vector<2x32xf32>
    %452 = math.exp %451 : vector<2x32xf32>
    %cst_228 = arith.constant 1.000000e+00 : f32
    %453 = vector.broadcast %cst_228 : f32 to vector<2x32xf32>
    %454 = arith.addf %453, %452 : vector<2x32xf32>
    %455 = arith.divf %453, %454 : vector<2x32xf32>
    %c0_229 = arith.constant 0 : index
    %c0_230 = arith.constant 0 : index
    %c0_231 = arith.constant 0 : index
    %456 = vector.load %arg15[%c0_229, %c0_230, %c0_231] : memref<8x2x32xf32, #tpu.memory_space<vmem>>, vector<1x2x32xf32>
    %457 = vector.shape_cast %456 : vector<1x2x32xf32> to vector<2x32xf32>
    %458 = arith.mulf %447, %439 : vector<2x32xf32>
    %459 = arith.addf %457, %458 : vector<2x32xf32>
    %460 = math.tanh %459 : vector<2x32xf32>
    %cst_232 = arith.constant 1.000000e+00 : f32
    %461 = vector.broadcast %cst_232 : f32 to vector<2x32xf32>
    %462 = arith.subf %461, %455 : vector<2x32xf32>
    %463 = arith.mulf %462, %460 : vector<2x32xf32>
    %464 = arith.mulf %455, %433 : vector<2x32xf32>
    %465 = arith.addf %463, %464 : vector<2x32xf32>
    %cst_233 = arith.constant dense<0.000000e+00> : vector<2x128xf32>
    %466 = tpu.matmul %465, %429, %cst_233 {dimension_numbers = #tpu.dot_dimension_numbers<[1], [0], [0], [1], [0, 0, 1, 1], [], []>} : vector<2x32xf32>, vector<32x128xf32>, vector<2x128xf32> -> vector<2x128xf32>
    %467 = arith.addf %466, %432 : vector<2x128xf32>
    %c0_234 = arith.constant 0 : index
    %c0_235 = arith.constant 0 : index
    %c0_236 = arith.constant 0 : index
    %468 = vector.load %arg12[%c0_234, %c0_235, %c0_236] : memref<8x2x128xf32, #tpu.memory_space<vmem>>, vector<1x2x128xf32>
    %469 = vector.shape_cast %468 : vector<1x2x128xf32> to vector<2x128xf32>
    %470 = vector.shape_cast %467 : vector<2x128xf32> to vector<1x2x128xf32>
    tpu.vector_store %arg12[%c0_234, %c0_235, %c0_236], %470 {strides = array<i32>} : memref<8x2x128xf32, #tpu.memory_space<vmem>>, vector<1x2x128xf32>,
    %cst_237 = arith.constant dense<0.000000e+00> : vector<2x32xf32>
    %471 = tpu.matmul %465, %412, %cst_237 {dimension_numbers = #tpu.dot_dimension_numbers<[1], [0], [0], [1], [0, 0, 1, 1], [], []>} : vector<2x32xf32>, vector<32x32xf32>, vector<2x32xf32> -> vector<2x32xf32>
    %472 = arith.addf %471, %420 : vector<2x32xf32>
    %cst_238 = arith.constant dense<0.000000e+00> : vector<2x32xf32>
    %473 = tpu.matmul %465, %414, %cst_238 {dimension_numbers = #tpu.dot_dimension_numbers<[1], [0], [0], [1], [0, 0, 1, 1], [], []>} : vector<2x32xf32>, vector<32x32xf32>, vector<2x32xf32> -> vector<2x32xf32>
    %474 = arith.addf %473, %424 : vector<2x32xf32>
    %cst_239 = arith.constant dense<0.000000e+00> : vector<2x32xf32>
    %475 = tpu.matmul %465, %416, %cst_239 {dimension_numbers = #tpu.dot_dimension_numbers<[1], [0], [0], [1], [0, 0, 1, 1], [], []>} : vector<2x32xf32>, vector<32x32xf32>, vector<2x32xf32> -> vector<2x32xf32>
    %476 = arith.addf %475, %428 : vector<2x32xf32>
    %c1_240 = arith.constant 1 : index
    %c0_241 = arith.constant 0 : index
    %c0_242 = arith.constant 0 : index
    %477 = vector.load %arg13[%c1_240, %c0_241, %c0_242] : memref<8x2x32xf32, #tpu.memory_space<vmem>>, vector<1x2x32xf32>
    %478 = vector.shape_cast %477 : vector<1x2x32xf32> to vector<2x32xf32>
    %479 = arith.addf %478, %472 : vector<2x32xf32>
    %480 = arith.negf %479 : vector<2x32xf32>
    %481 = math.exp %480 : vector<2x32xf32>
    %cst_243 = arith.constant 1.000000e+00 : f32
    %482 = vector.broadcast %cst_243 : f32 to vector<2x32xf32>
    %483 = arith.addf %482, %481 : vector<2x32xf32>
    %484 = arith.divf %482, %483 : vector<2x32xf32>
    %c1_244 = arith.constant 1 : index
    %c0_245 = arith.constant 0 : index
    %c0_246 = arith.constant 0 : index
    %485 = vector.load %arg14[%c1_244, %c0_245, %c0_246] : memref<8x2x32xf32, #tpu.memory_space<vmem>>, vector<1x2x32xf32>
    %486 = vector.shape_cast %485 : vector<1x2x32xf32> to vector<2x32xf32>
    %487 = arith.addf %486, %474 : vector<2x32xf32>
    %488 = arith.negf %487 : vector<2x32xf32>
    %489 = math.exp %488 : vector<2x32xf32>
    %cst_247 = arith.constant 1.000000e+00 : f32
    %490 = vector.broadcast %cst_247 : f32 to vector<2x32xf32>
    %491 = arith.addf %490, %489 : vector<2x32xf32>
    %492 = arith.divf %490, %491 : vector<2x32xf32>
    %c1_248 = arith.constant 1 : index
    %c0_249 = arith.constant 0 : index
    %c0_250 = arith.constant 0 : index
    %493 = vector.load %arg15[%c1_248, %c0_249, %c0_250] : memref<8x2x32xf32, #tpu.memory_space<vmem>>, vector<1x2x32xf32>
    %494 = vector.shape_cast %493 : vector<1x2x32xf32> to vector<2x32xf32>
    %495 = arith.mulf %484, %476 : vector<2x32xf32>
    %496 = arith.addf %494, %495 : vector<2x32xf32>
    %497 = math.tanh %496 : vector<2x32xf32>
    %cst_251 = arith.constant 1.000000e+00 : f32
    %498 = vector.broadcast %cst_251 : f32 to vector<2x32xf32>
    %499 = arith.subf %498, %492 : vector<2x32xf32>
    %500 = arith.mulf %499, %497 : vector<2x32xf32>
    %501 = arith.mulf %492, %465 : vector<2x32xf32>
    %502 = arith.addf %500, %501 : vector<2x32xf32>
    %cst_252 = arith.constant dense<0.000000e+00> : vector<2x128xf32>
    %503 = tpu.matmul %502, %429, %cst_252 {dimension_numbers = #tpu.dot_dimension_numbers<[1], [0], [0], [1], [0, 0, 1, 1], [], []>} : vector<2x32xf32>, vector<32x128xf32>, vector<2x128xf32> -> vector<2x128xf32>
    %504 = arith.addf %503, %432 : vector<2x128xf32>
    %c1_253 = arith.constant 1 : index
    %c0_254 = arith.constant 0 : index
    %c0_255 = arith.constant 0 : index
    %505 = vector.load %arg12[%c1_253, %c0_254, %c0_255] : memref<8x2x128xf32, #tpu.memory_space<vmem>>, vector<1x2x128xf32>
    %506 = vector.shape_cast %505 : vector<1x2x128xf32> to vector<2x128xf32>
    %507 = vector.shape_cast %504 : vector<2x128xf32> to vector<1x2x128xf32>
    tpu.vector_store %arg12[%c1_253, %c0_254, %c0_255], %507 {strides = array<i32>} : memref<8x2x128xf32, #tpu.memory_space<vmem>>, vector<1x2x128xf32>,
    %cst_256 = arith.constant dense<0.000000e+00> : vector<2x32xf32>
    %508 = tpu.matmul %502, %412, %cst_256 {dimension_numbers = #tpu.dot_dimension_numbers<[1], [0], [0], [1], [0, 0, 1, 1], [], []>} : vector<2x32xf32>, vector<32x32xf32>, vector<2x32xf32> -> vector<2x32xf32>
    %509 = arith.addf %508, %420 : vector<2x32xf32>
    %cst_257 = arith.constant dense<0.000000e+00> : vector<2x32xf32>
    %510 = tpu.matmul %502, %414, %cst_257 {dimension_numbers = #tpu.dot_dimension_numbers<[1], [0], [0], [1], [0, 0, 1, 1], [], []>} : vector<2x32xf32>, vector<32x32xf32>, vector<2x32xf32> -> vector<2x32xf32>
    %511 = arith.addf %510, %424 : vector<2x32xf32>
    %cst_258 = arith.constant dense<0.000000e+00> : vector<2x32xf32>
    %512 = tpu.matmul %502, %416, %cst_258 {dimension_numbers = #tpu.dot_dimension_numbers<[1], [0], [0], [1], [0, 0, 1, 1], [], []>} : vector<2x32xf32>, vector<32x32xf32>, vector<2x32xf32> -> vector<2x32xf32>
    %513 = arith.addf %512, %428 : vector<2x32xf32>
    %c2_259 = arith.constant 2 : index
    %c0_260 = arith.constant 0 : index
    %c0_261 = arith.constant 0 : index
    %514 = vector.load %arg13[%c2_259, %c0_260, %c0_261] : memref<8x2x32xf32, #tpu.memory_space<vmem>>, vector<1x2x32xf32>
    %515 = vector.shape_cast %514 : vector<1x2x32xf32> to vector<2x32xf32>
    %516 = arith.addf %515, %509 : vector<2x32xf32>
    %517 = arith.negf %516 : vector<2x32xf32>
    %518 = math.exp %517 : vector<2x32xf32>
    %cst_262 = arith.constant 1.000000e+00 : f32
    %519 = vector.broadcast %cst_262 : f32 to vector<2x32xf32>
    %520 = arith.addf %519, %518 : vector<2x32xf32>
    %521 = arith.divf %519, %520 : vector<2x32xf32>
    %c2_263 = arith.constant 2 : index
    %c0_264 = arith.constant 0 : index
    %c0_265 = arith.constant 0 : index
    %522 = vector.load %arg14[%c2_263, %c0_264, %c0_265] : memref<8x2x32xf32, #tpu.memory_space<vmem>>, vector<1x2x32xf32>
    %523 = vector.shape_cast %522 : vector<1x2x32xf32> to vector<2x32xf32>
    %524 = arith.addf %523, %511 : vector<2x32xf32>
    %525 = arith.negf %524 : vector<2x32xf32>
    %526 = math.exp %525 : vector<2x32xf32>
    %cst_266 = arith.constant 1.000000e+00 : f32
    %527 = vector.broadcast %cst_266 : f32 to vector<2x32xf32>
    %528 = arith.addf %527, %526 : vector<2x32xf32>
    %529 = arith.divf %527, %528 : vector<2x32xf32>
    %c2_267 = arith.constant 2 : index
    %c0_268 = arith.constant 0 : index
    %c0_269 = arith.constant 0 : index
    %530 = vector.load %arg15[%c2_267, %c0_268, %c0_269] : memref<8x2x32xf32, #tpu.memory_space<vmem>>, vector<1x2x32xf32>
    %531 = vector.shape_cast %530 : vector<1x2x32xf32> to vector<2x32xf32>
    %532 = arith.mulf %521, %513 : vector<2x32xf32>
    %533 = arith.addf %531, %532 : vector<2x32xf32>
    %534 = math.tanh %533 : vector<2x32xf32>
    %cst_270 = arith.constant 1.000000e+00 : f32
    %535 = vector.broadcast %cst_270 : f32 to vector<2x32xf32>
    %536 = arith.subf %535, %529 : vector<2x32xf32>
    %537 = arith.mulf %536, %534 : vector<2x32xf32>
    %538 = arith.mulf %529, %502 : vector<2x32xf32>
    %539 = arith.addf %537, %538 : vector<2x32xf32>
    %cst_271 = arith.constant dense<0.000000e+00> : vector<2x128xf32>
    %540 = tpu.matmul %539, %429, %cst_271 {dimension_numbers = #tpu.dot_dimension_numbers<[1], [0], [0], [1], [0, 0, 1, 1], [], []>} : vector<2x32xf32>, vector<32x128xf32>, vector<2x128xf32> -> vector<2x128xf32>
    %541 = arith.addf %540, %432 : vector<2x128xf32>
    %c2_272 = arith.constant 2 : index
    %c0_273 = arith.constant 0 : index
    %c0_274 = arith.constant 0 : index
    %542 = vector.load %arg12[%c2_272, %c0_273, %c0_274] : memref<8x2x128xf32, #tpu.memory_space<vmem>>, vector<1x2x128xf32>
    %543 = vector.shape_cast %542 : vector<1x2x128xf32> to vector<2x128xf32>
    %544 = vector.shape_cast %541 : vector<2x128xf32> to vector<1x2x128xf32>
    tpu.vector_store %arg12[%c2_272, %c0_273, %c0_274], %544 {strides = array<i32>} : memref<8x2x128xf32, #tpu.memory_space<vmem>>, vector<1x2x128xf32>,
    %cst_275 = arith.constant dense<0.000000e+00> : vector<2x32xf32>
    %545 = tpu.matmul %539, %412, %cst_275 {dimension_numbers = #tpu.dot_dimension_numbers<[1], [0], [0], [1], [0, 0, 1, 1], [], []>} : vector<2x32xf32>, vector<32x32xf32>, vector<2x32xf32> -> vector<2x32xf32>
    %546 = arith.addf %545, %420 : vector<2x32xf32>
    %cst_276 = arith.constant dense<0.000000e+00> : vector<2x32xf32>
    %547 = tpu.matmul %539, %414, %cst_276 {dimension_numbers = #tpu.dot_dimension_numbers<[1], [0], [0], [1], [0, 0, 1, 1], [], []>} : vector<2x32xf32>, vector<32x32xf32>, vector<2x32xf32> -> vector<2x32xf32>
    %548 = arith.addf %547, %424 : vector<2x32xf32>
    %cst_277 = arith.constant dense<0.000000e+00> : vector<2x32xf32>
    %549 = tpu.matmul %539, %416, %cst_277 {dimension_numbers = #tpu.dot_dimension_numbers<[1], [0], [0], [1], [0, 0, 1, 1], [], []>} : vector<2x32xf32>, vector<32x32xf32>, vector<2x32xf32> -> vector<2x32xf32>
    %550 = arith.addf %549, %428 : vector<2x32xf32>
    %c3_278 = arith.constant 3 : index
    %c0_279 = arith.constant 0 : index
    %c0_280 = arith.constant 0 : index
    %551 = vector.load %arg13[%c3_278, %c0_279, %c0_280] : memref<8x2x32xf32, #tpu.memory_space<vmem>>, vector<1x2x32xf32>
    %552 = vector.shape_cast %551 : vector<1x2x32xf32> to vector<2x32xf32>
    %553 = arith.addf %552, %546 : vector<2x32xf32>
    %554 = arith.negf %553 : vector<2x32xf32>
    %555 = math.exp %554 : vector<2x32xf32>
    %cst_281 = arith.constant 1.000000e+00 : f32
    %556 = vector.broadcast %cst_281 : f32 to vector<2x32xf32>
    %557 = arith.addf %556, %555 : vector<2x32xf32>
    %558 = arith.divf %556, %557 : vector<2x32xf32>
    %c3_282 = arith.constant 3 : index
    %c0_283 = arith.constant 0 : index
    %c0_284 = arith.constant 0 : index
    %559 = vector.load %arg14[%c3_282, %c0_283, %c0_284] : memref<8x2x32xf32, #tpu.memory_space<vmem>>, vector<1x2x32xf32>
    %560 = vector.shape_cast %559 : vector<1x2x32xf32> to vector<2x32xf32>
    %561 = arith.addf %560, %548 : vector<2x32xf32>
    %562 = arith.negf %561 : vector<2x32xf32>
    %563 = math.exp %562 : vector<2x32xf32>
    %cst_285 = arith.constant 1.000000e+00 : f32
    %564 = vector.broadcast %cst_285 : f32 to vector<2x32xf32>
    %565 = arith.addf %564, %563 : vector<2x32xf32>
    %566 = arith.divf %564, %565 : vector<2x32xf32>
    %c3_286 = arith.constant 3 : index
    %c0_287 = arith.constant 0 : index
    %c0_288 = arith.constant 0 : index
    %567 = vector.load %arg15[%c3_286, %c0_287, %c0_288] : memref<8x2x32xf32, #tpu.memory_space<vmem>>, vector<1x2x32xf32>
    %568 = vector.shape_cast %567 : vector<1x2x32xf32> to vector<2x32xf32>
    %569 = arith.mulf %558, %550 : vector<2x32xf32>
    %570 = arith.addf %568, %569 : vector<2x32xf32>
    %571 = math.tanh %570 : vector<2x32xf32>
    %cst_289 = arith.constant 1.000000e+00 : f32
    %572 = vector.broadcast %cst_289 : f32 to vector<2x32xf32>
    %573 = arith.subf %572, %566 : vector<2x32xf32>
    %574 = arith.mulf %573, %571 : vector<2x32xf32>
    %575 = arith.mulf %566, %539 : vector<2x32xf32>
    %576 = arith.addf %574, %575 : vector<2x32xf32>
    %cst_290 = arith.constant dense<0.000000e+00> : vector<2x128xf32>
    %577 = tpu.matmul %576, %429, %cst_290 {dimension_numbers = #tpu.dot_dimension_numbers<[1], [0], [0], [1], [0, 0, 1, 1], [], []>} : vector<2x32xf32>, vector<32x128xf32>, vector<2x128xf32> -> vector<2x128xf32>
    %578 = arith.addf %577, %432 : vector<2x128xf32>
    %c3_291 = arith.constant 3 : index
    %c0_292 = arith.constant 0 : index
    %c0_293 = arith.constant 0 : index
    %579 = vector.load %arg12[%c3_291, %c0_292, %c0_293] : memref<8x2x128xf32, #tpu.memory_space<vmem>>, vector<1x2x128xf32>
    %580 = vector.shape_cast %579 : vector<1x2x128xf32> to vector<2x128xf32>
    %581 = vector.shape_cast %578 : vector<2x128xf32> to vector<1x2x128xf32>
    tpu.vector_store %arg12[%c3_291, %c0_292, %c0_293], %581 {strides = array<i32>} : memref<8x2x128xf32, #tpu.memory_space<vmem>>, vector<1x2x128xf32>,
    %cst_294 = arith.constant dense<0.000000e+00> : vector<2x32xf32>
    %582 = tpu.matmul %576, %412, %cst_294 {dimension_numbers = #tpu.dot_dimension_numbers<[1], [0], [0], [1], [0, 0, 1, 1], [], []>} : vector<2x32xf32>, vector<32x32xf32>, vector<2x32xf32> -> vector<2x32xf32>
    %583 = arith.addf %582, %420 : vector<2x32xf32>
    %cst_295 = arith.constant dense<0.000000e+00> : vector<2x32xf32>
    %584 = tpu.matmul %576, %414, %cst_295 {dimension_numbers = #tpu.dot_dimension_numbers<[1], [0], [0], [1], [0, 0, 1, 1], [], []>} : vector<2x32xf32>, vector<32x32xf32>, vector<2x32xf32> -> vector<2x32xf32>
    %585 = arith.addf %584, %424 : vector<2x32xf32>
    %cst_296 = arith.constant dense<0.000000e+00> : vector<2x32xf32>
    %586 = tpu.matmul %576, %416, %cst_296 {dimension_numbers = #tpu.dot_dimension_numbers<[1], [0], [0], [1], [0, 0, 1, 1], [], []>} : vector<2x32xf32>, vector<32x32xf32>, vector<2x32xf32> -> vector<2x32xf32>
    %587 = arith.addf %586, %428 : vector<2x32xf32>
    %c4_297 = arith.constant 4 : index
    %c0_298 = arith.constant 0 : index
    %c0_299 = arith.constant 0 : index
    %588 = vector.load %arg13[%c4_297, %c0_298, %c0_299] : memref<8x2x32xf32, #tpu.memory_space<vmem>>, vector<1x2x32xf32>
    %589 = vector.shape_cast %588 : vector<1x2x32xf32> to vector<2x32xf32>
    %590 = arith.addf %589, %583 : vector<2x32xf32>
    %591 = arith.negf %590 : vector<2x32xf32>
    %592 = math.exp %591 : vector<2x32xf32>
    %cst_300 = arith.constant 1.000000e+00 : f32
    %593 = vector.broadcast %cst_300 : f32 to vector<2x32xf32>
    %594 = arith.addf %593, %592 : vector<2x32xf32>
    %595 = arith.divf %593, %594 : vector<2x32xf32>
    %c4_301 = arith.constant 4 : index
    %c0_302 = arith.constant 0 : index
    %c0_303 = arith.constant 0 : index
    %596 = vector.load %arg14[%c4_301, %c0_302, %c0_303] : memref<8x2x32xf32, #tpu.memory_space<vmem>>, vector<1x2x32xf32>
    %597 = vector.shape_cast %596 : vector<1x2x32xf32> to vector<2x32xf32>
    %598 = arith.addf %597, %585 : vector<2x32xf32>
    %599 = arith.negf %598 : vector<2x32xf32>
    %600 = math.exp %599 : vector<2x32xf32>
    %cst_304 = arith.constant 1.000000e+00 : f32
    %601 = vector.broadcast %cst_304 : f32 to vector<2x32xf32>
    %602 = arith.addf %601, %600 : vector<2x32xf32>
    %603 = arith.divf %601, %602 : vector<2x32xf32>
    %c4_305 = arith.constant 4 : index
    %c0_306 = arith.constant 0 : index
    %c0_307 = arith.constant 0 : index
    %604 = vector.load %arg15[%c4_305, %c0_306, %c0_307] : memref<8x2x32xf32, #tpu.memory_space<vmem>>, vector<1x2x32xf32>
    %605 = vector.shape_cast %604 : vector<1x2x32xf32> to vector<2x32xf32>
    %606 = arith.mulf %595, %587 : vector<2x32xf32>
    %607 = arith.addf %605, %606 : vector<2x32xf32>
    %608 = math.tanh %607 : vector<2x32xf32>
    %cst_308 = arith.constant 1.000000e+00 : f32
    %609 = vector.broadcast %cst_308 : f32 to vector<2x32xf32>
    %610 = arith.subf %609, %603 : vector<2x32xf32>
    %611 = arith.mulf %610, %608 : vector<2x32xf32>
    %612 = arith.mulf %603, %576 : vector<2x32xf32>
    %613 = arith.addf %611, %612 : vector<2x32xf32>
    %cst_309 = arith.constant dense<0.000000e+00> : vector<2x128xf32>
    %614 = tpu.matmul %613, %429, %cst_309 {dimension_numbers = #tpu.dot_dimension_numbers<[1], [0], [0], [1], [0, 0, 1, 1], [], []>} : vector<2x32xf32>, vector<32x128xf32>, vector<2x128xf32> -> vector<2x128xf32>
    %615 = arith.addf %614, %432 : vector<2x128xf32>
    %c4_310 = arith.constant 4 : index
    %c0_311 = arith.constant 0 : index
    %c0_312 = arith.constant 0 : index
    %616 = vector.load %arg12[%c4_310, %c0_311, %c0_312] : memref<8x2x128xf32, #tpu.memory_space<vmem>>, vector<1x2x128xf32>
    %617 = vector.shape_cast %616 : vector<1x2x128xf32> to vector<2x128xf32>
    %618 = vector.shape_cast %615 : vector<2x128xf32> to vector<1x2x128xf32>
    tpu.vector_store %arg12[%c4_310, %c0_311, %c0_312], %618 {strides = array<i32>} : memref<8x2x128xf32, #tpu.memory_space<vmem>>, vector<1x2x128xf32>,
    %cst_313 = arith.constant dense<0.000000e+00> : vector<2x32xf32>
    %619 = tpu.matmul %613, %412, %cst_313 {dimension_numbers = #tpu.dot_dimension_numbers<[1], [0], [0], [1], [0, 0, 1, 1], [], []>} : vector<2x32xf32>, vector<32x32xf32>, vector<2x32xf32> -> vector<2x32xf32>
    %620 = arith.addf %619, %420 : vector<2x32xf32>
    %cst_314 = arith.constant dense<0.000000e+00> : vector<2x32xf32>
    %621 = tpu.matmul %613, %414, %cst_314 {dimension_numbers = #tpu.dot_dimension_numbers<[1], [0], [0], [1], [0, 0, 1, 1], [], []>} : vector<2x32xf32>, vector<32x32xf32>, vector<2x32xf32> -> vector<2x32xf32>
    %622 = arith.addf %621, %424 : vector<2x32xf32>
    %cst_315 = arith.constant dense<0.000000e+00> : vector<2x32xf32>
    %623 = tpu.matmul %613, %416, %cst_315 {dimension_numbers = #tpu.dot_dimension_numbers<[1], [0], [0], [1], [0, 0, 1, 1], [], []>} : vector<2x32xf32>, vector<32x32xf32>, vector<2x32xf32> -> vector<2x32xf32>
    %624 = arith.addf %623, %428 : vector<2x32xf32>
    %c5_316 = arith.constant 5 : index
    %c0_317 = arith.constant 0 : index
    %c0_318 = arith.constant 0 : index
    %625 = vector.load %arg13[%c5_316, %c0_317, %c0_318] : memref<8x2x32xf32, #tpu.memory_space<vmem>>, vector<1x2x32xf32>
    %626 = vector.shape_cast %625 : vector<1x2x32xf32> to vector<2x32xf32>
    %627 = arith.addf %626, %620 : vector<2x32xf32>
    %628 = arith.negf %627 : vector<2x32xf32>
    %629 = math.exp %628 : vector<2x32xf32>
    %cst_319 = arith.constant 1.000000e+00 : f32
    %630 = vector.broadcast %cst_319 : f32 to vector<2x32xf32>
    %631 = arith.addf %630, %629 : vector<2x32xf32>
    %632 = arith.divf %630, %631 : vector<2x32xf32>
    %c5_320 = arith.constant 5 : index
    %c0_321 = arith.constant 0 : index
    %c0_322 = arith.constant 0 : index
    %633 = vector.load %arg14[%c5_320, %c0_321, %c0_322] : memref<8x2x32xf32, #tpu.memory_space<vmem>>, vector<1x2x32xf32>
    %634 = vector.shape_cast %633 : vector<1x2x32xf32> to vector<2x32xf32>
    %635 = arith.addf %634, %622 : vector<2x32xf32>
    %636 = arith.negf %635 : vector<2x32xf32>
    %637 = math.exp %636 : vector<2x32xf32>
    %cst_323 = arith.constant 1.000000e+00 : f32
    %638 = vector.broadcast %cst_323 : f32 to vector<2x32xf32>
    %639 = arith.addf %638, %637 : vector<2x32xf32>
    %640 = arith.divf %638, %639 : vector<2x32xf32>
    %c5_324 = arith.constant 5 : index
    %c0_325 = arith.constant 0 : index
    %c0_326 = arith.constant 0 : index
    %641 = vector.load %arg15[%c5_324, %c0_325, %c0_326] : memref<8x2x32xf32, #tpu.memory_space<vmem>>, vector<1x2x32xf32>
    %642 = vector.shape_cast %641 : vector<1x2x32xf32> to vector<2x32xf32>
    %643 = arith.mulf %632, %624 : vector<2x32xf32>
    %644 = arith.addf %642, %643 : vector<2x32xf32>
    %645 = math.tanh %644 : vector<2x32xf32>
    %cst_327 = arith.constant 1.000000e+00 : f32
    %646 = vector.broadcast %cst_327 : f32 to vector<2x32xf32>
    %647 = arith.subf %646, %640 : vector<2x32xf32>
    %648 = arith.mulf %647, %645 : vector<2x32xf32>
    %649 = arith.mulf %640, %613 : vector<2x32xf32>
    %650 = arith.addf %648, %649 : vector<2x32xf32>
    %cst_328 = arith.constant dense<0.000000e+00> : vector<2x128xf32>
    %651 = tpu.matmul %650, %429, %cst_328 {dimension_numbers = #tpu.dot_dimension_numbers<[1], [0], [0], [1], [0, 0, 1, 1], [], []>} : vector<2x32xf32>, vector<32x128xf32>, vector<2x128xf32> -> vector<2x128xf32>
    %652 = arith.addf %651, %432 : vector<2x128xf32>
    %c5_329 = arith.constant 5 : index
    %c0_330 = arith.constant 0 : index
    %c0_331 = arith.constant 0 : index
    %653 = vector.load %arg12[%c5_329, %c0_330, %c0_331] : memref<8x2x128xf32, #tpu.memory_space<vmem>>, vector<1x2x128xf32>
    %654 = vector.shape_cast %653 : vector<1x2x128xf32> to vector<2x128xf32>
    %655 = vector.shape_cast %652 : vector<2x128xf32> to vector<1x2x128xf32>
    tpu.vector_store %arg12[%c5_329, %c0_330, %c0_331], %655 {strides = array<i32>} : memref<8x2x128xf32, #tpu.memory_space<vmem>>, vector<1x2x128xf32>,
    %cst_332 = arith.constant dense<0.000000e+00> : vector<2x32xf32>
    %656 = tpu.matmul %650, %412, %cst_332 {dimension_numbers = #tpu.dot_dimension_numbers<[1], [0], [0], [1], [0, 0, 1, 1], [], []>} : vector<2x32xf32>, vector<32x32xf32>, vector<2x32xf32> -> vector<2x32xf32>
    %657 = arith.addf %656, %420 : vector<2x32xf32>
    %cst_333 = arith.constant dense<0.000000e+00> : vector<2x32xf32>
    %658 = tpu.matmul %650, %414, %cst_333 {dimension_numbers = #tpu.dot_dimension_numbers<[1], [0], [0], [1], [0, 0, 1, 1], [], []>} : vector<2x32xf32>, vector<32x32xf32>, vector<2x32xf32> -> vector<2x32xf32>
    %659 = arith.addf %658, %424 : vector<2x32xf32>
    %cst_334 = arith.constant dense<0.000000e+00> : vector<2x32xf32>
    %660 = tpu.matmul %650, %416, %cst_334 {dimension_numbers = #tpu.dot_dimension_numbers<[1], [0], [0], [1], [0, 0, 1, 1], [], []>} : vector<2x32xf32>, vector<32x32xf32>, vector<2x32xf32> -> vector<2x32xf32>
    %661 = arith.addf %660, %428 : vector<2x32xf32>
    %c6_335 = arith.constant 6 : index
    %c0_336 = arith.constant 0 : index
    %c0_337 = arith.constant 0 : index
    %662 = vector.load %arg13[%c6_335, %c0_336, %c0_337] : memref<8x2x32xf32, #tpu.memory_space<vmem>>, vector<1x2x32xf32>
    %663 = vector.shape_cast %662 : vector<1x2x32xf32> to vector<2x32xf32>
    %664 = arith.addf %663, %657 : vector<2x32xf32>
    %665 = arith.negf %664 : vector<2x32xf32>
    %666 = math.exp %665 : vector<2x32xf32>
    %cst_338 = arith.constant 1.000000e+00 : f32
    %667 = vector.broadcast %cst_338 : f32 to vector<2x32xf32>
    %668 = arith.addf %667, %666 : vector<2x32xf32>
    %669 = arith.divf %667, %668 : vector<2x32xf32>
    %c6_339 = arith.constant 6 : index
    %c0_340 = arith.constant 0 : index
    %c0_341 = arith.constant 0 : index
    %670 = vector.load %arg14[%c6_339, %c0_340, %c0_341] : memref<8x2x32xf32, #tpu.memory_space<vmem>>, vector<1x2x32xf32>
    %671 = vector.shape_cast %670 : vector<1x2x32xf32> to vector<2x32xf32>
    %672 = arith.addf %671, %659 : vector<2x32xf32>
    %673 = arith.negf %672 : vector<2x32xf32>
    %674 = math.exp %673 : vector<2x32xf32>
    %cst_342 = arith.constant 1.000000e+00 : f32
    %675 = vector.broadcast %cst_342 : f32 to vector<2x32xf32>
    %676 = arith.addf %675, %674 : vector<2x32xf32>
    %677 = arith.divf %675, %676 : vector<2x32xf32>
    %c6_343 = arith.constant 6 : index
    %c0_344 = arith.constant 0 : index
    %c0_345 = arith.constant 0 : index
    %678 = vector.load %arg15[%c6_343, %c0_344, %c0_345] : memref<8x2x32xf32, #tpu.memory_space<vmem>>, vector<1x2x32xf32>
    %679 = vector.shape_cast %678 : vector<1x2x32xf32> to vector<2x32xf32>
    %680 = arith.mulf %669, %661 : vector<2x32xf32>
    %681 = arith.addf %679, %680 : vector<2x32xf32>
    %682 = math.tanh %681 : vector<2x32xf32>
    %cst_346 = arith.constant 1.000000e+00 : f32
    %683 = vector.broadcast %cst_346 : f32 to vector<2x32xf32>
    %684 = arith.subf %683, %677 : vector<2x32xf32>
    %685 = arith.mulf %684, %682 : vector<2x32xf32>
    %686 = arith.mulf %677, %650 : vector<2x32xf32>
    %687 = arith.addf %685, %686 : vector<2x32xf32>
    %cst_347 = arith.constant dense<0.000000e+00> : vector<2x128xf32>
    %688 = tpu.matmul %687, %429, %cst_347 {dimension_numbers = #tpu.dot_dimension_numbers<[1], [0], [0], [1], [0, 0, 1, 1], [], []>} : vector<2x32xf32>, vector<32x128xf32>, vector<2x128xf32> -> vector<2x128xf32>
    %689 = arith.addf %688, %432 : vector<2x128xf32>
    %c6_348 = arith.constant 6 : index
    %c0_349 = arith.constant 0 : index
    %c0_350 = arith.constant 0 : index
    %690 = vector.load %arg12[%c6_348, %c0_349, %c0_350] : memref<8x2x128xf32, #tpu.memory_space<vmem>>, vector<1x2x128xf32>
    %691 = vector.shape_cast %690 : vector<1x2x128xf32> to vector<2x128xf32>
    %692 = vector.shape_cast %689 : vector<2x128xf32> to vector<1x2x128xf32>
    tpu.vector_store %arg12[%c6_348, %c0_349, %c0_350], %692 {strides = array<i32>} : memref<8x2x128xf32, #tpu.memory_space<vmem>>, vector<1x2x128xf32>,
    %cst_351 = arith.constant dense<0.000000e+00> : vector<2x32xf32>
    %693 = tpu.matmul %687, %412, %cst_351 {dimension_numbers = #tpu.dot_dimension_numbers<[1], [0], [0], [1], [0, 0, 1, 1], [], []>} : vector<2x32xf32>, vector<32x32xf32>, vector<2x32xf32> -> vector<2x32xf32>
    %694 = arith.addf %693, %420 : vector<2x32xf32>
    %cst_352 = arith.constant dense<0.000000e+00> : vector<2x32xf32>
    %695 = tpu.matmul %687, %414, %cst_352 {dimension_numbers = #tpu.dot_dimension_numbers<[1], [0], [0], [1], [0, 0, 1, 1], [], []>} : vector<2x32xf32>, vector<32x32xf32>, vector<2x32xf32> -> vector<2x32xf32>
    %696 = arith.addf %695, %424 : vector<2x32xf32>
    %cst_353 = arith.constant dense<0.000000e+00> : vector<2x32xf32>
    %697 = tpu.matmul %687, %416, %cst_353 {dimension_numbers = #tpu.dot_dimension_numbers<[1], [0], [0], [1], [0, 0, 1, 1], [], []>} : vector<2x32xf32>, vector<32x32xf32>, vector<2x32xf32> -> vector<2x32xf32>
    %698 = arith.addf %697, %428 : vector<2x32xf32>
    %c7_354 = arith.constant 7 : index
    %c0_355 = arith.constant 0 : index
    %c0_356 = arith.constant 0 : index
    %699 = vector.load %arg13[%c7_354, %c0_355, %c0_356] : memref<8x2x32xf32, #tpu.memory_space<vmem>>, vector<1x2x32xf32>
    %700 = vector.shape_cast %699 : vector<1x2x32xf32> to vector<2x32xf32>
    %701 = arith.addf %700, %694 : vector<2x32xf32>
    %702 = arith.negf %701 : vector<2x32xf32>
    %703 = math.exp %702 : vector<2x32xf32>
    %cst_357 = arith.constant 1.000000e+00 : f32
    %704 = vector.broadcast %cst_357 : f32 to vector<2x32xf32>
    %705 = arith.addf %704, %703 : vector<2x32xf32>
    %706 = arith.divf %704, %705 : vector<2x32xf32>
    %c7_358 = arith.constant 7 : index
    %c0_359 = arith.constant 0 : index
    %c0_360 = arith.constant 0 : index
    %707 = vector.load %arg14[%c7_358, %c0_359, %c0_360] : memref<8x2x32xf32, #tpu.memory_space<vmem>>, vector<1x2x32xf32>
    %708 = vector.shape_cast %707 : vector<1x2x32xf32> to vector<2x32xf32>
    %709 = arith.addf %708, %696 : vector<2x32xf32>
    %710 = arith.negf %709 : vector<2x32xf32>
    %711 = math.exp %710 : vector<2x32xf32>
    %cst_361 = arith.constant 1.000000e+00 : f32
    %712 = vector.broadcast %cst_361 : f32 to vector<2x32xf32>
    %713 = arith.addf %712, %711 : vector<2x32xf32>
    %714 = arith.divf %712, %713 : vector<2x32xf32>
    %c7_362 = arith.constant 7 : index
    %c0_363 = arith.constant 0 : index
    %c0_364 = arith.constant 0 : index
    %715 = vector.load %arg15[%c7_362, %c0_363, %c0_364] : memref<8x2x32xf32, #tpu.memory_space<vmem>>, vector<1x2x32xf32>
    %716 = vector.shape_cast %715 : vector<1x2x32xf32> to vector<2x32xf32>
    %717 = arith.mulf %706, %698 : vector<2x32xf32>
    %718 = arith.addf %716, %717 : vector<2x32xf32>
    %719 = math.tanh %718 : vector<2x32xf32>
    %cst_365 = arith.constant 1.000000e+00 : f32
    %720 = vector.broadcast %cst_365 : f32 to vector<2x32xf32>
    %721 = arith.subf %720, %714 : vector<2x32xf32>
    %722 = arith.mulf %721, %719 : vector<2x32xf32>
    %723 = arith.mulf %714, %687 : vector<2x32xf32>
    %724 = arith.addf %722, %723 : vector<2x32xf32>
    %cst_366 = arith.constant dense<0.000000e+00> : vector<2x128xf32>
    %725 = tpu.matmul %724, %429, %cst_366 {dimension_numbers = #tpu.dot_dimension_numbers<[1], [0], [0], [1], [0, 0, 1, 1], [], []>} : vector<2x32xf32>, vector<32x128xf32>, vector<2x128xf32> -> vector<2x128xf32>
    %726 = arith.addf %725, %432 : vector<2x128xf32>
    %c7_367 = arith.constant 7 : index
    %c0_368 = arith.constant 0 : index
    %c0_369 = arith.constant 0 : index
    %727 = vector.load %arg12[%c7_367, %c0_368, %c0_369] : memref<8x2x128xf32, #tpu.memory_space<vmem>>, vector<1x2x128xf32>
    %728 = vector.shape_cast %727 : vector<1x2x128xf32> to vector<2x128xf32>
    %729 = vector.shape_cast %726 : vector<2x128xf32> to vector<1x2x128xf32>
    tpu.vector_store %arg12[%c7_367, %c0_368, %c0_369], %729 {strides = array<i32>} : memref<8x2x128xf32, #tpu.memory_space<vmem>>, vector<1x2x128xf32>,
    return
  }
  func.func @transform_0(%arg0: i32) -> (i32, i32) {
    %c0_i32 = arith.constant 0 : i32
    %c0_i32_0 = arith.constant 0 : i32
    %c0_i32_1 = arith.constant 0 : i32
    return %c0_i32, %c0_i32_0 : i32, i32
  }
  func.func @transform_1(%arg0: i32) -> (i32, i32, i32) {
    %c0_i32 = arith.constant 0 : i32
    %c0_i32_0 = arith.constant 0 : i32
    %c0_i32_1 = arith.constant 0 : i32
    %c0_i32_2 = arith.constant 0 : i32
    return %c0_i32, %c0_i32_0, %c0_i32_1 : i32, i32, i32
  }
  func.func @transform_2(%arg0: i32) -> (i32, i32, i32) {
    %c0_i32 = arith.constant 0 : i32
    %c0_i32_0 = arith.constant 0 : i32
    %c0_i32_1 = arith.constant 0 : i32
    %c0_i32_2 = arith.constant 0 : i32
    return %c0_i32, %c0_i32_0, %c0_i32_1 : i32, i32, i32
  }
  func.func @transform_3(%arg0: i32) -> (i32, i32, i32) {
    %c0_i32 = arith.constant 0 : i32
    %c0_i32_0 = arith.constant 0 : i32
    %c0_i32_1 = arith.constant 0 : i32
    %c0_i32_2 = arith.constant 0 : i32
    return %c0_i32, %c0_i32_0, %c0_i32_1 : i32, i32, i32
  }
  func.func @transform_4(%arg0: i32) -> (i32, i32, i32) {
    %c0_i32 = arith.constant 0 : i32
    %c0_i32_0 = arith.constant 0 : i32
    %c0_i32_1 = arith.constant 0 : i32
    %c0_i32_2 = arith.constant 0 : i32
    return %c0_i32, %c0_i32_0, %c0_i32_1 : i32, i32, i32
  }
  func.func @transform_5(%arg0: i32) -> (i32, i32, i32) {
    %c0_i32 = arith.constant 0 : i32
    %c0_i32_0 = arith.constant 0 : i32
    %c0_i32_1 = arith.constant 0 : i32
    %c0_i32_2 = arith.constant 0 : i32
    return %c0_i32, %c0_i32_0, %c0_i32_1 : i32, i32, i32
  }
  func.func @transform_6(%arg0: i32) -> (i32, i32, i32) {
    %c0_i32 = arith.constant 0 : i32
    %c0_i32_0 = arith.constant 0 : i32
    %c0_i32_1 = arith.constant 0 : i32
    %c0_i32_2 = arith.constant 0 : i32
    return %c0_i32, %c0_i32_0, %c0_i32_1 : i32, i32, i32
  }
  func.func @transform_7(%arg0: i32) -> (i32, i32, i32) {
    %c0_i32 = arith.constant 0 : i32
    %c0_i32_0 = arith.constant 0 : i32
    %c0_i32_1 = arith.constant 0 : i32
    %c0_i32_2 = arith.constant 0 : i32
    return %c0_i32, %c0_i32_0, %c0_i32_1 : i32, i32, i32
  }
  func.func @transform_8(%arg0: i32) -> (i32, i32, i32) {
    %c0_i32 = arith.constant 0 : i32
    %c0_i32_0 = arith.constant 0 : i32
    %c0_i32_1 = arith.constant 0 : i32
    %c0_i32_2 = arith.constant 0 : i32
    return %c0_i32, %c0_i32_0, %c0_i32_1 : i32, i32, i32
  }
  func.func @transform_9(%arg0: i32) -> (i32, i32) {
    %c0_i32 = arith.constant 0 : i32
    %c0_i32_0 = arith.constant 0 : i32
    %c0_i32_1 = arith.constant 0 : i32
    return %c0_i32, %c0_i32_0 : i32, i32
  }
  func.func @transform_10(%arg0: i32) -> (i32, i32) {
    %c0_i32 = arith.constant 0 : i32
    %c0_i32_0 = arith.constant 0 : i32
    %c0_i32_1 = arith.constant 0 : i32
    return %c0_i32, %c0_i32_0 : i32, i32
  }
  func.func @transform_11(%arg0: i32) -> (i32, i32, i32) {
    %c0_i32 = arith.constant 0 : i32
    %c0_i32_0 = arith.constant 0 : i32
    %c0_i32_1 = arith.constant 0 : i32
    %c0_i32_2 = arith.constant 0 : i32
    return %c0_i32, %c0_i32_0, %c0_i32_1 : i32, i32, i32
  }
}

</mosaic_0001>

<llo_original>
// kernel: tpu_custom_call.1
$region0: #{tpu_custom_call.1}
  #allocation0 [shape = 'u32[]', space=smem, size = 0x4, offset = 0x4, fixed_abs, tag = 'smem constant byte address 0x4 - core index']
  #allocation1 [shape = 'u32[144,128]{1,0:T(1,128)}', space=vmem, size = 0x12000, scoped, tag = 'internal scratch']
  #allocation2 [shape = 'f32[8,2,32]{2,1,0:T(2,128)}', space=vmem, size = 0x2000, scoped, tag = 'scratch operand']
  #allocation3 [shape = 'f32[8,2,32]{2,1,0:T(2,128)}', space=vmem, size = 0x2000, scoped, tag = 'scratch operand']
  #allocation4 [shape = 'f32[8,2,32]{2,1,0:T(2,128)}', space=vmem, size = 0x2000, scoped, tag = 'scratch operand']
  %s0 = inlined_call_operand.hbm [shape: f32[16,16], index: 0, kind: input, shape index: {}]
  %s1 = inlined_call_operand.hbm [shape: f32[3,16,32], index: 1, kind: input, shape index: {}]
  %s2 = inlined_call_operand.hbm [shape: f32[3,32,32], index: 2, kind: input, shape index: {}]
  %s3 = inlined_call_operand.hbm [shape: f32[3,1,32], index: 3, kind: input, shape index: {}]
  %s4 = inlined_call_operand.hbm [shape: f32[3,1,32], index: 4, kind: input, shape index: {}]
  %s5 = inlined_call_operand.hbm [shape: f32[3,32,32], index: 5, kind: input, shape index: {}]
  %s6 = inlined_call_operand.hbm [shape: f32[3,32,32], index: 6, kind: input, shape index: {}]
  %s7 = inlined_call_operand.hbm [shape: f32[3,1,32], index: 7, kind: input, shape index: {}]
  %s8 = inlined_call_operand.hbm [shape: f32[3,1,32], index: 8, kind: input, shape index: {}]
  %s9 = inlined_call_operand.vmem [shape: f32[32,128], index: 9, kind: input, shape index: {}]
  %s10 = inlined_call_operand.vmem [shape: f32[1,128], index: 10, kind: input, shape index: {}]
  %s11 = inlined_call_operand.hbm [shape: f32[8,2,128], index: 11, kind: output, shape index: {}]
  %s12 = sld [smem:[#allocation0]]
  $region90: #{tpu_custom_call.1} parent=0
    _
  %s14 = ssub.s32 1, %s12
  %s15 = scalar_select 0, %s14, %s12
  $region1: #{tpu_custom_call.1} parent=0
    #allocation5 [shape = 'u8[8192]{0}', space=vmem, size = 0x2000, scoped, tag = 'input window, operand 0, single buffered']
    #allocation6 [shape = 's32[1]{0}', space=sflag, size = 0x4, scoped, tag = 'scoped memory for tpu_custom_call.1']
    #allocation7 [shape = 's32[1]{0}', space=sflag, size = 0x4, scoped, tag = 'scoped memory for tpu_custom_call.1']
    #allocation8 [shape = 'u8[24576]{0}', space=vmem, size = 0x6000, scoped, tag = 'input window, operand 1, single buffered']
    #allocation9 [shape = 's32[1]{0}', space=sflag, size = 0x4, scoped, tag = 'scoped memory for tpu_custom_call.1']
    #allocation10 [shape = 'u8[49152]{0}', space=vmem, size = 0xc000, scoped, tag = 'input window, operand 2, single buffered']
    #allocation11 [shape = 'u8[1536]{0}', space=vmem, size = 0x800, scoped, tag = 'input window, operand 3, single buffered']
    #allocation12 [shape = 's32[1]{0}', space=sflag, size = 0x4, scoped, tag = 'scoped memory for tpu_custom_call.1']
    #allocation13 [shape = 'u8[1536]{0}', space=vmem, size = 0x800, scoped, tag = 'input window, operand 4, single buffered']
    #allocation14 [shape = 'u8[49152]{0}', space=vmem, size = 0xc000, scoped, tag = 'input window, operand 5, single buffered']
    #allocation15 [shape = 's32[1]{0}', space=sflag, size = 0x4, scoped, tag = 'scoped memory for tpu_custom_call.1']
    #allocation16 [shape = 'u8[49152]{0}', space=vmem, size = 0xc000, scoped, tag = 'input window, operand 6, single buffered']
    #allocation17 [shape = 'u8[1536]{0}', space=vmem, size = 0x800, scoped, tag = 'input window, operand 7, single buffered']
    #allocation18 [shape = 's32[1]{0}', space=sflag, size = 0x4, scoped, tag = 'scoped memory for tpu_custom_call.1']
    #allocation19 [shape = 'u8[1536]{0}', space=vmem, size = 0x800, scoped, tag = 'input window, operand 8, single buffered']
    #allocation20 [shape = 'u8[8192]{0}', space=vmem, size = 0x2000, scoped, tag = 'output window, operand 0, single buffered']
    %16 = vsyncpa [#allocation6], 0
    %17 = vsyncpa [#allocation9], 0
    %18 = vsyncpa [#allocation12], 0
    %19 = vsyncpa [#allocation15], 0
    %20 = vsyncpa [#allocation18], 0
    %21 = vsyncpa [#allocation7], 0
    // Predicated region
    $region2: #{tpu_custom_call.1} parent=1 // pred_check
      _
    $region3: #{tpu_custom_call.1} parent=1 // pred_check_branch
      %23 = sbr.rel (0) target = $region5
    $region4: #{tpu_custom_call.1} parent=1 // pred_region
      %s25 = ssub.s32 256, 256
      %26 = vsyncadd [#allocation6], %s25
      %s27 = sshll.u32 [#allocation5], 4
      %s28 = int_to_ptr.vmem [resolvable:$true] %s27
      %33 = dma.hbm_to_vmem [thread:$0]  %s0, 256, %s28, [#allocation6], 128, 128, 8
    $region5: #{tpu_custom_call.1} parent=1 // pred_fallthru
      _
    // Predicated region
    $region6: #{tpu_custom_call.1} parent=1 // pred_check
      _
    $region7: #{tpu_custom_call.1} parent=1 // pred_check_branch
      %35 = sbr.rel (0) target = $region9
    $region8: #{tpu_custom_call.1} parent=1 // pred_region
      %s37 = ssub.s32 768, 768
      %38 = vsyncadd [#allocation9], %s37
      %s39 = sshll.u32 [#allocation8], 4
      %s40 = int_to_ptr.vmem [resolvable:$true] %s39
      %45 = dma.hbm_to_vmem [thread:$0]  %s1, 768, %s40, [#allocation9], 128, 128, 8
    $region9: #{tpu_custom_call.1} parent=1 // pred_fallthru
      _
    // Predicated region
    $region10: #{tpu_custom_call.1} parent=1 // pred_check
      _
    $region11: #{tpu_custom_call.1} parent=1 // pred_check_branch
      %47 = sbr.rel (0) target = $region13
    $region12: #{tpu_custom_call.1} parent=1 // pred_region
      %s49 = ssub.s32 1536, 1536
      %50 = vsyncadd [#allocation9], %s49
      %s51 = sshll.u32 [#allocation10], 4
      %s52 = int_to_ptr.vmem [resolvable:$true] %s51
      %57 = dma.hbm_to_vmem [thread:$0]  %s2, 1536, %s52, [#allocation9], 128, 128, 8
    $region13: #{tpu_custom_call.1} parent=1 // pred_fallthru
      _
    // Predicated region
    $region14: #{tpu_custom_call.1} parent=1 // pred_check
      _
    $region15: #{tpu_custom_call.1} parent=1 // pred_check_branch
      %59 = sbr.rel (0) target = $region17
    $region16: #{tpu_custom_call.1} parent=1 // pred_region
      %s61 = ssub.s32 48, 48
      %62 = vsyncadd [#allocation12], %s61
      %s63 = sshll.u32 [#allocation11], 4
      %s64 = int_to_ptr.vmem [resolvable:$true] %s63
      %69 = dma.hbm_to_vmem [thread:$0]  %s3, 48, %s64, [#allocation12], 16, 16, 1
    $region17: #{tpu_custom_call.1} parent=1 // pred_fallthru
      _
    // Predicated region
    $region18: #{tpu_custom_call.1} parent=1 // pred_check
      _
    $region19: #{tpu_custom_call.1} parent=1 // pred_check_branch
      %71 = sbr.rel (0) target = $region21
    $region20: #{tpu_custom_call.1} parent=1 // pred_region
      %s73 = ssub.s32 48, 48
      %74 = vsyncadd [#allocation12], %s73
      %s75 = sshll.u32 [#allocation13], 4
      %s76 = int_to_ptr.vmem [resolvable:$true] %s75
      %81 = dma.hbm_to_vmem [thread:$0]  %s4, 48, %s76, [#allocation12], 16, 16, 1
    $region21: #{tpu_custom_call.1} parent=1 // pred_fallthru
      _
    // Predicated region
    $region22: #{tpu_custom_call.1} parent=1 // pred_check
      _
    $region23: #{tpu_custom_call.1} parent=1 // pred_check_branch
      %83 = sbr.rel (0) target = $region25
    $region24: #{tpu_custom_call.1} parent=1 // pred_region
      %s85 = ssub.s32 1536, 1536
      %86 = vsyncadd [#allocation15], %s85
      %s87 = sshll.u32 [#allocation14], 4
      %s88 = int_to_ptr.vmem [resolvable:$true] %s87
      %93 = dma.hbm_to_vmem [thread:$0]  %s5, 1536, %s88, [#allocation15], 128, 128, 8
    $region25: #{tpu_custom_call.1} parent=1 // pred_fallthru
      _
    // Predicated region
    $region26: #{tpu_custom_call.1} parent=1 // pred_check
      _
    $region27: #{tpu_custom_call.1} parent=1 // pred_check_branch
      %95 = sbr.rel (0) target = $region29
    $region28: #{tpu_custom_call.1} parent=1 // pred_region
      %s97 = ssub.s32 1536, 1536
      %98 = vsyncadd [#allocation15], %s97
      %s99 = sshll.u32 [#allocation16], 4
      %s100 = int_to_ptr.vmem [resolvable:$true] %s99
      %105 = dma.hbm_to_vmem [thread:$0]  %s6, 1536, %s100, [#allocation15], 128, 128, 8
    $region29: #{tpu_custom_call.1} parent=1 // pred_fallthru
      _
    // Predicated region
    $region30: #{tpu_custom_call.1} parent=1 // pred_check
      _
    $region31: #{tpu_custom_call.1} parent=1 // pred_check_branch
      %107 = sbr.rel (0) target = $region33
    $region32: #{tpu_custom_call.1} parent=1 // pred_region
      %s109 = ssub.s32 48, 48
      %110 = vsyncadd [#allocation18], %s109
      %s111 = sshll.u32 [#allocation17], 4
      %s112 = int_to_ptr.vmem [resolvable:$true] %s111
      %117 = dma.hbm_to_vmem [thread:$0]  %s7, 48, %s112, [#allocation18], 16, 16, 1
    $region33: #{tpu_custom_call.1} parent=1 // pred_fallthru
      _
    // Predicated region
    $region34: #{tpu_custom_call.1} parent=1 // pred_check
      _
    $region35: #{tpu_custom_call.1} parent=1 // pred_check_branch
      %119 = sbr.rel (0) target = $region37
    $region36: #{tpu_custom_call.1} parent=1 // pred_region
      %s121 = ssub.s32 48, 48
      %122 = vsyncadd [#allocation18], %s121
      %s123 = sshll.u32 [#allocation19], 4
      %s124 = int_to_ptr.vmem [resolvable:$true] %s123
      %129 = dma.hbm_to_vmem [thread:$0]  %s8, 48, %s124, [#allocation18], 16, 16, 1
    $region37: #{tpu_custom_call.1} parent=1 // pred_fallthru
      _
    // Predicated region
    $region38: #{tpu_custom_call.1} parent=1 // pred_check
      _
    $region39: #{tpu_custom_call.1} parent=1 // pred_check_branch
      %131 = sbr.rel (0) target = $region41
    $region40: #{tpu_custom_call.1} parent=1 // pred_region
      _
    $region41: #{tpu_custom_call.1} parent=1 // pred_fallthru
      _
    // Predicated region
    $region42: #{tpu_custom_call.1} parent=1 // pred_check
      _
    $region43: #{tpu_custom_call.1} parent=1 // pred_check_branch
      %133 = sbr.rel (0) target = $region45
    $region44: #{tpu_custom_call.1} parent=1 // pred_region
      _
    $region45: #{tpu_custom_call.1} parent=1 // pred_fallthru
      _
    // Predicated region
    $region46: #{tpu_custom_call.1} parent=1 // pred_check
      _
    $region47: #{tpu_custom_call.1} parent=1 // pred_check_branch
      %135 = sbr.rel (0) target = $region49
    $region48: #{tpu_custom_call.1} parent=1 // pred_region
      %136 = dma.done [#allocation6], 256
    $region49: #{tpu_custom_call.1} parent=1 // pred_fallthru
      _
    // Predicated region
    $region50: #{tpu_custom_call.1} parent=1 // pred_check
      _
    $region51: #{tpu_custom_call.1} parent=1 // pred_check_branch
      %138 = sbr.rel (0) target = $region53
    $region52: #{tpu_custom_call.1} parent=1 // pred_region
      %139 = dma.done [#allocation9], 768
    $region53: #{tpu_custom_call.1} parent=1 // pred_fallthru
      _
    // Predicated region
    $region54: #{tpu_custom_call.1} parent=1 // pred_check
      _
    $region55: #{tpu_custom_call.1} parent=1 // pred_check_branch
      %141 = sbr.rel (0) target = $region57
    $region56: #{tpu_custom_call.1} parent=1 // pred_region
      %142 = dma.done [#allocation9], 1536
    $region57: #{tpu_custom_call.1} parent=1 // pred_fallthru
      _
    // Predicated region
    $region58: #{tpu_custom_call.1} parent=1 // pred_check
      _
    $region59: #{tpu_custom_call.1} parent=1 // pred_check_branch
      %144 = sbr.rel (0) target = $region61
    $region60: #{tpu_custom_call.1} parent=1 // pred_region
      %145 = dma.done [#allocation12], 48
    $region61: #{tpu_custom_call.1} parent=1 // pred_fallthru
      _
    // Predicated region
    $region62: #{tpu_custom_call.1} parent=1 // pred_check
      _
    $region63: #{tpu_custom_call.1} parent=1 // pred_check_branch
      %147 = sbr.rel (0) target = $region65
    $region64: #{tpu_custom_call.1} parent=1 // pred_region
      %148 = dma.done [#allocation12], 48
    $region65: #{tpu_custom_call.1} parent=1 // pred_fallthru
      _
    // Predicated region
    $region66: #{tpu_custom_call.1} parent=1 // pred_check
      _
    $region67: #{tpu_custom_call.1} parent=1 // pred_check_branch
      %150 = sbr.rel (0) target = $region69
    $region68: #{tpu_custom_call.1} parent=1 // pred_region
      %151 = dma.done [#allocation15], 1536
    $region69: #{tpu_custom_call.1} parent=1 // pred_fallthru
      _
    // Predicated region
    $region70: #{tpu_custom_call.1} parent=1 // pred_check
      _
    $region71: #{tpu_custom_call.1} parent=1 // pred_check_branch
      %153 = sbr.rel (0) target = $region73
    $region72: #{tpu_custom_call.1} parent=1 // pred_region
      %154 = dma.done [#allocation15], 1536
    $region73: #{tpu_custom_call.1} parent=1 // pred_fallthru
      _
    // Predicated region
    $region74: #{tpu_custom_call.1} parent=1 // pred_check
      _
    $region75: #{tpu_custom_call.1} parent=1 // pred_check_branch
      %156 = sbr.rel (0) target = $region77
    $region76: #{tpu_custom_call.1} parent=1 // pred_region
      %157 = dma.done [#allocation18], 48
    $region77: #{tpu_custom_call.1} parent=1 // pred_fallthru
      _
    // Predicated region
    $region78: #{tpu_custom_call.1} parent=1 // pred_check
      _
    $region79: #{tpu_custom_call.1} parent=1 // pred_check_branch
      %159 = sbr.rel (0) target = $region81
    $region80: #{tpu_custom_call.1} parent=1 // pred_region
      %160 = dma.done [#allocation18], 48
    $region81: #{tpu_custom_call.1} parent=1 // pred_fallthru
      _
    %v161 = vld [vmem:[#allocation5] sm:$0xff]
    %v162 = vld [vmem:[#allocation5 + $0x8] sm:$0xff]
    %v163 = vld [vmem:[#allocation8] sm:$0xff]
    %v164 = vld [vmem:[#allocation8 + $0x8] sm:$0xff]
    %v165 = vld [vmem:[#allocation11] sm:$0x1]
    %v167 = vlaneseq
    %v168 = vshrl.u32 %v167, 7
    %v169 = vsub.s32 0, %v168
    %v170 = vrot.slane %v165, %v169
    %vm172 = vcmask 130048
    %v174 = vsel %vm172, %v161, 0
    %v177 = vsel %vm172, %v162, 0
    %179 = vmatprep.subr.mxu0 0.0
    %180 = vmatpush1.msra.mxu0 %v163
    %181 = vmatprep.subr.mxu0 0.0
    %182 = vmatpush1.msra.mxu0 %v164
    %183 = vmatprep.subr.mxu0 0.0
    %184 = vmatpush1.msra.mxu0 0.0
    %185 = vmatprep.subr.mxu0 0.0
    %186 = vmatpush1.msra.mxu0 0.0
    %187 = vmatprep.subr.mxu0 0.0
    %188 = vmatpush1.msra.mxu0 0.0
    %189 = vmatprep.subr.mxu0 0.0
    %190 = vmatpush1.msra.mxu0 0.0
    %191 = vmatprep.subr.mxu0 0.0
    %192 = vmatpush1.msra.mxu0 0.0
    %193 = vmatprep.subr.mxu0 0.0
    %194 = vmatpush1.msra.mxu0 0.0
    %195 = vmatprep.subr.mxu0 0.0
    %196 = vmatpush1.msra.mxu0 0.0
    %197 = vmatprep.subr.mxu0 0.0
    %198 = vmatpush1.msra.mxu0 0.0
    %199 = vmatprep.subr.mxu0 0.0
    %200 = vmatpush1.msra.mxu0 0.0
    %201 = vmatprep.subr.mxu0 0.0
    %202 = vmatpush1.msra.mxu0 0.0
    %203 = vmatprep.subr.mxu0 0.0
    %204 = vmatpush1.msra.mxu0 0.0
    %205 = vmatprep.subr.mxu0 0.0
    %206 = vmatpush1.msra.mxu0 0.0
    %207 = vmatprep.subr.mxu0 0.0
    %208 = vmatpush1.msra.mxu0 0.0
    %209 = vmatprep.subr.mxu0 0.0
    %210 = vmatpush1.msra.mxu0 0.0
    %211 = vmatprep.subr.mxu0 0.0
    %212 = vmatpush1.msra.mxu0 0.0
    %213 = vmatprep.subr.mxu0 0.0
    %214 = vmatpush1.msra.mxu0 0.0
    %215 = vmatprep.subr.mxu0 0.0
    %216 = vmatpush1.msra.mxu0 0.0
    %217 = vmatprep.subr.mxu0 0.0
    %218 = vmatpush1.msra.mxu0 0.0
    %219 = vmatprep.subr.mxu0 0.0
    %220 = vmatpush1.msra.mxu0 0.0
    %221 = vmatprep.subr.mxu0 0.0
    %222 = vmatpush1.msra.mxu0 0.0
    %223 = vmatprep.subr.mxu0 0.0
    %224 = vmatpush1.msra.mxu0 0.0
    %225 = vmatprep.subr.mxu0 0.0
    %226 = vmatpush1.msra.mxu0 0.0
    %227 = vmatprep.subr.mxu0 0.0
    %228 = vmatpush1.msra.mxu0 0.0
    %229 = vmatprep.subr.mxu0 0.0
    %230 = vmatpush1.msra.mxu0 0.0
    %231 = vmatprep.subr.mxu0 0.0
    %232 = vmatpush1.msra.mxu0 0.0
    %233 = vmatprep.subr.mxu0 0.0
    %234 = vmatpush1.msra.mxu0 0.0
    %235 = vmatprep.subr.mxu0 0.0
    %236 = vmatpush1.msra.mxu0 0.0
    %237 = vmatprep.subr.mxu0 0.0
    %238 = vmatpush1.msra.mxu0 0.0
    %239 = vmatprep.subr.mxu0 0.0
    %240 = vmatpush1.msra.mxu0 0.0
    %241 = vmatprep.subr.mxu0 0.0
    %242 = vmatpush1.msra.mxu0 0.0
    %243 = vmatprep.mubr.f32.mxu0 0.0
    %244 = vmatmul.mubr.f32.gmra.mrb[0].mxu0 %v174
    %v245 = vpop.f32.mrb[0].mxu0
    %v246 = vadd.f32 %v170, %v245
    %v247 = vpop.f32.mrb[0].mxu0
    %248 = vmatprep.mubr.f32.mxu0 0.0
    %249 = vmatmul.mubr.f32.gmra.mrb[0].mxu0 %v177
    %v250 = vpop.f32.mrb[0].mxu0
    %v251 = vadd.f32 %v170, %v250
    %v252 = vpop.f32.mrb[0].mxu0
    %253 = vdwg.mxu0
    %s254 = scalar_lea.vmem [#allocation8], 16
    %v255 = vld [vmem:[%s254] sm:$0xff]
    %v256 = vld [vmem:[%s254 + $0x8] sm:$0xff]
    %s257 = scalar_lea.vmem [#allocation11], 1
    %v258 = vld [vmem:[%s257] sm:$0x1]
    %v260 = vlaneseq
    %v261 = vshrl.u32 %v260, 7
    %v262 = vsub.s32 0, %v261
    %v263 = vrot.slane %v258, %v262
    %265 = vmatprep.subr.mxu0 0.0
    %266 = vmatpush1.msra.mxu0 %v255
    %267 = vmatprep.subr.mxu0 0.0
    %268 = vmatpush1.msra.mxu0 %v256
    %269 = vmatprep.subr.mxu0 0.0
    %270 = vmatpush1.msra.mxu0 0.0
    %271 = vmatprep.subr.mxu0 0.0
    %272 = vmatpush1.msra.mxu0 0.0
    %273 = vmatprep.subr.mxu0 0.0
    %274 = vmatpush1.msra.mxu0 0.0
    %275 = vmatprep.subr.mxu0 0.0
    %276 = vmatpush1.msra.mxu0 0.0
    %277 = vmatprep.subr.mxu0 0.0
    %278 = vmatpush1.msra.mxu0 0.0
    %279 = vmatprep.subr.mxu0 0.0
    %280 = vmatpush1.msra.mxu0 0.0
    %281 = vmatprep.subr.mxu0 0.0
    %282 = vmatpush1.msra.mxu0 0.0
    %283 = vmatprep.subr.mxu0 0.0
    %284 = vmatpush1.msra.mxu0 0.0
    %285 = vmatprep.subr.mxu0 0.0
    %286 = vmatpush1.msra.mxu0 0.0
    %287 = vmatprep.subr.mxu0 0.0
    %288 = vmatpush1.msra.mxu0 0.0
    %289 = vmatprep.subr.mxu0 0.0
    %290 = vmatpush1.msra.mxu0 0.0
    %291 = vmatprep.subr.mxu0 0.0
    %292 = vmatpush1.msra.mxu0 0.0
    %293 = vmatprep.subr.mxu0 0.0
    %294 = vmatpush1.msra.mxu0 0.0
    %295 = vmatprep.subr.mxu0 0.0
    %296 = vmatpush1.msra.mxu0 0.0
    %297 = vmatprep.subr.mxu0 0.0
    %298 = vmatpush1.msra.mxu0 0.0
    %299 = vmatprep.subr.mxu0 0.0
    %300 = vmatpush1.msra.mxu0 0.0
    %301 = vmatprep.subr.mxu0 0.0
    %302 = vmatpush1.msra.mxu0 0.0
    %303 = vmatprep.subr.mxu0 0.0
    %304 = vmatpush1.msra.mxu0 0.0
    %305 = vmatprep.subr.mxu0 0.0
    %306 = vmatpush1.msra.mxu0 0.0
    %307 = vmatprep.subr.mxu0 0.0
    %308 = vmatpush1.msra.mxu0 0.0
    %309 = vmatprep.subr.mxu0 0.0
    %310 = vmatpush1.msra.mxu0 0.0
    %311 = vmatprep.subr.mxu0 0.0
    %312 = vmatpush1.msra.mxu0 0.0
    %313 = vmatprep.subr.mxu0 0.0
    %314 = vmatpush1.msra.mxu0 0.0
    %315 = vmatprep.subr.mxu0 0.0
    %316 = vmatpush1.msra.mxu0 0.0
    %317 = vmatprep.subr.mxu0 0.0
    %318 = vmatpush1.msra.mxu0 0.0
    %319 = vmatprep.subr.mxu0 0.0
    %320 = vmatpush1.msra.mxu0 0.0
    %321 = vmatprep.subr.mxu0 0.0
    %322 = vmatpush1.msra.mxu0 0.0
    %323 = vmatprep.subr.mxu0 0.0
    %324 = vmatpush1.msra.mxu0 0.0
    %325 = vmatprep.subr.mxu0 0.0
    %326 = vmatpush1.msra.mxu0 0.0
    %327 = vmatprep.subr.mxu0 0.0
    %328 = vmatpush1.msra.mxu0 0.0
    %329 = vmatprep.mubr.f32.mxu0 0.0
    %330 = vmatmul.mubr.f32.gmra.mrb[0].mxu0 %v174
    %v331 = vpop.f32.mrb[0].mxu0
    %v332 = vadd.f32 %v263, %v331
    %v333 = vpop.f32.mrb[0].mxu0
    %334 = vmatprep.mubr.f32.mxu0 0.0
    %335 = vmatmul.mubr.f32.gmra.mrb[0].mxu0 %v177
    %v336 = vpop.f32.mrb[0].mxu0
    %v337 = vadd.f32 %v263, %v336
    %v338 = vpop.f32.mrb[0].mxu0
    %339 = vdwg.mxu0
    %s340 = scalar_lea.vmem [#allocation8], 32
    %v341 = vld [vmem:[%s340] sm:$0xff]
    %v342 = vld [vmem:[%s340 + $0x8] sm:$0xff]
    %s343 = scalar_lea.vmem [#allocation11], 2
    %v344 = vld [vmem:[%s343] sm:$0x1]
    %v346 = vlaneseq
    %v347 = vshrl.u32 %v346, 7
    %v348 = vsub.s32 0, %v347
    %v349 = vrot.slane %v344, %v348
    %351 = vmatprep.subr.mxu0 0.0
    %352 = vmatpush1.msra.mxu0 %v341
    %353 = vmatprep.subr.mxu0 0.0
    %354 = vmatpush1.msra.mxu0 %v342
    %355 = vmatprep.subr.mxu0 0.0
    %356 = vmatpush1.msra.mxu0 0.0
    %357 = vmatprep.subr.mxu0 0.0
    %358 = vmatpush1.msra.mxu0 0.0
    %359 = vmatprep.subr.mxu0 0.0
    %360 = vmatpush1.msra.mxu0 0.0
    %361 = vmatprep.subr.mxu0 0.0
    %362 = vmatpush1.msra.mxu0 0.0
    %363 = vmatprep.subr.mxu0 0.0
    %364 = vmatpush1.msra.mxu0 0.0
    %365 = vmatprep.subr.mxu0 0.0
    %366 = vmatpush1.msra.mxu0 0.0
    %367 = vmatprep.subr.mxu0 0.0
    %368 = vmatpush1.msra.mxu0 0.0
    %369 = vmatprep.subr.mxu0 0.0
    %370 = vmatpush1.msra.mxu0 0.0
    %371 = vmatprep.subr.mxu0 0.0
    %372 = vmatpush1.msra.mxu0 0.0
    %373 = vmatprep.subr.mxu0 0.0
    %374 = vmatpush1.msra.mxu0 0.0
    %375 = vmatprep.subr.mxu0 0.0
    %376 = vmatpush1.msra.mxu0 0.0
    %377 = vmatprep.subr.mxu0 0.0
    %378 = vmatpush1.msra.mxu0 0.0
    %379 = vmatprep.subr.mxu0 0.0
    %380 = vmatpush1.msra.mxu0 0.0
    %381 = vmatprep.subr.mxu0 0.0
    %382 = vmatpush1.msra.mxu0 0.0
    %383 = vmatprep.subr.mxu0 0.0
    %384 = vmatpush1.msra.mxu0 0.0
    %385 = vmatprep.subr.mxu0 0.0
    %386 = vmatpush1.msra.mxu0 0.0
    %387 = vmatprep.subr.mxu0 0.0
    %388 = vmatpush1.msra.mxu0 0.0
    %389 = vmatprep.subr.mxu0 0.0
    %390 = vmatpush1.msra.mxu0 0.0
    %391 = vmatprep.subr.mxu0 0.0
    %392 = vmatpush1.msra.mxu0 0.0
    %393 = vmatprep.subr.mxu0 0.0
    %394 = vmatpush1.msra.mxu0 0.0
    %395 = vmatprep.subr.mxu0 0.0
    %396 = vmatpush1.msra.mxu0 0.0
    %397 = vmatprep.subr.mxu0 0.0
    %398 = vmatpush1.msra.mxu0 0.0
    %399 = vmatprep.subr.mxu0 0.0
    %400 = vmatpush1.msra.mxu0 0.0
    %401 = vmatprep.subr.mxu0 0.0
    %402 = vmatpush1.msra.mxu0 0.0
    %403 = vmatprep.subr.mxu0 0.0
    %404 = vmatpush1.msra.mxu0 0.0
    %405 = vmatprep.subr.mxu0 0.0
    %406 = vmatpush1.msra.mxu0 0.0
    %407 = vmatprep.subr.mxu0 0.0
    %408 = vmatpush1.msra.mxu0 0.0
    %409 = vmatprep.subr.mxu0 0.0
    %410 = vmatpush1.msra.mxu0 0.0
    %411 = vmatprep.subr.mxu0 0.0
    %412 = vmatpush1.msra.mxu0 0.0
    %413 = vmatprep.subr.mxu0 0.0
    %414 = vmatpush1.msra.mxu0 0.0
    %415 = vmatprep.mubr.f32.mxu0 0.0
    %416 = vmatmul.mubr.f32.gmra.mrb[0].mxu0 %v174
    %v417 = vpop.f32.mrb[0].mxu0
    %v418 = vadd.f32 %v349, %v417
    %v419 = vpop.f32.mrb[0].mxu0
    %420 = vmatprep.mubr.f32.mxu0 0.0
    %421 = vmatmul.mubr.f32.gmra.mrb[0].mxu0 %v177
    %v422 = vpop.f32.mrb[0].mxu0
    %v423 = vadd.f32 %v349, %v422
    %v424 = vpop.f32.mrb[0].mxu0
    %425 = vdwg.mxu0
    %v426 = vld [vmem:[#allocation10] sm:$0xff]
    %v427 = vld [vmem:[#allocation10 + $0x8] sm:$0xff]
    %v428 = vld [vmem:[#allocation10 + $0x10] sm:$0xff]
    %v429 = vld [vmem:[#allocation10 + $0x18] sm:$0xff]
    %s430 = scalar_lea.vmem [#allocation10], 32
    %v431 = vld [vmem:[%s430] sm:$0xff]
    %v432 = vld [vmem:[%s430 + $0x8] sm:$0xff]
    %v433 = vld [vmem:[%s430 + $0x10] sm:$0xff]
    %v434 = vld [vmem:[%s430 + $0x18] sm:$0xff]
    %s435 = scalar_lea.vmem [#allocation10], 64
    %v436 = vld [vmem:[%s435] sm:$0xff]
    %v437 = vld [vmem:[%s435 + $0x8] sm:$0xff]
    %v438 = vld [vmem:[%s435 + $0x10] sm:$0xff]
    %v439 = vld [vmem:[%s435 + $0x18] sm:$0xff]
    %v440 = vld [vmem:[#allocation13] sm:$0x1]
    %v442 = vlaneseq
    %v443 = vshrl.u32 %v442, 7
    %v444 = vsub.s32 0, %v443
    %v445 = vrot.slane %v440, %v444
    %s447 = scalar_lea.vmem [#allocation13], 1
    %v448 = vld [vmem:[%s447] sm:$0x1]
    %v450 = vlaneseq
    %v451 = vshrl.u32 %v450, 7
    %v452 = vsub.s32 0, %v451
    %v453 = vrot.slane %v448, %v452
    %s455 = scalar_lea.vmem [#allocation13], 2
    %v456 = vld [vmem:[%s455] sm:$0x1]
    %v458 = vlaneseq
    %v459 = vshrl.u32 %v458, 7
    %v460 = vsub.s32 0, %v459
    %v461 = vrot.slane %v456, %v460
    %v463 = vld [vmem:[#allocation14] sm:$0xff]
    %v464 = vld [vmem:[#allocation14 + $0x8] sm:$0xff]
    %v465 = vld [vmem:[#allocation14 + $0x10] sm:$0xff]
    %v466 = vld [vmem:[#allocation14 + $0x18] sm:$0xff]
    %s467 = scalar_lea.vmem [#allocation14], 32
    %v468 = vld [vmem:[%s467] sm:$0xff]
    %v469 = vld [vmem:[%s467 + $0x8] sm:$0xff]
    %v470 = vld [vmem:[%s467 + $0x10] sm:$0xff]
    %v471 = vld [vmem:[%s467 + $0x18] sm:$0xff]
    %s472 = scalar_lea.vmem [#allocation14], 64
    %v473 = vld [vmem:[%s472] sm:$0xff]
    %v474 = vld [vmem:[%s472 + $0x8] sm:$0xff]
    %v475 = vld [vmem:[%s472 + $0x10] sm:$0xff]
    %v476 = vld [vmem:[%s472 + $0x18] sm:$0xff]
    %v477 = vld [vmem:[#allocation17] sm:$0x1]
    %v479 = vlaneseq
    %v480 = vshrl.u32 %v479, 7
    %v481 = vsub.s32 0, %v480
    %v482 = vrot.slane %v477, %v481
    %s484 = scalar_lea.vmem [#allocation17], 1
    %v485 = vld [vmem:[%s484] sm:$0x1]
    %v487 = vlaneseq
    %v488 = vshrl.u32 %v487, 7
    %v489 = vsub.s32 0, %v488
    %v490 = vrot.slane %v485, %v489
    %s492 = scalar_lea.vmem [#allocation17], 2
    %v493 = vld [vmem:[%s492] sm:$0x1]
    %v495 = vlaneseq
    %v496 = vshrl.u32 %v495, 7
    %v497 = vsub.s32 0, %v496
    %v498 = vrot.slane %v493, %v497
    %vm500 = vcmask 261120
    %v502 = vsel %vm500, 0.0, 0
    %504 = vmatprep.subr.mxu0 0.0
    %505 = vmatpush1.msra.mxu0 %v426
    %506 = vmatprep.subr.mxu0 0.0
    %507 = vmatpush1.msra.mxu0 %v427
    %508 = vmatprep.subr.mxu0 0.0
    %509 = vmatpush1.msra.mxu0 %v428
    %510 = vmatprep.subr.mxu0 0.0
    %511 = vmatpush1.msra.mxu0 %v429
    %512 = vmatprep.subr.mxu0 0.0
    %513 = vmatpush1.msra.mxu0 0.0
    %514 = vmatprep.subr.mxu0 0.0
    %515 = vmatpush1.msra.mxu0 0.0
    %516 = vmatprep.subr.mxu0 0.0
    %517 = vmatpush1.msra.mxu0 0.0
    %518 = vmatprep.subr.mxu0 0.0
    %519 = vmatpush1.msra.mxu0 0.0
    %520 = vmatprep.subr.mxu0 0.0
    %521 = vmatpush1.msra.mxu0 0.0
    %522 = vmatprep.subr.mxu0 0.0
    %523 = vmatpush1.msra.mxu0 0.0
    %524 = vmatprep.subr.mxu0 0.0
    %525 = vmatpush1.msra.mxu0 0.0
    %526 = vmatprep.subr.mxu0 0.0
    %527 = vmatpush1.msra.mxu0 0.0
    %528 = vmatprep.subr.mxu0 0.0
    %529 = vmatpush1.msra.mxu0 0.0
    %530 = vmatprep.subr.mxu0 0.0
    %531 = vmatpush1.msra.mxu0 0.0
    %532 = vmatprep.subr.mxu0 0.0
    %533 = vmatpush1.msra.mxu0 0.0
    %534 = vmatprep.subr.mxu0 0.0
    %535 = vmatpush1.msra.mxu0 0.0
    %536 = vmatprep.subr.mxu0 0.0
    %537 = vmatpush1.msra.mxu0 0.0
    %538 = vmatprep.subr.mxu0 0.0
    %539 = vmatpush1.msra.mxu0 0.0
    %540 = vmatprep.subr.mxu0 0.0
    %541 = vmatpush1.msra.mxu0 0.0
    %542 = vmatprep.subr.mxu0 0.0
    %543 = vmatpush1.msra.mxu0 0.0
    %544 = vmatprep.subr.mxu0 0.0
    %545 = vmatpush1.msra.mxu0 0.0
    %546 = vmatprep.subr.mxu0 0.0
    %547 = vmatpush1.msra.mxu0 0.0
    %548 = vmatprep.subr.mxu0 0.0
    %549 = vmatpush1.msra.mxu0 0.0
    %550 = vmatprep.subr.mxu0 0.0
    %551 = vmatpush1.msra.mxu0 0.0
    %552 = vmatprep.subr.mxu0 0.0
    %553 = vmatpush1.msra.mxu0 0.0
    %554 = vmatprep.subr.mxu0 0.0
    %555 = vmatpush1.msra.mxu0 0.0
    %556 = vmatprep.subr.mxu0 0.0
    %557 = vmatpush1.msra.mxu0 0.0
    %558 = vmatprep.subr.mxu0 0.0
    %559 = vmatpush1.msra.mxu0 0.0
    %560 = vmatprep.subr.mxu0 0.0
    %561 = vmatpush1.msra.mxu0 0.0
    %562 = vmatprep.subr.mxu0 0.0
    %563 = vmatpush1.msra.mxu0 0.0
    %564 = vmatprep.subr.mxu0 0.0
    %565 = vmatpush1.msra.mxu0 0.0
    %566 = vmatprep.subr.mxu0 0.0
    %567 = vmatpush1.msra.mxu0 0.0
    %568 = vmatprep.mubr.f32.mxu0 0.0
    %569 = vmatmul.mubr.f32.gmra.mrb[0].mxu0 %v502
    %v570 = vpop.f32.mrb[0].mxu0
    %v571 = vadd.f32 %v445, %v570
    %v572 = vpop.f32.mrb[0].mxu0
    %573 = vdwg.mxu0
    %574 = vmatprep.subr.mxu0 0.0
    %575 = vmatpush1.msra.mxu0 %v431
    %576 = vmatprep.subr.mxu0 0.0
    %577 = vmatpush1.msra.mxu0 %v432
    %578 = vmatprep.subr.mxu0 0.0
    %579 = vmatpush1.msra.mxu0 %v433
    %580 = vmatprep.subr.mxu0 0.0
    %581 = vmatpush1.msra.mxu0 %v434
    %582 = vmatprep.subr.mxu0 0.0
    %583 = vmatpush1.msra.mxu0 0.0
    %584 = vmatprep.subr.mxu0 0.0
    %585 = vmatpush1.msra.mxu0 0.0
    %586 = vmatprep.subr.mxu0 0.0
    %587 = vmatpush1.msra.mxu0 0.0
    %588 = vmatprep.subr.mxu0 0.0
    %589 = vmatpush1.msra.mxu0 0.0
    %590 = vmatprep.subr.mxu0 0.0
    %591 = vmatpush1.msra.mxu0 0.0
    %592 = vmatprep.subr.mxu0 0.0
    %593 = vmatpush1.msra.mxu0 0.0
    %594 = vmatprep.subr.mxu0 0.0
    %595 = vmatpush1.msra.mxu0 0.0
    %596 = vmatprep.subr.mxu0 0.0
    %597 = vmatpush1.msra.mxu0 0.0
    %598 = vmatprep.subr.mxu0 0.0
    %599 = vmatpush1.msra.mxu0 0.0
    %600 = vmatprep.subr.mxu0 0.0
    %601 = vmatpush1.msra.mxu0 0.0
    %602 = vmatprep.subr.mxu0 0.0
    %603 = vmatpush1.msra.mxu0 0.0
    %604 = vmatprep.subr.mxu0 0.0
    %605 = vmatpush1.msra.mxu0 0.0
    %606 = vmatprep.subr.mxu0 0.0
    %607 = vmatpush1.msra.mxu0 0.0
    %608 = vmatprep.subr.mxu0 0.0
    %609 = vmatpush1.msra.mxu0 0.0
    %610 = vmatprep.subr.mxu0 0.0
    %611 = vmatpush1.msra.mxu0 0.0
    %612 = vmatprep.subr.mxu0 0.0
    %613 = vmatpush1.msra.mxu0 0.0
    %614 = vmatprep.subr.mxu0 0.0
    %615 = vmatpush1.msra.mxu0 0.0
    %616 = vmatprep.subr.mxu0 0.0
    %617 = vmatpush1.msra.mxu0 0.0
    %618 = vmatprep.subr.mxu0 0.0
    %619 = vmatpush1.msra.mxu0 0.0
    %620 = vmatprep.subr.mxu0 0.0
    %621 = vmatpush1.msra.mxu0 0.0
    %622 = vmatprep.subr.mxu0 0.0
    %623 = vmatpush1.msra.mxu0 0.0
    %624 = vmatprep.subr.mxu0 0.0
    %625 = vmatpush1.msra.mxu0 0.0
    %626 = vmatprep.subr.mxu0 0.0
    %627 = vmatpush1.msra.mxu0 0.0
    %628 = vmatprep.subr.mxu0 0.0
    %629 = vmatpush1.msra.mxu0 0.0
    %630 = vmatprep.subr.mxu0 0.0
    %631 = vmatpush1.msra.mxu0 0.0
    %632 = vmatprep.subr.mxu0 0.0
    %633 = vmatpush1.msra.mxu0 0.0
    %634 = vmatprep.subr.mxu0 0.0
    %635 = vmatpush1.msra.mxu0 0.0
    %636 = vmatprep.subr.mxu0 0.0
    %637 = vmatpush1.msra.mxu0 0.0
    %638 = vmatprep.mubr.f32.mxu0 0.0
    %639 = vmatmul.mubr.f32.gmra.mrb[0].mxu0 %v502
    %v640 = vpop.f32.mrb[0].mxu0
    %v641 = vadd.f32 %v453, %v640
    %v642 = vpop.f32.mrb[0].mxu0
    %643 = vdwg.mxu0
    %644 = vmatprep.subr.mxu0 0.0
    %645 = vmatpush1.msra.mxu0 %v436
    %646 = vmatprep.subr.mxu0 0.0
    %647 = vmatpush1.msra.mxu0 %v437
    %648 = vmatprep.subr.mxu0 0.0
    %649 = vmatpush1.msra.mxu0 %v438
    %650 = vmatprep.subr.mxu0 0.0
    %651 = vmatpush1.msra.mxu0 %v439
    %652 = vmatprep.subr.mxu0 0.0
    %653 = vmatpush1.msra.mxu0 0.0
    %654 = vmatprep.subr.mxu0 0.0
    %655 = vmatpush1.msra.mxu0 0.0
    %656 = vmatprep.subr.mxu0 0.0
    %657 = vmatpush1.msra.mxu0 0.0
    %658 = vmatprep.subr.mxu0 0.0
    %659 = vmatpush1.msra.mxu0 0.0
    %660 = vmatprep.subr.mxu0 0.0
    %661 = vmatpush1.msra.mxu0 0.0
    %662 = vmatprep.subr.mxu0 0.0
    %663 = vmatpush1.msra.mxu0 0.0
    %664 = vmatprep.subr.mxu0 0.0
    %665 = vmatpush1.msra.mxu0 0.0
    %666 = vmatprep.subr.mxu0 0.0
    %667 = vmatpush1.msra.mxu0 0.0
    %668 = vmatprep.subr.mxu0 0.0
    %669 = vmatpush1.msra.mxu0 0.0
    %670 = vmatprep.subr.mxu0 0.0
    %671 = vmatpush1.msra.mxu0 0.0
    %672 = vmatprep.subr.mxu0 0.0
    %673 = vmatpush1.msra.mxu0 0.0
    %674 = vmatprep.subr.mxu0 0.0
    %675 = vmatpush1.msra.mxu0 0.0
    %676 = vmatprep.subr.mxu0 0.0
    %677 = vmatpush1.msra.mxu0 0.0
    %678 = vmatprep.subr.mxu0 0.0
    %679 = vmatpush1.msra.mxu0 0.0
    %680 = vmatprep.subr.mxu0 0.0
    %681 = vmatpush1.msra.mxu0 0.0
    %682 = vmatprep.subr.mxu0 0.0
    %683 = vmatpush1.msra.mxu0 0.0
    %684 = vmatprep.subr.mxu0 0.0
    %685 = vmatpush1.msra.mxu0 0.0
    %686 = vmatprep.subr.mxu0 0.0
    %687 = vmatpush1.msra.mxu0 0.0
    %688 = vmatprep.subr.mxu0 0.0
    %689 = vmatpush1.msra.mxu0 0.0
    %690 = vmatprep.subr.mxu0 0.0
    %691 = vmatpush1.msra.mxu0 0.0
    %692 = vmatprep.subr.mxu0 0.0
    %693 = vmatpush1.msra.mxu0 0.0
    %694 = vmatprep.subr.mxu0 0.0
    %695 = vmatpush1.msra.mxu0 0.0
    %696 = vmatprep.subr.mxu0 0.0
    %697 = vmatpush1.msra.mxu0 0.0
    %698 = vmatprep.subr.mxu0 0.0
    %699 = vmatpush1.msra.mxu0 0.0
    %700 = vmatprep.subr.mxu0 0.0
    %701 = vmatpush1.msra.mxu0 0.0
    %702 = vmatprep.subr.mxu0 0.0
    %703 = vmatpush1.msra.mxu0 0.0
    %704 = vmatprep.subr.mxu0 0.0
    %705 = vmatpush1.msra.mxu0 0.0
    %706 = vmatprep.subr.mxu0 0.0
    %707 = vmatpush1.msra.mxu0 0.0
    %708 = vmatprep.mubr.f32.mxu0 0.0
    %709 = vmatmul.mubr.f32.gmra.mrb[0].mxu0 %v502
    %v710 = vpop.f32.mrb[0].mxu0
    %v711 = vadd.f32 %v461, %v710
    %v712 = vpop.f32.mrb[0].mxu0
    %713 = vdwg.mxu0
    %v714 = vadd.f32 %v246, %v571
    %v715 = vxor.u32 %v714, 2147483648
    %v716 = vmul.f32 %v715, 1.442695
    %v717 = vpow.pop %v716
    %v718 = vadd.f32 %v717, 1.0
    %v719 = vrcp.pop %v718
    %v720 = vmul.f32 1.0, %v719
    %v721 = vadd.f32 %v332, %v641
    %v722 = vxor.u32 %v721, 2147483648
    %v723 = vmul.f32 %v722, 1.442695
    %v724 = vpow.pop %v723
    %v725 = vadd.f32 %v724, 1.0
    %v726 = vrcp.pop %v725
    %v727 = vmul.f32 1.0, %v726
    %v728 = vmul.f32 %v720, %v711
    %v729 = vadd.f32 %v418, %v728
    %v730 = vtanh.pop %v729
    %v731 = vsub.f32 1.0, %v727
    %v732 = vmul.f32 %v731, %v730
    %v733 = vmul.f32 %v727, 0.0
    %v734 = vadd.f32 %v732, %v733
    %v736 = vsel %vm500, %v734, 0
    %738 = vmatprep.subr.mxu0 0.0
    %739 = vmatpush1.msra.mxu0 %v463
    %740 = vmatprep.subr.mxu0 0.0
    %741 = vmatpush1.msra.mxu0 %v464
    %742 = vmatprep.subr.mxu0 0.0
    %743 = vmatpush1.msra.mxu0 %v465
    %744 = vmatprep.subr.mxu0 0.0
    %745 = vmatpush1.msra.mxu0 %v466
    %746 = vmatprep.subr.mxu0 0.0
    %747 = vmatpush1.msra.mxu0 0.0
    %748 = vmatprep.subr.mxu0 0.0
    %749 = vmatpush1.msra.mxu0 0.0
    %750 = vmatprep.subr.mxu0 0.0
    %751 = vmatpush1.msra.mxu0 0.0
    %752 = vmatprep.subr.mxu0 0.0
    %753 = vmatpush1.msra.mxu0 0.0
    %754 = vmatprep.subr.mxu0 0.0
    %755 = vmatpush1.msra.mxu0 0.0
    %756 = vmatprep.subr.mxu0 0.0
    %757 = vmatpush1.msra.mxu0 0.0
    %758 = vmatprep.subr.mxu0 0.0
    %759 = vmatpush1.msra.mxu0 0.0
    %760 = vmatprep.subr.mxu0 0.0
    %761 = vmatpush1.msra.mxu0 0.0
    %762 = vmatprep.subr.mxu0 0.0
    %763 = vmatpush1.msra.mxu0 0.0
    %764 = vmatprep.subr.mxu0 0.0
    %765 = vmatpush1.msra.mxu0 0.0
    %766 = vmatprep.subr.mxu0 0.0
    %767 = vmatpush1.msra.mxu0 0.0
    %768 = vmatprep.subr.mxu0 0.0
    %769 = vmatpush1.msra.mxu0 0.0
    %770 = vmatprep.subr.mxu0 0.0
    %771 = vmatpush1.msra.mxu0 0.0
    %772 = vmatprep.subr.mxu0 0.0
    %773 = vmatpush1.msra.mxu0 0.0
    %774 = vmatprep.subr.mxu0 0.0
    %775 = vmatpush1.msra.mxu0 0.0
    %776 = vmatprep.subr.mxu0 0.0
    %777 = vmatpush1.msra.mxu0 0.0
    %778 = vmatprep.subr.mxu0 0.0
    %779 = vmatpush1.msra.mxu0 0.0
    %780 = vmatprep.subr.mxu0 0.0
    %781 = vmatpush1.msra.mxu0 0.0
    %782 = vmatprep.subr.mxu0 0.0
    %783 = vmatpush1.msra.mxu0 0.0
    %784 = vmatprep.subr.mxu0 0.0
    %785 = vmatpush1.msra.mxu0 0.0
    %786 = vmatprep.subr.mxu0 0.0
    %787 = vmatpush1.msra.mxu0 0.0
    %788 = vmatprep.subr.mxu0 0.0
    %789 = vmatpush1.msra.mxu0 0.0
    %790 = vmatprep.subr.mxu0 0.0
    %791 = vmatpush1.msra.mxu0 0.0
    %792 = vmatprep.subr.mxu0 0.0
    %793 = vmatpush1.msra.mxu0 0.0
    %794 = vmatprep.subr.mxu0 0.0
    %795 = vmatpush1.msra.mxu0 0.0
    %796 = vmatprep.subr.mxu0 0.0
    %797 = vmatpush1.msra.mxu0 0.0
    %798 = vmatprep.subr.mxu0 0.0
    %799 = vmatpush1.msra.mxu0 0.0
    %800 = vmatprep.subr.mxu0 0.0
    %801 = vmatpush1.msra.mxu0 0.0
    %802 = vmatprep.mubr.f32.mxu0 0.0
    %803 = vmatmul.mubr.f32.gmra.mrb[0].mxu0 %v736
    %v804 = vpop.f32.mrb[0].mxu0
    %v805 = vadd.f32 %v482, %v804
    %v806 = vpop.f32.mrb[0].mxu0
    %807 = vdwg.mxu0
    %vm808 = vcmask 254976
    %809 = vst.msk [vmem:[#allocation2] sm:$0x3] %vm808, %v805
    %810 = vmatprep.subr.mxu0 0.0
    %811 = vmatpush1.msra.mxu0 %v468
    %812 = vmatprep.subr.mxu0 0.0
    %813 = vmatpush1.msra.mxu0 %v469
    %814 = vmatprep.subr.mxu0 0.0
    %815 = vmatpush1.msra.mxu0 %v470
    %816 = vmatprep.subr.mxu0 0.0
    %817 = vmatpush1.msra.mxu0 %v471
    %818 = vmatprep.subr.mxu0 0.0
    %819 = vmatpush1.msra.mxu0 0.0
    %820 = vmatprep.subr.mxu0 0.0
    %821 = vmatpush1.msra.mxu0 0.0
    %822 = vmatprep.subr.mxu0 0.0
    %823 = vmatpush1.msra.mxu0 0.0
    %824 = vmatprep.subr.mxu0 0.0
    %825 = vmatpush1.msra.mxu0 0.0
    %826 = vmatprep.subr.mxu0 0.0
    %827 = vmatpush1.msra.mxu0 0.0
    %828 = vmatprep.subr.mxu0 0.0
    %829 = vmatpush1.msra.mxu0 0.0
    %830 = vmatprep.subr.mxu0 0.0
    %831 = vmatpush1.msra.mxu0 0.0
    %832 = vmatprep.subr.mxu0 0.0
    %833 = vmatpush1.msra.mxu0 0.0
    %834 = vmatprep.subr.mxu0 0.0
    %835 = vmatpush1.msra.mxu0 0.0
    %836 = vmatprep.subr.mxu0 0.0
    %837 = vmatpush1.msra.mxu0 0.0
    %838 = vmatprep.subr.mxu0 0.0
    %839 = vmatpush1.msra.mxu0 0.0
    %840 = vmatprep.subr.mxu0 0.0
    %841 = vmatpush1.msra.mxu0 0.0
    %842 = vmatprep.subr.mxu0 0.0
    %843 = vmatpush1.msra.mxu0 0.0
    %844 = vmatprep.subr.mxu0 0.0
    %845 = vmatpush1.msra.mxu0 0.0
    %846 = vmatprep.subr.mxu0 0.0
    %847 = vmatpush1.msra.mxu0 0.0
    %848 = vmatprep.subr.mxu0 0.0
    %849 = vmatpush1.msra.mxu0 0.0
    %850 = vmatprep.subr.mxu0 0.0
    %851 = vmatpush1.msra.mxu0 0.0
    %852 = vmatprep.subr.mxu0 0.0
    %853 = vmatpush1.msra.mxu0 0.0
    %854 = vmatprep.subr.mxu0 0.0
    %855 = vmatpush1.msra.mxu0 0.0
    %856 = vmatprep.subr.mxu0 0.0
    %857 = vmatpush1.msra.mxu0 0.0
    %858 = vmatprep.subr.mxu0 0.0
    %859 = vmatpush1.msra.mxu0 0.0
    %860 = vmatprep.subr.mxu0 0.0
    %861 = vmatpush1.msra.mxu0 0.0
    %862 = vmatprep.subr.mxu0 0.0
    %863 = vmatpush1.msra.mxu0 0.0
    %864 = vmatprep.subr.mxu0 0.0
    %865 = vmatpush1.msra.mxu0 0.0
    %866 = vmatprep.subr.mxu0 0.0
    %867 = vmatpush1.msra.mxu0 0.0
    %868 = vmatprep.subr.mxu0 0.0
    %869 = vmatpush1.msra.mxu0 0.0
    %870 = vmatprep.subr.mxu0 0.0
    %871 = vmatpush1.msra.mxu0 0.0
    %872 = vmatprep.subr.mxu0 0.0
    %873 = vmatpush1.msra.mxu0 0.0
    %874 = vmatprep.mubr.f32.mxu0 0.0
    %875 = vmatmul.mubr.f32.gmra.mrb[0].mxu0 %v736
    %v876 = vpop.f32.mrb[0].mxu0
    %v877 = vadd.f32 %v490, %v876
    %v878 = vpop.f32.mrb[0].mxu0
    %879 = vdwg.mxu0
    %880 = vst.msk [vmem:[#allocation3] sm:$0x3] %vm808, %v877
    %881 = vmatprep.subr.mxu0 0.0
    %882 = vmatpush1.msra.mxu0 %v473
    %883 = vmatprep.subr.mxu0 0.0
    %884 = vmatpush1.msra.mxu0 %v474
    %885 = vmatprep.subr.mxu0 0.0
    %886 = vmatpush1.msra.mxu0 %v475
    %887 = vmatprep.subr.mxu0 0.0
    %888 = vmatpush1.msra.mxu0 %v476
    %889 = vmatprep.subr.mxu0 0.0
    %890 = vmatpush1.msra.mxu0 0.0
    %891 = vmatprep.subr.mxu0 0.0
    %892 = vmatpush1.msra.mxu0 0.0
    %893 = vmatprep.subr.mxu0 0.0
    %894 = vmatpush1.msra.mxu0 0.0
    %895 = vmatprep.subr.mxu0 0.0
    %896 = vmatpush1.msra.mxu0 0.0
    %897 = vmatprep.subr.mxu0 0.0
    %898 = vmatpush1.msra.mxu0 0.0
    %899 = vmatprep.subr.mxu0 0.0
    %900 = vmatpush1.msra.mxu0 0.0
    %901 = vmatprep.subr.mxu0 0.0
    %902 = vmatpush1.msra.mxu0 0.0
    %903 = vmatprep.subr.mxu0 0.0
    %904 = vmatpush1.msra.mxu0 0.0
    %905 = vmatprep.subr.mxu0 0.0
    %906 = vmatpush1.msra.mxu0 0.0
    %907 = vmatprep.subr.mxu0 0.0
    %908 = vmatpush1.msra.mxu0 0.0
    %909 = vmatprep.subr.mxu0 0.0
    %910 = vmatpush1.msra.mxu0 0.0
    %911 = vmatprep.subr.mxu0 0.0
    %912 = vmatpush1.msra.mxu0 0.0
    %913 = vmatprep.subr.mxu0 0.0
    %914 = vmatpush1.msra.mxu0 0.0
    %915 = vmatprep.subr.mxu0 0.0
    %916 = vmatpush1.msra.mxu0 0.0
    %917 = vmatprep.subr.mxu0 0.0
    %918 = vmatpush1.msra.mxu0 0.0
    %919 = vmatprep.subr.mxu0 0.0
    %920 = vmatpush1.msra.mxu0 0.0
    %921 = vmatprep.subr.mxu0 0.0
    %922 = vmatpush1.msra.mxu0 0.0
    %923 = vmatprep.subr.mxu0 0.0
    %924 = vmatpush1.msra.mxu0 0.0
    %925 = vmatprep.subr.mxu0 0.0
    %926 = vmatpush1.msra.mxu0 0.0
    %927 = vmatprep.subr.mxu0 0.0
    %928 = vmatpush1.msra.mxu0 0.0
    %929 = vmatprep.subr.mxu0 0.0
    %930 = vmatpush1.msra.mxu0 0.0
    %931 = vmatprep.subr.mxu0 0.0
    %932 = vmatpush1.msra.mxu0 0.0
    %933 = vmatprep.subr.mxu0 0.0
    %934 = vmatpush1.msra.mxu0 0.0
    %935 = vmatprep.subr.mxu0 0.0
    %936 = vmatpush1.msra.mxu0 0.0
    %937 = vmatprep.subr.mxu0 0.0
    %938 = vmatpush1.msra.mxu0 0.0
    %939 = vmatprep.subr.mxu0 0.0
    %940 = vmatpush1.msra.mxu0 0.0
    %941 = vmatprep.subr.mxu0 0.0
    %942 = vmatpush1.msra.mxu0 0.0
    %943 = vmatprep.subr.mxu0 0.0
    %944 = vmatpush1.msra.mxu0 0.0
    %945 = vmatprep.mubr.f32.mxu0 0.0
    %946 = vmatmul.mubr.f32.gmra.mrb[0].mxu0 %v736
    %v947 = vpop.f32.mrb[0].mxu0
    %v948 = vadd.f32 %v498, %v947
    %v949 = vpop.f32.mrb[0].mxu0
    %950 = vdwg.mxu0
    %951 = vst.msk [vmem:[#allocation4] sm:$0x3] %vm808, %v948
    %952 = vmatprep.subr.mxu0 0.0
    %953 = vmatpush1.msra.mxu0 %v426
    %954 = vmatprep.subr.mxu0 0.0
    %955 = vmatpush1.msra.mxu0 %v427
    %956 = vmatprep.subr.mxu0 0.0
    %957 = vmatpush1.msra.mxu0 %v428
    %958 = vmatprep.subr.mxu0 0.0
    %959 = vmatpush1.msra.mxu0 %v429
    %960 = vmatprep.subr.mxu0 0.0
    %961 = vmatpush1.msra.mxu0 0.0
    %962 = vmatprep.subr.mxu0 0.0
    %963 = vmatpush1.msra.mxu0 0.0
    %964 = vmatprep.subr.mxu0 0.0
    %965 = vmatpush1.msra.mxu0 0.0
    %966 = vmatprep.subr.mxu0 0.0
    %967 = vmatpush1.msra.mxu0 0.0
    %968 = vmatprep.subr.mxu0 0.0
    %969 = vmatpush1.msra.mxu0 0.0
    %970 = vmatprep.subr.mxu0 0.0
    %971 = vmatpush1.msra.mxu0 0.0
    %972 = vmatprep.subr.mxu0 0.0
    %973 = vmatpush1.msra.mxu0 0.0
    %974 = vmatprep.subr.mxu0 0.0
    %975 = vmatpush1.msra.mxu0 0.0
    %976 = vmatprep.subr.mxu0 0.0
    %977 = vmatpush1.msra.mxu0 0.0
    %978 = vmatprep.subr.mxu0 0.0
    %979 = vmatpush1.msra.mxu0 0.0
    %980 = vmatprep.subr.mxu0 0.0
    %981 = vmatpush1.msra.mxu0 0.0
    %982 = vmatprep.subr.mxu0 0.0
    %983 = vmatpush1.msra.mxu0 0.0
    %984 = vmatprep.subr.mxu0 0.0
    %985 = vmatpush1.msra.mxu0 0.0
    %986 = vmatprep.subr.mxu0 0.0
    %987 = vmatpush1.msra.mxu0 0.0
    %988 = vmatprep.subr.mxu0 0.0
    %989 = vmatpush1.msra.mxu0 0.0
    %990 = vmatprep.subr.mxu0 0.0
    %991 = vmatpush1.msra.mxu0 0.0
    %992 = vmatprep.subr.mxu0 0.0
    %993 = vmatpush1.msra.mxu0 0.0
    %994 = vmatprep.subr.mxu0 0.0
    %995 = vmatpush1.msra.mxu0 0.0
    %996 = vmatprep.subr.mxu0 0.0
    %997 = vmatpush1.msra.mxu0 0.0
    %998 = vmatprep.subr.mxu0 0.0
    %999 = vmatpush1.msra.mxu0 0.0
    %1000 = vmatprep.subr.mxu0 0.0
    %1001 = vmatpush1.msra.mxu0 0.0
    %1002 = vmatprep.subr.mxu0 0.0
    %1003 = vmatpush1.msra.mxu0 0.0
    %1004 = vmatprep.subr.mxu0 0.0
    %1005 = vmatpush1.msra.mxu0 0.0
    %1006 = vmatprep.subr.mxu0 0.0
    %1007 = vmatpush1.msra.mxu0 0.0
    %1008 = vmatprep.subr.mxu0 0.0
    %1009 = vmatpush1.msra.mxu0 0.0
    %1010 = vmatprep.subr.mxu0 0.0
    %1011 = vmatpush1.msra.mxu0 0.0
    %1012 = vmatprep.subr.mxu0 0.0
    %1013 = vmatpush1.msra.mxu0 0.0
    %1014 = vmatprep.subr.mxu0 0.0
    %1015 = vmatpush1.msra.mxu0 0.0
    %1016 = vmatprep.mubr.f32.mxu0 0.0
    %1017 = vmatmul.mubr.f32.gmra.mrb[0].mxu0 %v736
    %v1018 = vpop.f32.mrb[0].mxu0
    %v1019 = vadd.f32 %v445, %v1018
    %v1020 = vpop.f32.mrb[0].mxu0
    %1021 = vdwg.mxu0
    %1022 = vmatprep.subr.mxu0 0.0
    %1023 = vmatpush1.msra.mxu0 %v431
    %1024 = vmatprep.subr.mxu0 0.0
    %1025 = vmatpush1.msra.mxu0 %v432
    %1026 = vmatprep.subr.mxu0 0.0
    %1027 = vmatpush1.msra.mxu0 %v433
    %1028 = vmatprep.subr.mxu0 0.0
    %1029 = vmatpush1.msra.mxu0 %v434
    %1030 = vmatprep.subr.mxu0 0.0
    %1031 = vmatpush1.msra.mxu0 0.0
    %1032 = vmatprep.subr.mxu0 0.0
    %1033 = vmatpush1.msra.mxu0 0.0
    %1034 = vmatprep.subr.mxu0 0.0
    %1035 = vmatpush1.msra.mxu0 0.0
    %1036 = vmatprep.subr.mxu0 0.0
    %1037 = vmatpush1.msra.mxu0 0.0
    %1038 = vmatprep.subr.mxu0 0.0
    %1039 = vmatpush1.msra.mxu0 0.0
    %1040 = vmatprep.subr.mxu0 0.0
    %1041 = vmatpush1.msra.mxu0 0.0
    %1042 = vmatprep.subr.mxu0 0.0
    %1043 = vmatpush1.msra.mxu0 0.0
    %1044 = vmatprep.subr.mxu0 0.0
    %1045 = vmatpush1.msra.mxu0 0.0
    %1046 = vmatprep.subr.mxu0 0.0
    %1047 = vmatpush1.msra.mxu0 0.0
    %1048 = vmatprep.subr.mxu0 0.0
    %1049 = vmatpush1.msra.mxu0 0.0
    %1050 = vmatprep.subr.mxu0 0.0
    %1051 = vmatpush1.msra.mxu0 0.0
    %1052 = vmatprep.subr.mxu0 0.0
    %1053 = vmatpush1.msra.mxu0 0.0
    %1054 = vmatprep.subr.mxu0 0.0
    %1055 = vmatpush1.msra.mxu0 0.0
    %1056 = vmatprep.subr.mxu0 0.0
    %1057 = vmatpush1.msra.mxu0 0.0
    %1058 = vmatprep.subr.mxu0 0.0
    %1059 = vmatpush1.msra.mxu0 0.0
    %1060 = vmatprep.subr.mxu0 0.0
    %1061 = vmatpush1.msra.mxu0 0.0
    %1062 = vmatprep.subr.mxu0 0.0
    %1063 = vmatpush1.msra.mxu0 0.0
    %1064 = vmatprep.subr.mxu0 0.0
    %1065 = vmatpush1.msra.mxu0 0.0
    %1066 = vmatprep.subr.mxu0 0.0
    %1067 = vmatpush1.msra.mxu0 0.0
    %1068 = vmatprep.subr.mxu0 0.0
    %1069 = vmatpush1.msra.mxu0 0.0
    %1070 = vmatprep.subr.mxu0 0.0
    %1071 = vmatpush1.msra.mxu0 0.0
    %1072 = vmatprep.subr.mxu0 0.0
    %1073 = vmatpush1.msra.mxu0 0.0
    %1074 = vmatprep.subr.mxu0 0.0
    %1075 = vmatpush1.msra.mxu0 0.0
    %1076 = vmatprep.subr.mxu0 0.0
    %1077 = vmatpush1.msra.mxu0 0.0
    %1078 = vmatprep.subr.mxu0 0.0
    %1079 = vmatpush1.msra.mxu0 0.0
    %1080 = vmatprep.subr.mxu0 0.0
    %1081 = vmatpush1.msra.mxu0 0.0
    %1082 = vmatprep.subr.mxu0 0.0
    %1083 = vmatpush1.msra.mxu0 0.0
    %1084 = vmatprep.subr.mxu0 0.0
    %1085 = vmatpush1.msra.mxu0 0.0
    %1086 = vmatprep.mubr.f32.mxu0 0.0
    %1087 = vmatmul.mubr.f32.gmra.mrb[0].mxu0 %v736
    %v1088 = vpop.f32.mrb[0].mxu0
    %v1089 = vadd.f32 %v453, %v1088
    %v1090 = vpop.f32.mrb[0].mxu0
    %1091 = vdwg.mxu0
    %1092 = vmatprep.subr.mxu0 0.0
    %1093 = vmatpush1.msra.mxu0 %v436
    %1094 = vmatprep.subr.mxu0 0.0
    %1095 = vmatpush1.msra.mxu0 %v437
    %1096 = vmatprep.subr.mxu0 0.0
    %1097 = vmatpush1.msra.mxu0 %v438
    %1098 = vmatprep.subr.mxu0 0.0
    %1099 = vmatpush1.msra.mxu0 %v439
    %1100 = vmatprep.subr.mxu0 0.0
    %1101 = vmatpush1.msra.mxu0 0.0
    %1102 = vmatprep.subr.mxu0 0.0
    %1103 = vmatpush1.msra.mxu0 0.0
    %1104 = vmatprep.subr.mxu0 0.0
    %1105 = vmatpush1.msra.mxu0 0.0
    %1106 = vmatprep.subr.mxu0 0.0
    %1107 = vmatpush1.msra.mxu0 0.0
    %1108 = vmatprep.subr.mxu0 0.0
    %1109 = vmatpush1.msra.mxu0 0.0
    %1110 = vmatprep.subr.mxu0 0.0
    %1111 = vmatpush1.msra.mxu0 0.0
    %1112 = vmatprep.subr.mxu0 0.0
    %1113 = vmatpush1.msra.mxu0 0.0
    %1114 = vmatprep.subr.mxu0 0.0
    %1115 = vmatpush1.msra.mxu0 0.0
    %1116 = vmatprep.subr.mxu0 0.0
    %1117 = vmatpush1.msra.mxu0 0.0
    %1118 = vmatprep.subr.mxu0 0.0
    %1119 = vmatpush1.msra.mxu0 0.0
    %1120 = vmatprep.subr.mxu0 0.0
    %1121 = vmatpush1.msra.mxu0 0.0
    %1122 = vmatprep.subr.mxu0 0.0
    %1123 = vmatpush1.msra.mxu0 0.0
    %1124 = vmatprep.subr.mxu0 0.0
    %1125 = vmatpush1.msra.mxu0 0.0
    %1126 = vmatprep.subr.mxu0 0.0
    %1127 = vmatpush1.msra.mxu0 0.0
    %1128 = vmatprep.subr.mxu0 0.0
    %1129 = vmatpush1.msra.mxu0 0.0
    %1130 = vmatprep.subr.mxu0 0.0
    %1131 = vmatpush1.msra.mxu0 0.0
    %1132 = vmatprep.subr.mxu0 0.0
    %1133 = vmatpush1.msra.mxu0 0.0
    %1134 = vmatprep.subr.mxu0 0.0
    %1135 = vmatpush1.msra.mxu0 0.0
    %1136 = vmatprep.subr.mxu0 0.0
    %1137 = vmatpush1.msra.mxu0 0.0
    %1138 = vmatprep.subr.mxu0 0.0
    %1139 = vmatpush1.msra.mxu0 0.0
    %1140 = vmatprep.subr.mxu0 0.0
    %1141 = vmatpush1.msra.mxu0 0.0
    %1142 = vmatprep.subr.mxu0 0.0
    %1143 = vmatpush1.msra.mxu0 0.0
    %1144 = vmatprep.subr.mxu0 0.0
    %1145 = vmatpush1.msra.mxu0 0.0
    %1146 = vmatprep.subr.mxu0 0.0
    %1147 = vmatpush1.msra.mxu0 0.0
    %1148 = vmatprep.subr.mxu0 0.0
    %1149 = vmatpush1.msra.mxu0 0.0
    %1150 = vmatprep.subr.mxu0 0.0
    %1151 = vmatpush1.msra.mxu0 0.0
    %1152 = vmatprep.subr.mxu0 0.0
    %1153 = vmatpush1.msra.mxu0 0.0
    %1154 = vmatprep.subr.mxu0 0.0
    %1155 = vmatpush1.msra.mxu0 0.0
    %1156 = vmatprep.mubr.f32.mxu0 0.0
    %1157 = vmatmul.mubr.f32.gmra.mrb[0].mxu0 %v736
    %v1158 = vpop.f32.mrb[0].mxu0
    %v1159 = vadd.f32 %v461, %v1158
    %v1160 = vpop.f32.mrb[0].mxu0
    %1161 = vdwg.mxu0
    %v1163 = vrot.slane %v1019, 6
    %v1165 = vadd.f32 %v246, %v1163
    %v1166 = vxor.u32 %v1165, 2147483648
    %v1167 = vmul.f32 %v1166, 1.442695
    %v1168 = vpow.pop %v1167
    %v1169 = vadd.f32 %v1168, 1.0
    %v1170 = vrcp.pop %v1169
    %v1171 = vmul.f32 1.0, %v1170
    %v1173 = vrot.slane %v1089, 6
    %v1175 = vadd.f32 %v332, %v1173
    %v1176 = vxor.u32 %v1175, 2147483648
    %v1177 = vmul.f32 %v1176, 1.442695
    %v1178 = vpow.pop %v1177
    %v1179 = vadd.f32 %v1178, 1.0
    %v1180 = vrcp.pop %v1179
    %v1181 = vmul.f32 1.0, %v1180
    %v1183 = vrot.slane %v1159, 6
    %v1185 = vmul.f32 %v1171, %v1183
    %v1186 = vadd.f32 %v418, %v1185
    %v1187 = vtanh.pop %v1186
    %v1188 = vsub.f32 1.0, %v1181
    %v1189 = vmul.f32 %v1188, %v1187
    %v1190 = vrot.slane %v734, 6
    %v1192 = vmul.f32 %v1181, %v1190
    %v1193 = vadd.f32 %v1189, %v1192
    %v1195 = vrot.slane %v1193, 2
    %v1196 = vsel %vm500, %v1195, 0
    %1198 = vmatprep.subr.mxu0 0.0
    %1199 = vmatpush1.msra.mxu0 %v463
    %1200 = vmatprep.subr.mxu0 0.0
    %1201 = vmatpush1.msra.mxu0 %v464
    %1202 = vmatprep.subr.mxu0 0.0
    %1203 = vmatpush1.msra.mxu0 %v465
    %1204 = vmatprep.subr.mxu0 0.0
    %1205 = vmatpush1.msra.mxu0 %v466
    %1206 = vmatprep.subr.mxu0 0.0
    %1207 = vmatpush1.msra.mxu0 0.0
    %1208 = vmatprep.subr.mxu0 0.0
    %1209 = vmatpush1.msra.mxu0 0.0
    %1210 = vmatprep.subr.mxu0 0.0
    %1211 = vmatpush1.msra.mxu0 0.0
    %1212 = vmatprep.subr.mxu0 0.0
    %1213 = vmatpush1.msra.mxu0 0.0
    %1214 = vmatprep.subr.mxu0 0.0
    %1215 = vmatpush1.msra.mxu0 0.0
    %1216 = vmatprep.subr.mxu0 0.0
    %1217 = vmatpush1.msra.mxu0 0.0
    %1218 = vmatprep.subr.mxu0 0.0
    %1219 = vmatpush1.msra.mxu0 0.0
    %1220 = vmatprep.subr.mxu0 0.0
    %1221 = vmatpush1.msra.mxu0 0.0
    %1222 = vmatprep.subr.mxu0 0.0
    %1223 = vmatpush1.msra.mxu0 0.0
    %1224 = vmatprep.subr.mxu0 0.0
    %1225 = vmatpush1.msra.mxu0 0.0
    %1226 = vmatprep.subr.mxu0 0.0
    %1227 = vmatpush1.msra.mxu0 0.0
    %1228 = vmatprep.subr.mxu0 0.0
    %1229 = vmatpush1.msra.mxu0 0.0
    %1230 = vmatprep.subr.mxu0 0.0
    %1231 = vmatpush1.msra.mxu0 0.0
    %1232 = vmatprep.subr.mxu0 0.0
    %1233 = vmatpush1.msra.mxu0 0.0
    %1234 = vmatprep.subr.mxu0 0.0
    %1235 = vmatpush1.msra.mxu0 0.0
    %1236 = vmatprep.subr.mxu0 0.0
    %1237 = vmatpush1.msra.mxu0 0.0
    %1238 = vmatprep.subr.mxu0 0.0
    %1239 = vmatpush1.msra.mxu0 0.0
    %1240 = vmatprep.subr.mxu0 0.0
    %1241 = vmatpush1.msra.mxu0 0.0
    %1242 = vmatprep.subr.mxu0 0.0
    %1243 = vmatpush1.msra.mxu0 0.0
    %1244 = vmatprep.subr.mxu0 0.0
    %1245 = vmatpush1.msra.mxu0 0.0
    %1246 = vmatprep.subr.mxu0 0.0
    %1247 = vmatpush1.msra.mxu0 0.0
    %1248 = vmatprep.subr.mxu0 0.0
    %1249 = vmatpush1.msra.mxu0 0.0
    %1250 = vmatprep.subr.mxu0 0.0
    %1251 = vmatpush1.msra.mxu0 0.0
    %1252 = vmatprep.subr.mxu0 0.0
    %1253 = vmatpush1.msra.mxu0 0.0
    %1254 = vmatprep.subr.mxu0 0.0
    %1255 = vmatpush1.msra.mxu0 0.0
    %1256 = vmatprep.subr.mxu0 0.0
    %1257 = vmatpush1.msra.mxu0 0.0
    %1258 = vmatprep.subr.mxu0 0.0
    %1259 = vmatpush1.msra.mxu0 0.0
    %1260 = vmatprep.subr.mxu0 0.0
    %1261 = vmatpush1.msra.mxu0 0.0
    %1262 = vmatprep.mubr.f32.mxu0 0.0
    %1263 = vmatmul.mubr.f32.gmra.mrb[0].mxu0 %v1196
    %v1264 = vpop.f32.mrb[0].mxu0
    %v1265 = vadd.f32 %v482, %v1264
    %v1266 = vpop.f32.mrb[0].mxu0
    %1267 = vdwg.mxu0
    %s1268 = scalar_lea.vmem [#allocation2], 2
    %1269 = vst.msk [vmem:[%s1268] sm:$0x3] %vm808, %v1265
    %1270 = vmatprep.subr.mxu0 0.0
    %1271 = vmatpush1.msra.mxu0 %v468
    %1272 = vmatprep.subr.mxu0 0.0
    %1273 = vmatpush1.msra.mxu0 %v469
    %1274 = vmatprep.subr.mxu0 0.0
    %1275 = vmatpush1.msra.mxu0 %v470
    %1276 = vmatprep.subr.mxu0 0.0
    %1277 = vmatpush1.msra.mxu0 %v471
    %1278 = vmatprep.subr.mxu0 0.0
    %1279 = vmatpush1.msra.mxu0 0.0
    %1280 = vmatprep.subr.mxu0 0.0
    %1281 = vmatpush1.msra.mxu0 0.0
    %1282 = vmatprep.subr.mxu0 0.0
    %1283 = vmatpush1.msra.mxu0 0.0
    %1284 = vmatprep.subr.mxu0 0.0
    %1285 = vmatpush1.msra.mxu0 0.0
    %1286 = vmatprep.subr.mxu0 0.0
    %1287 = vmatpush1.msra.mxu0 0.0
    %1288 = vmatprep.subr.mxu0 0.0
    %1289 = vmatpush1.msra.mxu0 0.0
    %1290 = vmatprep.subr.mxu0 0.0
    %1291 = vmatpush1.msra.mxu0 0.0
    %1292 = vmatprep.subr.mxu0 0.0
    %1293 = vmatpush1.msra.mxu0 0.0
    %1294 = vmatprep.subr.mxu0 0.0
    %1295 = vmatpush1.msra.mxu0 0.0
    %1296 = vmatprep.subr.mxu0 0.0
    %1297 = vmatpush1.msra.mxu0 0.0
    %1298 = vmatprep.subr.mxu0 0.0
    %1299 = vmatpush1.msra.mxu0 0.0
    %1300 = vmatprep.subr.mxu0 0.0
    %1301 = vmatpush1.msra.mxu0 0.0
    %1302 = vmatprep.subr.mxu0 0.0
    %1303 = vmatpush1.msra.mxu0 0.0
    %1304 = vmatprep.subr.mxu0 0.0
    %1305 = vmatpush1.msra.mxu0 0.0
    %1306 = vmatprep.subr.mxu0 0.0
    %1307 = vmatpush1.msra.mxu0 0.0
    %1308 = vmatprep.subr.mxu0 0.0
    %1309 = vmatpush1.msra.mxu0 0.0
    %1310 = vmatprep.subr.mxu0 0.0
    %1311 = vmatpush1.msra.mxu0 0.0
    %1312 = vmatprep.subr.mxu0 0.0
    %1313 = vmatpush1.msra.mxu0 0.0
    %1314 = vmatprep.subr.mxu0 0.0
    %1315 = vmatpush1.msra.mxu0 0.0
    %1316 = vmatprep.subr.mxu0 0.0
    %1317 = vmatpush1.msra.mxu0 0.0
    %1318 = vmatprep.subr.mxu0 0.0
    %1319 = vmatpush1.msra.mxu0 0.0
    %1320 = vmatprep.subr.mxu0 0.0
    %1321 = vmatpush1.msra.mxu0 0.0
    %1322 = vmatprep.subr.mxu0 0.0
    %1323 = vmatpush1.msra.mxu0 0.0
    %1324 = vmatprep.subr.mxu0 0.0
    %1325 = vmatpush1.msra.mxu0 0.0
    %1326 = vmatprep.subr.mxu0 0.0
    %1327 = vmatpush1.msra.mxu0 0.0
    %1328 = vmatprep.subr.mxu0 0.0
    %1329 = vmatpush1.msra.mxu0 0.0
    %1330 = vmatprep.subr.mxu0 0.0
    %1331 = vmatpush1.msra.mxu0 0.0
    %1332 = vmatprep.subr.mxu0 0.0
    %1333 = vmatpush1.msra.mxu0 0.0
    %1334 = vmatprep.mubr.f32.mxu0 0.0
    %1335 = vmatmul.mubr.f32.gmra.mrb[0].mxu0 %v1196
    %v1336 = vpop.f32.mrb[0].mxu0
    %v1337 = vadd.f32 %v490, %v1336
    %v1338 = vpop.f32.mrb[0].mxu0
    %1339 = vdwg.mxu0
    %s1340 = scalar_lea.vmem [#allocation3], 2
    %1341 = vst.msk [vmem:[%s1340] sm:$0x3] %vm808, %v1337
    %1342 = vmatprep.subr.mxu0 0.0
    %1343 = vmatpush1.msra.mxu0 %v473
    %1344 = vmatprep.subr.mxu0 0.0
    %1345 = vmatpush1.msra.mxu0 %v474
    %1346 = vmatprep.subr.mxu0 0.0
    %1347 = vmatpush1.msra.mxu0 %v475
    %1348 = vmatprep.subr.mxu0 0.0
    %1349 = vmatpush1.msra.mxu0 %v476
    %1350 = vmatprep.subr.mxu0 0.0
    %1351 = vmatpush1.msra.mxu0 0.0
    %1352 = vmatprep.subr.mxu0 0.0
    %1353 = vmatpush1.msra.mxu0 0.0
    %1354 = vmatprep.subr.mxu0 0.0
    %1355 = vmatpush1.msra.mxu0 0.0
    %1356 = vmatprep.subr.mxu0 0.0
    %1357 = vmatpush1.msra.mxu0 0.0
    %1358 = vmatprep.subr.mxu0 0.0
    %1359 = vmatpush1.msra.mxu0 0.0
    %1360 = vmatprep.subr.mxu0 0.0
    %1361 = vmatpush1.msra.mxu0 0.0
    %1362 = vmatprep.subr.mxu0 0.0
    %1363 = vmatpush1.msra.mxu0 0.0
    %1364 = vmatprep.subr.mxu0 0.0
    %1365 = vmatpush1.msra.mxu0 0.0
    %1366 = vmatprep.subr.mxu0 0.0
    %1367 = vmatpush1.msra.mxu0 0.0
    %1368 = vmatprep.subr.mxu0 0.0
    %1369 = vmatpush1.msra.mxu0 0.0
    %1370 = vmatprep.subr.mxu0 0.0
    %1371 = vmatpush1.msra.mxu0 0.0
    %1372 = vmatprep.subr.mxu0 0.0
    %1373 = vmatpush1.msra.mxu0 0.0
    %1374 = vmatprep.subr.mxu0 0.0
    %1375 = vmatpush1.msra.mxu0 0.0
    %1376 = vmatprep.subr.mxu0 0.0
    %1377 = vmatpush1.msra.mxu0 0.0
    %1378 = vmatprep.subr.mxu0 0.0
    %1379 = vmatpush1.msra.mxu0 0.0
    %1380 = vmatprep.subr.mxu0 0.0
    %1381 = vmatpush1.msra.mxu0 0.0
    %1382 = vmatprep.subr.mxu0 0.0
    %1383 = vmatpush1.msra.mxu0 0.0
    %1384 = vmatprep.subr.mxu0 0.0
    %1385 = vmatpush1.msra.mxu0 0.0
    %1386 = vmatprep.subr.mxu0 0.0
    %1387 = vmatpush1.msra.mxu0 0.0
    %1388 = vmatprep.subr.mxu0 0.0
    %1389 = vmatpush1.msra.mxu0 0.0
    %1390 = vmatprep.subr.mxu0 0.0
    %1391 = vmatpush1.msra.mxu0 0.0
    %1392 = vmatprep.subr.mxu0 0.0
    %1393 = vmatpush1.msra.mxu0 0.0
    %1394 = vmatprep.subr.mxu0 0.0
    %1395 = vmatpush1.msra.mxu0 0.0
    %1396 = vmatprep.subr.mxu0 0.0
    %1397 = vmatpush1.msra.mxu0 0.0
    %1398 = vmatprep.subr.mxu0 0.0
    %1399 = vmatpush1.msra.mxu0 0.0
    %1400 = vmatprep.subr.mxu0 0.0
    %1401 = vmatpush1.msra.mxu0 0.0
    %1402 = vmatprep.subr.mxu0 0.0
    %1403 = vmatpush1.msra.mxu0 0.0
    %1404 = vmatprep.subr.mxu0 0.0
    %1405 = vmatpush1.msra.mxu0 0.0
    %1406 = vmatprep.mubr.f32.mxu0 0.0
    %1407 = vmatmul.mubr.f32.gmra.mrb[0].mxu0 %v1196
    %v1408 = vpop.f32.mrb[0].mxu0
    %v1409 = vadd.f32 %v498, %v1408
    %v1410 = vpop.f32.mrb[0].mxu0
    %1411 = vdwg.mxu0
    %s1412 = scalar_lea.vmem [#allocation4], 2
    %1413 = vst.msk [vmem:[%s1412] sm:$0x3] %vm808, %v1409
    %1414 = vmatprep.subr.mxu0 0.0
    %1415 = vmatpush1.msra.mxu0 %v426
    %1416 = vmatprep.subr.mxu0 0.0
    %1417 = vmatpush1.msra.mxu0 %v427
    %1418 = vmatprep.subr.mxu0 0.0
    %1419 = vmatpush1.msra.mxu0 %v428
    %1420 = vmatprep.subr.mxu0 0.0
    %1421 = vmatpush1.msra.mxu0 %v429
    %1422 = vmatprep.subr.mxu0 0.0
    %1423 = vmatpush1.msra.mxu0 0.0
    %1424 = vmatprep.subr.mxu0 0.0
    %1425 = vmatpush1.msra.mxu0 0.0
    %1426 = vmatprep.subr.mxu0 0.0
    %1427 = vmatpush1.msra.mxu0 0.0
    %1428 = vmatprep.subr.mxu0 0.0
    %1429 = vmatpush1.msra.mxu0 0.0
    %1430 = vmatprep.subr.mxu0 0.0
    %1431 = vmatpush1.msra.mxu0 0.0
    %1432 = vmatprep.subr.mxu0 0.0
    %1433 = vmatpush1.msra.mxu0 0.0
    %1434 = vmatprep.subr.mxu0 0.0
    %1435 = vmatpush1.msra.mxu0 0.0
    %1436 = vmatprep.subr.mxu0 0.0
    %1437 = vmatpush1.msra.mxu0 0.0
    %1438 = vmatprep.subr.mxu0 0.0
    %1439 = vmatpush1.msra.mxu0 0.0
    %1440 = vmatprep.subr.mxu0 0.0
    %1441 = vmatpush1.msra.mxu0 0.0
    %1442 = vmatprep.subr.mxu0 0.0
    %1443 = vmatpush1.msra.mxu0 0.0
    %1444 = vmatprep.subr.mxu0 0.0
    %1445 = vmatpush1.msra.mxu0 0.0
    %1446 = vmatprep.subr.mxu0 0.0
    %1447 = vmatpush1.msra.mxu0 0.0
    %1448 = vmatprep.subr.mxu0 0.0
    %1449 = vmatpush1.msra.mxu0 0.0
    %1450 = vmatprep.subr.mxu0 0.0
    %1451 = vmatpush1.msra.mxu0 0.0
    %1452 = vmatprep.subr.mxu0 0.0
    %1453 = vmatpush1.msra.mxu0 0.0
    %1454 = vmatprep.subr.mxu0 0.0
    %1455 = vmatpush1.msra.mxu0 0.0
    %1456 = vmatprep.subr.mxu0 0.0
    %1457 = vmatpush1.msra.mxu0 0.0
    %1458 = vmatprep.subr.mxu0 0.0
    %1459 = vmatpush1.msra.mxu0 0.0
    %1460 = vmatprep.subr.mxu0 0.0
    %1461 = vmatpush1.msra.mxu0 0.0
    %1462 = vmatprep.subr.mxu0 0.0
    %1463 = vmatpush1.msra.mxu0 0.0
    %1464 = vmatprep.subr.mxu0 0.0
    %1465 = vmatpush1.msra.mxu0 0.0
    %1466 = vmatprep.subr.mxu0 0.0
    %1467 = vmatpush1.msra.mxu0 0.0
    %1468 = vmatprep.subr.mxu0 0.0
    %1469 = vmatpush1.msra.mxu0 0.0
    %1470 = vmatprep.subr.mxu0 0.0
    %1471 = vmatpush1.msra.mxu0 0.0
    %1472 = vmatprep.subr.mxu0 0.0
    %1473 = vmatpush1.msra.mxu0 0.0
    %1474 = vmatprep.subr.mxu0 0.0
    %1475 = vmatpush1.msra.mxu0 0.0
    %1476 = vmatprep.subr.mxu0 0.0
    %1477 = vmatpush1.msra.mxu0 0.0
    %1478 = vmatprep.mubr.f32.mxu0 0.0
    %1479 = vmatmul.mubr.f32.gmra.mrb[0].mxu0 %v1196
    %v1480 = vpop.f32.mrb[0].mxu0
    %v1481 = vadd.f32 %v445, %v1480
    %v1482 = vpop.f32.mrb[0].mxu0
    %1483 = vdwg.mxu0
    %1484 = vmatprep.subr.mxu0 0.0
    %1485 = vmatpush1.msra.mxu0 %v431
    %1486 = vmatprep.subr.mxu0 0.0
    %1487 = vmatpush1.msra.mxu0 %v432
    %1488 = vmatprep.subr.mxu0 0.0
    %1489 = vmatpush1.msra.mxu0 %v433
    %1490 = vmatprep.subr.mxu0 0.0
    %1491 = vmatpush1.msra.mxu0 %v434
    %1492 = vmatprep.subr.mxu0 0.0
    %1493 = vmatpush1.msra.mxu0 0.0
    %1494 = vmatprep.subr.mxu0 0.0
    %1495 = vmatpush1.msra.mxu0 0.0
    %1496 = vmatprep.subr.mxu0 0.0
    %1497 = vmatpush1.msra.mxu0 0.0
    %1498 = vmatprep.subr.mxu0 0.0
    %1499 = vmatpush1.msra.mxu0 0.0
    %1500 = vmatprep.subr.mxu0 0.0
    %1501 = vmatpush1.msra.mxu0 0.0
    %1502 = vmatprep.subr.mxu0 0.0
    %1503 = vmatpush1.msra.mxu0 0.0
    %1504 = vmatprep.subr.mxu0 0.0
    %1505 = vmatpush1.msra.mxu0 0.0
    %1506 = vmatprep.subr.mxu0 0.0
    %1507 = vmatpush1.msra.mxu0 0.0
    %1508 = vmatprep.subr.mxu0 0.0
    %1509 = vmatpush1.msra.mxu0 0.0
    %1510 = vmatprep.subr.mxu0 0.0
    %1511 = vmatpush1.msra.mxu0 0.0
    %1512 = vmatprep.subr.mxu0 0.0
    %1513 = vmatpush1.msra.mxu0 0.0
    %1514 = vmatprep.subr.mxu0 0.0
    %1515 = vmatpush1.msra.mxu0 0.0
    %1516 = vmatprep.subr.mxu0 0.0
    %1517 = vmatpush1.msra.mxu0 0.0
    %1518 = vmatprep.subr.mxu0 0.0
    %1519 = vmatpush1.msra.mxu0 0.0
    %1520 = vmatprep.subr.mxu0 0.0
    %1521 = vmatpush1.msra.mxu0 0.0
    %1522 = vmatprep.subr.mxu0 0.0
    %1523 = vmatpush1.msra.mxu0 0.0
    %1524 = vmatprep.subr.mxu0 0.0
    %1525 = vmatpush1.msra.mxu0 0.0
    %1526 = vmatprep.subr.mxu0 0.0
    %1527 = vmatpush1.msra.mxu0 0.0
    %1528 = vmatprep.subr.mxu0 0.0
    %1529 = vmatpush1.msra.mxu0 0.0
    %1530 = vmatprep.subr.mxu0 0.0
    %1531 = vmatpush1.msra.mxu0 0.0
    %1532 = vmatprep.subr.mxu0 0.0
    %1533 = vmatpush1.msra.mxu0 0.0
    %1534 = vmatprep.subr.mxu0 0.0
    %1535 = vmatpush1.msra.mxu0 0.0
    %1536 = vmatprep.subr.mxu0 0.0
    %1537 = vmatpush1.msra.mxu0 0.0
    %1538 = vmatprep.subr.mxu0 0.0
    %1539 = vmatpush1.msra.mxu0 0.0
    %1540 = vmatprep.subr.mxu0 0.0
    %1541 = vmatpush1.msra.mxu0 0.0
    %1542 = vmatprep.subr.mxu0 0.0
    %1543 = vmatpush1.msra.mxu0 0.0
    %1544 = vmatprep.subr.mxu0 0.0
    %1545 = vmatpush1.msra.mxu0 0.0
    %1546 = vmatprep.subr.mxu0 0.0
    %1547 = vmatpush1.msra.mxu0 0.0
    %1548 = vmatprep.mubr.f32.mxu0 0.0
    %1549 = vmatmul.mubr.f32.gmra.mrb[0].mxu0 %v1196
    %v1550 = vpop.f32.mrb[0].mxu0
    %v1551 = vadd.f32 %v453, %v1550
    %v1552 = vpop.f32.mrb[0].mxu0
    %1553 = vdwg.mxu0
    %1554 = vmatprep.subr.mxu0 0.0
    %1555 = vmatpush1.msra.mxu0 %v436
    %1556 = vmatprep.subr.mxu0 0.0
    %1557 = vmatpush1.msra.mxu0 %v437
    %1558 = vmatprep.subr.mxu0 0.0
    %1559 = vmatpush1.msra.mxu0 %v438
    %1560 = vmatprep.subr.mxu0 0.0
    %1561 = vmatpush1.msra.mxu0 %v439
    %1562 = vmatprep.subr.mxu0 0.0
    %1563 = vmatpush1.msra.mxu0 0.0
    %1564 = vmatprep.subr.mxu0 0.0
    %1565 = vmatpush1.msra.mxu0 0.0
    %1566 = vmatprep.subr.mxu0 0.0
    %1567 = vmatpush1.msra.mxu0 0.0
    %1568 = vmatprep.subr.mxu0 0.0
    %1569 = vmatpush1.msra.mxu0 0.0
    %1570 = vmatprep.subr.mxu0 0.0
    %1571 = vmatpush1.msra.mxu0 0.0
    %1572 = vmatprep.subr.mxu0 0.0
    %1573 = vmatpush1.msra.mxu0 0.0
    %1574 = vmatprep.subr.mxu0 0.0
    %1575 = vmatpush1.msra.mxu0 0.0
    %1576 = vmatprep.subr.mxu0 0.0
    %1577 = vmatpush1.msra.mxu0 0.0
    %1578 = vmatprep.subr.mxu0 0.0
    %1579 = vmatpush1.msra.mxu0 0.0
    %1580 = vmatprep.subr.mxu0 0.0
    %1581 = vmatpush1.msra.mxu0 0.0
    %1582 = vmatprep.subr.mxu0 0.0
    %1583 = vmatpush1.msra.mxu0 0.0
    %1584 = vmatprep.subr.mxu0 0.0
    %1585 = vmatpush1.msra.mxu0 0.0
    %1586 = vmatprep.subr.mxu0 0.0
    %1587 = vmatpush1.msra.mxu0 0.0
    %1588 = vmatprep.subr.mxu0 0.0
    %1589 = vmatpush1.msra.mxu0 0.0
    %1590 = vmatprep.subr.mxu0 0.0
    %1591 = vmatpush1.msra.mxu0 0.0
    %1592 = vmatprep.subr.mxu0 0.0
    %1593 = vmatpush1.msra.mxu0 0.0
    %1594 = vmatprep.subr.mxu0 0.0
    %1595 = vmatpush1.msra.mxu0 0.0
    %1596 = vmatprep.subr.mxu0 0.0
    %1597 = vmatpush1.msra.mxu0 0.0
    %1598 = vmatprep.subr.mxu0 0.0
    %1599 = vmatpush1.msra.mxu0 0.0
    %1600 = vmatprep.subr.mxu0 0.0
    %1601 = vmatpush1.msra.mxu0 0.0
    %1602 = vmatprep.subr.mxu0 0.0
    %1603 = vmatpush1.msra.mxu0 0.0
    %1604 = vmatprep.subr.mxu0 0.0
    %1605 = vmatpush1.msra.mxu0 0.0
    %1606 = vmatprep.subr.mxu0 0.0
    %1607 = vmatpush1.msra.mxu0 0.0
    %1608 = vmatprep.subr.mxu0 0.0
    %1609 = vmatpush1.msra.mxu0 0.0
    %1610 = vmatprep.subr.mxu0 0.0
    %1611 = vmatpush1.msra.mxu0 0.0
    %1612 = vmatprep.subr.mxu0 0.0
    %1613 = vmatpush1.msra.mxu0 0.0
    %1614 = vmatprep.subr.mxu0 0.0
    %1615 = vmatpush1.msra.mxu0 0.0
    %1616 = vmatprep.subr.mxu0 0.0
    %1617 = vmatpush1.msra.mxu0 0.0
    %1618 = vmatprep.mubr.f32.mxu0 0.0
    %1619 = vmatmul.mubr.f32.gmra.mrb[0].mxu0 %v1196
    %v1620 = vpop.f32.mrb[0].mxu0
    %v1621 = vadd.f32 %v461, %v1620
    %v1622 = vpop.f32.mrb[0].mxu0
    %1623 = vdwg.mxu0
    %v1625 = vrot.slane %v1481, 4
    %v1627 = vadd.f32 %v246, %v1625
    %v1628 = vxor.u32 %v1627, 2147483648
    %v1629 = vmul.f32 %v1628, 1.442695
    %v1630 = vpow.pop %v1629
    %v1631 = vadd.f32 %v1630, 1.0
    %v1632 = vrcp.pop %v1631
    %v1633 = vmul.f32 1.0, %v1632
    %v1635 = vrot.slane %v1551, 4
    %v1637 = vadd.f32 %v332, %v1635
    %v1638 = vxor.u32 %v1637, 2147483648
    %v1639 = vmul.f32 %v1638, 1.442695
    %v1640 = vpow.pop %v1639
    %v1641 = vadd.f32 %v1640, 1.0
    %v1642 = vrcp.pop %v1641
    %v1643 = vmul.f32 1.0, %v1642
    %v1645 = vrot.slane %v1621, 4
    %v1647 = vmul.f32 %v1633, %v1645
    %v1648 = vadd.f32 %v418, %v1647
    %v1649 = vtanh.pop %v1648
    %v1650 = vsub.f32 1.0, %v1643
    %v1651 = vmul.f32 %v1650, %v1649
    %v1652 = vrot.slane %v1193, 6
    %v1654 = vmul.f32 %v1643, %v1652
    %v1655 = vadd.f32 %v1651, %v1654
    %v1657 = vrot.slane %v1655, 4
    %v1658 = vsel %vm500, %v1657, 0
    %1660 = vmatprep.subr.mxu0 0.0
    %1661 = vmatpush1.msra.mxu0 %v463
    %1662 = vmatprep.subr.mxu0 0.0
    %1663 = vmatpush1.msra.mxu0 %v464
    %1664 = vmatprep.subr.mxu0 0.0
    %1665 = vmatpush1.msra.mxu0 %v465
    %1666 = vmatprep.subr.mxu0 0.0
    %1667 = vmatpush1.msra.mxu0 %v466
    %1668 = vmatprep.subr.mxu0 0.0
    %1669 = vmatpush1.msra.mxu0 0.0
    %1670 = vmatprep.subr.mxu0 0.0
    %1671 = vmatpush1.msra.mxu0 0.0
    %1672 = vmatprep.subr.mxu0 0.0
    %1673 = vmatpush1.msra.mxu0 0.0
    %1674 = vmatprep.subr.mxu0 0.0
    %1675 = vmatpush1.msra.mxu0 0.0
    %1676 = vmatprep.subr.mxu0 0.0
    %1677 = vmatpush1.msra.mxu0 0.0
    %1678 = vmatprep.subr.mxu0 0.0
    %1679 = vmatpush1.msra.mxu0 0.0
    %1680 = vmatprep.subr.mxu0 0.0
    %1681 = vmatpush1.msra.mxu0 0.0
    %1682 = vmatprep.subr.mxu0 0.0
    %1683 = vmatpush1.msra.mxu0 0.0
    %1684 = vmatprep.subr.mxu0 0.0
    %1685 = vmatpush1.msra.mxu0 0.0
    %1686 = vmatprep.subr.mxu0 0.0
    %1687 = vmatpush1.msra.mxu0 0.0
    %1688 = vmatprep.subr.mxu0 0.0
    %1689 = vmatpush1.msra.mxu0 0.0
    %1690 = vmatprep.subr.mxu0 0.0
    %1691 = vmatpush1.msra.mxu0 0.0
    %1692 = vmatprep.subr.mxu0 0.0
    %1693 = vmatpush1.msra.mxu0 0.0
    %1694 = vmatprep.subr.mxu0 0.0
    %1695 = vmatpush1.msra.mxu0 0.0
    %1696 = vmatprep.subr.mxu0 0.0
    %1697 = vmatpush1.msra.mxu0 0.0
    %1698 = vmatprep.subr.mxu0 0.0
    %1699 = vmatpush1.msra.mxu0 0.0
    %1700 = vmatprep.subr.mxu0 0.0
    %1701 = vmatpush1.msra.mxu0 0.0
    %1702 = vmatprep.subr.mxu0 0.0
    %1703 = vmatpush1.msra.mxu0 0.0
    %1704 = vmatprep.subr.mxu0 0.0
    %1705 = vmatpush1.msra.mxu0 0.0
    %1706 = vmatprep.subr.mxu0 0.0
    %1707 = vmatpush1.msra.mxu0 0.0
    %1708 = vmatprep.subr.mxu0 0.0
    %1709 = vmatpush1.msra.mxu0 0.0
    %1710 = vmatprep.subr.mxu0 0.0
    %1711 = vmatpush1.msra.mxu0 0.0
    %1712 = vmatprep.subr.mxu0 0.0
    %1713 = vmatpush1.msra.mxu0 0.0
    %1714 = vmatprep.subr.mxu0 0.0
    %1715 = vmatpush1.msra.mxu0 0.0
    %1716 = vmatprep.subr.mxu0 0.0
    %1717 = vmatpush1.msra.mxu0 0.0
    %1718 = vmatprep.subr.mxu0 0.0
    %1719 = vmatpush1.msra.mxu0 0.0
    %1720 = vmatprep.subr.mxu0 0.0
    %1721 = vmatpush1.msra.mxu0 0.0
    %1722 = vmatprep.subr.mxu0 0.0
    %1723 = vmatpush1.msra.mxu0 0.0
    %1724 = vmatprep.mubr.f32.mxu0 0.0
    %1725 = vmatmul.mubr.f32.gmra.mrb[0].mxu0 %v1658
    %v1726 = vpop.f32.mrb[0].mxu0
    %v1727 = vadd.f32 %v482, %v1726
    %v1728 = vpop.f32.mrb[0].mxu0
    %1729 = vdwg.mxu0
    %s1730 = scalar_lea.vmem [#allocation2], 4
    %1731 = vst.msk [vmem:[%s1730] sm:$0x3] %vm808, %v1727
    %1732 = vmatprep.subr.mxu0 0.0
    %1733 = vmatpush1.msra.mxu0 %v468
    %1734 = vmatprep.subr.mxu0 0.0
    %1735 = vmatpush1.msra.mxu0 %v469
    %1736 = vmatprep.subr.mxu0 0.0
    %1737 = vmatpush1.msra.mxu0 %v470
    %1738 = vmatprep.subr.mxu0 0.0
    %1739 = vmatpush1.msra.mxu0 %v471
    %1740 = vmatprep.subr.mxu0 0.0
    %1741 = vmatpush1.msra.mxu0 0.0
    %1742 = vmatprep.subr.mxu0 0.0
    %1743 = vmatpush1.msra.mxu0 0.0
    %1744 = vmatprep.subr.mxu0 0.0
    %1745 = vmatpush1.msra.mxu0 0.0
    %1746 = vmatprep.subr.mxu0 0.0
    %1747 = vmatpush1.msra.mxu0 0.0
    %1748 = vmatprep.subr.mxu0 0.0
    %1749 = vmatpush1.msra.mxu0 0.0
    %1750 = vmatprep.subr.mxu0 0.0
    %1751 = vmatpush1.msra.mxu0 0.0
    %1752 = vmatprep.subr.mxu0 0.0
    %1753 = vmatpush1.msra.mxu0 0.0
    %1754 = vmatprep.subr.mxu0 0.0
    %1755 = vmatpush1.msra.mxu0 0.0
    %1756 = vmatprep.subr.mxu0 0.0
    %1757 = vmatpush1.msra.mxu0 0.0
    %1758 = vmatprep.subr.mxu0 0.0
    %1759 = vmatpush1.msra.mxu0 0.0
    %1760 = vmatprep.subr.mxu0 0.0
    %1761 = vmatpush1.msra.mxu0 0.0
    %1762 = vmatprep.subr.mxu0 0.0
    %1763 = vmatpush1.msra.mxu0 0.0
    %1764 = vmatprep.subr.mxu0 0.0
    %1765 = vmatpush1.msra.mxu0 0.0
    %1766 = vmatprep.subr.mxu0 0.0
    %1767 = vmatpush1.msra.mxu0 0.0
    %1768 = vmatprep.subr.mxu0 0.0
    %1769 = vmatpush1.msra.mxu0 0.0
    %1770 = vmatprep.subr.mxu0 0.0
    %1771 = vmatpush1.msra.mxu0 0.0
    %1772 = vmatprep.subr.mxu0 0.0
    %1773 = vmatpush1.msra.mxu0 0.0
    %1774 = vmatprep.subr.mxu0 0.0
    %1775 = vmatpush1.msra.mxu0 0.0
    %1776 = vmatprep.subr.mxu0 0.0
    %1777 = vmatpush1.msra.mxu0 0.0
    %1778 = vmatprep.subr.mxu0 0.0
    %1779 = vmatpush1.msra.mxu0 0.0
    %1780 = vmatprep.subr.mxu0 0.0
    %1781 = vmatpush1.msra.mxu0 0.0
    %1782 = vmatprep.subr.mxu0 0.0
    %1783 = vmatpush1.msra.mxu0 0.0
    %1784 = vmatprep.subr.mxu0 0.0
    %1785 = vmatpush1.msra.mxu0 0.0
    %1786 = vmatprep.subr.mxu0 0.0
    %1787 = vmatpush1.msra.mxu0 0.0
    %1788 = vmatprep.subr.mxu0 0.0
    %1789 = vmatpush1.msra.mxu0 0.0
    %1790 = vmatprep.subr.mxu0 0.0
    %1791 = vmatpush1.msra.mxu0 0.0
    %1792 = vmatprep.subr.mxu0 0.0
    %1793 = vmatpush1.msra.mxu0 0.0
    %1794 = vmatprep.subr.mxu0 0.0
    %1795 = vmatpush1.msra.mxu0 0.0
    %1796 = vmatprep.mubr.f32.mxu0 0.0
    %1797 = vmatmul.mubr.f32.gmra.mrb[0].mxu0 %v1658
    %v1798 = vpop.f32.mrb[0].mxu0
    %v1799 = vadd.f32 %v490, %v1798
    %v1800 = vpop.f32.mrb[0].mxu0
    %1801 = vdwg.mxu0
    %s1802 = scalar_lea.vmem [#allocation3], 4
    %1803 = vst.msk [vmem:[%s1802] sm:$0x3] %vm808, %v1799
    %1804 = vmatprep.subr.mxu0 0.0
    %1805 = vmatpush1.msra.mxu0 %v473
    %1806 = vmatprep.subr.mxu0 0.0
    %1807 = vmatpush1.msra.mxu0 %v474
    %1808 = vmatprep.subr.mxu0 0.0
    %1809 = vmatpush1.msra.mxu0 %v475
    %1810 = vmatprep.subr.mxu0 0.0
    %1811 = vmatpush1.msra.mxu0 %v476
    %1812 = vmatprep.subr.mxu0 0.0
    %1813 = vmatpush1.msra.mxu0 0.0
    %1814 = vmatprep.subr.mxu0 0.0
    %1815 = vmatpush1.msra.mxu0 0.0
    %1816 = vmatprep.subr.mxu0 0.0
    %1817 = vmatpush1.msra.mxu0 0.0
    %1818 = vmatprep.subr.mxu0 0.0
    %1819 = vmatpush1.msra.mxu0 0.0
    %1820 = vmatprep.subr.mxu0 0.0
    %1821 = vmatpush1.msra.mxu0 0.0
    %1822 = vmatprep.subr.mxu0 0.0
    %1823 = vmatpush1.msra.mxu0 0.0
    %1824 = vmatprep.subr.mxu0 0.0
    %1825 = vmatpush1.msra.mxu0 0.0
    %1826 = vmatprep.subr.mxu0 0.0
    %1827 = vmatpush1.msra.mxu0 0.0
    %1828 = vmatprep.subr.mxu0 0.0
    %1829 = vmatpush1.msra.mxu0 0.0
    %1830 = vmatprep.subr.mxu0 0.0
    %1831 = vmatpush1.msra.mxu0 0.0
    %1832 = vmatprep.subr.mxu0 0.0
    %1833 = vmatpush1.msra.mxu0 0.0
    %1834 = vmatprep.subr.mxu0 0.0
    %1835 = vmatpush1.msra.mxu0 0.0
    %1836 = vmatprep.subr.mxu0 0.0
    %1837 = vmatpush1.msra.mxu0 0.0
    %1838 = vmatprep.subr.mxu0 0.0
    %1839 = vmatpush1.msra.mxu0 0.0
    %1840 = vmatprep.subr.mxu0 0.0
    %1841 = vmatpush1.msra.mxu0 0.0
    %1842 = vmatprep.subr.mxu0 0.0
    %1843 = vmatpush1.msra.mxu0 0.0
    %1844 = vmatprep.subr.mxu0 0.0
    %1845 = vmatpush1.msra.mxu0 0.0
    %1846 = vmatprep.subr.mxu0 0.0
    %1847 = vmatpush1.msra.mxu0 0.0
    %1848 = vmatprep.subr.mxu0 0.0
    %1849 = vmatpush1.msra.mxu0 0.0
    %1850 = vmatprep.subr.mxu0 0.0
    %1851 = vmatpush1.msra.mxu0 0.0
    %1852 = vmatprep.subr.mxu0 0.0
    %1853 = vmatpush1.msra.mxu0 0.0
    %1854 = vmatprep.subr.mxu0 0.0
    %1855 = vmatpush1.msra.mxu0 0.0
    %1856 = vmatprep.subr.mxu0 0.0
    %1857 = vmatpush1.msra.mxu0 0.0
    %1858 = vmatprep.subr.mxu0 0.0
    %1859 = vmatpush1.msra.mxu0 0.0
    %1860 = vmatprep.subr.mxu0 0.0
    %1861 = vmatpush1.msra.mxu0 0.0
    %1862 = vmatprep.subr.mxu0 0.0
    %1863 = vmatpush1.msra.mxu0 0.0
    %1864 = vmatprep.subr.mxu0 0.0
    %1865 = vmatpush1.msra.mxu0 0.0
    %1866 = vmatprep.subr.mxu0 0.0
    %1867 = vmatpush1.msra.mxu0 0.0
    %1868 = vmatprep.mubr.f32.mxu0 0.0
    %1869 = vmatmul.mubr.f32.gmra.mrb[0].mxu0 %v1658
    %v1870 = vpop.f32.mrb[0].mxu0
    %v1871 = vadd.f32 %v498, %v1870
    %v1872 = vpop.f32.mrb[0].mxu0
    %1873 = vdwg.mxu0
    %s1874 = scalar_lea.vmem [#allocation4], 4
    %1875 = vst.msk [vmem:[%s1874] sm:$0x3] %vm808, %v1871
    %1876 = vmatprep.subr.mxu0 0.0
    %1877 = vmatpush1.msra.mxu0 %v426
    %1878 = vmatprep.subr.mxu0 0.0
    %1879 = vmatpush1.msra.mxu0 %v427
    %1880 = vmatprep.subr.mxu0 0.0
    %1881 = vmatpush1.msra.mxu0 %v428
    %1882 = vmatprep.subr.mxu0 0.0
    %1883 = vmatpush1.msra.mxu0 %v429
    %1884 = vmatprep.subr.mxu0 0.0
    %1885 = vmatpush1.msra.mxu0 0.0
    %1886 = vmatprep.subr.mxu0 0.0
    %1887 = vmatpush1.msra.mxu0 0.0
    %1888 = vmatprep.subr.mxu0 0.0
    %1889 = vmatpush1.msra.mxu0 0.0
    %1890 = vmatprep.subr.mxu0 0.0
    %1891 = vmatpush1.msra.mxu0 0.0
    %1892 = vmatprep.subr.mxu0 0.0
    %1893 = vmatpush1.msra.mxu0 0.0
    %1894 = vmatprep.subr.mxu0 0.0
    %1895 = vmatpush1.msra.mxu0 0.0
    %1896 = vmatprep.subr.mxu0 0.0
    %1897 = vmatpush1.msra.mxu0 0.0
    %1898 = vmatprep.subr.mxu0 0.0
    %1899 = vmatpush1.msra.mxu0 0.0
    %1900 = vmatprep.subr.mxu0 0.0
    %1901 = vmatpush1.msra.mxu0 0.0
    %1902 = vmatprep.subr.mxu0 0.0
    %1903 = vmatpush1.msra.mxu0 0.0
    %1904 = vmatprep.subr.mxu0 0.0
    %1905 = vmatpush1.msra.mxu0 0.0
    %1906 = vmatprep.subr.mxu0 0.0
    %1907 = vmatpush1.msra.mxu0 0.0
    %1908 = vmatprep.subr.mxu0 0.0
    %1909 = vmatpush1.msra.mxu0 0.0
    %1910 = vmatprep.subr.mxu0 0.0
    %1911 = vmatpush1.msra.mxu0 0.0
    %1912 = vmatprep.subr.mxu0 0.0
    %1913 = vmatpush1.msra.mxu0 0.0
    %1914 = vmatprep.subr.mxu0 0.0
    %1915 = vmatpush1.msra.mxu0 0.0
    %1916 = vmatprep.subr.mxu0 0.0
    %1917 = vmatpush1.msra.mxu0 0.0
    %1918 = vmatprep.subr.mxu0 0.0
    %1919 = vmatpush1.msra.mxu0 0.0
    %1920 = vmatprep.subr.mxu0 0.0
    %1921 = vmatpush1.msra.mxu0 0.0
    %1922 = vmatprep.subr.mxu0 0.0
    %1923 = vmatpush1.msra.mxu0 0.0
    %1924 = vmatprep.subr.mxu0 0.0
    %1925 = vmatpush1.msra.mxu0 0.0
    %1926 = vmatprep.subr.mxu0 0.0
    %1927 = vmatpush1.msra.mxu0 0.0
    %1928 = vmatprep.subr.mxu0 0.0
    %1929 = vmatpush1.msra.mxu0 0.0
    %1930 = vmatprep.subr.mxu0 0.0
    %1931 = vmatpush1.msra.mxu0 0.0
    %1932 = vmatprep.subr.mxu0 0.0
    %1933 = vmatpush1.msra.mxu0 0.0
    %1934 = vmatprep.subr.mxu0 0.0
    %1935 = vmatpush1.msra.mxu0 0.0
    %1936 = vmatprep.subr.mxu0 0.0
    %1937 = vmatpush1.msra.mxu0 0.0
    %1938 = vmatprep.subr.mxu0 0.0
    %1939 = vmatpush1.msra.mxu0 0.0
    %1940 = vmatprep.mubr.f32.mxu0 0.0
    %1941 = vmatmul.mubr.f32.gmra.mrb[0].mxu0 %v1658
    %v1942 = vpop.f32.mrb[0].mxu0
    %v1943 = vadd.f32 %v445, %v1942
    %v1944 = vpop.f32.mrb[0].mxu0
    %1945 = vdwg.mxu0
    %1946 = vmatprep.subr.mxu0 0.0
    %1947 = vmatpush1.msra.mxu0 %v431
    %1948 = vmatprep.subr.mxu0 0.0
    %1949 = vmatpush1.msra.mxu0 %v432
    %1950 = vmatprep.subr.mxu0 0.0
    %1951 = vmatpush1.msra.mxu0 %v433
    %1952 = vmatprep.subr.mxu0 0.0
    %1953 = vmatpush1.msra.mxu0 %v434
    %1954 = vmatprep.subr.mxu0 0.0
    %1955 = vmatpush1.msra.mxu0 0.0
    %1956 = vmatprep.subr.mxu0 0.0
    %1957 = vmatpush1.msra.mxu0 0.0
    %1958 = vmatprep.subr.mxu0 0.0
    %1959 = vmatpush1.msra.mxu0 0.0
    %1960 = vmatprep.subr.mxu0 0.0
    %1961 = vmatpush1.msra.mxu0 0.0
    %1962 = vmatprep.subr.mxu0 0.0
    %1963 = vmatpush1.msra.mxu0 0.0
    %1964 = vmatprep.subr.mxu0 0.0
    %1965 = vmatpush1.msra.mxu0 0.0
    %1966 = vmatprep.subr.mxu0 0.0
    %1967 = vmatpush1.msra.mxu0 0.0
    %1968 = vmatprep.subr.mxu0 0.0
    %1969 = vmatpush1.msra.mxu0 0.0
    %1970 = vmatprep.subr.mxu0 0.0
    %1971 = vmatpush1.msra.mxu0 0.0
    %1972 = vmatprep.subr.mxu0 0.0
    %1973 = vmatpush1.msra.mxu0 0.0
    %1974 = vmatprep.subr.mxu0 0.0
    %1975 = vmatpush1.msra.mxu0 0.0
    %1976 = vmatprep.subr.mxu0 0.0
    %1977 = vmatpush1.msra.mxu0 0.0
    %1978 = vmatprep.subr.mxu0 0.0
    %1979 = vmatpush1.msra.mxu0 0.0
    %1980 = vmatprep.subr.mxu0 0.0
    %1981 = vmatpush1.msra.mxu0 0.0
    %1982 = vmatprep.subr.mxu0 0.0
    %1983 = vmatpush1.msra.mxu0 0.0
    %1984 = vmatprep.subr.mxu0 0.0
    %1985 = vmatpush1.msra.mxu0 0.0
    %1986 = vmatprep.subr.mxu0 0.0
    %1987 = vmatpush1.msra.mxu0 0.0
    %1988 = vmatprep.subr.mxu0 0.0
    %1989 = vmatpush1.msra.mxu0 0.0
    %1990 = vmatprep.subr.mxu0 0.0
    %1991 = vmatpush1.msra.mxu0 0.0
    %1992 = vmatprep.subr.mxu0 0.0
    %1993 = vmatpush1.msra.mxu0 0.0
    %1994 = vmatprep.subr.mxu0 0.0
    %1995 = vmatpush1.msra.mxu0 0.0
    %1996 = vmatprep.subr.mxu0 0.0
    %1997 = vmatpush1.msra.mxu0 0.0
    %1998 = vmatprep.subr.mxu0 0.0
    %1999 = vmatpush1.msra.mxu0 0.0
    %2000 = vmatprep.subr.mxu0 0.0
    %2001 = vmatpush1.msra.mxu0 0.0
    %2002 = vmatprep.subr.mxu0 0.0
    %2003 = vmatpush1.msra.mxu0 0.0
    %2004 = vmatprep.subr.mxu0 0.0
    %2005 = vmatpush1.msra.mxu0 0.0
    %2006 = vmatprep.subr.mxu0 0.0
    %2007 = vmatpush1.msra.mxu0 0.0
    %2008 = vmatprep.subr.mxu0 0.0
    %2009 = vmatpush1.msra.mxu0 0.0
    %2010 = vmatprep.mubr.f32.mxu0 0.0
    %2011 = vmatmul.mubr.f32.gmra.mrb[0].mxu0 %v1658
    %v2012 = vpop.f32.mrb[0].mxu0
    %v2013 = vadd.f32 %v453, %v2012
    %v2014 = vpop.f32.mrb[0].mxu0
    %2015 = vdwg.mxu0
    %2016 = vmatprep.subr.mxu0 0.0
    %2017 = vmatpush1.msra.mxu0 %v436
    %2018 = vmatprep.subr.mxu0 0.0
    %2019 = vmatpush1.msra.mxu0 %v437
    %2020 = vmatprep.subr.mxu0 0.0
    %2021 = vmatpush1.msra.mxu0 %v438
    %2022 = vmatprep.subr.mxu0 0.0
    %2023 = vmatpush1.msra.mxu0 %v439
    %2024 = vmatprep.subr.mxu0 0.0
    %2025 = vmatpush1.msra.mxu0 0.0
    %2026 = vmatprep.subr.mxu0 0.0
    %2027 = vmatpush1.msra.mxu0 0.0
    %2028 = vmatprep.subr.mxu0 0.0
    %2029 = vmatpush1.msra.mxu0 0.0
    %2030 = vmatprep.subr.mxu0 0.0
    %2031 = vmatpush1.msra.mxu0 0.0
    %2032 = vmatprep.subr.mxu0 0.0
    %2033 = vmatpush1.msra.mxu0 0.0
    %2034 = vmatprep.subr.mxu0 0.0
    %2035 = vmatpush1.msra.mxu0 0.0
    %2036 = vmatprep.subr.mxu0 0.0
    %2037 = vmatpush1.msra.mxu0 0.0
    %2038 = vmatprep.subr.mxu0 0.0
    %2039 = vmatpush1.msra.mxu0 0.0
    %2040 = vmatprep.subr.mxu0 0.0
    %2041 = vmatpush1.msra.mxu0 0.0
    %2042 = vmatprep.subr.mxu0 0.0
    %2043 = vmatpush1.msra.mxu0 0.0
    %2044 = vmatprep.subr.mxu0 0.0
    %2045 = vmatpush1.msra.mxu0 0.0
    %2046 = vmatprep.subr.mxu0 0.0
    %2047 = vmatpush1.msra.mxu0 0.0
    %2048 = vmatprep.subr.mxu0 0.0
    %2049 = vmatpush1.msra.mxu0 0.0
    %2050 = vmatprep.subr.mxu0 0.0
    %2051 = vmatpush1.msra.mxu0 0.0
    %2052 = vmatprep.subr.mxu0 0.0
    %2053 = vmatpush1.msra.mxu0 0.0
    %2054 = vmatprep.subr.mxu0 0.0
    %2055 = vmatpush1.msra.mxu0 0.0
    %2056 = vmatprep.subr.mxu0 0.0
    %2057 = vmatpush1.msra.mxu0 0.0
    %2058 = vmatprep.subr.mxu0 0.0
    %2059 = vmatpush1.msra.mxu0 0.0
    %2060 = vmatprep.subr.mxu0 0.0
    %2061 = vmatpush1.msra.mxu0 0.0
    %2062 = vmatprep.subr.mxu0 0.0
    %2063 = vmatpush1.msra.mxu0 0.0
    %2064 = vmatprep.subr.mxu0 0.0
    %2065 = vmatpush1.msra.mxu0 0.0
    %2066 = vmatprep.subr.mxu0 0.0
    %2067 = vmatpush1.msra.mxu0 0.0
    %2068 = vmatprep.subr.mxu0 0.0
    %2069 = vmatpush1.msra.mxu0 0.0
    %2070 = vmatprep.subr.mxu0 0.0
    %2071 = vmatpush1.msra.mxu0 0.0
    %2072 = vmatprep.subr.mxu0 0.0
    %2073 = vmatpush1.msra.mxu0 0.0
    %2074 = vmatprep.subr.mxu0 0.0
    %2075 = vmatpush1.msra.mxu0 0.0
    %2076 = vmatprep.subr.mxu0 0.0
    %2077 = vmatpush1.msra.mxu0 0.0
    %2078 = vmatprep.subr.mxu0 0.0
    %2079 = vmatpush1.msra.mxu0 0.0
    %2080 = vmatprep.mubr.f32.mxu0 0.0
    %2081 = vmatmul.mubr.f32.gmra.mrb[0].mxu0 %v1658
    %v2082 = vpop.f32.mrb[0].mxu0
    %v2083 = vadd.f32 %v461, %v2082
    %v2084 = vpop.f32.mrb[0].mxu0
    %2085 = vdwg.mxu0
    %v2087 = vrot.slane %v1943, 2
    %v2089 = vadd.f32 %v246, %v2087
    %v2090 = vxor.u32 %v2089, 2147483648
    %v2091 = vmul.f32 %v2090, 1.442695
    %v2092 = vpow.pop %v2091
    %v2093 = vadd.f32 %v2092, 1.0
    %v2094 = vrcp.pop %v2093
    %v2095 = vmul.f32 1.0, %v2094
    %v2097 = vrot.slane %v2013, 2
    %v2099 = vadd.f32 %v332, %v2097
    %v2100 = vxor.u32 %v2099, 2147483648
    %v2101 = vmul.f32 %v2100, 1.442695
    %v2102 = vpow.pop %v2101
    %v2103 = vadd.f32 %v2102, 1.0
    %v2104 = vrcp.pop %v2103
    %v2105 = vmul.f32 1.0, %v2104
    %v2107 = vrot.slane %v2083, 2
    %v2109 = vmul.f32 %v2095, %v2107
    %v2110 = vadd.f32 %v418, %v2109
    %v2111 = vtanh.pop %v2110
    %v2112 = vsub.f32 1.0, %v2105
    %v2113 = vmul.f32 %v2112, %v2111
    %v2114 = vrot.slane %v1655, 6
    %v2116 = vmul.f32 %v2105, %v2114
    %v2117 = vadd.f32 %v2113, %v2116
    %v2119 = vrot.slane %v2117, 6
    %v2120 = vsel %vm500, %v2119, 0
    %2122 = vmatprep.subr.mxu0 0.0
    %2123 = vmatpush1.msra.mxu0 %v463
    %2124 = vmatprep.subr.mxu0 0.0
    %2125 = vmatpush1.msra.mxu0 %v464
    %2126 = vmatprep.subr.mxu0 0.0
    %2127 = vmatpush1.msra.mxu0 %v465
    %2128 = vmatprep.subr.mxu0 0.0
    %2129 = vmatpush1.msra.mxu0 %v466
    %2130 = vmatprep.subr.mxu0 0.0
    %2131 = vmatpush1.msra.mxu0 0.0
    %2132 = vmatprep.subr.mxu0 0.0
    %2133 = vmatpush1.msra.mxu0 0.0
    %2134 = vmatprep.subr.mxu0 0.0
    %2135 = vmatpush1.msra.mxu0 0.0
    %2136 = vmatprep.subr.mxu0 0.0
    %2137 = vmatpush1.msra.mxu0 0.0
    %2138 = vmatprep.subr.mxu0 0.0
    %2139 = vmatpush1.msra.mxu0 0.0
    %2140 = vmatprep.subr.mxu0 0.0
    %2141 = vmatpush1.msra.mxu0 0.0
    %2142 = vmatprep.subr.mxu0 0.0
    %2143 = vmatpush1.msra.mxu0 0.0
    %2144 = vmatprep.subr.mxu0 0.0
    %2145 = vmatpush1.msra.mxu0 0.0
    %2146 = vmatprep.subr.mxu0 0.0
    %2147 = vmatpush1.msra.mxu0 0.0
    %2148 = vmatprep.subr.mxu0 0.0
    %2149 = vmatpush1.msra.mxu0 0.0
    %2150 = vmatprep.subr.mxu0 0.0
    %2151 = vmatpush1.msra.mxu0 0.0
    %2152 = vmatprep.subr.mxu0 0.0
    %2153 = vmatpush1.msra.mxu0 0.0
    %2154 = vmatprep.subr.mxu0 0.0
    %2155 = vmatpush1.msra.mxu0 0.0
    %2156 = vmatprep.subr.mxu0 0.0
    %2157 = vmatpush1.msra.mxu0 0.0
    %2158 = vmatprep.subr.mxu0 0.0
    %2159 = vmatpush1.msra.mxu0 0.0
    %2160 = vmatprep.subr.mxu0 0.0
    %2161 = vmatpush1.msra.mxu0 0.0
    %2162 = vmatprep.subr.mxu0 0.0
    %2163 = vmatpush1.msra.mxu0 0.0
    %2164 = vmatprep.subr.mxu0 0.0
    %2165 = vmatpush1.msra.mxu0 0.0
    %2166 = vmatprep.subr.mxu0 0.0
    %2167 = vmatpush1.msra.mxu0 0.0
    %2168 = vmatprep.subr.mxu0 0.0
    %2169 = vmatpush1.msra.mxu0 0.0
    %2170 = vmatprep.subr.mxu0 0.0
    %2171 = vmatpush1.msra.mxu0 0.0
    %2172 = vmatprep.subr.mxu0 0.0
    %2173 = vmatpush1.msra.mxu0 0.0
    %2174 = vmatprep.subr.mxu0 0.0
    %2175 = vmatpush1.msra.mxu0 0.0
    %2176 = vmatprep.subr.mxu0 0.0
    %2177 = vmatpush1.msra.mxu0 0.0
    %2178 = vmatprep.subr.mxu0 0.0
    %2179 = vmatpush1.msra.mxu0 0.0
    %2180 = vmatprep.subr.mxu0 0.0
    %2181 = vmatpush1.msra.mxu0 0.0
    %2182 = vmatprep.subr.mxu0 0.0
    %2183 = vmatpush1.msra.mxu0 0.0
    %2184 = vmatprep.subr.mxu0 0.0
    %2185 = vmatpush1.msra.mxu0 0.0
    %2186 = vmatprep.mubr.f32.mxu0 0.0
    %2187 = vmatmul.mubr.f32.gmra.mrb[0].mxu0 %v2120
    %v2188 = vpop.f32.mrb[0].mxu0
    %v2189 = vadd.f32 %v482, %v2188
    %v2190 = vpop.f32.mrb[0].mxu0
    %2191 = vdwg.mxu0
    %s2192 = scalar_lea.vmem [#allocation2], 6
    %2193 = vst.msk [vmem:[%s2192] sm:$0x3] %vm808, %v2189
    %2194 = vmatprep.subr.mxu0 0.0
    %2195 = vmatpush1.msra.mxu0 %v468
    %2196 = vmatprep.subr.mxu0 0.0
    %2197 = vmatpush1.msra.mxu0 %v469
    %2198 = vmatprep.subr.mxu0 0.0
    %2199 = vmatpush1.msra.mxu0 %v470
    %2200 = vmatprep.subr.mxu0 0.0
    %2201 = vmatpush1.msra.mxu0 %v471
    %2202 = vmatprep.subr.mxu0 0.0
    %2203 = vmatpush1.msra.mxu0 0.0
    %2204 = vmatprep.subr.mxu0 0.0
    %2205 = vmatpush1.msra.mxu0 0.0
    %2206 = vmatprep.subr.mxu0 0.0
    %2207 = vmatpush1.msra.mxu0 0.0
    %2208 = vmatprep.subr.mxu0 0.0
    %2209 = vmatpush1.msra.mxu0 0.0
    %2210 = vmatprep.subr.mxu0 0.0
    %2211 = vmatpush1.msra.mxu0 0.0
    %2212 = vmatprep.subr.mxu0 0.0
    %2213 = vmatpush1.msra.mxu0 0.0
    %2214 = vmatprep.subr.mxu0 0.0
    %2215 = vmatpush1.msra.mxu0 0.0
    %2216 = vmatprep.subr.mxu0 0.0
    %2217 = vmatpush1.msra.mxu0 0.0
    %2218 = vmatprep.subr.mxu0 0.0
    %2219 = vmatpush1.msra.mxu0 0.0
    %2220 = vmatprep.subr.mxu0 0.0
    %2221 = vmatpush1.msra.mxu0 0.0
    %2222 = vmatprep.subr.mxu0 0.0
    %2223 = vmatpush1.msra.mxu0 0.0
    %2224 = vmatprep.subr.mxu0 0.0
    %2225 = vmatpush1.msra.mxu0 0.0
    %2226 = vmatprep.subr.mxu0 0.0
    %2227 = vmatpush1.msra.mxu0 0.0
    %2228 = vmatprep.subr.mxu0 0.0
    %2229 = vmatpush1.msra.mxu0 0.0
    %2230 = vmatprep.subr.mxu0 0.0
    %2231 = vmatpush1.msra.mxu0 0.0
    %2232 = vmatprep.subr.mxu0 0.0
    %2233 = vmatpush1.msra.mxu0 0.0
    %2234 = vmatprep.subr.mxu0 0.0
    %2235 = vmatpush1.msra.mxu0 0.0
    %2236 = vmatprep.subr.mxu0 0.0
    %2237 = vmatpush1.msra.mxu0 0.0
    %2238 = vmatprep.subr.mxu0 0.0
    %2239 = vmatpush1.msra.mxu0 0.0
    %2240 = vmatprep.subr.mxu0 0.0
    %2241 = vmatpush1.msra.mxu0 0.0
    %2242 = vmatprep.subr.mxu0 0.0
    %2243 = vmatpush1.msra.mxu0 0.0
    %2244 = vmatprep.subr.mxu0 0.0
    %2245 = vmatpush1.msra.mxu0 0.0
    %2246 = vmatprep.subr.mxu0 0.0
    %2247 = vmatpush1.msra.mxu0 0.0
    %2248 = vmatprep.subr.mxu0 0.0
    %2249 = vmatpush1.msra.mxu0 0.0
    %2250 = vmatprep.subr.mxu0 0.0
    %2251 = vmatpush1.msra.mxu0 0.0
    %2252 = vmatprep.subr.mxu0 0.0
    %2253 = vmatpush1.msra.mxu0 0.0
    %2254 = vmatprep.subr.mxu0 0.0
    %2255 = vmatpush1.msra.mxu0 0.0
    %2256 = vmatprep.subr.mxu0 0.0
    %2257 = vmatpush1.msra.mxu0 0.0
    %2258 = vmatprep.mubr.f32.mxu0 0.0
    %2259 = vmatmul.mubr.f32.gmra.mrb[0].mxu0 %v2120
    %v2260 = vpop.f32.mrb[0].mxu0
    %v2261 = vadd.f32 %v490, %v2260
    %v2262 = vpop.f32.mrb[0].mxu0
    %2263 = vdwg.mxu0
    %s2264 = scalar_lea.vmem [#allocation3], 6
    %2265 = vst.msk [vmem:[%s2264] sm:$0x3] %vm808, %v2261
    %2266 = vmatprep.subr.mxu0 0.0
    %2267 = vmatpush1.msra.mxu0 %v473
    %2268 = vmatprep.subr.mxu0 0.0
    %2269 = vmatpush1.msra.mxu0 %v474
    %2270 = vmatprep.subr.mxu0 0.0
    %2271 = vmatpush1.msra.mxu0 %v475
    %2272 = vmatprep.subr.mxu0 0.0
    %2273 = vmatpush1.msra.mxu0 %v476
    %2274 = vmatprep.subr.mxu0 0.0
    %2275 = vmatpush1.msra.mxu0 0.0
    %2276 = vmatprep.subr.mxu0 0.0
    %2277 = vmatpush1.msra.mxu0 0.0
    %2278 = vmatprep.subr.mxu0 0.0
    %2279 = vmatpush1.msra.mxu0 0.0
    %2280 = vmatprep.subr.mxu0 0.0
    %2281 = vmatpush1.msra.mxu0 0.0
    %2282 = vmatprep.subr.mxu0 0.0
    %2283 = vmatpush1.msra.mxu0 0.0
    %2284 = vmatprep.subr.mxu0 0.0
    %2285 = vmatpush1.msra.mxu0 0.0
    %2286 = vmatprep.subr.mxu0 0.0
    %2287 = vmatpush1.msra.mxu0 0.0
    %2288 = vmatprep.subr.mxu0 0.0
    %2289 = vmatpush1.msra.mxu0 0.0
    %2290 = vmatprep.subr.mxu0 0.0
    %2291 = vmatpush1.msra.mxu0 0.0
    %2292 = vmatprep.subr.mxu0 0.0
    %2293 = vmatpush1.msra.mxu0 0.0
    %2294 = vmatprep.subr.mxu0 0.0
    %2295 = vmatpush1.msra.mxu0 0.0
    %2296 = vmatprep.subr.mxu0 0.0
    %2297 = vmatpush1.msra.mxu0 0.0
    %2298 = vmatprep.subr.mxu0 0.0
    %2299 = vmatpush1.msra.mxu0 0.0
    %2300 = vmatprep.subr.mxu0 0.0
    %2301 = vmatpush1.msra.mxu0 0.0
    %2302 = vmatprep.subr.mxu0 0.0
    %2303 = vmatpush1.msra.mxu0 0.0
    %2304 = vmatprep.subr.mxu0 0.0
    %2305 = vmatpush1.msra.mxu0 0.0
    %2306 = vmatprep.subr.mxu0 0.0
    %2307 = vmatpush1.msra.mxu0 0.0
    %2308 = vmatprep.subr.mxu0 0.0
    %2309 = vmatpush1.msra.mxu0 0.0
    %2310 = vmatprep.subr.mxu0 0.0
    %2311 = vmatpush1.msra.mxu0 0.0
    %2312 = vmatprep.subr.mxu0 0.0
    %2313 = vmatpush1.msra.mxu0 0.0
    %2314 = vmatprep.subr.mxu0 0.0
    %2315 = vmatpush1.msra.mxu0 0.0
    %2316 = vmatprep.subr.mxu0 0.0
    %2317 = vmatpush1.msra.mxu0 0.0
    %2318 = vmatprep.subr.mxu0 0.0
    %2319 = vmatpush1.msra.mxu0 0.0
    %2320 = vmatprep.subr.mxu0 0.0
    %2321 = vmatpush1.msra.mxu0 0.0
    %2322 = vmatprep.subr.mxu0 0.0
    %2323 = vmatpush1.msra.mxu0 0.0
    %2324 = vmatprep.subr.mxu0 0.0
    %2325 = vmatpush1.msra.mxu0 0.0
    %2326 = vmatprep.subr.mxu0 0.0
    %2327 = vmatpush1.msra.mxu0 0.0
    %2328 = vmatprep.subr.mxu0 0.0
    %2329 = vmatpush1.msra.mxu0 0.0
    %2330 = vmatprep.mubr.f32.mxu0 0.0
    %2331 = vmatmul.mubr.f32.gmra.mrb[0].mxu0 %v2120
    %v2332 = vpop.f32.mrb[0].mxu0
    %v2333 = vadd.f32 %v498, %v2332
    %v2334 = vpop.f32.mrb[0].mxu0
    %2335 = vdwg.mxu0
    %s2336 = scalar_lea.vmem [#allocation4], 6
    %2337 = vst.msk [vmem:[%s2336] sm:$0x3] %vm808, %v2333
    %2338 = vmatprep.subr.mxu0 0.0
    %2339 = vmatpush1.msra.mxu0 %v426
    %2340 = vmatprep.subr.mxu0 0.0
    %2341 = vmatpush1.msra.mxu0 %v427
    %2342 = vmatprep.subr.mxu0 0.0
    %2343 = vmatpush1.msra.mxu0 %v428
    %2344 = vmatprep.subr.mxu0 0.0
    %2345 = vmatpush1.msra.mxu0 %v429
    %2346 = vmatprep.subr.mxu0 0.0
    %2347 = vmatpush1.msra.mxu0 0.0
    %2348 = vmatprep.subr.mxu0 0.0
    %2349 = vmatpush1.msra.mxu0 0.0
    %2350 = vmatprep.subr.mxu0 0.0
    %2351 = vmatpush1.msra.mxu0 0.0
    %2352 = vmatprep.subr.mxu0 0.0
    %2353 = vmatpush1.msra.mxu0 0.0
    %2354 = vmatprep.subr.mxu0 0.0
    %2355 = vmatpush1.msra.mxu0 0.0
    %2356 = vmatprep.subr.mxu0 0.0
    %2357 = vmatpush1.msra.mxu0 0.0
    %2358 = vmatprep.subr.mxu0 0.0
    %2359 = vmatpush1.msra.mxu0 0.0
    %2360 = vmatprep.subr.mxu0 0.0
    %2361 = vmatpush1.msra.mxu0 0.0
    %2362 = vmatprep.subr.mxu0 0.0
    %2363 = vmatpush1.msra.mxu0 0.0
    %2364 = vmatprep.subr.mxu0 0.0
    %2365 = vmatpush1.msra.mxu0 0.0
    %2366 = vmatprep.subr.mxu0 0.0
    %2367 = vmatpush1.msra.mxu0 0.0
    %2368 = vmatprep.subr.mxu0 0.0
    %2369 = vmatpush1.msra.mxu0 0.0
    %2370 = vmatprep.subr.mxu0 0.0
    %2371 = vmatpush1.msra.mxu0 0.0
    %2372 = vmatprep.subr.mxu0 0.0
    %2373 = vmatpush1.msra.mxu0 0.0
    %2374 = vmatprep.subr.mxu0 0.0
    %2375 = vmatpush1.msra.mxu0 0.0
    %2376 = vmatprep.subr.mxu0 0.0
    %2377 = vmatpush1.msra.mxu0 0.0
    %2378 = vmatprep.subr.mxu0 0.0
    %2379 = vmatpush1.msra.mxu0 0.0
    %2380 = vmatprep.subr.mxu0 0.0
    %2381 = vmatpush1.msra.mxu0 0.0
    %2382 = vmatprep.subr.mxu0 0.0
    %2383 = vmatpush1.msra.mxu0 0.0
    %2384 = vmatprep.subr.mxu0 0.0
    %2385 = vmatpush1.msra.mxu0 0.0
    %2386 = vmatprep.subr.mxu0 0.0
    %2387 = vmatpush1.msra.mxu0 0.0
    %2388 = vmatprep.subr.mxu0 0.0
    %2389 = vmatpush1.msra.mxu0 0.0
    %2390 = vmatprep.subr.mxu0 0.0
    %2391 = vmatpush1.msra.mxu0 0.0
    %2392 = vmatprep.subr.mxu0 0.0
    %2393 = vmatpush1.msra.mxu0 0.0
    %2394 = vmatprep.subr.mxu0 0.0
    %2395 = vmatpush1.msra.mxu0 0.0
    %2396 = vmatprep.subr.mxu0 0.0
    %2397 = vmatpush1.msra.mxu0 0.0
    %2398 = vmatprep.subr.mxu0 0.0
    %2399 = vmatpush1.msra.mxu0 0.0
    %2400 = vmatprep.subr.mxu0 0.0
    %2401 = vmatpush1.msra.mxu0 0.0
    %2402 = vmatprep.mubr.f32.mxu0 0.0
    %2403 = vmatmul.mubr.f32.gmra.mrb[0].mxu0 %v2120
    %v2404 = vpop.f32.mrb[0].mxu0
    %v2405 = vadd.f32 %v445, %v2404
    %v2406 = vpop.f32.mrb[0].mxu0
    %2407 = vdwg.mxu0
    %2408 = vmatprep.subr.mxu0 0.0
    %2409 = vmatpush1.msra.mxu0 %v431
    %2410 = vmatprep.subr.mxu0 0.0
    %2411 = vmatpush1.msra.mxu0 %v432
    %2412 = vmatprep.subr.mxu0 0.0
    %2413 = vmatpush1.msra.mxu0 %v433
    %2414 = vmatprep.subr.mxu0 0.0
    %2415 = vmatpush1.msra.mxu0 %v434
    %2416 = vmatprep.subr.mxu0 0.0
    %2417 = vmatpush1.msra.mxu0 0.0
    %2418 = vmatprep.subr.mxu0 0.0
    %2419 = vmatpush1.msra.mxu0 0.0
    %2420 = vmatprep.subr.mxu0 0.0
    %2421 = vmatpush1.msra.mxu0 0.0
    %2422 = vmatprep.subr.mxu0 0.0
    %2423 = vmatpush1.msra.mxu0 0.0
    %2424 = vmatprep.subr.mxu0 0.0
    %2425 = vmatpush1.msra.mxu0 0.0
    %2426 = vmatprep.subr.mxu0 0.0
    %2427 = vmatpush1.msra.mxu0 0.0
    %2428 = vmatprep.subr.mxu0 0.0
    %2429 = vmatpush1.msra.mxu0 0.0
    %2430 = vmatprep.subr.mxu0 0.0
    %2431 = vmatpush1.msra.mxu0 0.0
    %2432 = vmatprep.subr.mxu0 0.0
    %2433 = vmatpush1.msra.mxu0 0.0
    %2434 = vmatprep.subr.mxu0 0.0
    %2435 = vmatpush1.msra.mxu0 0.0
    %2436 = vmatprep.subr.mxu0 0.0
    %2437 = vmatpush1.msra.mxu0 0.0
    %2438 = vmatprep.subr.mxu0 0.0
    %2439 = vmatpush1.msra.mxu0 0.0
    %2440 = vmatprep.subr.mxu0 0.0
    %2441 = vmatpush1.msra.mxu0 0.0
    %2442 = vmatprep.subr.mxu0 0.0
    %2443 = vmatpush1.msra.mxu0 0.0
    %2444 = vmatprep.subr.mxu0 0.0
    %2445 = vmatpush1.msra.mxu0 0.0
    %2446 = vmatprep.subr.mxu0 0.0
    %2447 = vmatpush1.msra.mxu0 0.0
    %2448 = vmatprep.subr.mxu0 0.0
    %2449 = vmatpush1.msra.mxu0 0.0
    %2450 = vmatprep.subr.mxu0 0.0
    %2451 = vmatpush1.msra.mxu0 0.0
    %2452 = vmatprep.subr.mxu0 0.0
    %2453 = vmatpush1.msra.mxu0 0.0
    %2454 = vmatprep.subr.mxu0 0.0
    %2455 = vmatpush1.msra.mxu0 0.0
    %2456 = vmatprep.subr.mxu0 0.0
    %2457 = vmatpush1.msra.mxu0 0.0
    %2458 = vmatprep.subr.mxu0 0.0
    %2459 = vmatpush1.msra.mxu0 0.0
    %2460 = vmatprep.subr.mxu0 0.0
    %2461 = vmatpush1.msra.mxu0 0.0
    %2462 = vmatprep.subr.mxu0 0.0
    %2463 = vmatpush1.msra.mxu0 0.0
    %2464 = vmatprep.subr.mxu0 0.0
    %2465 = vmatpush1.msra.mxu0 0.0
    %2466 = vmatprep.subr.mxu0 0.0
    %2467 = vmatpush1.msra.mxu0 0.0
    %2468 = vmatprep.subr.mxu0 0.0
    %2469 = vmatpush1.msra.mxu0 0.0
    %2470 = vmatprep.subr.mxu0 0.0
    %2471 = vmatpush1.msra.mxu0 0.0
    %2472 = vmatprep.mubr.f32.mxu0 0.0
    %2473 = vmatmul.mubr.f32.gmra.mrb[0].mxu0 %v2120
    %v2474 = vpop.f32.mrb[0].mxu0
    %v2475 = vadd.f32 %v453, %v2474
    %v2476 = vpop.f32.mrb[0].mxu0
    %2477 = vdwg.mxu0
    %2478 = vmatprep.subr.mxu0 0.0
    %2479 = vmatpush1.msra.mxu0 %v436
    %2480 = vmatprep.subr.mxu0 0.0
    %2481 = vmatpush1.msra.mxu0 %v437
    %2482 = vmatprep.subr.mxu0 0.0
    %2483 = vmatpush1.msra.mxu0 %v438
    %2484 = vmatprep.subr.mxu0 0.0
    %2485 = vmatpush1.msra.mxu0 %v439
    %2486 = vmatprep.subr.mxu0 0.0
    %2487 = vmatpush1.msra.mxu0 0.0
    %2488 = vmatprep.subr.mxu0 0.0
    %2489 = vmatpush1.msra.mxu0 0.0
    %2490 = vmatprep.subr.mxu0 0.0
    %2491 = vmatpush1.msra.mxu0 0.0
    %2492 = vmatprep.subr.mxu0 0.0
    %2493 = vmatpush1.msra.mxu0 0.0
    %2494 = vmatprep.subr.mxu0 0.0
    %2495 = vmatpush1.msra.mxu0 0.0
    %2496 = vmatprep.subr.mxu0 0.0
    %2497 = vmatpush1.msra.mxu0 0.0
    %2498 = vmatprep.subr.mxu0 0.0
    %2499 = vmatpush1.msra.mxu0 0.0
    %2500 = vmatprep.subr.mxu0 0.0
    %2501 = vmatpush1.msra.mxu0 0.0
    %2502 = vmatprep.subr.mxu0 0.0
    %2503 = vmatpush1.msra.mxu0 0.0
    %2504 = vmatprep.subr.mxu0 0.0
    %2505 = vmatpush1.msra.mxu0 0.0
    %2506 = vmatprep.subr.mxu0 0.0
    %2507 = vmatpush1.msra.mxu0 0.0
    %2508 = vmatprep.subr.mxu0 0.0
    %2509 = vmatpush1.msra.mxu0 0.0
    %2510 = vmatprep.subr.mxu0 0.0
    %2511 = vmatpush1.msra.mxu0 0.0
    %2512 = vmatprep.subr.mxu0 0.0
    %2513 = vmatpush1.msra.mxu0 0.0
    %2514 = vmatprep.subr.mxu0 0.0
    %2515 = vmatpush1.msra.mxu0 0.0
    %2516 = vmatprep.subr.mxu0 0.0
    %2517 = vmatpush1.msra.mxu0 0.0
    %2518 = vmatprep.subr.mxu0 0.0
    %2519 = vmatpush1.msra.mxu0 0.0
    %2520 = vmatprep.subr.mxu0 0.0
    %2521 = vmatpush1.msra.mxu0 0.0
    %2522 = vmatprep.subr.mxu0 0.0
    %2523 = vmatpush1.msra.mxu0 0.0
    %2524 = vmatprep.subr.mxu0 0.0
    %2525 = vmatpush1.msra.mxu0 0.0
    %2526 = vmatprep.subr.mxu0 0.0
    %2527 = vmatpush1.msra.mxu0 0.0
    %2528 = vmatprep.subr.mxu0 0.0
    %2529 = vmatpush1.msra.mxu0 0.0
    %2530 = vmatprep.subr.mxu0 0.0
    %2531 = vmatpush1.msra.mxu0 0.0
    %2532 = vmatprep.subr.mxu0 0.0
    %2533 = vmatpush1.msra.mxu0 0.0
    %2534 = vmatprep.subr.mxu0 0.0
    %2535 = vmatpush1.msra.mxu0 0.0
    %2536 = vmatprep.subr.mxu0 0.0
    %2537 = vmatpush1.msra.mxu0 0.0
    %2538 = vmatprep.subr.mxu0 0.0
    %2539 = vmatpush1.msra.mxu0 0.0
    %2540 = vmatprep.subr.mxu0 0.0
    %2541 = vmatpush1.msra.mxu0 0.0
    %2542 = vmatprep.mubr.f32.mxu0 0.0
    %2543 = vmatmul.mubr.f32.gmra.mrb[0].mxu0 %v2120
    %v2544 = vpop.f32.mrb[0].mxu0
    %v2545 = vadd.f32 %v461, %v2544
    %v2546 = vpop.f32.mrb[0].mxu0
    %2547 = vdwg.mxu0
    %v2548 = vadd.f32 %v251, %v2405
    %v2549 = vxor.u32 %v2548, 2147483648
    %v2550 = vmul.f32 %v2549, 1.442695
    %v2551 = vpow.pop %v2550
    %v2552 = vadd.f32 %v2551, 1.0
    %v2553 = vrcp.pop %v2552
    %v2554 = vmul.f32 1.0, %v2553
    %v2555 = vadd.f32 %v337, %v2475
    %v2556 = vxor.u32 %v2555, 2147483648
    %v2557 = vmul.f32 %v2556, 1.442695
    %v2558 = vpow.pop %v2557
    %v2559 = vadd.f32 %v2558, 1.0
    %v2560 = vrcp.pop %v2559
    %v2561 = vmul.f32 1.0, %v2560
    %v2562 = vmul.f32 %v2554, %v2545
    %v2563 = vadd.f32 %v423, %v2562
    %v2564 = vtanh.pop %v2563
    %v2565 = vsub.f32 1.0, %v2561
    %v2566 = vmul.f32 %v2565, %v2564
    %v2568 = vmul.f32 %v2561, %v2119
    %v2569 = vadd.f32 %v2566, %v2568
    %v2571 = vsel %vm500, %v2569, 0
    %2573 = vmatprep.subr.mxu0 0.0
    %2574 = vmatpush1.msra.mxu0 %v463
    %2575 = vmatprep.subr.mxu0 0.0
    %2576 = vmatpush1.msra.mxu0 %v464
    %2577 = vmatprep.subr.mxu0 0.0
    %2578 = vmatpush1.msra.mxu0 %v465
    %2579 = vmatprep.subr.mxu0 0.0
    %2580 = vmatpush1.msra.mxu0 %v466
    %2581 = vmatprep.subr.mxu0 0.0
    %2582 = vmatpush1.msra.mxu0 0.0
    %2583 = vmatprep.subr.mxu0 0.0
    %2584 = vmatpush1.msra.mxu0 0.0
    %2585 = vmatprep.subr.mxu0 0.0
    %2586 = vmatpush1.msra.mxu0 0.0
    %2587 = vmatprep.subr.mxu0 0.0
    %2588 = vmatpush1.msra.mxu0 0.0
    %2589 = vmatprep.subr.mxu0 0.0
    %2590 = vmatpush1.msra.mxu0 0.0
    %2591 = vmatprep.subr.mxu0 0.0
    %2592 = vmatpush1.msra.mxu0 0.0
    %2593 = vmatprep.subr.mxu0 0.0
    %2594 = vmatpush1.msra.mxu0 0.0
    %2595 = vmatprep.subr.mxu0 0.0
    %2596 = vmatpush1.msra.mxu0 0.0
    %2597 = vmatprep.subr.mxu0 0.0
    %2598 = vmatpush1.msra.mxu0 0.0
    %2599 = vmatprep.subr.mxu0 0.0
    %2600 = vmatpush1.msra.mxu0 0.0
    %2601 = vmatprep.subr.mxu0 0.0
    %2602 = vmatpush1.msra.mxu0 0.0
    %2603 = vmatprep.subr.mxu0 0.0
    %2604 = vmatpush1.msra.mxu0 0.0
    %2605 = vmatprep.subr.mxu0 0.0
    %2606 = vmatpush1.msra.mxu0 0.0
    %2607 = vmatprep.subr.mxu0 0.0
    %2608 = vmatpush1.msra.mxu0 0.0
    %2609 = vmatprep.subr.mxu0 0.0
    %2610 = vmatpush1.msra.mxu0 0.0
    %2611 = vmatprep.subr.mxu0 0.0
    %2612 = vmatpush1.msra.mxu0 0.0
    %2613 = vmatprep.subr.mxu0 0.0
    %2614 = vmatpush1.msra.mxu0 0.0
    %2615 = vmatprep.subr.mxu0 0.0
    %2616 = vmatpush1.msra.mxu0 0.0
    %2617 = vmatprep.subr.mxu0 0.0
    %2618 = vmatpush1.msra.mxu0 0.0
    %2619 = vmatprep.subr.mxu0 0.0
    %2620 = vmatpush1.msra.mxu0 0.0
    %2621 = vmatprep.subr.mxu0 0.0
    %2622 = vmatpush1.msra.mxu0 0.0
    %2623 = vmatprep.subr.mxu0 0.0
    %2624 = vmatpush1.msra.mxu0 0.0
    %2625 = vmatprep.subr.mxu0 0.0
    %2626 = vmatpush1.msra.mxu0 0.0
    %2627 = vmatprep.subr.mxu0 0.0
    %2628 = vmatpush1.msra.mxu0 0.0
    %2629 = vmatprep.subr.mxu0 0.0
    %2630 = vmatpush1.msra.mxu0 0.0
    %2631 = vmatprep.subr.mxu0 0.0
    %2632 = vmatpush1.msra.mxu0 0.0
    %2633 = vmatprep.subr.mxu0 0.0
    %2634 = vmatpush1.msra.mxu0 0.0
    %2635 = vmatprep.subr.mxu0 0.0
    %2636 = vmatpush1.msra.mxu0 0.0
    %2637 = vmatprep.mubr.f32.mxu0 0.0
    %2638 = vmatmul.mubr.f32.gmra.mrb[0].mxu0 %v2571
    %v2639 = vpop.f32.mrb[0].mxu0
    %v2640 = vadd.f32 %v482, %v2639
    %v2641 = vpop.f32.mrb[0].mxu0
    %2642 = vdwg.mxu0
    %s2643 = scalar_lea.vmem [#allocation2], 8
    %2644 = vst.msk [vmem:[%s2643] sm:$0x3] %vm808, %v2640
    %2645 = vmatprep.subr.mxu0 0.0
    %2646 = vmatpush1.msra.mxu0 %v468
    %2647 = vmatprep.subr.mxu0 0.0
    %2648 = vmatpush1.msra.mxu0 %v469
    %2649 = vmatprep.subr.mxu0 0.0
    %2650 = vmatpush1.msra.mxu0 %v470
    %2651 = vmatprep.subr.mxu0 0.0
    %2652 = vmatpush1.msra.mxu0 %v471
    %2653 = vmatprep.subr.mxu0 0.0
    %2654 = vmatpush1.msra.mxu0 0.0
    %2655 = vmatprep.subr.mxu0 0.0
    %2656 = vmatpush1.msra.mxu0 0.0
    %2657 = vmatprep.subr.mxu0 0.0
    %2658 = vmatpush1.msra.mxu0 0.0
    %2659 = vmatprep.subr.mxu0 0.0
    %2660 = vmatpush1.msra.mxu0 0.0
    %2661 = vmatprep.subr.mxu0 0.0
    %2662 = vmatpush1.msra.mxu0 0.0
    %2663 = vmatprep.subr.mxu0 0.0
    %2664 = vmatpush1.msra.mxu0 0.0
    %2665 = vmatprep.subr.mxu0 0.0
    %2666 = vmatpush1.msra.mxu0 0.0
    %2667 = vmatprep.subr.mxu0 0.0
    %2668 = vmatpush1.msra.mxu0 0.0
    %2669 = vmatprep.subr.mxu0 0.0
    %2670 = vmatpush1.msra.mxu0 0.0
    %2671 = vmatprep.subr.mxu0 0.0
    %2672 = vmatpush1.msra.mxu0 0.0
    %2673 = vmatprep.subr.mxu0 0.0
    %2674 = vmatpush1.msra.mxu0 0.0
    %2675 = vmatprep.subr.mxu0 0.0
    %2676 = vmatpush1.msra.mxu0 0.0
    %2677 = vmatprep.subr.mxu0 0.0
    %2678 = vmatpush1.msra.mxu0 0.0
    %2679 = vmatprep.subr.mxu0 0.0
    %2680 = vmatpush1.msra.mxu0 0.0
    %2681 = vmatprep.subr.mxu0 0.0
    %2682 = vmatpush1.msra.mxu0 0.0
    %2683 = vmatprep.subr.mxu0 0.0
    %2684 = vmatpush1.msra.mxu0 0.0
    %2685 = vmatprep.subr.mxu0 0.0
    %2686 = vmatpush1.msra.mxu0 0.0
    %2687 = vmatprep.subr.mxu0 0.0
    %2688 = vmatpush1.msra.mxu0 0.0
    %2689 = vmatprep.subr.mxu0 0.0
    %2690 = vmatpush1.msra.mxu0 0.0
    %2691 = vmatprep.subr.mxu0 0.0
    %2692 = vmatpush1.msra.mxu0 0.0
    %2693 = vmatprep.subr.mxu0 0.0
    %2694 = vmatpush1.msra.mxu0 0.0
    %2695 = vmatprep.subr.mxu0 0.0
    %2696 = vmatpush1.msra.mxu0 0.0
    %2697 = vmatprep.subr.mxu0 0.0
    %2698 = vmatpush1.msra.mxu0 0.0
    %2699 = vmatprep.subr.mxu0 0.0
    %2700 = vmatpush1.msra.mxu0 0.0
    %2701 = vmatprep.subr.mxu0 0.0
    %2702 = vmatpush1.msra.mxu0 0.0
    %2703 = vmatprep.subr.mxu0 0.0
    %2704 = vmatpush1.msra.mxu0 0.0
    %2705 = vmatprep.subr.mxu0 0.0
    %2706 = vmatpush1.msra.mxu0 0.0
    %2707 = vmatprep.subr.mxu0 0.0
    %2708 = vmatpush1.msra.mxu0 0.0
    %2709 = vmatprep.mubr.f32.mxu0 0.0
    %2710 = vmatmul.mubr.f32.gmra.mrb[0].mxu0 %v2571
    %v2711 = vpop.f32.mrb[0].mxu0
    %v2712 = vadd.f32 %v490, %v2711
    %v2713 = vpop.f32.mrb[0].mxu0
    %2714 = vdwg.mxu0
    %s2715 = scalar_lea.vmem [#allocation3], 8
    %2716 = vst.msk [vmem:[%s2715] sm:$0x3] %vm808, %v2712
    %2717 = vmatprep.subr.mxu0 0.0
    %2718 = vmatpush1.msra.mxu0 %v473
    %2719 = vmatprep.subr.mxu0 0.0
    %2720 = vmatpush1.msra.mxu0 %v474
    %2721 = vmatprep.subr.mxu0 0.0
    %2722 = vmatpush1.msra.mxu0 %v475
    %2723 = vmatprep.subr.mxu0 0.0
    %2724 = vmatpush1.msra.mxu0 %v476
    %2725 = vmatprep.subr.mxu0 0.0
    %2726 = vmatpush1.msra.mxu0 0.0
    %2727 = vmatprep.subr.mxu0 0.0
    %2728 = vmatpush1.msra.mxu0 0.0
    %2729 = vmatprep.subr.mxu0 0.0
    %2730 = vmatpush1.msra.mxu0 0.0
    %2731 = vmatprep.subr.mxu0 0.0
    %2732 = vmatpush1.msra.mxu0 0.0
    %2733 = vmatprep.subr.mxu0 0.0
    %2734 = vmatpush1.msra.mxu0 0.0
    %2735 = vmatprep.subr.mxu0 0.0
    %2736 = vmatpush1.msra.mxu0 0.0
    %2737 = vmatprep.subr.mxu0 0.0
    %2738 = vmatpush1.msra.mxu0 0.0
    %2739 = vmatprep.subr.mxu0 0.0
    %2740 = vmatpush1.msra.mxu0 0.0
    %2741 = vmatprep.subr.mxu0 0.0
    %2742 = vmatpush1.msra.mxu0 0.0
    %2743 = vmatprep.subr.mxu0 0.0
    %2744 = vmatpush1.msra.mxu0 0.0
    %2745 = vmatprep.subr.mxu0 0.0
    %2746 = vmatpush1.msra.mxu0 0.0
    %2747 = vmatprep.subr.mxu0 0.0
    %2748 = vmatpush1.msra.mxu0 0.0
    %2749 = vmatprep.subr.mxu0 0.0
    %2750 = vmatpush1.msra.mxu0 0.0
    %2751 = vmatprep.subr.mxu0 0.0
    %2752 = vmatpush1.msra.mxu0 0.0
    %2753 = vmatprep.subr.mxu0 0.0
    %2754 = vmatpush1.msra.mxu0 0.0
    %2755 = vmatprep.subr.mxu0 0.0
    %2756 = vmatpush1.msra.mxu0 0.0
    %2757 = vmatprep.subr.mxu0 0.0
    %2758 = vmatpush1.msra.mxu0 0.0
    %2759 = vmatprep.subr.mxu0 0.0
    %2760 = vmatpush1.msra.mxu0 0.0
    %2761 = vmatprep.subr.mxu0 0.0
    %2762 = vmatpush1.msra.mxu0 0.0
    %2763 = vmatprep.subr.mxu0 0.0
    %2764 = vmatpush1.msra.mxu0 0.0
    %2765 = vmatprep.subr.mxu0 0.0
    %2766 = vmatpush1.msra.mxu0 0.0
    %2767 = vmatprep.subr.mxu0 0.0
    %2768 = vmatpush1.msra.mxu0 0.0
    %2769 = vmatprep.subr.mxu0 0.0
    %2770 = vmatpush1.msra.mxu0 0.0
    %2771 = vmatprep.subr.mxu0 0.0
    %2772 = vmatpush1.msra.mxu0 0.0
    %2773 = vmatprep.subr.mxu0 0.0
    %2774 = vmatpush1.msra.mxu0 0.0
    %2775 = vmatprep.subr.mxu0 0.0
    %2776 = vmatpush1.msra.mxu0 0.0
    %2777 = vmatprep.subr.mxu0 0.0
    %2778 = vmatpush1.msra.mxu0 0.0
    %2779 = vmatprep.subr.mxu0 0.0
    %2780 = vmatpush1.msra.mxu0 0.0
    %2781 = vmatprep.mubr.f32.mxu0 0.0
    %2782 = vmatmul.mubr.f32.gmra.mrb[0].mxu0 %v2571
    %v2783 = vpop.f32.mrb[0].mxu0
    %v2784 = vadd.f32 %v498, %v2783
    %v2785 = vpop.f32.mrb[0].mxu0
    %2786 = vdwg.mxu0
    %s2787 = scalar_lea.vmem [#allocation4], 8
    %2788 = vst.msk [vmem:[%s2787] sm:$0x3] %vm808, %v2784
    %2789 = vmatprep.subr.mxu0 0.0
    %2790 = vmatpush1.msra.mxu0 %v426
    %2791 = vmatprep.subr.mxu0 0.0
    %2792 = vmatpush1.msra.mxu0 %v427
    %2793 = vmatprep.subr.mxu0 0.0
    %2794 = vmatpush1.msra.mxu0 %v428
    %2795 = vmatprep.subr.mxu0 0.0
    %2796 = vmatpush1.msra.mxu0 %v429
    %2797 = vmatprep.subr.mxu0 0.0
    %2798 = vmatpush1.msra.mxu0 0.0
    %2799 = vmatprep.subr.mxu0 0.0
    %2800 = vmatpush1.msra.mxu0 0.0
    %2801 = vmatprep.subr.mxu0 0.0
    %2802 = vmatpush1.msra.mxu0 0.0
    %2803 = vmatprep.subr.mxu0 0.0
    %2804 = vmatpush1.msra.mxu0 0.0
    %2805 = vmatprep.subr.mxu0 0.0
    %2806 = vmatpush1.msra.mxu0 0.0
    %2807 = vmatprep.subr.mxu0 0.0
    %2808 = vmatpush1.msra.mxu0 0.0
    %2809 = vmatprep.subr.mxu0 0.0
    %2810 = vmatpush1.msra.mxu0 0.0
    %2811 = vmatprep.subr.mxu0 0.0
    %2812 = vmatpush1.msra.mxu0 0.0
    %2813 = vmatprep.subr.mxu0 0.0
    %2814 = vmatpush1.msra.mxu0 0.0
    %2815 = vmatprep.subr.mxu0 0.0
    %2816 = vmatpush1.msra.mxu0 0.0
    %2817 = vmatprep.subr.mxu0 0.0
    %2818 = vmatpush1.msra.mxu0 0.0
    %2819 = vmatprep.subr.mxu0 0.0
    %2820 = vmatpush1.msra.mxu0 0.0
    %2821 = vmatprep.subr.mxu0 0.0
    %2822 = vmatpush1.msra.mxu0 0.0
    %2823 = vmatprep.subr.mxu0 0.0
    %2824 = vmatpush1.msra.mxu0 0.0
    %2825 = vmatprep.subr.mxu0 0.0
    %2826 = vmatpush1.msra.mxu0 0.0
    %2827 = vmatprep.subr.mxu0 0.0
    %2828 = vmatpush1.msra.mxu0 0.0
    %2829 = vmatprep.subr.mxu0 0.0
    %2830 = vmatpush1.msra.mxu0 0.0
    %2831 = vmatprep.subr.mxu0 0.0
    %2832 = vmatpush1.msra.mxu0 0.0
    %2833 = vmatprep.subr.mxu0 0.0
    %2834 = vmatpush1.msra.mxu0 0.0
    %2835 = vmatprep.subr.mxu0 0.0
    %2836 = vmatpush1.msra.mxu0 0.0
    %2837 = vmatprep.subr.mxu0 0.0
    %2838 = vmatpush1.msra.mxu0 0.0
    %2839 = vmatprep.subr.mxu0 0.0
    %2840 = vmatpush1.msra.mxu0 0.0
    %2841 = vmatprep.subr.mxu0 0.0
    %2842 = vmatpush1.msra.mxu0 0.0
    %2843 = vmatprep.subr.mxu0 0.0
    %2844 = vmatpush1.msra.mxu0 0.0
    %2845 = vmatprep.subr.mxu0 0.0
    %2846 = vmatpush1.msra.mxu0 0.0
    %2847 = vmatprep.subr.mxu0 0.0
    %2848 = vmatpush1.msra.mxu0 0.0
    %2849 = vmatprep.subr.mxu0 0.0
    %2850 = vmatpush1.msra.mxu0 0.0
    %2851 = vmatprep.subr.mxu0 0.0
    %2852 = vmatpush1.msra.mxu0 0.0
    %2853 = vmatprep.mubr.f32.mxu0 0.0
    %2854 = vmatmul.mubr.f32.gmra.mrb[0].mxu0 %v2571
    %v2855 = vpop.f32.mrb[0].mxu0
    %v2856 = vadd.f32 %v445, %v2855
    %v2857 = vpop.f32.mrb[0].mxu0
    %2858 = vdwg.mxu0
    %2859 = vmatprep.subr.mxu0 0.0
    %2860 = vmatpush1.msra.mxu0 %v431
    %2861 = vmatprep.subr.mxu0 0.0
    %2862 = vmatpush1.msra.mxu0 %v432
    %2863 = vmatprep.subr.mxu0 0.0
    %2864 = vmatpush1.msra.mxu0 %v433
    %2865 = vmatprep.subr.mxu0 0.0
    %2866 = vmatpush1.msra.mxu0 %v434
    %2867 = vmatprep.subr.mxu0 0.0
    %2868 = vmatpush1.msra.mxu0 0.0
    %2869 = vmatprep.subr.mxu0 0.0
    %2870 = vmatpush1.msra.mxu0 0.0
    %2871 = vmatprep.subr.mxu0 0.0
    %2872 = vmatpush1.msra.mxu0 0.0
    %2873 = vmatprep.subr.mxu0 0.0
    %2874 = vmatpush1.msra.mxu0 0.0
    %2875 = vmatprep.subr.mxu0 0.0
    %2876 = vmatpush1.msra.mxu0 0.0
    %2877 = vmatprep.subr.mxu0 0.0
    %2878 = vmatpush1.msra.mxu0 0.0
    %2879 = vmatprep.subr.mxu0 0.0
    %2880 = vmatpush1.msra.mxu0 0.0
    %2881 = vmatprep.subr.mxu0 0.0
    %2882 = vmatpush1.msra.mxu0 0.0
    %2883 = vmatprep.subr.mxu0 0.0
    %2884 = vmatpush1.msra.mxu0 0.0
    %2885 = vmatprep.subr.mxu0 0.0
    %2886 = vmatpush1.msra.mxu0 0.0
    %2887 = vmatprep.subr.mxu0 0.0
    %2888 = vmatpush1.msra.mxu0 0.0
    %2889 = vmatprep.subr.mxu0 0.0
    %2890 = vmatpush1.msra.mxu0 0.0
    %2891 = vmatprep.subr.mxu0 0.0
    %2892 = vmatpush1.msra.mxu0 0.0
    %2893 = vmatprep.subr.mxu0 0.0
    %2894 = vmatpush1.msra.mxu0 0.0
    %2895 = vmatprep.subr.mxu0 0.0
    %2896 = vmatpush1.msra.mxu0 0.0
    %2897 = vmatprep.subr.mxu0 0.0
    %2898 = vmatpush1.msra.mxu0 0.0
    %2899 = vmatprep.subr.mxu0 0.0
    %2900 = vmatpush1.msra.mxu0 0.0
    %2901 = vmatprep.subr.mxu0 0.0
    %2902 = vmatpush1.msra.mxu0 0.0
    %2903 = vmatprep.subr.mxu0 0.0
    %2904 = vmatpush1.msra.mxu0 0.0
    %2905 = vmatprep.subr.mxu0 0.0
    %2906 = vmatpush1.msra.mxu0 0.0
    %2907 = vmatprep.subr.mxu0 0.0
    %2908 = vmatpush1.msra.mxu0 0.0
    %2909 = vmatprep.subr.mxu0 0.0
    %2910 = vmatpush1.msra.mxu0 0.0
    %2911 = vmatprep.subr.mxu0 0.0
    %2912 = vmatpush1.msra.mxu0 0.0
    %2913 = vmatprep.subr.mxu0 0.0
    %2914 = vmatpush1.msra.mxu0 0.0
    %2915 = vmatprep.subr.mxu0 0.0
    %2916 = vmatpush1.msra.mxu0 0.0
    %2917 = vmatprep.subr.mxu0 0.0
    %2918 = vmatpush1.msra.mxu0 0.0
    %2919 = vmatprep.subr.mxu0 0.0
    %2920 = vmatpush1.msra.mxu0 0.0
    %2921 = vmatprep.subr.mxu0 0.0
    %2922 = vmatpush1.msra.mxu0 0.0
    %2923 = vmatprep.mubr.f32.mxu0 0.0
    %2924 = vmatmul.mubr.f32.gmra.mrb[0].mxu0 %v2571
    %v2925 = vpop.f32.mrb[0].mxu0
    %v2926 = vadd.f32 %v453, %v2925
    %v2927 = vpop.f32.mrb[0].mxu0
    %2928 = vdwg.mxu0
    %2929 = vmatprep.subr.mxu0 0.0
    %2930 = vmatpush1.msra.mxu0 %v436
    %2931 = vmatprep.subr.mxu0 0.0
    %2932 = vmatpush1.msra.mxu0 %v437
    %2933 = vmatprep.subr.mxu0 0.0
    %2934 = vmatpush1.msra.mxu0 %v438
    %2935 = vmatprep.subr.mxu0 0.0
    %2936 = vmatpush1.msra.mxu0 %v439
    %2937 = vmatprep.subr.mxu0 0.0
    %2938 = vmatpush1.msra.mxu0 0.0
    %2939 = vmatprep.subr.mxu0 0.0
    %2940 = vmatpush1.msra.mxu0 0.0
    %2941 = vmatprep.subr.mxu0 0.0
    %2942 = vmatpush1.msra.mxu0 0.0
    %2943 = vmatprep.subr.mxu0 0.0
    %2944 = vmatpush1.msra.mxu0 0.0
    %2945 = vmatprep.subr.mxu0 0.0
    %2946 = vmatpush1.msra.mxu0 0.0
    %2947 = vmatprep.subr.mxu0 0.0
    %2948 = vmatpush1.msra.mxu0 0.0
    %2949 = vmatprep.subr.mxu0 0.0
    %2950 = vmatpush1.msra.mxu0 0.0
    %2951 = vmatprep.subr.mxu0 0.0
    %2952 = vmatpush1.msra.mxu0 0.0
    %2953 = vmatprep.subr.mxu0 0.0
    %2954 = vmatpush1.msra.mxu0 0.0
    %2955 = vmatprep.subr.mxu0 0.0
    %2956 = vmatpush1.msra.mxu0 0.0
    %2957 = vmatprep.subr.mxu0 0.0
    %2958 = vmatpush1.msra.mxu0 0.0
    %2959 = vmatprep.subr.mxu0 0.0
    %2960 = vmatpush1.msra.mxu0 0.0
    %2961 = vmatprep.subr.mxu0 0.0
    %2962 = vmatpush1.msra.mxu0 0.0
    %2963 = vmatprep.subr.mxu0 0.0
    %2964 = vmatpush1.msra.mxu0 0.0
    %2965 = vmatprep.subr.mxu0 0.0
    %2966 = vmatpush1.msra.mxu0 0.0
    %2967 = vmatprep.subr.mxu0 0.0
    %2968 = vmatpush1.msra.mxu0 0.0
    %2969 = vmatprep.subr.mxu0 0.0
    %2970 = vmatpush1.msra.mxu0 0.0
    %2971 = vmatprep.subr.mxu0 0.0
    %2972 = vmatpush1.msra.mxu0 0.0
    %2973 = vmatprep.subr.mxu0 0.0
    %2974 = vmatpush1.msra.mxu0 0.0
    %2975 = vmatprep.subr.mxu0 0.0
    %2976 = vmatpush1.msra.mxu0 0.0
    %2977 = vmatprep.subr.mxu0 0.0
    %2978 = vmatpush1.msra.mxu0 0.0
    %2979 = vmatprep.subr.mxu0 0.0
    %2980 = vmatpush1.msra.mxu0 0.0
    %2981 = vmatprep.subr.mxu0 0.0
    %2982 = vmatpush1.msra.mxu0 0.0
    %2983 = vmatprep.subr.mxu0 0.0
    %2984 = vmatpush1.msra.mxu0 0.0
    %2985 = vmatprep.subr.mxu0 0.0
    %2986 = vmatpush1.msra.mxu0 0.0
    %2987 = vmatprep.subr.mxu0 0.0
    %2988 = vmatpush1.msra.mxu0 0.0
    %2989 = vmatprep.subr.mxu0 0.0
    %2990 = vmatpush1.msra.mxu0 0.0
    %2991 = vmatprep.subr.mxu0 0.0
    %2992 = vmatpush1.msra.mxu0 0.0
    %2993 = vmatprep.mubr.f32.mxu0 0.0
    %2994 = vmatmul.mubr.f32.gmra.mrb[0].mxu0 %v2571
    %v2995 = vpop.f32.mrb[0].mxu0
    %v2996 = vadd.f32 %v461, %v2995
    %v2997 = vpop.f32.mrb[0].mxu0
    %2998 = vdwg.mxu0
    %v3000 = vrot.slane %v2856, 6
    %v3002 = vadd.f32 %v251, %v3000
    %v3003 = vxor.u32 %v3002, 2147483648
    %v3004 = vmul.f32 %v3003, 1.442695
    %v3005 = vpow.pop %v3004
    %v3006 = vadd.f32 %v3005, 1.0
    %v3007 = vrcp.pop %v3006
    %v3008 = vmul.f32 1.0, %v3007
    %v3010 = vrot.slane %v2926, 6
    %v3012 = vadd.f32 %v337, %v3010
    %v3013 = vxor.u32 %v3012, 2147483648
    %v3014 = vmul.f32 %v3013, 1.442695
    %v3015 = vpow.pop %v3014
    %v3016 = vadd.f32 %v3015, 1.0
    %v3017 = vrcp.pop %v3016
    %v3018 = vmul.f32 1.0, %v3017
    %v3020 = vrot.slane %v2996, 6
    %v3022 = vmul.f32 %v3008, %v3020
    %v3023 = vadd.f32 %v423, %v3022
    %v3024 = vtanh.pop %v3023
    %v3025 = vsub.f32 1.0, %v3018
    %v3026 = vmul.f32 %v3025, %v3024
    %v3027 = vrot.slane %v2569, 6
    %v3029 = vmul.f32 %v3018, %v3027
    %v3030 = vadd.f32 %v3026, %v3029
    %v3032 = vrot.slane %v3030, 2
    %v3033 = vsel %vm500, %v3032, 0
    %3035 = vmatprep.subr.mxu0 0.0
    %3036 = vmatpush1.msra.mxu0 %v463
    %3037 = vmatprep.subr.mxu0 0.0
    %3038 = vmatpush1.msra.mxu0 %v464
    %3039 = vmatprep.subr.mxu0 0.0
    %3040 = vmatpush1.msra.mxu0 %v465
    %3041 = vmatprep.subr.mxu0 0.0
    %3042 = vmatpush1.msra.mxu0 %v466
    %3043 = vmatprep.subr.mxu0 0.0
    %3044 = vmatpush1.msra.mxu0 0.0
    %3045 = vmatprep.subr.mxu0 0.0
    %3046 = vmatpush1.msra.mxu0 0.0
    %3047 = vmatprep.subr.mxu0 0.0
    %3048 = vmatpush1.msra.mxu0 0.0
    %3049 = vmatprep.subr.mxu0 0.0
    %3050 = vmatpush1.msra.mxu0 0.0
    %3051 = vmatprep.subr.mxu0 0.0
    %3052 = vmatpush1.msra.mxu0 0.0
    %3053 = vmatprep.subr.mxu0 0.0
    %3054 = vmatpush1.msra.mxu0 0.0
    %3055 = vmatprep.subr.mxu0 0.0
    %3056 = vmatpush1.msra.mxu0 0.0
    %3057 = vmatprep.subr.mxu0 0.0
    %3058 = vmatpush1.msra.mxu0 0.0
    %3059 = vmatprep.subr.mxu0 0.0
    %3060 = vmatpush1.msra.mxu0 0.0
    %3061 = vmatprep.subr.mxu0 0.0
    %3062 = vmatpush1.msra.mxu0 0.0
    %3063 = vmatprep.subr.mxu0 0.0
    %3064 = vmatpush1.msra.mxu0 0.0
    %3065 = vmatprep.subr.mxu0 0.0
    %3066 = vmatpush1.msra.mxu0 0.0
    %3067 = vmatprep.subr.mxu0 0.0
    %3068 = vmatpush1.msra.mxu0 0.0
    %3069 = vmatprep.subr.mxu0 0.0
    %3070 = vmatpush1.msra.mxu0 0.0
    %3071 = vmatprep.subr.mxu0 0.0
    %3072 = vmatpush1.msra.mxu0 0.0
    %3073 = vmatprep.subr.mxu0 0.0
    %3074 = vmatpush1.msra.mxu0 0.0
    %3075 = vmatprep.subr.mxu0 0.0
    %3076 = vmatpush1.msra.mxu0 0.0
    %3077 = vmatprep.subr.mxu0 0.0
    %3078 = vmatpush1.msra.mxu0 0.0
    %3079 = vmatprep.subr.mxu0 0.0
    %3080 = vmatpush1.msra.mxu0 0.0
    %3081 = vmatprep.subr.mxu0 0.0
    %3082 = vmatpush1.msra.mxu0 0.0
    %3083 = vmatprep.subr.mxu0 0.0
    %3084 = vmatpush1.msra.mxu0 0.0
    %3085 = vmatprep.subr.mxu0 0.0
    %3086 = vmatpush1.msra.mxu0 0.0
    %3087 = vmatprep.subr.mxu0 0.0
    %3088 = vmatpush1.msra.mxu0 0.0
    %3089 = vmatprep.subr.mxu0 0.0
    %3090 = vmatpush1.msra.mxu0 0.0
    %3091 = vmatprep.subr.mxu0 0.0
    %3092 = vmatpush1.msra.mxu0 0.0
    %3093 = vmatprep.subr.mxu0 0.0
    %3094 = vmatpush1.msra.mxu0 0.0
    %3095 = vmatprep.subr.mxu0 0.0
    %3096 = vmatpush1.msra.mxu0 0.0
    %3097 = vmatprep.subr.mxu0 0.0
    %3098 = vmatpush1.msra.mxu0 0.0
    %3099 = vmatprep.mubr.f32.mxu0 0.0
    %3100 = vmatmul.mubr.f32.gmra.mrb[0].mxu0 %v3033
    %v3101 = vpop.f32.mrb[0].mxu0
    %v3102 = vadd.f32 %v482, %v3101
    %v3103 = vpop.f32.mrb[0].mxu0
    %3104 = vdwg.mxu0
    %s3105 = scalar_lea.vmem [#allocation2], 10
    %3106 = vst.msk [vmem:[%s3105] sm:$0x3] %vm808, %v3102
    %3107 = vmatprep.subr.mxu0 0.0
    %3108 = vmatpush1.msra.mxu0 %v468
    %3109 = vmatprep.subr.mxu0 0.0
    %3110 = vmatpush1.msra.mxu0 %v469
    %3111 = vmatprep.subr.mxu0 0.0
    %3112 = vmatpush1.msra.mxu0 %v470
    %3113 = vmatprep.subr.mxu0 0.0
    %3114 = vmatpush1.msra.mxu0 %v471
    %3115 = vmatprep.subr.mxu0 0.0
    %3116 = vmatpush1.msra.mxu0 0.0
    %3117 = vmatprep.subr.mxu0 0.0
    %3118 = vmatpush1.msra.mxu0 0.0
    %3119 = vmatprep.subr.mxu0 0.0
    %3120 = vmatpush1.msra.mxu0 0.0
    %3121 = vmatprep.subr.mxu0 0.0
    %3122 = vmatpush1.msra.mxu0 0.0
    %3123 = vmatprep.subr.mxu0 0.0
    %3124 = vmatpush1.msra.mxu0 0.0
    %3125 = vmatprep.subr.mxu0 0.0
    %3126 = vmatpush1.msra.mxu0 0.0
    %3127 = vmatprep.subr.mxu0 0.0
    %3128 = vmatpush1.msra.mxu0 0.0
    %3129 = vmatprep.subr.mxu0 0.0
    %3130 = vmatpush1.msra.mxu0 0.0
    %3131 = vmatprep.subr.mxu0 0.0
    %3132 = vmatpush1.msra.mxu0 0.0
    %3133 = vmatprep.subr.mxu0 0.0
    %3134 = vmatpush1.msra.mxu0 0.0
    %3135 = vmatprep.subr.mxu0 0.0
    %3136 = vmatpush1.msra.mxu0 0.0
    %3137 = vmatprep.subr.mxu0 0.0
    %3138 = vmatpush1.msra.mxu0 0.0
    %3139 = vmatprep.subr.mxu0 0.0
    %3140 = vmatpush1.msra.mxu0 0.0
    %3141 = vmatprep.subr.mxu0 0.0
    %3142 = vmatpush1.msra.mxu0 0.0
    %3143 = vmatprep.subr.mxu0 0.0
    %3144 = vmatpush1.msra.mxu0 0.0
    %3145 = vmatprep.subr.mxu0 0.0
    %3146 = vmatpush1.msra.mxu0 0.0
    %3147 = vmatprep.subr.mxu0 0.0
    %3148 = vmatpush1.msra.mxu0 0.0
    %3149 = vmatprep.subr.mxu0 0.0
    %3150 = vmatpush1.msra.mxu0 0.0
    %3151 = vmatprep.subr.mxu0 0.0
    %3152 = vmatpush1.msra.mxu0 0.0
    %3153 = vmatprep.subr.mxu0 0.0
    %3154 = vmatpush1.msra.mxu0 0.0
    %3155 = vmatprep.subr.mxu0 0.0
    %3156 = vmatpush1.msra.mxu0 0.0
    %3157 = vmatprep.subr.mxu0 0.0
    %3158 = vmatpush1.msra.mxu0 0.0
    %3159 = vmatprep.subr.mxu0 0.0
    %3160 = vmatpush1.msra.mxu0 0.0
    %3161 = vmatprep.subr.mxu0 0.0
    %3162 = vmatpush1.msra.mxu0 0.0
    %3163 = vmatprep.subr.mxu0 0.0
    %3164 = vmatpush1.msra.mxu0 0.0
    %3165 = vmatprep.subr.mxu0 0.0
    %3166 = vmatpush1.msra.mxu0 0.0
    %3167 = vmatprep.subr.mxu0 0.0
    %3168 = vmatpush1.msra.mxu0 0.0
    %3169 = vmatprep.subr.mxu0 0.0
    %3170 = vmatpush1.msra.mxu0 0.0
    %3171 = vmatprep.mubr.f32.mxu0 0.0
    %3172 = vmatmul.mubr.f32.gmra.mrb[0].mxu0 %v3033
    %v3173 = vpop.f32.mrb[0].mxu0
    %v3174 = vadd.f32 %v490, %v3173
    %v3175 = vpop.f32.mrb[0].mxu0
    %3176 = vdwg.mxu0
    %s3177 = scalar_lea.vmem [#allocation3], 10
    %3178 = vst.msk [vmem:[%s3177] sm:$0x3] %vm808, %v3174
    %3179 = vmatprep.subr.mxu0 0.0
    %3180 = vmatpush1.msra.mxu0 %v473
    %3181 = vmatprep.subr.mxu0 0.0
    %3182 = vmatpush1.msra.mxu0 %v474
    %3183 = vmatprep.subr.mxu0 0.0
    %3184 = vmatpush1.msra.mxu0 %v475
    %3185 = vmatprep.subr.mxu0 0.0
    %3186 = vmatpush1.msra.mxu0 %v476
    %3187 = vmatprep.subr.mxu0 0.0
    %3188 = vmatpush1.msra.mxu0 0.0
    %3189 = vmatprep.subr.mxu0 0.0
    %3190 = vmatpush1.msra.mxu0 0.0
    %3191 = vmatprep.subr.mxu0 0.0
    %3192 = vmatpush1.msra.mxu0 0.0
    %3193 = vmatprep.subr.mxu0 0.0
    %3194 = vmatpush1.msra.mxu0 0.0
    %3195 = vmatprep.subr.mxu0 0.0
    %3196 = vmatpush1.msra.mxu0 0.0
    %3197 = vmatprep.subr.mxu0 0.0
    %3198 = vmatpush1.msra.mxu0 0.0
    %3199 = vmatprep.subr.mxu0 0.0
    %3200 = vmatpush1.msra.mxu0 0.0
    %3201 = vmatprep.subr.mxu0 0.0
    %3202 = vmatpush1.msra.mxu0 0.0
    %3203 = vmatprep.subr.mxu0 0.0
    %3204 = vmatpush1.msra.mxu0 0.0
    %3205 = vmatprep.subr.mxu0 0.0
    %3206 = vmatpush1.msra.mxu0 0.0
    %3207 = vmatprep.subr.mxu0 0.0
    %3208 = vmatpush1.msra.mxu0 0.0
    %3209 = vmatprep.subr.mxu0 0.0
    %3210 = vmatpush1.msra.mxu0 0.0
    %3211 = vmatprep.subr.mxu0 0.0
    %3212 = vmatpush1.msra.mxu0 0.0
    %3213 = vmatprep.subr.mxu0 0.0
    %3214 = vmatpush1.msra.mxu0 0.0
    %3215 = vmatprep.subr.mxu0 0.0
    %3216 = vmatpush1.msra.mxu0 0.0
    %3217 = vmatprep.subr.mxu0 0.0
    %3218 = vmatpush1.msra.mxu0 0.0
    %3219 = vmatprep.subr.mxu0 0.0
    %3220 = vmatpush1.msra.mxu0 0.0
    %3221 = vmatprep.subr.mxu0 0.0
    %3222 = vmatpush1.msra.mxu0 0.0
    %3223 = vmatprep.subr.mxu0 0.0
    %3224 = vmatpush1.msra.mxu0 0.0
    %3225 = vmatprep.subr.mxu0 0.0
    %3226 = vmatpush1.msra.mxu0 0.0
    %3227 = vmatprep.subr.mxu0 0.0
    %3228 = vmatpush1.msra.mxu0 0.0
    %3229 = vmatprep.subr.mxu0 0.0
    %3230 = vmatpush1.msra.mxu0 0.0
    %3231 = vmatprep.subr.mxu0 0.0
    %3232 = vmatpush1.msra.mxu0 0.0
    %3233 = vmatprep.subr.mxu0 0.0
    %3234 = vmatpush1.msra.mxu0 0.0
    %3235 = vmatprep.subr.mxu0 0.0
    %3236 = vmatpush1.msra.mxu0 0.0
    %3237 = vmatprep.subr.mxu0 0.0
    %3238 = vmatpush1.msra.mxu0 0.0
    %3239 = vmatprep.subr.mxu0 0.0
    %3240 = vmatpush1.msra.mxu0 0.0
    %3241 = vmatprep.subr.mxu0 0.0
    %3242 = vmatpush1.msra.mxu0 0.0
    %3243 = vmatprep.mubr.f32.mxu0 0.0
    %3244 = vmatmul.mubr.f32.gmra.mrb[0].mxu0 %v3033
    %v3245 = vpop.f32.mrb[0].mxu0
    %v3246 = vadd.f32 %v498, %v3245
    %v3247 = vpop.f32.mrb[0].mxu0
    %3248 = vdwg.mxu0
    %s3249 = scalar_lea.vmem [#allocation4], 10
    %3250 = vst.msk [vmem:[%s3249] sm:$0x3] %vm808, %v3246
    %3251 = vmatprep.subr.mxu0 0.0
    %3252 = vmatpush1.msra.mxu0 %v426
    %3253 = vmatprep.subr.mxu0 0.0
    %3254 = vmatpush1.msra.mxu0 %v427
    %3255 = vmatprep.subr.mxu0 0.0
    %3256 = vmatpush1.msra.mxu0 %v428
    %3257 = vmatprep.subr.mxu0 0.0
    %3258 = vmatpush1.msra.mxu0 %v429
    %3259 = vmatprep.subr.mxu0 0.0
    %3260 = vmatpush1.msra.mxu0 0.0
    %3261 = vmatprep.subr.mxu0 0.0
    %3262 = vmatpush1.msra.mxu0 0.0
    %3263 = vmatprep.subr.mxu0 0.0
    %3264 = vmatpush1.msra.mxu0 0.0
    %3265 = vmatprep.subr.mxu0 0.0
    %3266 = vmatpush1.msra.mxu0 0.0
    %3267 = vmatprep.subr.mxu0 0.0
    %3268 = vmatpush1.msra.mxu0 0.0
    %3269 = vmatprep.subr.mxu0 0.0
    %3270 = vmatpush1.msra.mxu0 0.0
    %3271 = vmatprep.subr.mxu0 0.0
    %3272 = vmatpush1.msra.mxu0 0.0
    %3273 = vmatprep.subr.mxu0 0.0
    %3274 = vmatpush1.msra.mxu0 0.0
    %3275 = vmatprep.subr.mxu0 0.0
    %3276 = vmatpush1.msra.mxu0 0.0
    %3277 = vmatprep.subr.mxu0 0.0
    %3278 = vmatpush1.msra.mxu0 0.0
    %3279 = vmatprep.subr.mxu0 0.0
    %3280 = vmatpush1.msra.mxu0 0.0
    %3281 = vmatprep.subr.mxu0 0.0
    %3282 = vmatpush1.msra.mxu0 0.0
    %3283 = vmatprep.subr.mxu0 0.0
    %3284 = vmatpush1.msra.mxu0 0.0
    %3285 = vmatprep.subr.mxu0 0.0
    %3286 = vmatpush1.msra.mxu0 0.0
    %3287 = vmatprep.subr.mxu0 0.0
    %3288 = vmatpush1.msra.mxu0 0.0
    %3289 = vmatprep.subr.mxu0 0.0
    %3290 = vmatpush1.msra.mxu0 0.0
    %3291 = vmatprep.subr.mxu0 0.0
    %3292 = vmatpush1.msra.mxu0 0.0
    %3293 = vmatprep.subr.mxu0 0.0
    %3294 = vmatpush1.msra.mxu0 0.0
    %3295 = vmatprep.subr.mxu0 0.0
    %3296 = vmatpush1.msra.mxu0 0.0
    %3297 = vmatprep.subr.mxu0 0.0
    %3298 = vmatpush1.msra.mxu0 0.0
    %3299 = vmatprep.subr.mxu0 0.0
    %3300 = vmatpush1.msra.mxu0 0.0
    %3301 = vmatprep.subr.mxu0 0.0
    %3302 = vmatpush1.msra.mxu0 0.0
    %3303 = vmatprep.subr.mxu0 0.0
    %3304 = vmatpush1.msra.mxu0 0.0
    %3305 = vmatprep.subr.mxu0 0.0
    %3306 = vmatpush1.msra.mxu0 0.0
    %3307 = vmatprep.subr.mxu0 0.0
    %3308 = vmatpush1.msra.mxu0 0.0
    %3309 = vmatprep.subr.mxu0 0.0
    %3310 = vmatpush1.msra.mxu0 0.0
    %3311 = vmatprep.subr.mxu0 0.0
    %3312 = vmatpush1.msra.mxu0 0.0
    %3313 = vmatprep.subr.mxu0 0.0
    %3314 = vmatpush1.msra.mxu0 0.0
    %3315 = vmatprep.mubr.f32.mxu0 0.0
    %3316 = vmatmul.mubr.f32.gmra.mrb[0].mxu0 %v3033
    %v3317 = vpop.f32.mrb[0].mxu0
    %v3318 = vadd.f32 %v445, %v3317
    %v3319 = vpop.f32.mrb[0].mxu0
    %3320 = vdwg.mxu0
    %3321 = vmatprep.subr.mxu0 0.0
    %3322 = vmatpush1.msra.mxu0 %v431
    %3323 = vmatprep.subr.mxu0 0.0
    %3324 = vmatpush1.msra.mxu0 %v432
    %3325 = vmatprep.subr.mxu0 0.0
    %3326 = vmatpush1.msra.mxu0 %v433
    %3327 = vmatprep.subr.mxu0 0.0
    %3328 = vmatpush1.msra.mxu0 %v434
    %3329 = vmatprep.subr.mxu0 0.0
    %3330 = vmatpush1.msra.mxu0 0.0
    %3331 = vmatprep.subr.mxu0 0.0
    %3332 = vmatpush1.msra.mxu0 0.0
    %3333 = vmatprep.subr.mxu0 0.0
    %3334 = vmatpush1.msra.mxu0 0.0
    %3335 = vmatprep.subr.mxu0 0.0
    %3336 = vmatpush1.msra.mxu0 0.0
    %3337 = vmatprep.subr.mxu0 0.0
    %3338 = vmatpush1.msra.mxu0 0.0
    %3339 = vmatprep.subr.mxu0 0.0
    %3340 = vmatpush1.msra.mxu0 0.0
    %3341 = vmatprep.subr.mxu0 0.0
    %3342 = vmatpush1.msra.mxu0 0.0
    %3343 = vmatprep.subr.mxu0 0.0
    %3344 = vmatpush1.msra.mxu0 0.0
    %3345 = vmatprep.subr.mxu0 0.0
    %3346 = vmatpush1.msra.mxu0 0.0
    %3347 = vmatprep.subr.mxu0 0.0
    %3348 = vmatpush1.msra.mxu0 0.0
    %3349 = vmatprep.subr.mxu0 0.0
    %3350 = vmatpush1.msra.mxu0 0.0
    %3351 = vmatprep.subr.mxu0 0.0
    %3352 = vmatpush1.msra.mxu0 0.0
    %3353 = vmatprep.subr.mxu0 0.0
    %3354 = vmatpush1.msra.mxu0 0.0
    %3355 = vmatprep.subr.mxu0 0.0
    %3356 = vmatpush1.msra.mxu0 0.0
    %3357 = vmatprep.subr.mxu0 0.0
    %3358 = vmatpush1.msra.mxu0 0.0
    %3359 = vmatprep.subr.mxu0 0.0
    %3360 = vmatpush1.msra.mxu0 0.0
    %3361 = vmatprep.subr.mxu0 0.0
    %3362 = vmatpush1.msra.mxu0 0.0
    %3363 = vmatprep.subr.mxu0 0.0
    %3364 = vmatpush1.msra.mxu0 0.0
    %3365 = vmatprep.subr.mxu0 0.0
    %3366 = vmatpush1.msra.mxu0 0.0
    %3367 = vmatprep.subr.mxu0 0.0
    %3368 = vmatpush1.msra.mxu0 0.0
    %3369 = vmatprep.subr.mxu0 0.0
    %3370 = vmatpush1.msra.mxu0 0.0
    %3371 = vmatprep.subr.mxu0 0.0
    %3372 = vmatpush1.msra.mxu0 0.0
    %3373 = vmatprep.subr.mxu0 0.0
    %3374 = vmatpush1.msra.mxu0 0.0
    %3375 = vmatprep.subr.mxu0 0.0
    %3376 = vmatpush1.msra.mxu0 0.0
    %3377 = vmatprep.subr.mxu0 0.0
    %3378 = vmatpush1.msra.mxu0 0.0
    %3379 = vmatprep.subr.mxu0 0.0
    %3380 = vmatpush1.msra.mxu0 0.0
    %3381 = vmatprep.subr.mxu0 0.0
    %3382 = vmatpush1.msra.mxu0 0.0
    %3383 = vmatprep.subr.mxu0 0.0
    %3384 = vmatpush1.msra.mxu0 0.0
    %3385 = vmatprep.mubr.f32.mxu0 0.0
    %3386 = vmatmul.mubr.f32.gmra.mrb[0].mxu0 %v3033
    %v3387 = vpop.f32.mrb[0].mxu0
    %v3388 = vadd.f32 %v453, %v3387
    %v3389 = vpop.f32.mrb[0].mxu0
    %3390 = vdwg.mxu0
    %3391 = vmatprep.subr.mxu0 0.0
    %3392 = vmatpush1.msra.mxu0 %v436
    %3393 = vmatprep.subr.mxu0 0.0
    %3394 = vmatpush1.msra.mxu0 %v437
    %3395 = vmatprep.subr.mxu0 0.0
    %3396 = vmatpush1.msra.mxu0 %v438
    %3397 = vmatprep.subr.mxu0 0.0
    %3398 = vmatpush1.msra.mxu0 %v439
    %3399 = vmatprep.subr.mxu0 0.0
    %3400 = vmatpush1.msra.mxu0 0.0
    %3401 = vmatprep.subr.mxu0 0.0
    %3402 = vmatpush1.msra.mxu0 0.0
    %3403 = vmatprep.subr.mxu0 0.0
    %3404 = vmatpush1.msra.mxu0 0.0
    %3405 = vmatprep.subr.mxu0 0.0
    %3406 = vmatpush1.msra.mxu0 0.0
    %3407 = vmatprep.subr.mxu0 0.0
    %3408 = vmatpush1.msra.mxu0 0.0
    %3409 = vmatprep.subr.mxu0 0.0
    %3410 = vmatpush1.msra.mxu0 0.0
    %3411 = vmatprep.subr.mxu0 0.0
    %3412 = vmatpush1.msra.mxu0 0.0
    %3413 = vmatprep.subr.mxu0 0.0
    %3414 = vmatpush1.msra.mxu0 0.0
    %3415 = vmatprep.subr.mxu0 0.0
    %3416 = vmatpush1.msra.mxu0 0.0
    %3417 = vmatprep.subr.mxu0 0.0
    %3418 = vmatpush1.msra.mxu0 0.0
    %3419 = vmatprep.subr.mxu0 0.0
    %3420 = vmatpush1.msra.mxu0 0.0
    %3421 = vmatprep.subr.mxu0 0.0
    %3422 = vmatpush1.msra.mxu0 0.0
    %3423 = vmatprep.subr.mxu0 0.0
    %3424 = vmatpush1.msra.mxu0 0.0
    %3425 = vmatprep.subr.mxu0 0.0
    %3426 = vmatpush1.msra.mxu0 0.0
    %3427 = vmatprep.subr.mxu0 0.0
    %3428 = vmatpush1.msra.mxu0 0.0
    %3429 = vmatprep.subr.mxu0 0.0
    %3430 = vmatpush1.msra.mxu0 0.0
    %3431 = vmatprep.subr.mxu0 0.0
    %3432 = vmatpush1.msra.mxu0 0.0
    %3433 = vmatprep.subr.mxu0 0.0
    %3434 = vmatpush1.msra.mxu0 0.0
    %3435 = vmatprep.subr.mxu0 0.0
    %3436 = vmatpush1.msra.mxu0 0.0
    %3437 = vmatprep.subr.mxu0 0.0
    %3438 = vmatpush1.msra.mxu0 0.0
    %3439 = vmatprep.subr.mxu0 0.0
    %3440 = vmatpush1.msra.mxu0 0.0
    %3441 = vmatprep.subr.mxu0 0.0
    %3442 = vmatpush1.msra.mxu0 0.0
    %3443 = vmatprep.subr.mxu0 0.0
    %3444 = vmatpush1.msra.mxu0 0.0
    %3445 = vmatprep.subr.mxu0 0.0
    %3446 = vmatpush1.msra.mxu0 0.0
    %3447 = vmatprep.subr.mxu0 0.0
    %3448 = vmatpush1.msra.mxu0 0.0
    %3449 = vmatprep.subr.mxu0 0.0
    %3450 = vmatpush1.msra.mxu0 0.0
    %3451 = vmatprep.subr.mxu0 0.0
    %3452 = vmatpush1.msra.mxu0 0.0
    %3453 = vmatprep.subr.mxu0 0.0
    %3454 = vmatpush1.msra.mxu0 0.0
    %3455 = vmatprep.mubr.f32.mxu0 0.0
    %3456 = vmatmul.mubr.f32.gmra.mrb[0].mxu0 %v3033
    %v3457 = vpop.f32.mrb[0].mxu0
    %v3458 = vadd.f32 %v461, %v3457
    %v3459 = vpop.f32.mrb[0].mxu0
    %3460 = vdwg.mxu0
    %v3462 = vrot.slane %v3318, 4
    %v3464 = vadd.f32 %v251, %v3462
    %v3465 = vxor.u32 %v3464, 2147483648
    %v3466 = vmul.f32 %v3465, 1.442695
    %v3467 = vpow.pop %v3466
    %v3468 = vadd.f32 %v3467, 1.0
    %v3469 = vrcp.pop %v3468
    %v3470 = vmul.f32 1.0, %v3469
    %v3472 = vrot.slane %v3388, 4
    %v3474 = vadd.f32 %v337, %v3472
    %v3475 = vxor.u32 %v3474, 2147483648
    %v3476 = vmul.f32 %v3475, 1.442695
    %v3477 = vpow.pop %v3476
    %v3478 = vadd.f32 %v3477, 1.0
    %v3479 = vrcp.pop %v3478
    %v3480 = vmul.f32 1.0, %v3479
    %v3482 = vrot.slane %v3458, 4
    %v3484 = vmul.f32 %v3470, %v3482
    %v3485 = vadd.f32 %v423, %v3484
    %v3486 = vtanh.pop %v3485
    %v3487 = vsub.f32 1.0, %v3480
    %v3488 = vmul.f32 %v3487, %v3486
    %v3489 = vrot.slane %v3030, 6
    %v3491 = vmul.f32 %v3480, %v3489
    %v3492 = vadd.f32 %v3488, %v3491
    %v3494 = vrot.slane %v3492, 4
    %v3495 = vsel %vm500, %v3494, 0
    %3497 = vmatprep.subr.mxu0 0.0
    %3498 = vmatpush1.msra.mxu0 %v463
    %3499 = vmatprep.subr.mxu0 0.0
    %3500 = vmatpush1.msra.mxu0 %v464
    %3501 = vmatprep.subr.mxu0 0.0
    %3502 = vmatpush1.msra.mxu0 %v465
    %3503 = vmatprep.subr.mxu0 0.0
    %3504 = vmatpush1.msra.mxu0 %v466
    %3505 = vmatprep.subr.mxu0 0.0
    %3506 = vmatpush1.msra.mxu0 0.0
    %3507 = vmatprep.subr.mxu0 0.0
    %3508 = vmatpush1.msra.mxu0 0.0
    %3509 = vmatprep.subr.mxu0 0.0
    %3510 = vmatpush1.msra.mxu0 0.0
    %3511 = vmatprep.subr.mxu0 0.0
    %3512 = vmatpush1.msra.mxu0 0.0
    %3513 = vmatprep.subr.mxu0 0.0
    %3514 = vmatpush1.msra.mxu0 0.0
    %3515 = vmatprep.subr.mxu0 0.0
    %3516 = vmatpush1.msra.mxu0 0.0
    %3517 = vmatprep.subr.mxu0 0.0
    %3518 = vmatpush1.msra.mxu0 0.0
    %3519 = vmatprep.subr.mxu0 0.0
    %3520 = vmatpush1.msra.mxu0 0.0
    %3521 = vmatprep.subr.mxu0 0.0
    %3522 = vmatpush1.msra.mxu0 0.0
    %3523 = vmatprep.subr.mxu0 0.0
    %3524 = vmatpush1.msra.mxu0 0.0
    %3525 = vmatprep.subr.mxu0 0.0
    %3526 = vmatpush1.msra.mxu0 0.0
    %3527 = vmatprep.subr.mxu0 0.0
    %3528 = vmatpush1.msra.mxu0 0.0
    %3529 = vmatprep.subr.mxu0 0.0
    %3530 = vmatpush1.msra.mxu0 0.0
    %3531 = vmatprep.subr.mxu0 0.0
    %3532 = vmatpush1.msra.mxu0 0.0
    %3533 = vmatprep.subr.mxu0 0.0
    %3534 = vmatpush1.msra.mxu0 0.0
    %3535 = vmatprep.subr.mxu0 0.0
    %3536 = vmatpush1.msra.mxu0 0.0
    %3537 = vmatprep.subr.mxu0 0.0
    %3538 = vmatpush1.msra.mxu0 0.0
    %3539 = vmatprep.subr.mxu0 0.0
    %3540 = vmatpush1.msra.mxu0 0.0
    %3541 = vmatprep.subr.mxu0 0.0
    %3542 = vmatpush1.msra.mxu0 0.0
    %3543 = vmatprep.subr.mxu0 0.0
    %3544 = vmatpush1.msra.mxu0 0.0
    %3545 = vmatprep.subr.mxu0 0.0
    %3546 = vmatpush1.msra.mxu0 0.0
    %3547 = vmatprep.subr.mxu0 0.0
    %3548 = vmatpush1.msra.mxu0 0.0
    %3549 = vmatprep.subr.mxu0 0.0
    %3550 = vmatpush1.msra.mxu0 0.0
    %3551 = vmatprep.subr.mxu0 0.0
    %3552 = vmatpush1.msra.mxu0 0.0
    %3553 = vmatprep.subr.mxu0 0.0
    %3554 = vmatpush1.msra.mxu0 0.0
    %3555 = vmatprep.subr.mxu0 0.0
    %3556 = vmatpush1.msra.mxu0 0.0
    %3557 = vmatprep.subr.mxu0 0.0
    %3558 = vmatpush1.msra.mxu0 0.0
    %3559 = vmatprep.subr.mxu0 0.0
    %3560 = vmatpush1.msra.mxu0 0.0
    %3561 = vmatprep.mubr.f32.mxu0 0.0
    %3562 = vmatmul.mubr.f32.gmra.mrb[0].mxu0 %v3495
    %v3563 = vpop.f32.mrb[0].mxu0
    %v3564 = vadd.f32 %v482, %v3563
    %v3565 = vpop.f32.mrb[0].mxu0
    %3566 = vdwg.mxu0
    %s3567 = scalar_lea.vmem [#allocation2], 12
    %3568 = vst.msk [vmem:[%s3567] sm:$0x3] %vm808, %v3564
    %3569 = vmatprep.subr.mxu0 0.0
    %3570 = vmatpush1.msra.mxu0 %v468
    %3571 = vmatprep.subr.mxu0 0.0
    %3572 = vmatpush1.msra.mxu0 %v469
    %3573 = vmatprep.subr.mxu0 0.0
    %3574 = vmatpush1.msra.mxu0 %v470
    %3575 = vmatprep.subr.mxu0 0.0
    %3576 = vmatpush1.msra.mxu0 %v471
    %3577 = vmatprep.subr.mxu0 0.0
    %3578 = vmatpush1.msra.mxu0 0.0
    %3579 = vmatprep.subr.mxu0 0.0
    %3580 = vmatpush1.msra.mxu0 0.0
    %3581 = vmatprep.subr.mxu0 0.0
    %3582 = vmatpush1.msra.mxu0 0.0
    %3583 = vmatprep.subr.mxu0 0.0
    %3584 = vmatpush1.msra.mxu0 0.0
    %3585 = vmatprep.subr.mxu0 0.0
    %3586 = vmatpush1.msra.mxu0 0.0
    %3587 = vmatprep.subr.mxu0 0.0
    %3588 = vmatpush1.msra.mxu0 0.0
    %3589 = vmatprep.subr.mxu0 0.0
    %3590 = vmatpush1.msra.mxu0 0.0
    %3591 = vmatprep.subr.mxu0 0.0
    %3592 = vmatpush1.msra.mxu0 0.0
    %3593 = vmatprep.subr.mxu0 0.0
    %3594 = vmatpush1.msra.mxu0 0.0
    %3595 = vmatprep.subr.mxu0 0.0
    %3596 = vmatpush1.msra.mxu0 0.0
    %3597 = vmatprep.subr.mxu0 0.0
    %3598 = vmatpush1.msra.mxu0 0.0
    %3599 = vmatprep.subr.mxu0 0.0
    %3600 = vmatpush1.msra.mxu0 0.0
    %3601 = vmatprep.subr.mxu0 0.0
    %3602 = vmatpush1.msra.mxu0 0.0
    %3603 = vmatprep.subr.mxu0 0.0
    %3604 = vmatpush1.msra.mxu0 0.0
    %3605 = vmatprep.subr.mxu0 0.0
    %3606 = vmatpush1.msra.mxu0 0.0
    %3607 = vmatprep.subr.mxu0 0.0
    %3608 = vmatpush1.msra.mxu0 0.0
    %3609 = vmatprep.subr.mxu0 0.0
    %3610 = vmatpush1.msra.mxu0 0.0
    %3611 = vmatprep.subr.mxu0 0.0
    %3612 = vmatpush1.msra.mxu0 0.0
    %3613 = vmatprep.subr.mxu0 0.0
    %3614 = vmatpush1.msra.mxu0 0.0
    %3615 = vmatprep.subr.mxu0 0.0
    %3616 = vmatpush1.msra.mxu0 0.0
    %3617 = vmatprep.subr.mxu0 0.0
    %3618 = vmatpush1.msra.mxu0 0.0
    %3619 = vmatprep.subr.mxu0 0.0
    %3620 = vmatpush1.msra.mxu0 0.0
    %3621 = vmatprep.subr.mxu0 0.0
    %3622 = vmatpush1.msra.mxu0 0.0
    %3623 = vmatprep.subr.mxu0 0.0
    %3624 = vmatpush1.msra.mxu0 0.0
    %3625 = vmatprep.subr.mxu0 0.0
    %3626 = vmatpush1.msra.mxu0 0.0
    %3627 = vmatprep.subr.mxu0 0.0
    %3628 = vmatpush1.msra.mxu0 0.0
    %3629 = vmatprep.subr.mxu0 0.0
    %3630 = vmatpush1.msra.mxu0 0.0
    %3631 = vmatprep.subr.mxu0 0.0
    %3632 = vmatpush1.msra.mxu0 0.0
    %3633 = vmatprep.mubr.f32.mxu0 0.0
    %3634 = vmatmul.mubr.f32.gmra.mrb[0].mxu0 %v3495
    %v3635 = vpop.f32.mrb[0].mxu0
    %v3636 = vadd.f32 %v490, %v3635
    %v3637 = vpop.f32.mrb[0].mxu0
    %3638 = vdwg.mxu0
    %s3639 = scalar_lea.vmem [#allocation3], 12
    %3640 = vst.msk [vmem:[%s3639] sm:$0x3] %vm808, %v3636
    %3641 = vmatprep.subr.mxu0 0.0
    %3642 = vmatpush1.msra.mxu0 %v473
    %3643 = vmatprep.subr.mxu0 0.0
    %3644 = vmatpush1.msra.mxu0 %v474
    %3645 = vmatprep.subr.mxu0 0.0
    %3646 = vmatpush1.msra.mxu0 %v475
    %3647 = vmatprep.subr.mxu0 0.0
    %3648 = vmatpush1.msra.mxu0 %v476
    %3649 = vmatprep.subr.mxu0 0.0
    %3650 = vmatpush1.msra.mxu0 0.0
    %3651 = vmatprep.subr.mxu0 0.0
    %3652 = vmatpush1.msra.mxu0 0.0
    %3653 = vmatprep.subr.mxu0 0.0
    %3654 = vmatpush1.msra.mxu0 0.0
    %3655 = vmatprep.subr.mxu0 0.0
    %3656 = vmatpush1.msra.mxu0 0.0
    %3657 = vmatprep.subr.mxu0 0.0
    %3658 = vmatpush1.msra.mxu0 0.0
    %3659 = vmatprep.subr.mxu0 0.0
    %3660 = vmatpush1.msra.mxu0 0.0
    %3661 = vmatprep.subr.mxu0 0.0
    %3662 = vmatpush1.msra.mxu0 0.0
    %3663 = vmatprep.subr.mxu0 0.0
    %3664 = vmatpush1.msra.mxu0 0.0
    %3665 = vmatprep.subr.mxu0 0.0
    %3666 = vmatpush1.msra.mxu0 0.0
    %3667 = vmatprep.subr.mxu0 0.0
    %3668 = vmatpush1.msra.mxu0 0.0
    %3669 = vmatprep.subr.mxu0 0.0
    %3670 = vmatpush1.msra.mxu0 0.0
    %3671 = vmatprep.subr.mxu0 0.0
    %3672 = vmatpush1.msra.mxu0 0.0
    %3673 = vmatprep.subr.mxu0 0.0
    %3674 = vmatpush1.msra.mxu0 0.0
    %3675 = vmatprep.subr.mxu0 0.0
    %3676 = vmatpush1.msra.mxu0 0.0
    %3677 = vmatprep.subr.mxu0 0.0
    %3678 = vmatpush1.msra.mxu0 0.0
    %3679 = vmatprep.subr.mxu0 0.0
    %3680 = vmatpush1.msra.mxu0 0.0
    %3681 = vmatprep.subr.mxu0 0.0
    %3682 = vmatpush1.msra.mxu0 0.0
    %3683 = vmatprep.subr.mxu0 0.0
    %3684 = vmatpush1.msra.mxu0 0.0
    %3685 = vmatprep.subr.mxu0 0.0
    %3686 = vmatpush1.msra.mxu0 0.0
    %3687 = vmatprep.subr.mxu0 0.0
    %3688 = vmatpush1.msra.mxu0 0.0
    %3689 = vmatprep.subr.mxu0 0.0
    %3690 = vmatpush1.msra.mxu0 0.0
    %3691 = vmatprep.subr.mxu0 0.0
    %3692 = vmatpush1.msra.mxu0 0.0
    %3693 = vmatprep.subr.mxu0 0.0
    %3694 = vmatpush1.msra.mxu0 0.0
    %3695 = vmatprep.subr.mxu0 0.0
    %3696 = vmatpush1.msra.mxu0 0.0
    %3697 = vmatprep.subr.mxu0 0.0
    %3698 = vmatpush1.msra.mxu0 0.0
    %3699 = vmatprep.subr.mxu0 0.0
    %3700 = vmatpush1.msra.mxu0 0.0
    %3701 = vmatprep.subr.mxu0 0.0
    %3702 = vmatpush1.msra.mxu0 0.0
    %3703 = vmatprep.subr.mxu0 0.0
    %3704 = vmatpush1.msra.mxu0 0.0
    %3705 = vmatprep.mubr.f32.mxu0 0.0
    %3706 = vmatmul.mubr.f32.gmra.mrb[0].mxu0 %v3495
    %v3707 = vpop.f32.mrb[0].mxu0
    %v3708 = vadd.f32 %v498, %v3707
    %v3709 = vpop.f32.mrb[0].mxu0
    %3710 = vdwg.mxu0
    %s3711 = scalar_lea.vmem [#allocation4], 12
    %3712 = vst.msk [vmem:[%s3711] sm:$0x3] %vm808, %v3708
    %3713 = vmatprep.subr.mxu0 0.0
    %3714 = vmatpush1.msra.mxu0 %v426
    %3715 = vmatprep.subr.mxu0 0.0
    %3716 = vmatpush1.msra.mxu0 %v427
    %3717 = vmatprep.subr.mxu0 0.0
    %3718 = vmatpush1.msra.mxu0 %v428
    %3719 = vmatprep.subr.mxu0 0.0
    %3720 = vmatpush1.msra.mxu0 %v429
    %3721 = vmatprep.subr.mxu0 0.0
    %3722 = vmatpush1.msra.mxu0 0.0
    %3723 = vmatprep.subr.mxu0 0.0
    %3724 = vmatpush1.msra.mxu0 0.0
    %3725 = vmatprep.subr.mxu0 0.0
    %3726 = vmatpush1.msra.mxu0 0.0
    %3727 = vmatprep.subr.mxu0 0.0
    %3728 = vmatpush1.msra.mxu0 0.0
    %3729 = vmatprep.subr.mxu0 0.0
    %3730 = vmatpush1.msra.mxu0 0.0
    %3731 = vmatprep.subr.mxu0 0.0
    %3732 = vmatpush1.msra.mxu0 0.0
    %3733 = vmatprep.subr.mxu0 0.0
    %3734 = vmatpush1.msra.mxu0 0.0
    %3735 = vmatprep.subr.mxu0 0.0
    %3736 = vmatpush1.msra.mxu0 0.0
    %3737 = vmatprep.subr.mxu0 0.0
    %3738 = vmatpush1.msra.mxu0 0.0
    %3739 = vmatprep.subr.mxu0 0.0
    %3740 = vmatpush1.msra.mxu0 0.0
    %3741 = vmatprep.subr.mxu0 0.0
    %3742 = vmatpush1.msra.mxu0 0.0
    %3743 = vmatprep.subr.mxu0 0.0
    %3744 = vmatpush1.msra.mxu0 0.0
    %3745 = vmatprep.subr.mxu0 0.0
    %3746 = vmatpush1.msra.mxu0 0.0
    %3747 = vmatprep.subr.mxu0 0.0
    %3748 = vmatpush1.msra.mxu0 0.0
    %3749 = vmatprep.subr.mxu0 0.0
    %3750 = vmatpush1.msra.mxu0 0.0
    %3751 = vmatprep.subr.mxu0 0.0
    %3752 = vmatpush1.msra.mxu0 0.0
    %3753 = vmatprep.subr.mxu0 0.0
    %3754 = vmatpush1.msra.mxu0 0.0
    %3755 = vmatprep.subr.mxu0 0.0
    %3756 = vmatpush1.msra.mxu0 0.0
    %3757 = vmatprep.subr.mxu0 0.0
    %3758 = vmatpush1.msra.mxu0 0.0
    %3759 = vmatprep.subr.mxu0 0.0
    %3760 = vmatpush1.msra.mxu0 0.0
    %3761 = vmatprep.subr.mxu0 0.0
    %3762 = vmatpush1.msra.mxu0 0.0
    %3763 = vmatprep.subr.mxu0 0.0
    %3764 = vmatpush1.msra.mxu0 0.0
    %3765 = vmatprep.subr.mxu0 0.0
    %3766 = vmatpush1.msra.mxu0 0.0
    %3767 = vmatprep.subr.mxu0 0.0
    %3768 = vmatpush1.msra.mxu0 0.0
    %3769 = vmatprep.subr.mxu0 0.0
    %3770 = vmatpush1.msra.mxu0 0.0
    %3771 = vmatprep.subr.mxu0 0.0
    %3772 = vmatpush1.msra.mxu0 0.0
    %3773 = vmatprep.subr.mxu0 0.0
    %3774 = vmatpush1.msra.mxu0 0.0
    %3775 = vmatprep.subr.mxu0 0.0
    %3776 = vmatpush1.msra.mxu0 0.0
    %3777 = vmatprep.mubr.f32.mxu0 0.0
    %3778 = vmatmul.mubr.f32.gmra.mrb[0].mxu0 %v3495
    %v3779 = vpop.f32.mrb[0].mxu0
    %v3780 = vadd.f32 %v445, %v3779
    %v3781 = vpop.f32.mrb[0].mxu0
    %3782 = vdwg.mxu0
    %3783 = vmatprep.subr.mxu0 0.0
    %3784 = vmatpush1.msra.mxu0 %v431
    %3785 = vmatprep.subr.mxu0 0.0
    %3786 = vmatpush1.msra.mxu0 %v432
    %3787 = vmatprep.subr.mxu0 0.0
    %3788 = vmatpush1.msra.mxu0 %v433
    %3789 = vmatprep.subr.mxu0 0.0
    %3790 = vmatpush1.msra.mxu0 %v434
    %3791 = vmatprep.subr.mxu0 0.0
    %3792 = vmatpush1.msra.mxu0 0.0
    %3793 = vmatprep.subr.mxu0 0.0
    %3794 = vmatpush1.msra.mxu0 0.0
    %3795 = vmatprep.subr.mxu0 0.0
    %3796 = vmatpush1.msra.mxu0 0.0
    %3797 = vmatprep.subr.mxu0 0.0
    %3798 = vmatpush1.msra.mxu0 0.0
    %3799 = vmatprep.subr.mxu0 0.0
    %3800 = vmatpush1.msra.mxu0 0.0
    %3801 = vmatprep.subr.mxu0 0.0
    %3802 = vmatpush1.msra.mxu0 0.0
    %3803 = vmatprep.subr.mxu0 0.0
    %3804 = vmatpush1.msra.mxu0 0.0
    %3805 = vmatprep.subr.mxu0 0.0
    %3806 = vmatpush1.msra.mxu0 0.0
    %3807 = vmatprep.subr.mxu0 0.0
    %3808 = vmatpush1.msra.mxu0 0.0
    %3809 = vmatprep.subr.mxu0 0.0
    %3810 = vmatpush1.msra.mxu0 0.0
    %3811 = vmatprep.subr.mxu0 0.0
    %3812 = vmatpush1.msra.mxu0 0.0
    %3813 = vmatprep.subr.mxu0 0.0
    %3814 = vmatpush1.msra.mxu0 0.0
    %3815 = vmatprep.subr.mxu0 0.0
    %3816 = vmatpush1.msra.mxu0 0.0
    %3817 = vmatprep.subr.mxu0 0.0
    %3818 = vmatpush1.msra.mxu0 0.0
    %3819 = vmatprep.subr.mxu0 0.0
    %3820 = vmatpush1.msra.mxu0 0.0
    %3821 = vmatprep.subr.mxu0 0.0
    %3822 = vmatpush1.msra.mxu0 0.0
    %3823 = vmatprep.subr.mxu0 0.0
    %3824 = vmatpush1.msra.mxu0 0.0
    %3825 = vmatprep.subr.mxu0 0.0
    %3826 = vmatpush1.msra.mxu0 0.0
    %3827 = vmatprep.subr.mxu0 0.0
    %3828 = vmatpush1.msra.mxu0 0.0
    %3829 = vmatprep.subr.mxu0 0.0
    %3830 = vmatpush1.msra.mxu0 0.0
    %3831 = vmatprep.subr.mxu0 0.0
    %3832 = vmatpush1.msra.mxu0 0.0
    %3833 = vmatprep.subr.mxu0 0.0
    %3834 = vmatpush1.msra.mxu0 0.0
    %3835 = vmatprep.subr.mxu0 0.0
    %3836 = vmatpush1.msra.mxu0 0.0
    %3837 = vmatprep.subr.mxu0 0.0
    %3838 = vmatpush1.msra.mxu0 0.0
    %3839 = vmatprep.subr.mxu0 0.0
    %3840 = vmatpush1.msra.mxu0 0.0
    %3841 = vmatprep.subr.mxu0 0.0
    %3842 = vmatpush1.msra.mxu0 0.0
    %3843 = vmatprep.subr.mxu0 0.0
    %3844 = vmatpush1.msra.mxu0 0.0
    %3845 = vmatprep.subr.mxu0 0.0
    %3846 = vmatpush1.msra.mxu0 0.0
    %3847 = vmatprep.mubr.f32.mxu0 0.0
    %3848 = vmatmul.mubr.f32.gmra.mrb[0].mxu0 %v3495
    %v3849 = vpop.f32.mrb[0].mxu0
    %v3850 = vadd.f32 %v453, %v3849
    %v3851 = vpop.f32.mrb[0].mxu0
    %3852 = vdwg.mxu0
    %3853 = vmatprep.subr.mxu0 0.0
    %3854 = vmatpush1.msra.mxu0 %v436
    %3855 = vmatprep.subr.mxu0 0.0
    %3856 = vmatpush1.msra.mxu0 %v437
    %3857 = vmatprep.subr.mxu0 0.0
    %3858 = vmatpush1.msra.mxu0 %v438
    %3859 = vmatprep.subr.mxu0 0.0
    %3860 = vmatpush1.msra.mxu0 %v439
    %3861 = vmatprep.subr.mxu0 0.0
    %3862 = vmatpush1.msra.mxu0 0.0
    %3863 = vmatprep.subr.mxu0 0.0
    %3864 = vmatpush1.msra.mxu0 0.0
    %3865 = vmatprep.subr.mxu0 0.0
    %3866 = vmatpush1.msra.mxu0 0.0
    %3867 = vmatprep.subr.mxu0 0.0
    %3868 = vmatpush1.msra.mxu0 0.0
    %3869 = vmatprep.subr.mxu0 0.0
    %3870 = vmatpush1.msra.mxu0 0.0
    %3871 = vmatprep.subr.mxu0 0.0
    %3872 = vmatpush1.msra.mxu0 0.0
    %3873 = vmatprep.subr.mxu0 0.0
    %3874 = vmatpush1.msra.mxu0 0.0
    %3875 = vmatprep.subr.mxu0 0.0
    %3876 = vmatpush1.msra.mxu0 0.0
    %3877 = vmatprep.subr.mxu0 0.0
    %3878 = vmatpush1.msra.mxu0 0.0
    %3879 = vmatprep.subr.mxu0 0.0
    %3880 = vmatpush1.msra.mxu0 0.0
    %3881 = vmatprep.subr.mxu0 0.0
    %3882 = vmatpush1.msra.mxu0 0.0
    %3883 = vmatprep.subr.mxu0 0.0
    %3884 = vmatpush1.msra.mxu0 0.0
    %3885 = vmatprep.subr.mxu0 0.0
    %3886 = vmatpush1.msra.mxu0 0.0
    %3887 = vmatprep.subr.mxu0 0.0
    %3888 = vmatpush1.msra.mxu0 0.0
    %3889 = vmatprep.subr.mxu0 0.0
    %3890 = vmatpush1.msra.mxu0 0.0
    %3891 = vmatprep.subr.mxu0 0.0
    %3892 = vmatpush1.msra.mxu0 0.0
    %3893 = vmatprep.subr.mxu0 0.0
    %3894 = vmatpush1.msra.mxu0 0.0
    %3895 = vmatprep.subr.mxu0 0.0
    %3896 = vmatpush1.msra.mxu0 0.0
    %3897 = vmatprep.subr.mxu0 0.0
    %3898 = vmatpush1.msra.mxu0 0.0
    %3899 = vmatprep.subr.mxu0 0.0
    %3900 = vmatpush1.msra.mxu0 0.0
    %3901 = vmatprep.subr.mxu0 0.0
    %3902 = vmatpush1.msra.mxu0 0.0
    %3903 = vmatprep.subr.mxu0 0.0
    %3904 = vmatpush1.msra.mxu0 0.0
    %3905 = vmatprep.subr.mxu0 0.0
    %3906 = vmatpush1.msra.mxu0 0.0
    %3907 = vmatprep.subr.mxu0 0.0
    %3908 = vmatpush1.msra.mxu0 0.0
    %3909 = vmatprep.subr.mxu0 0.0
    %3910 = vmatpush1.msra.mxu0 0.0
    %3911 = vmatprep.subr.mxu0 0.0
    %3912 = vmatpush1.msra.mxu0 0.0
    %3913 = vmatprep.subr.mxu0 0.0
    %3914 = vmatpush1.msra.mxu0 0.0
    %3915 = vmatprep.subr.mxu0 0.0
    %3916 = vmatpush1.msra.mxu0 0.0
    %3917 = vmatprep.mubr.f32.mxu0 0.0
    %3918 = vmatmul.mubr.f32.gmra.mrb[0].mxu0 %v3495
    %v3919 = vpop.f32.mrb[0].mxu0
    %v3920 = vadd.f32 %v461, %v3919
    %v3921 = vpop.f32.mrb[0].mxu0
    %3922 = vdwg.mxu0
    %v3924 = vrot.slane %v3780, 2
    %v3926 = vadd.f32 %v251, %v3924
    %v3927 = vxor.u32 %v3926, 2147483648
    %v3928 = vmul.f32 %v3927, 1.442695
    %v3929 = vpow.pop %v3928
    %v3930 = vadd.f32 %v3929, 1.0
    %v3931 = vrcp.pop %v3930
    %v3932 = vmul.f32 1.0, %v3931
    %v3934 = vrot.slane %v3850, 2
    %v3936 = vadd.f32 %v337, %v3934
    %v3937 = vxor.u32 %v3936, 2147483648
    %v3938 = vmul.f32 %v3937, 1.442695
    %v3939 = vpow.pop %v3938
    %v3940 = vadd.f32 %v3939, 1.0
    %v3941 = vrcp.pop %v3940
    %v3942 = vmul.f32 1.0, %v3941
    %v3944 = vrot.slane %v3920, 2
    %v3946 = vmul.f32 %v3932, %v3944
    %v3947 = vadd.f32 %v423, %v3946
    %v3948 = vtanh.pop %v3947
    %v3949 = vsub.f32 1.0, %v3942
    %v3950 = vmul.f32 %v3949, %v3948
    %v3951 = vrot.slane %v3492, 6
    %v3953 = vmul.f32 %v3942, %v3951
    %v3954 = vadd.f32 %v3950, %v3953
    %v3956 = vrot.slane %v3954, 6
    %v3957 = vsel %vm500, %v3956, 0
    %3959 = vmatprep.subr.mxu0 0.0
    %3960 = vmatpush1.msra.mxu0 %v463
    %3961 = vmatprep.subr.mxu0 0.0
    %3962 = vmatpush1.msra.mxu0 %v464
    %3963 = vmatprep.subr.mxu0 0.0
    %3964 = vmatpush1.msra.mxu0 %v465
    %3965 = vmatprep.subr.mxu0 0.0
    %3966 = vmatpush1.msra.mxu0 %v466
    %3967 = vmatprep.subr.mxu0 0.0
    %3968 = vmatpush1.msra.mxu0 0.0
    %3969 = vmatprep.subr.mxu0 0.0
    %3970 = vmatpush1.msra.mxu0 0.0
    %3971 = vmatprep.subr.mxu0 0.0
    %3972 = vmatpush1.msra.mxu0 0.0
    %3973 = vmatprep.subr.mxu0 0.0
    %3974 = vmatpush1.msra.mxu0 0.0
    %3975 = vmatprep.subr.mxu0 0.0
    %3976 = vmatpush1.msra.mxu0 0.0
    %3977 = vmatprep.subr.mxu0 0.0
    %3978 = vmatpush1.msra.mxu0 0.0
    %3979 = vmatprep.subr.mxu0 0.0
    %3980 = vmatpush1.msra.mxu0 0.0
    %3981 = vmatprep.subr.mxu0 0.0
    %3982 = vmatpush1.msra.mxu0 0.0
    %3983 = vmatprep.subr.mxu0 0.0
    %3984 = vmatpush1.msra.mxu0 0.0
    %3985 = vmatprep.subr.mxu0 0.0
    %3986 = vmatpush1.msra.mxu0 0.0
    %3987 = vmatprep.subr.mxu0 0.0
    %3988 = vmatpush1.msra.mxu0 0.0
    %3989 = vmatprep.subr.mxu0 0.0
    %3990 = vmatpush1.msra.mxu0 0.0
    %3991 = vmatprep.subr.mxu0 0.0
    %3992 = vmatpush1.msra.mxu0 0.0
    %3993 = vmatprep.subr.mxu0 0.0
    %3994 = vmatpush1.msra.mxu0 0.0
    %3995 = vmatprep.subr.mxu0 0.0
    %3996 = vmatpush1.msra.mxu0 0.0
    %3997 = vmatprep.subr.mxu0 0.0
    %3998 = vmatpush1.msra.mxu0 0.0
    %3999 = vmatprep.subr.mxu0 0.0
    %4000 = vmatpush1.msra.mxu0 0.0
    %4001 = vmatprep.subr.mxu0 0.0
    %4002 = vmatpush1.msra.mxu0 0.0
    %4003 = vmatprep.subr.mxu0 0.0
    %4004 = vmatpush1.msra.mxu0 0.0
    %4005 = vmatprep.subr.mxu0 0.0
    %4006 = vmatpush1.msra.mxu0 0.0
    %4007 = vmatprep.subr.mxu0 0.0
    %4008 = vmatpush1.msra.mxu0 0.0
    %4009 = vmatprep.subr.mxu0 0.0
    %4010 = vmatpush1.msra.mxu0 0.0
    %4011 = vmatprep.subr.mxu0 0.0
    %4012 = vmatpush1.msra.mxu0 0.0
    %4013 = vmatprep.subr.mxu0 0.0
    %4014 = vmatpush1.msra.mxu0 0.0
    %4015 = vmatprep.subr.mxu0 0.0
    %4016 = vmatpush1.msra.mxu0 0.0
    %4017 = vmatprep.subr.mxu0 0.0
    %4018 = vmatpush1.msra.mxu0 0.0
    %4019 = vmatprep.subr.mxu0 0.0
    %4020 = vmatpush1.msra.mxu0 0.0
    %4021 = vmatprep.subr.mxu0 0.0
    %4022 = vmatpush1.msra.mxu0 0.0
    %4023 = vmatprep.mubr.f32.mxu0 0.0
    %4024 = vmatmul.mubr.f32.gmra.mrb[0].mxu0 %v3957
    %v4025 = vpop.f32.mrb[0].mxu0
    %v4026 = vadd.f32 %v482, %v4025
    %v4027 = vpop.f32.mrb[0].mxu0
    %4028 = vdwg.mxu0
    %s4029 = scalar_lea.vmem [#allocation2], 14
    %4030 = vst.msk [vmem:[%s4029] sm:$0x3] %vm808, %v4026
    %4031 = vmatprep.subr.mxu0 0.0
    %4032 = vmatpush1.msra.mxu0 %v468
    %4033 = vmatprep.subr.mxu0 0.0
    %4034 = vmatpush1.msra.mxu0 %v469
    %4035 = vmatprep.subr.mxu0 0.0
    %4036 = vmatpush1.msra.mxu0 %v470
    %4037 = vmatprep.subr.mxu0 0.0
    %4038 = vmatpush1.msra.mxu0 %v471
    %4039 = vmatprep.subr.mxu0 0.0
    %4040 = vmatpush1.msra.mxu0 0.0
    %4041 = vmatprep.subr.mxu0 0.0
    %4042 = vmatpush1.msra.mxu0 0.0
    %4043 = vmatprep.subr.mxu0 0.0
    %4044 = vmatpush1.msra.mxu0 0.0
    %4045 = vmatprep.subr.mxu0 0.0
    %4046 = vmatpush1.msra.mxu0 0.0
    %4047 = vmatprep.subr.mxu0 0.0
    %4048 = vmatpush1.msra.mxu0 0.0
    %4049 = vmatprep.subr.mxu0 0.0
    %4050 = vmatpush1.msra.mxu0 0.0
    %4051 = vmatprep.subr.mxu0 0.0
    %4052 = vmatpush1.msra.mxu0 0.0
    %4053 = vmatprep.subr.mxu0 0.0
    %4054 = vmatpush1.msra.mxu0 0.0
    %4055 = vmatprep.subr.mxu0 0.0
    %4056 = vmatpush1.msra.mxu0 0.0
    %4057 = vmatprep.subr.mxu0 0.0
    %4058 = vmatpush1.msra.mxu0 0.0
    %4059 = vmatprep.subr.mxu0 0.0
    %4060 = vmatpush1.msra.mxu0 0.0
    %4061 = vmatprep.subr.mxu0 0.0
    %4062 = vmatpush1.msra.mxu0 0.0
    %4063 = vmatprep.subr.mxu0 0.0
    %4064 = vmatpush1.msra.mxu0 0.0
    %4065 = vmatprep.subr.mxu0 0.0
    %4066 = vmatpush1.msra.mxu0 0.0
    %4067 = vmatprep.subr.mxu0 0.0
    %4068 = vmatpush1.msra.mxu0 0.0
    %4069 = vmatprep.subr.mxu0 0.0
    %4070 = vmatpush1.msra.mxu0 0.0
    %4071 = vmatprep.subr.mxu0 0.0
    %4072 = vmatpush1.msra.mxu0 0.0
    %4073 = vmatprep.subr.mxu0 0.0
    %4074 = vmatpush1.msra.mxu0 0.0
    %4075 = vmatprep.subr.mxu0 0.0
    %4076 = vmatpush1.msra.mxu0 0.0
    %4077 = vmatprep.subr.mxu0 0.0
    %4078 = vmatpush1.msra.mxu0 0.0
    %4079 = vmatprep.subr.mxu0 0.0
    %4080 = vmatpush1.msra.mxu0 0.0
    %4081 = vmatprep.subr.mxu0 0.0
    %4082 = vmatpush1.msra.mxu0 0.0
    %4083 = vmatprep.subr.mxu0 0.0
    %4084 = vmatpush1.msra.mxu0 0.0
    %4085 = vmatprep.subr.mxu0 0.0
    %4086 = vmatpush1.msra.mxu0 0.0
    %4087 = vmatprep.subr.mxu0 0.0
    %4088 = vmatpush1.msra.mxu0 0.0
    %4089 = vmatprep.subr.mxu0 0.0
    %4090 = vmatpush1.msra.mxu0 0.0
    %4091 = vmatprep.subr.mxu0 0.0
    %4092 = vmatpush1.msra.mxu0 0.0
    %4093 = vmatprep.subr.mxu0 0.0
    %4094 = vmatpush1.msra.mxu0 0.0
    %4095 = vmatprep.mubr.f32.mxu0 0.0
    %4096 = vmatmul.mubr.f32.gmra.mrb[0].mxu0 %v3957
    %v4097 = vpop.f32.mrb[0].mxu0
    %v4098 = vadd.f32 %v490, %v4097
    %v4099 = vpop.f32.mrb[0].mxu0
    %4100 = vdwg.mxu0
    %s4101 = scalar_lea.vmem [#allocation3], 14
    %4102 = vst.msk [vmem:[%s4101] sm:$0x3] %vm808, %v4098
    %4103 = vmatprep.subr.mxu0 0.0
    %4104 = vmatpush1.msra.mxu0 %v473
    %4105 = vmatprep.subr.mxu0 0.0
    %4106 = vmatpush1.msra.mxu0 %v474
    %4107 = vmatprep.subr.mxu0 0.0
    %4108 = vmatpush1.msra.mxu0 %v475
    %4109 = vmatprep.subr.mxu0 0.0
    %4110 = vmatpush1.msra.mxu0 %v476
    %4111 = vmatprep.subr.mxu0 0.0
    %4112 = vmatpush1.msra.mxu0 0.0
    %4113 = vmatprep.subr.mxu0 0.0
    %4114 = vmatpush1.msra.mxu0 0.0
    %4115 = vmatprep.subr.mxu0 0.0
    %4116 = vmatpush1.msra.mxu0 0.0
    %4117 = vmatprep.subr.mxu0 0.0
    %4118 = vmatpush1.msra.mxu0 0.0
    %4119 = vmatprep.subr.mxu0 0.0
    %4120 = vmatpush1.msra.mxu0 0.0
    %4121 = vmatprep.subr.mxu0 0.0
    %4122 = vmatpush1.msra.mxu0 0.0
    %4123 = vmatprep.subr.mxu0 0.0
    %4124 = vmatpush1.msra.mxu0 0.0
    %4125 = vmatprep.subr.mxu0 0.0
    %4126 = vmatpush1.msra.mxu0 0.0
    %4127 = vmatprep.subr.mxu0 0.0
    %4128 = vmatpush1.msra.mxu0 0.0
    %4129 = vmatprep.subr.mxu0 0.0
    %4130 = vmatpush1.msra.mxu0 0.0
    %4131 = vmatprep.subr.mxu0 0.0
    %4132 = vmatpush1.msra.mxu0 0.0
    %4133 = vmatprep.subr.mxu0 0.0
    %4134 = vmatpush1.msra.mxu0 0.0
    %4135 = vmatprep.subr.mxu0 0.0
    %4136 = vmatpush1.msra.mxu0 0.0
    %4137 = vmatprep.subr.mxu0 0.0
    %4138 = vmatpush1.msra.mxu0 0.0
    %4139 = vmatprep.subr.mxu0 0.0
    %4140 = vmatpush1.msra.mxu0 0.0
    %4141 = vmatprep.subr.mxu0 0.0
    %4142 = vmatpush1.msra.mxu0 0.0
    %4143 = vmatprep.subr.mxu0 0.0
    %4144 = vmatpush1.msra.mxu0 0.0
    %4145 = vmatprep.subr.mxu0 0.0
    %4146 = vmatpush1.msra.mxu0 0.0
    %4147 = vmatprep.subr.mxu0 0.0
    %4148 = vmatpush1.msra.mxu0 0.0
    %4149 = vmatprep.subr.mxu0 0.0
    %4150 = vmatpush1.msra.mxu0 0.0
    %4151 = vmatprep.subr.mxu0 0.0
    %4152 = vmatpush1.msra.mxu0 0.0
    %4153 = vmatprep.subr.mxu0 0.0
    %4154 = vmatpush1.msra.mxu0 0.0
    %4155 = vmatprep.subr.mxu0 0.0
    %4156 = vmatpush1.msra.mxu0 0.0
    %4157 = vmatprep.subr.mxu0 0.0
    %4158 = vmatpush1.msra.mxu0 0.0
    %4159 = vmatprep.subr.mxu0 0.0
    %4160 = vmatpush1.msra.mxu0 0.0
    %4161 = vmatprep.subr.mxu0 0.0
    %4162 = vmatpush1.msra.mxu0 0.0
    %4163 = vmatprep.subr.mxu0 0.0
    %4164 = vmatpush1.msra.mxu0 0.0
    %4165 = vmatprep.subr.mxu0 0.0
    %4166 = vmatpush1.msra.mxu0 0.0
    %4167 = vmatprep.mubr.f32.mxu0 0.0
    %4168 = vmatmul.mubr.f32.gmra.mrb[0].mxu0 %v3957
    %v4169 = vpop.f32.mrb[0].mxu0
    %v4170 = vadd.f32 %v498, %v4169
    %v4171 = vpop.f32.mrb[0].mxu0
    %4172 = vdwg.mxu0
    %s4173 = scalar_lea.vmem [#allocation4], 14
    %4174 = vst.msk [vmem:[%s4173] sm:$0x3] %vm808, %v4170
    %v4175 = vld [vmem:[#allocation16] sm:$0xff]
    %v4176 = vld [vmem:[#allocation16 + $0x8] sm:$0xff]
    %v4177 = vld [vmem:[#allocation16 + $0x10] sm:$0xff]
    %v4178 = vld [vmem:[#allocation16 + $0x18] sm:$0xff]
    %s4179 = scalar_lea.vmem [#allocation16], 32
    %v4180 = vld [vmem:[%s4179] sm:$0xff]
    %v4181 = vld [vmem:[%s4179 + $0x8] sm:$0xff]
    %v4182 = vld [vmem:[%s4179 + $0x10] sm:$0xff]
    %v4183 = vld [vmem:[%s4179 + $0x18] sm:$0xff]
    %s4184 = scalar_lea.vmem [#allocation16], 64
    %v4185 = vld [vmem:[%s4184] sm:$0xff]
    %v4186 = vld [vmem:[%s4184 + $0x8] sm:$0xff]
    %v4187 = vld [vmem:[%s4184 + $0x10] sm:$0xff]
    %v4188 = vld [vmem:[%s4184 + $0x18] sm:$0xff]
    %v4189 = vld [vmem:[#allocation19] sm:$0x1]
    %v4191 = vlaneseq
    %v4192 = vshrl.u32 %v4191, 7
    %v4193 = vsub.s32 0, %v4192
    %v4194 = vrot.slane %v4189, %v4193
    %s4196 = scalar_lea.vmem [#allocation19], 1
    %v4197 = vld [vmem:[%s4196] sm:$0x1]
    %v4199 = vlaneseq
    %v4200 = vshrl.u32 %v4199, 7
    %v4201 = vsub.s32 0, %v4200
    %v4202 = vrot.slane %v4197, %v4201
    %s4204 = scalar_lea.vmem [#allocation19], 2
    %v4205 = vld [vmem:[%s4204] sm:$0x1]
    %v4207 = vlaneseq
    %v4208 = vshrl.u32 %v4207, 7
    %v4209 = vsub.s32 0, %v4208
    %v4210 = vrot.slane %v4205, %v4209
    %v4212 = vld [vmem:[%s9] sm:$0xff]
    %v4213 = vld [vmem:[%s9 + $0x8] sm:$0xff]
    %v4214 = vld [vmem:[%s9 + $0x10] sm:$0xff]
    %v4215 = vld [vmem:[%s9 + $0x18] sm:$0xff]
    %v4216 = vld [vmem:[%s10] sm:$0x1]
    %v4218 = vlaneseq
    %v4219 = vshrl.u32 %v4218, 7
    %v4220 = vsub.s32 0, %v4219
    %v4221 = vrot.slane %v4216, %v4220
    %4223 = vmatprep.subr.mxu0 0.0
    %4224 = vmatpush1.msra.mxu0 %v4175
    %4225 = vmatprep.subr.mxu0 0.0
    %4226 = vmatpush1.msra.mxu0 %v4176
    %4227 = vmatprep.subr.mxu0 0.0
    %4228 = vmatpush1.msra.mxu0 %v4177
    %4229 = vmatprep.subr.mxu0 0.0
    %4230 = vmatpush1.msra.mxu0 %v4178
    %4231 = vmatprep.subr.mxu0 0.0
    %4232 = vmatpush1.msra.mxu0 0.0
    %4233 = vmatprep.subr.mxu0 0.0
    %4234 = vmatpush1.msra.mxu0 0.0
    %4235 = vmatprep.subr.mxu0 0.0
    %4236 = vmatpush1.msra.mxu0 0.0
    %4237 = vmatprep.subr.mxu0 0.0
    %4238 = vmatpush1.msra.mxu0 0.0
    %4239 = vmatprep.subr.mxu0 0.0
    %4240 = vmatpush1.msra.mxu0 0.0
    %4241 = vmatprep.subr.mxu0 0.0
    %4242 = vmatpush1.msra.mxu0 0.0
    %4243 = vmatprep.subr.mxu0 0.0
    %4244 = vmatpush1.msra.mxu0 0.0
    %4245 = vmatprep.subr.mxu0 0.0
    %4246 = vmatpush1.msra.mxu0 0.0
    %4247 = vmatprep.subr.mxu0 0.0
    %4248 = vmatpush1.msra.mxu0 0.0
    %4249 = vmatprep.subr.mxu0 0.0
    %4250 = vmatpush1.msra.mxu0 0.0
    %4251 = vmatprep.subr.mxu0 0.0
    %4252 = vmatpush1.msra.mxu0 0.0
    %4253 = vmatprep.subr.mxu0 0.0
    %4254 = vmatpush1.msra.mxu0 0.0
    %4255 = vmatprep.subr.mxu0 0.0
    %4256 = vmatpush1.msra.mxu0 0.0
    %4257 = vmatprep.subr.mxu0 0.0
    %4258 = vmatpush1.msra.mxu0 0.0
    %4259 = vmatprep.subr.mxu0 0.0
    %4260 = vmatpush1.msra.mxu0 0.0
    %4261 = vmatprep.subr.mxu0 0.0
    %4262 = vmatpush1.msra.mxu0 0.0
    %4263 = vmatprep.subr.mxu0 0.0
    %4264 = vmatpush1.msra.mxu0 0.0
    %4265 = vmatprep.subr.mxu0 0.0
    %4266 = vmatpush1.msra.mxu0 0.0
    %4267 = vmatprep.subr.mxu0 0.0
    %4268 = vmatpush1.msra.mxu0 0.0
    %4269 = vmatprep.subr.mxu0 0.0
    %4270 = vmatpush1.msra.mxu0 0.0
    %4271 = vmatprep.subr.mxu0 0.0
    %4272 = vmatpush1.msra.mxu0 0.0
    %4273 = vmatprep.subr.mxu0 0.0
    %4274 = vmatpush1.msra.mxu0 0.0
    %4275 = vmatprep.subr.mxu0 0.0
    %4276 = vmatpush1.msra.mxu0 0.0
    %4277 = vmatprep.subr.mxu0 0.0
    %4278 = vmatpush1.msra.mxu0 0.0
    %4279 = vmatprep.subr.mxu0 0.0
    %4280 = vmatpush1.msra.mxu0 0.0
    %4281 = vmatprep.subr.mxu0 0.0
    %4282 = vmatpush1.msra.mxu0 0.0
    %4283 = vmatprep.subr.mxu0 0.0
    %4284 = vmatpush1.msra.mxu0 0.0
    %4285 = vmatprep.subr.mxu0 0.0
    %4286 = vmatpush1.msra.mxu0 0.0
    %4287 = vmatprep.mubr.f32.mxu0 0.0
    %4288 = vmatmul.mubr.f32.gmra.mrb[0].mxu0 %v502
    %v4289 = vpop.f32.mrb[0].mxu0
    %v4290 = vadd.f32 %v4194, %v4289
    %v4291 = vpop.f32.mrb[0].mxu0
    %4292 = vdwg.mxu0
    %4293 = vmatprep.subr.mxu0 0.0
    %4294 = vmatpush1.msra.mxu0 %v4180
    %4295 = vmatprep.subr.mxu0 0.0
    %4296 = vmatpush1.msra.mxu0 %v4181
    %4297 = vmatprep.subr.mxu0 0.0
    %4298 = vmatpush1.msra.mxu0 %v4182
    %4299 = vmatprep.subr.mxu0 0.0
    %4300 = vmatpush1.msra.mxu0 %v4183
    %4301 = vmatprep.subr.mxu0 0.0
    %4302 = vmatpush1.msra.mxu0 0.0
    %4303 = vmatprep.subr.mxu0 0.0
    %4304 = vmatpush1.msra.mxu0 0.0
    %4305 = vmatprep.subr.mxu0 0.0
    %4306 = vmatpush1.msra.mxu0 0.0
    %4307 = vmatprep.subr.mxu0 0.0
    %4308 = vmatpush1.msra.mxu0 0.0
    %4309 = vmatprep.subr.mxu0 0.0
    %4310 = vmatpush1.msra.mxu0 0.0
    %4311 = vmatprep.subr.mxu0 0.0
    %4312 = vmatpush1.msra.mxu0 0.0
    %4313 = vmatprep.subr.mxu0 0.0
    %4314 = vmatpush1.msra.mxu0 0.0
    %4315 = vmatprep.subr.mxu0 0.0
    %4316 = vmatpush1.msra.mxu0 0.0
    %4317 = vmatprep.subr.mxu0 0.0
    %4318 = vmatpush1.msra.mxu0 0.0
    %4319 = vmatprep.subr.mxu0 0.0
    %4320 = vmatpush1.msra.mxu0 0.0
    %4321 = vmatprep.subr.mxu0 0.0
    %4322 = vmatpush1.msra.mxu0 0.0
    %4323 = vmatprep.subr.mxu0 0.0
    %4324 = vmatpush1.msra.mxu0 0.0
    %4325 = vmatprep.subr.mxu0 0.0
    %4326 = vmatpush1.msra.mxu0 0.0
    %4327 = vmatprep.subr.mxu0 0.0
    %4328 = vmatpush1.msra.mxu0 0.0
    %4329 = vmatprep.subr.mxu0 0.0
    %4330 = vmatpush1.msra.mxu0 0.0
    %4331 = vmatprep.subr.mxu0 0.0
    %4332 = vmatpush1.msra.mxu0 0.0
    %4333 = vmatprep.subr.mxu0 0.0
    %4334 = vmatpush1.msra.mxu0 0.0
    %4335 = vmatprep.subr.mxu0 0.0
    %4336 = vmatpush1.msra.mxu0 0.0
    %4337 = vmatprep.subr.mxu0 0.0
    %4338 = vmatpush1.msra.mxu0 0.0
    %4339 = vmatprep.subr.mxu0 0.0
    %4340 = vmatpush1.msra.mxu0 0.0
    %4341 = vmatprep.subr.mxu0 0.0
    %4342 = vmatpush1.msra.mxu0 0.0
    %4343 = vmatprep.subr.mxu0 0.0
    %4344 = vmatpush1.msra.mxu0 0.0
    %4345 = vmatprep.subr.mxu0 0.0
    %4346 = vmatpush1.msra.mxu0 0.0
    %4347 = vmatprep.subr.mxu0 0.0
    %4348 = vmatpush1.msra.mxu0 0.0
    %4349 = vmatprep.subr.mxu0 0.0
    %4350 = vmatpush1.msra.mxu0 0.0
    %4351 = vmatprep.subr.mxu0 0.0
    %4352 = vmatpush1.msra.mxu0 0.0
    %4353 = vmatprep.subr.mxu0 0.0
    %4354 = vmatpush1.msra.mxu0 0.0
    %4355 = vmatprep.subr.mxu0 0.0
    %4356 = vmatpush1.msra.mxu0 0.0
    %4357 = vmatprep.mubr.f32.mxu0 0.0
    %4358 = vmatmul.mubr.f32.gmra.mrb[0].mxu0 %v502
    %v4359 = vpop.f32.mrb[0].mxu0
    %v4360 = vadd.f32 %v4202, %v4359
    %v4361 = vpop.f32.mrb[0].mxu0
    %4362 = vdwg.mxu0
    %4363 = vmatprep.subr.mxu0 0.0
    %4364 = vmatpush1.msra.mxu0 %v4185
    %4365 = vmatprep.subr.mxu0 0.0
    %4366 = vmatpush1.msra.mxu0 %v4186
    %4367 = vmatprep.subr.mxu0 0.0
    %4368 = vmatpush1.msra.mxu0 %v4187
    %4369 = vmatprep.subr.mxu0 0.0
    %4370 = vmatpush1.msra.mxu0 %v4188
    %4371 = vmatprep.subr.mxu0 0.0
    %4372 = vmatpush1.msra.mxu0 0.0
    %4373 = vmatprep.subr.mxu0 0.0
    %4374 = vmatpush1.msra.mxu0 0.0
    %4375 = vmatprep.subr.mxu0 0.0
    %4376 = vmatpush1.msra.mxu0 0.0
    %4377 = vmatprep.subr.mxu0 0.0
    %4378 = vmatpush1.msra.mxu0 0.0
    %4379 = vmatprep.subr.mxu0 0.0
    %4380 = vmatpush1.msra.mxu0 0.0
    %4381 = vmatprep.subr.mxu0 0.0
    %4382 = vmatpush1.msra.mxu0 0.0
    %4383 = vmatprep.subr.mxu0 0.0
    %4384 = vmatpush1.msra.mxu0 0.0
    %4385 = vmatprep.subr.mxu0 0.0
    %4386 = vmatpush1.msra.mxu0 0.0
    %4387 = vmatprep.subr.mxu0 0.0
    %4388 = vmatpush1.msra.mxu0 0.0
    %4389 = vmatprep.subr.mxu0 0.0
    %4390 = vmatpush1.msra.mxu0 0.0
    %4391 = vmatprep.subr.mxu0 0.0
    %4392 = vmatpush1.msra.mxu0 0.0
    %4393 = vmatprep.subr.mxu0 0.0
    %4394 = vmatpush1.msra.mxu0 0.0
    %4395 = vmatprep.subr.mxu0 0.0
    %4396 = vmatpush1.msra.mxu0 0.0
    %4397 = vmatprep.subr.mxu0 0.0
    %4398 = vmatpush1.msra.mxu0 0.0
    %4399 = vmatprep.subr.mxu0 0.0
    %4400 = vmatpush1.msra.mxu0 0.0
    %4401 = vmatprep.subr.mxu0 0.0
    %4402 = vmatpush1.msra.mxu0 0.0
    %4403 = vmatprep.subr.mxu0 0.0
    %4404 = vmatpush1.msra.mxu0 0.0
    %4405 = vmatprep.subr.mxu0 0.0
    %4406 = vmatpush1.msra.mxu0 0.0
    %4407 = vmatprep.subr.mxu0 0.0
    %4408 = vmatpush1.msra.mxu0 0.0
    %4409 = vmatprep.subr.mxu0 0.0
    %4410 = vmatpush1.msra.mxu0 0.0
    %4411 = vmatprep.subr.mxu0 0.0
    %4412 = vmatpush1.msra.mxu0 0.0
    %4413 = vmatprep.subr.mxu0 0.0
    %4414 = vmatpush1.msra.mxu0 0.0
    %4415 = vmatprep.subr.mxu0 0.0
    %4416 = vmatpush1.msra.mxu0 0.0
    %4417 = vmatprep.subr.mxu0 0.0
    %4418 = vmatpush1.msra.mxu0 0.0
    %4419 = vmatprep.subr.mxu0 0.0
    %4420 = vmatpush1.msra.mxu0 0.0
    %4421 = vmatprep.subr.mxu0 0.0
    %4422 = vmatpush1.msra.mxu0 0.0
    %4423 = vmatprep.subr.mxu0 0.0
    %4424 = vmatpush1.msra.mxu0 0.0
    %4425 = vmatprep.subr.mxu0 0.0
    %4426 = vmatpush1.msra.mxu0 0.0
    %4427 = vmatprep.mubr.f32.mxu0 0.0
    %4428 = vmatmul.mubr.f32.gmra.mrb[0].mxu0 %v502
    %v4429 = vpop.f32.mrb[0].mxu0
    %v4430 = vadd.f32 %v4210, %v4429
    %v4431 = vpop.f32.mrb[0].mxu0
    %4432 = vdwg.mxu0
    %v4433 = vld [vmem:[#allocation2] sm:$0x3]
    %v4434 = vadd.f32 %v4433, %v4290
    %v4435 = vxor.u32 %v4434, 2147483648
    %v4436 = vmul.f32 %v4435, 1.442695
    %v4437 = vpow.pop %v4436
    %v4438 = vadd.f32 %v4437, 1.0
    %v4439 = vrcp.pop %v4438
    %v4440 = vmul.f32 1.0, %v4439
    %v4441 = vld [vmem:[#allocation3] sm:$0x3]
    %v4442 = vadd.f32 %v4441, %v4360
    %v4443 = vxor.u32 %v4442, 2147483648
    %v4444 = vmul.f32 %v4443, 1.442695
    %v4445 = vpow.pop %v4444
    %v4446 = vadd.f32 %v4445, 1.0
    %v4447 = vrcp.pop %v4446
    %v4448 = vmul.f32 1.0, %v4447
    %v4449 = vld [vmem:[#allocation4] sm:$0x3]
    %v4450 = vmul.f32 %v4440, %v4430
    %v4451 = vadd.f32 %v4449, %v4450
    %v4452 = vtanh.pop %v4451
    %v4453 = vsub.f32 1.0, %v4448
    %v4454 = vmul.f32 %v4453, %v4452
    %v4455 = vmul.f32 %v4448, 0.0
    %v4456 = vadd.f32 %v4454, %v4455
    %v4458 = vsel %vm500, %v4456, 0
    %4460 = vmatprep.subr.mxu0 0.0
    %4461 = vmatpush1.msra.mxu0 %v4212
    %4462 = vmatprep.subr.mxu0 0.0
    %4463 = vmatpush1.msra.mxu0 %v4213
    %4464 = vmatprep.subr.mxu0 0.0
    %4465 = vmatpush1.msra.mxu0 %v4214
    %4466 = vmatprep.subr.mxu0 0.0
    %4467 = vmatpush1.msra.mxu0 %v4215
    %4468 = vmatprep.subr.mxu0 0.0
    %4469 = vmatpush1.msra.mxu0 0.0
    %4470 = vmatprep.subr.mxu0 0.0
    %4471 = vmatpush1.msra.mxu0 0.0
    %4472 = vmatprep.subr.mxu0 0.0
    %4473 = vmatpush1.msra.mxu0 0.0
    %4474 = vmatprep.subr.mxu0 0.0
    %4475 = vmatpush1.msra.mxu0 0.0
    %4476 = vmatprep.subr.mxu0 0.0
    %4477 = vmatpush1.msra.mxu0 0.0
    %4478 = vmatprep.subr.mxu0 0.0
    %4479 = vmatpush1.msra.mxu0 0.0
    %4480 = vmatprep.subr.mxu0 0.0
    %4481 = vmatpush1.msra.mxu0 0.0
    %4482 = vmatprep.subr.mxu0 0.0
    %4483 = vmatpush1.msra.mxu0 0.0
    %4484 = vmatprep.subr.mxu0 0.0
    %4485 = vmatpush1.msra.mxu0 0.0
    %4486 = vmatprep.subr.mxu0 0.0
    %4487 = vmatpush1.msra.mxu0 0.0
    %4488 = vmatprep.subr.mxu0 0.0
    %4489 = vmatpush1.msra.mxu0 0.0
    %4490 = vmatprep.subr.mxu0 0.0
    %4491 = vmatpush1.msra.mxu0 0.0
    %4492 = vmatprep.subr.mxu0 0.0
    %4493 = vmatpush1.msra.mxu0 0.0
    %4494 = vmatprep.subr.mxu0 0.0
    %4495 = vmatpush1.msra.mxu0 0.0
    %4496 = vmatprep.subr.mxu0 0.0
    %4497 = vmatpush1.msra.mxu0 0.0
    %4498 = vmatprep.subr.mxu0 0.0
    %4499 = vmatpush1.msra.mxu0 0.0
    %4500 = vmatprep.subr.mxu0 0.0
    %4501 = vmatpush1.msra.mxu0 0.0
    %4502 = vmatprep.subr.mxu0 0.0
    %4503 = vmatpush1.msra.mxu0 0.0
    %4504 = vmatprep.subr.mxu0 0.0
    %4505 = vmatpush1.msra.mxu0 0.0
    %4506 = vmatprep.subr.mxu0 0.0
    %4507 = vmatpush1.msra.mxu0 0.0
    %4508 = vmatprep.subr.mxu0 0.0
    %4509 = vmatpush1.msra.mxu0 0.0
    %4510 = vmatprep.subr.mxu0 0.0
    %4511 = vmatpush1.msra.mxu0 0.0
    %4512 = vmatprep.subr.mxu0 0.0
    %4513 = vmatpush1.msra.mxu0 0.0
    %4514 = vmatprep.subr.mxu0 0.0
    %4515 = vmatpush1.msra.mxu0 0.0
    %4516 = vmatprep.subr.mxu0 0.0
    %4517 = vmatpush1.msra.mxu0 0.0
    %4518 = vmatprep.subr.mxu0 0.0
    %4519 = vmatpush1.msra.mxu0 0.0
    %4520 = vmatprep.subr.mxu0 0.0
    %4521 = vmatpush1.msra.mxu0 0.0
    %4522 = vmatprep.subr.mxu0 0.0
    %4523 = vmatpush1.msra.mxu0 0.0
    %4524 = vmatprep.mubr.f32.mxu0 0.0
    %4525 = vmatmul.mubr.f32.gmra.mrb[0].mxu0 %v4458
    %v4526 = vpop.f32.mrb[0].mxu0
    %v4527 = vadd.f32 %v4221, %v4526
    %v4528 = vpop.f32.mrb[0].mxu0
    %4529 = vdwg.mxu0
    %4530 = vst [vmem:[#allocation20] sm:$0x3] %v4527
    %4531 = vmatprep.subr.mxu0 0.0
    %4532 = vmatpush1.msra.mxu0 %v4175
    %4533 = vmatprep.subr.mxu0 0.0
    %4534 = vmatpush1.msra.mxu0 %v4176
    %4535 = vmatprep.subr.mxu0 0.0
    %4536 = vmatpush1.msra.mxu0 %v4177
    %4537 = vmatprep.subr.mxu0 0.0
    %4538 = vmatpush1.msra.mxu0 %v4178
    %4539 = vmatprep.subr.mxu0 0.0
    %4540 = vmatpush1.msra.mxu0 0.0
    %4541 = vmatprep.subr.mxu0 0.0
    %4542 = vmatpush1.msra.mxu0 0.0
    %4543 = vmatprep.subr.mxu0 0.0
    %4544 = vmatpush1.msra.mxu0 0.0
    %4545 = vmatprep.subr.mxu0 0.0
    %4546 = vmatpush1.msra.mxu0 0.0
    %4547 = vmatprep.subr.mxu0 0.0
    %4548 = vmatpush1.msra.mxu0 0.0
    %4549 = vmatprep.subr.mxu0 0.0
    %4550 = vmatpush1.msra.mxu0 0.0
    %4551 = vmatprep.subr.mxu0 0.0
    %4552 = vmatpush1.msra.mxu0 0.0
    %4553 = vmatprep.subr.mxu0 0.0
    %4554 = vmatpush1.msra.mxu0 0.0
    %4555 = vmatprep.subr.mxu0 0.0
    %4556 = vmatpush1.msra.mxu0 0.0
    %4557 = vmatprep.subr.mxu0 0.0
    %4558 = vmatpush1.msra.mxu0 0.0
    %4559 = vmatprep.subr.mxu0 0.0
    %4560 = vmatpush1.msra.mxu0 0.0
    %4561 = vmatprep.subr.mxu0 0.0
    %4562 = vmatpush1.msra.mxu0 0.0
    %4563 = vmatprep.subr.mxu0 0.0
    %4564 = vmatpush1.msra.mxu0 0.0
    %4565 = vmatprep.subr.mxu0 0.0
    %4566 = vmatpush1.msra.mxu0 0.0
    %4567 = vmatprep.subr.mxu0 0.0
    %4568 = vmatpush1.msra.mxu0 0.0
    %4569 = vmatprep.subr.mxu0 0.0
    %4570 = vmatpush1.msra.mxu0 0.0
    %4571 = vmatprep.subr.mxu0 0.0
    %4572 = vmatpush1.msra.mxu0 0.0
    %4573 = vmatprep.subr.mxu0 0.0
    %4574 = vmatpush1.msra.mxu0 0.0
    %4575 = vmatprep.subr.mxu0 0.0
    %4576 = vmatpush1.msra.mxu0 0.0
    %4577 = vmatprep.subr.mxu0 0.0
    %4578 = vmatpush1.msra.mxu0 0.0
    %4579 = vmatprep.subr.mxu0 0.0
    %4580 = vmatpush1.msra.mxu0 0.0
    %4581 = vmatprep.subr.mxu0 0.0
    %4582 = vmatpush1.msra.mxu0 0.0
    %4583 = vmatprep.subr.mxu0 0.0
    %4584 = vmatpush1.msra.mxu0 0.0
    %4585 = vmatprep.subr.mxu0 0.0
    %4586 = vmatpush1.msra.mxu0 0.0
    %4587 = vmatprep.subr.mxu0 0.0
    %4588 = vmatpush1.msra.mxu0 0.0
    %4589 = vmatprep.subr.mxu0 0.0
    %4590 = vmatpush1.msra.mxu0 0.0
    %4591 = vmatprep.subr.mxu0 0.0
    %4592 = vmatpush1.msra.mxu0 0.0
    %4593 = vmatprep.subr.mxu0 0.0
    %4594 = vmatpush1.msra.mxu0 0.0
    %4595 = vmatprep.mubr.f32.mxu0 0.0
    %4596 = vmatmul.mubr.f32.gmra.mrb[0].mxu0 %v4458
    %v4597 = vpop.f32.mrb[0].mxu0
    %v4598 = vadd.f32 %v4194, %v4597
    %v4599 = vpop.f32.mrb[0].mxu0
    %4600 = vdwg.mxu0
    %4601 = vmatprep.subr.mxu0 0.0
    %4602 = vmatpush1.msra.mxu0 %v4180
    %4603 = vmatprep.subr.mxu0 0.0
    %4604 = vmatpush1.msra.mxu0 %v4181
    %4605 = vmatprep.subr.mxu0 0.0
    %4606 = vmatpush1.msra.mxu0 %v4182
    %4607 = vmatprep.subr.mxu0 0.0
    %4608 = vmatpush1.msra.mxu0 %v4183
    %4609 = vmatprep.subr.mxu0 0.0
    %4610 = vmatpush1.msra.mxu0 0.0
    %4611 = vmatprep.subr.mxu0 0.0
    %4612 = vmatpush1.msra.mxu0 0.0
    %4613 = vmatprep.subr.mxu0 0.0
    %4614 = vmatpush1.msra.mxu0 0.0
    %4615 = vmatprep.subr.mxu0 0.0
    %4616 = vmatpush1.msra.mxu0 0.0
    %4617 = vmatprep.subr.mxu0 0.0
    %4618 = vmatpush1.msra.mxu0 0.0
    %4619 = vmatprep.subr.mxu0 0.0
    %4620 = vmatpush1.msra.mxu0 0.0
    %4621 = vmatprep.subr.mxu0 0.0
    %4622 = vmatpush1.msra.mxu0 0.0
    %4623 = vmatprep.subr.mxu0 0.0
    %4624 = vmatpush1.msra.mxu0 0.0
    %4625 = vmatprep.subr.mxu0 0.0
    %4626 = vmatpush1.msra.mxu0 0.0
    %4627 = vmatprep.subr.mxu0 0.0
    %4628 = vmatpush1.msra.mxu0 0.0
    %4629 = vmatprep.subr.mxu0 0.0
    %4630 = vmatpush1.msra.mxu0 0.0
    %4631 = vmatprep.subr.mxu0 0.0
    %4632 = vmatpush1.msra.mxu0 0.0
    %4633 = vmatprep.subr.mxu0 0.0
    %4634 = vmatpush1.msra.mxu0 0.0
    %4635 = vmatprep.subr.mxu0 0.0
    %4636 = vmatpush1.msra.mxu0 0.0
    %4637 = vmatprep.subr.mxu0 0.0
    %4638 = vmatpush1.msra.mxu0 0.0
    %4639 = vmatprep.subr.mxu0 0.0
    %4640 = vmatpush1.msra.mxu0 0.0
    %4641 = vmatprep.subr.mxu0 0.0
    %4642 = vmatpush1.msra.mxu0 0.0
    %4643 = vmatprep.subr.mxu0 0.0
    %4644 = vmatpush1.msra.mxu0 0.0
    %4645 = vmatprep.subr.mxu0 0.0
    %4646 = vmatpush1.msra.mxu0 0.0
    %4647 = vmatprep.subr.mxu0 0.0
    %4648 = vmatpush1.msra.mxu0 0.0
    %4649 = vmatprep.subr.mxu0 0.0
    %4650 = vmatpush1.msra.mxu0 0.0
    %4651 = vmatprep.subr.mxu0 0.0
    %4652 = vmatpush1.msra.mxu0 0.0
    %4653 = vmatprep.subr.mxu0 0.0
    %4654 = vmatpush1.msra.mxu0 0.0
    %4655 = vmatprep.subr.mxu0 0.0
    %4656 = vmatpush1.msra.mxu0 0.0
    %4657 = vmatprep.subr.mxu0 0.0
    %4658 = vmatpush1.msra.mxu0 0.0
    %4659 = vmatprep.subr.mxu0 0.0
    %4660 = vmatpush1.msra.mxu0 0.0
    %4661 = vmatprep.subr.mxu0 0.0
    %4662 = vmatpush1.msra.mxu0 0.0
    %4663 = vmatprep.subr.mxu0 0.0
    %4664 = vmatpush1.msra.mxu0 0.0
    %4665 = vmatprep.mubr.f32.mxu0 0.0
    %4666 = vmatmul.mubr.f32.gmra.mrb[0].mxu0 %v4458
    %v4667 = vpop.f32.mrb[0].mxu0
    %v4668 = vadd.f32 %v4202, %v4667
    %v4669 = vpop.f32.mrb[0].mxu0
    %4670 = vdwg.mxu0
    %4671 = vmatprep.subr.mxu0 0.0
    %4672 = vmatpush1.msra.mxu0 %v4185
    %4673 = vmatprep.subr.mxu0 0.0
    %4674 = vmatpush1.msra.mxu0 %v4186
    %4675 = vmatprep.subr.mxu0 0.0
    %4676 = vmatpush1.msra.mxu0 %v4187
    %4677 = vmatprep.subr.mxu0 0.0
    %4678 = vmatpush1.msra.mxu0 %v4188
    %4679 = vmatprep.subr.mxu0 0.0
    %4680 = vmatpush1.msra.mxu0 0.0
    %4681 = vmatprep.subr.mxu0 0.0
    %4682 = vmatpush1.msra.mxu0 0.0
    %4683 = vmatprep.subr.mxu0 0.0
    %4684 = vmatpush1.msra.mxu0 0.0
    %4685 = vmatprep.subr.mxu0 0.0
    %4686 = vmatpush1.msra.mxu0 0.0
    %4687 = vmatprep.subr.mxu0 0.0
    %4688 = vmatpush1.msra.mxu0 0.0
    %4689 = vmatprep.subr.mxu0 0.0
    %4690 = vmatpush1.msra.mxu0 0.0
    %4691 = vmatprep.subr.mxu0 0.0
    %4692 = vmatpush1.msra.mxu0 0.0
    %4693 = vmatprep.subr.mxu0 0.0
    %4694 = vmatpush1.msra.mxu0 0.0
    %4695 = vmatprep.subr.mxu0 0.0
    %4696 = vmatpush1.msra.mxu0 0.0
    %4697 = vmatprep.subr.mxu0 0.0
    %4698 = vmatpush1.msra.mxu0 0.0
    %4699 = vmatprep.subr.mxu0 0.0
    %4700 = vmatpush1.msra.mxu0 0.0
    %4701 = vmatprep.subr.mxu0 0.0
    %4702 = vmatpush1.msra.mxu0 0.0
    %4703 = vmatprep.subr.mxu0 0.0
    %4704 = vmatpush1.msra.mxu0 0.0
    %4705 = vmatprep.subr.mxu0 0.0
    %4706 = vmatpush1.msra.mxu0 0.0
    %4707 = vmatprep.subr.mxu0 0.0
    %4708 = vmatpush1.msra.mxu0 0.0
    %4709 = vmatprep.subr.mxu0 0.0
    %4710 = vmatpush1.msra.mxu0 0.0
    %4711 = vmatprep.subr.mxu0 0.0
    %4712 = vmatpush1.msra.mxu0 0.0
    %4713 = vmatprep.subr.mxu0 0.0
    %4714 = vmatpush1.msra.mxu0 0.0
    %4715 = vmatprep.subr.mxu0 0.0
    %4716 = vmatpush1.msra.mxu0 0.0
    %4717 = vmatprep.subr.mxu0 0.0
    %4718 = vmatpush1.msra.mxu0 0.0
    %4719 = vmatprep.subr.mxu0 0.0
    %4720 = vmatpush1.msra.mxu0 0.0
    %4721 = vmatprep.subr.mxu0 0.0
    %4722 = vmatpush1.msra.mxu0 0.0
    %4723 = vmatprep.subr.mxu0 0.0
    %4724 = vmatpush1.msra.mxu0 0.0
    %4725 = vmatprep.subr.mxu0 0.0
    %4726 = vmatpush1.msra.mxu0 0.0
    %4727 = vmatprep.subr.mxu0 0.0
    %4728 = vmatpush1.msra.mxu0 0.0
    %4729 = vmatprep.subr.mxu0 0.0
    %4730 = vmatpush1.msra.mxu0 0.0
    %4731 = vmatprep.subr.mxu0 0.0
    %4732 = vmatpush1.msra.mxu0 0.0
    %4733 = vmatprep.subr.mxu0 0.0
    %4734 = vmatpush1.msra.mxu0 0.0
    %4735 = vmatprep.mubr.f32.mxu0 0.0
    %4736 = vmatmul.mubr.f32.gmra.mrb[0].mxu0 %v4458
    %v4737 = vpop.f32.mrb[0].mxu0
    %v4738 = vadd.f32 %v4210, %v4737
    %v4739 = vpop.f32.mrb[0].mxu0
    %4740 = vdwg.mxu0
    %v4741 = vld [vmem:[%s1268] sm:$0x3]
    %v4742 = vadd.f32 %v4741, %v4598
    %v4743 = vxor.u32 %v4742, 2147483648
    %v4744 = vmul.f32 %v4743, 1.442695
    %v4745 = vpow.pop %v4744
    %v4746 = vadd.f32 %v4745, 1.0
    %v4747 = vrcp.pop %v4746
    %v4748 = vmul.f32 1.0, %v4747
    %v4749 = vld [vmem:[%s1340] sm:$0x3]
    %v4750 = vadd.f32 %v4749, %v4668
    %v4751 = vxor.u32 %v4750, 2147483648
    %v4752 = vmul.f32 %v4751, 1.442695
    %v4753 = vpow.pop %v4752
    %v4754 = vadd.f32 %v4753, 1.0
    %v4755 = vrcp.pop %v4754
    %v4756 = vmul.f32 1.0, %v4755
    %v4757 = vld [vmem:[%s1412] sm:$0x3]
    %v4758 = vmul.f32 %v4748, %v4738
    %v4759 = vadd.f32 %v4757, %v4758
    %v4760 = vtanh.pop %v4759
    %v4761 = vsub.f32 1.0, %v4756
    %v4762 = vmul.f32 %v4761, %v4760
    %v4763 = vmul.f32 %v4756, %v4456
    %v4764 = vadd.f32 %v4762, %v4763
    %v4766 = vsel %vm500, %v4764, 0
    %4768 = vmatprep.subr.mxu0 0.0
    %4769 = vmatpush1.msra.mxu0 %v4212
    %4770 = vmatprep.subr.mxu0 0.0
    %4771 = vmatpush1.msra.mxu0 %v4213
    %4772 = vmatprep.subr.mxu0 0.0
    %4773 = vmatpush1.msra.mxu0 %v4214
    %4774 = vmatprep.subr.mxu0 0.0
    %4775 = vmatpush1.msra.mxu0 %v4215
    %4776 = vmatprep.subr.mxu0 0.0
    %4777 = vmatpush1.msra.mxu0 0.0
    %4778 = vmatprep.subr.mxu0 0.0
    %4779 = vmatpush1.msra.mxu0 0.0
    %4780 = vmatprep.subr.mxu0 0.0
    %4781 = vmatpush1.msra.mxu0 0.0
    %4782 = vmatprep.subr.mxu0 0.0
    %4783 = vmatpush1.msra.mxu0 0.0
    %4784 = vmatprep.subr.mxu0 0.0
    %4785 = vmatpush1.msra.mxu0 0.0
    %4786 = vmatprep.subr.mxu0 0.0
    %4787 = vmatpush1.msra.mxu0 0.0
    %4788 = vmatprep.subr.mxu0 0.0
    %4789 = vmatpush1.msra.mxu0 0.0
    %4790 = vmatprep.subr.mxu0 0.0
    %4791 = vmatpush1.msra.mxu0 0.0
    %4792 = vmatprep.subr.mxu0 0.0
    %4793 = vmatpush1.msra.mxu0 0.0
    %4794 = vmatprep.subr.mxu0 0.0
    %4795 = vmatpush1.msra.mxu0 0.0
    %4796 = vmatprep.subr.mxu0 0.0
    %4797 = vmatpush1.msra.mxu0 0.0
    %4798 = vmatprep.subr.mxu0 0.0
    %4799 = vmatpush1.msra.mxu0 0.0
    %4800 = vmatprep.subr.mxu0 0.0
    %4801 = vmatpush1.msra.mxu0 0.0
    %4802 = vmatprep.subr.mxu0 0.0
    %4803 = vmatpush1.msra.mxu0 0.0
    %4804 = vmatprep.subr.mxu0 0.0
    %4805 = vmatpush1.msra.mxu0 0.0
    %4806 = vmatprep.subr.mxu0 0.0
    %4807 = vmatpush1.msra.mxu0 0.0
    %4808 = vmatprep.subr.mxu0 0.0
    %4809 = vmatpush1.msra.mxu0 0.0
    %4810 = vmatprep.subr.mxu0 0.0
    %4811 = vmatpush1.msra.mxu0 0.0
    %4812 = vmatprep.subr.mxu0 0.0
    %4813 = vmatpush1.msra.mxu0 0.0
    %4814 = vmatprep.subr.mxu0 0.0
    %4815 = vmatpush1.msra.mxu0 0.0
    %4816 = vmatprep.subr.mxu0 0.0
    %4817 = vmatpush1.msra.mxu0 0.0
    %4818 = vmatprep.subr.mxu0 0.0
    %4819 = vmatpush1.msra.mxu0 0.0
    %4820 = vmatprep.subr.mxu0 0.0
    %4821 = vmatpush1.msra.mxu0 0.0
    %4822 = vmatprep.subr.mxu0 0.0
    %4823 = vmatpush1.msra.mxu0 0.0
    %4824 = vmatprep.subr.mxu0 0.0
    %4825 = vmatpush1.msra.mxu0 0.0
    %4826 = vmatprep.subr.mxu0 0.0
    %4827 = vmatpush1.msra.mxu0 0.0
    %4828 = vmatprep.subr.mxu0 0.0
    %4829 = vmatpush1.msra.mxu0 0.0
    %4830 = vmatprep.subr.mxu0 0.0
    %4831 = vmatpush1.msra.mxu0 0.0
    %4832 = vmatprep.mubr.f32.mxu0 0.0
    %4833 = vmatmul.mubr.f32.gmra.mrb[0].mxu0 %v4766
    %v4834 = vpop.f32.mrb[0].mxu0
    %v4835 = vadd.f32 %v4221, %v4834
    %v4836 = vpop.f32.mrb[0].mxu0
    %4837 = vdwg.mxu0
    %s4838 = scalar_lea.vmem [#allocation20], 2
    %4839 = vst [vmem:[%s4838] sm:$0x3] %v4835
    %4840 = vmatprep.subr.mxu0 0.0
    %4841 = vmatpush1.msra.mxu0 %v4175
    %4842 = vmatprep.subr.mxu0 0.0
    %4843 = vmatpush1.msra.mxu0 %v4176
    %4844 = vmatprep.subr.mxu0 0.0
    %4845 = vmatpush1.msra.mxu0 %v4177
    %4846 = vmatprep.subr.mxu0 0.0
    %4847 = vmatpush1.msra.mxu0 %v4178
    %4848 = vmatprep.subr.mxu0 0.0
    %4849 = vmatpush1.msra.mxu0 0.0
    %4850 = vmatprep.subr.mxu0 0.0
    %4851 = vmatpush1.msra.mxu0 0.0
    %4852 = vmatprep.subr.mxu0 0.0
    %4853 = vmatpush1.msra.mxu0 0.0
    %4854 = vmatprep.subr.mxu0 0.0
    %4855 = vmatpush1.msra.mxu0 0.0
    %4856 = vmatprep.subr.mxu0 0.0
    %4857 = vmatpush1.msra.mxu0 0.0
    %4858 = vmatprep.subr.mxu0 0.0
    %4859 = vmatpush1.msra.mxu0 0.0
    %4860 = vmatprep.subr.mxu0 0.0
    %4861 = vmatpush1.msra.mxu0 0.0
    %4862 = vmatprep.subr.mxu0 0.0
    %4863 = vmatpush1.msra.mxu0 0.0
    %4864 = vmatprep.subr.mxu0 0.0
    %4865 = vmatpush1.msra.mxu0 0.0
    %4866 = vmatprep.subr.mxu0 0.0
    %4867 = vmatpush1.msra.mxu0 0.0
    %4868 = vmatprep.subr.mxu0 0.0
    %4869 = vmatpush1.msra.mxu0 0.0
    %4870 = vmatprep.subr.mxu0 0.0
    %4871 = vmatpush1.msra.mxu0 0.0
    %4872 = vmatprep.subr.mxu0 0.0
    %4873 = vmatpush1.msra.mxu0 0.0
    %4874 = vmatprep.subr.mxu0 0.0
    %4875 = vmatpush1.msra.mxu0 0.0
    %4876 = vmatprep.subr.mxu0 0.0
    %4877 = vmatpush1.msra.mxu0 0.0
    %4878 = vmatprep.subr.mxu0 0.0
    %4879 = vmatpush1.msra.mxu0 0.0
    %4880 = vmatprep.subr.mxu0 0.0
    %4881 = vmatpush1.msra.mxu0 0.0
    %4882 = vmatprep.subr.mxu0 0.0
    %4883 = vmatpush1.msra.mxu0 0.0
    %4884 = vmatprep.subr.mxu0 0.0
    %4885 = vmatpush1.msra.mxu0 0.0
    %4886 = vmatprep.subr.mxu0 0.0
    %4887 = vmatpush1.msra.mxu0 0.0
    %4888 = vmatprep.subr.mxu0 0.0
    %4889 = vmatpush1.msra.mxu0 0.0
    %4890 = vmatprep.subr.mxu0 0.0
    %4891 = vmatpush1.msra.mxu0 0.0
    %4892 = vmatprep.subr.mxu0 0.0
    %4893 = vmatpush1.msra.mxu0 0.0
    %4894 = vmatprep.subr.mxu0 0.0
    %4895 = vmatpush1.msra.mxu0 0.0
    %4896 = vmatprep.subr.mxu0 0.0
    %4897 = vmatpush1.msra.mxu0 0.0
    %4898 = vmatprep.subr.mxu0 0.0
    %4899 = vmatpush1.msra.mxu0 0.0
    %4900 = vmatprep.subr.mxu0 0.0
    %4901 = vmatpush1.msra.mxu0 0.0
    %4902 = vmatprep.subr.mxu0 0.0
    %4903 = vmatpush1.msra.mxu0 0.0
    %4904 = vmatprep.mubr.f32.mxu0 0.0
    %4905 = vmatmul.mubr.f32.gmra.mrb[0].mxu0 %v4766
    %v4906 = vpop.f32.mrb[0].mxu0
    %v4907 = vadd.f32 %v4194, %v4906
    %v4908 = vpop.f32.mrb[0].mxu0
    %4909 = vdwg.mxu0
    %4910 = vmatprep.subr.mxu0 0.0
    %4911 = vmatpush1.msra.mxu0 %v4180
    %4912 = vmatprep.subr.mxu0 0.0
    %4913 = vmatpush1.msra.mxu0 %v4181
    %4914 = vmatprep.subr.mxu0 0.0
    %4915 = vmatpush1.msra.mxu0 %v4182
    %4916 = vmatprep.subr.mxu0 0.0
    %4917 = vmatpush1.msra.mxu0 %v4183
    %4918 = vmatprep.subr.mxu0 0.0
    %4919 = vmatpush1.msra.mxu0 0.0
    %4920 = vmatprep.subr.mxu0 0.0
    %4921 = vmatpush1.msra.mxu0 0.0
    %4922 = vmatprep.subr.mxu0 0.0
    %4923 = vmatpush1.msra.mxu0 0.0
    %4924 = vmatprep.subr.mxu0 0.0
    %4925 = vmatpush1.msra.mxu0 0.0
    %4926 = vmatprep.subr.mxu0 0.0
    %4927 = vmatpush1.msra.mxu0 0.0
    %4928 = vmatprep.subr.mxu0 0.0
    %4929 = vmatpush1.msra.mxu0 0.0
    %4930 = vmatprep.subr.mxu0 0.0
    %4931 = vmatpush1.msra.mxu0 0.0
    %4932 = vmatprep.subr.mxu0 0.0
    %4933 = vmatpush1.msra.mxu0 0.0
    %4934 = vmatprep.subr.mxu0 0.0
    %4935 = vmatpush1.msra.mxu0 0.0
    %4936 = vmatprep.subr.mxu0 0.0
    %4937 = vmatpush1.msra.mxu0 0.0
    %4938 = vmatprep.subr.mxu0 0.0
    %4939 = vmatpush1.msra.mxu0 0.0
    %4940 = vmatprep.subr.mxu0 0.0
    %4941 = vmatpush1.msra.mxu0 0.0
    %4942 = vmatprep.subr.mxu0 0.0
    %4943 = vmatpush1.msra.mxu0 0.0
    %4944 = vmatprep.subr.mxu0 0.0
    %4945 = vmatpush1.msra.mxu0 0.0
    %4946 = vmatprep.subr.mxu0 0.0
    %4947 = vmatpush1.msra.mxu0 0.0
    %4948 = vmatprep.subr.mxu0 0.0
    %4949 = vmatpush1.msra.mxu0 0.0
    %4950 = vmatprep.subr.mxu0 0.0
    %4951 = vmatpush1.msra.mxu0 0.0
    %4952 = vmatprep.subr.mxu0 0.0
    %4953 = vmatpush1.msra.mxu0 0.0
    %4954 = vmatprep.subr.mxu0 0.0
    %4955 = vmatpush1.msra.mxu0 0.0
    %4956 = vmatprep.subr.mxu0 0.0
    %4957 = vmatpush1.msra.mxu0 0.0
    %4958 = vmatprep.subr.mxu0 0.0
    %4959 = vmatpush1.msra.mxu0 0.0
    %4960 = vmatprep.subr.mxu0 0.0
    %4961 = vmatpush1.msra.mxu0 0.0
    %4962 = vmatprep.subr.mxu0 0.0
    %4963 = vmatpush1.msra.mxu0 0.0
    %4964 = vmatprep.subr.mxu0 0.0
    %4965 = vmatpush1.msra.mxu0 0.0
    %4966 = vmatprep.subr.mxu0 0.0
    %4967 = vmatpush1.msra.mxu0 0.0
    %4968 = vmatprep.subr.mxu0 0.0
    %4969 = vmatpush1.msra.mxu0 0.0
    %4970 = vmatprep.subr.mxu0 0.0
    %4971 = vmatpush1.msra.mxu0 0.0
    %4972 = vmatprep.subr.mxu0 0.0
    %4973 = vmatpush1.msra.mxu0 0.0
    %4974 = vmatprep.mubr.f32.mxu0 0.0
    %4975 = vmatmul.mubr.f32.gmra.mrb[0].mxu0 %v4766
    %v4976 = vpop.f32.mrb[0].mxu0
    %v4977 = vadd.f32 %v4202, %v4976
    %v4978 = vpop.f32.mrb[0].mxu0
    %4979 = vdwg.mxu0
    %4980 = vmatprep.subr.mxu0 0.0
    %4981 = vmatpush1.msra.mxu0 %v4185
    %4982 = vmatprep.subr.mxu0 0.0
    %4983 = vmatpush1.msra.mxu0 %v4186
    %4984 = vmatprep.subr.mxu0 0.0
    %4985 = vmatpush1.msra.mxu0 %v4187
    %4986 = vmatprep.subr.mxu0 0.0
    %4987 = vmatpush1.msra.mxu0 %v4188
    %4988 = vmatprep.subr.mxu0 0.0
    %4989 = vmatpush1.msra.mxu0 0.0
    %4990 = vmatprep.subr.mxu0 0.0
    %4991 = vmatpush1.msra.mxu0 0.0
    %4992 = vmatprep.subr.mxu0 0.0
    %4993 = vmatpush1.msra.mxu0 0.0
    %4994 = vmatprep.subr.mxu0 0.0
    %4995 = vmatpush1.msra.mxu0 0.0
    %4996 = vmatprep.subr.mxu0 0.0
    %4997 = vmatpush1.msra.mxu0 0.0
    %4998 = vmatprep.subr.mxu0 0.0
    %4999 = vmatpush1.msra.mxu0 0.0
    %5000 = vmatprep.subr.mxu0 0.0
    %5001 = vmatpush1.msra.mxu0 0.0
    %5002 = vmatprep.subr.mxu0 0.0
    %5003 = vmatpush1.msra.mxu0 0.0
    %5004 = vmatprep.subr.mxu0 0.0
    %5005 = vmatpush1.msra.mxu0 0.0
    %5006 = vmatprep.subr.mxu0 0.0
    %5007 = vmatpush1.msra.mxu0 0.0
    %5008 = vmatprep.subr.mxu0 0.0
    %5009 = vmatpush1.msra.mxu0 0.0
    %5010 = vmatprep.subr.mxu0 0.0
    %5011 = vmatpush1.msra.mxu0 0.0
    %5012 = vmatprep.subr.mxu0 0.0
    %5013 = vmatpush1.msra.mxu0 0.0
    %5014 = vmatprep.subr.mxu0 0.0
    %5015 = vmatpush1.msra.mxu0 0.0
    %5016 = vmatprep.subr.mxu0 0.0
    %5017 = vmatpush1.msra.mxu0 0.0
    %5018 = vmatprep.subr.mxu0 0.0
    %5019 = vmatpush1.msra.mxu0 0.0
    %5020 = vmatprep.subr.mxu0 0.0
    %5021 = vmatpush1.msra.mxu0 0.0
    %5022 = vmatprep.subr.mxu0 0.0
    %5023 = vmatpush1.msra.mxu0 0.0
    %5024 = vmatprep.subr.mxu0 0.0
    %5025 = vmatpush1.msra.mxu0 0.0
    %5026 = vmatprep.subr.mxu0 0.0
    %5027 = vmatpush1.msra.mxu0 0.0
    %5028 = vmatprep.subr.mxu0 0.0
    %5029 = vmatpush1.msra.mxu0 0.0
    %5030 = vmatprep.subr.mxu0 0.0
    %5031 = vmatpush1.msra.mxu0 0.0
    %5032 = vmatprep.subr.mxu0 0.0
    %5033 = vmatpush1.msra.mxu0 0.0
    %5034 = vmatprep.subr.mxu0 0.0
    %5035 = vmatpush1.msra.mxu0 0.0
    %5036 = vmatprep.subr.mxu0 0.0
    %5037 = vmatpush1.msra.mxu0 0.0
    %5038 = vmatprep.subr.mxu0 0.0
    %5039 = vmatpush1.msra.mxu0 0.0
    %5040 = vmatprep.subr.mxu0 0.0
    %5041 = vmatpush1.msra.mxu0 0.0
    %5042 = vmatprep.subr.mxu0 0.0
    %5043 = vmatpush1.msra.mxu0 0.0
    %5044 = vmatprep.mubr.f32.mxu0 0.0
    %5045 = vmatmul.mubr.f32.gmra.mrb[0].mxu0 %v4766
    %v5046 = vpop.f32.mrb[0].mxu0
    %v5047 = vadd.f32 %v4210, %v5046
    %v5048 = vpop.f32.mrb[0].mxu0
    %5049 = vdwg.mxu0
    %v5050 = vld [vmem:[%s1730] sm:$0x3]
    %v5051 = vadd.f32 %v5050, %v4907
    %v5052 = vxor.u32 %v5051, 2147483648
    %v5053 = vmul.f32 %v5052, 1.442695
    %v5054 = vpow.pop %v5053
    %v5055 = vadd.f32 %v5054, 1.0
    %v5056 = vrcp.pop %v5055
    %v5057 = vmul.f32 1.0, %v5056
    %v5058 = vld [vmem:[%s1802] sm:$0x3]
    %v5059 = vadd.f32 %v5058, %v4977
    %v5060 = vxor.u32 %v5059, 2147483648
    %v5061 = vmul.f32 %v5060, 1.442695
    %v5062 = vpow.pop %v5061
    %v5063 = vadd.f32 %v5062, 1.0
    %v5064 = vrcp.pop %v5063
    %v5065 = vmul.f32 1.0, %v5064
    %v5066 = vld [vmem:[%s1874] sm:$0x3]
    %v5067 = vmul.f32 %v5057, %v5047
    %v5068 = vadd.f32 %v5066, %v5067
    %v5069 = vtanh.pop %v5068
    %v5070 = vsub.f32 1.0, %v5065
    %v5071 = vmul.f32 %v5070, %v5069
    %v5072 = vmul.f32 %v5065, %v4764
    %v5073 = vadd.f32 %v5071, %v5072
    %v5075 = vsel %vm500, %v5073, 0
    %5077 = vmatprep.subr.mxu0 0.0
    %5078 = vmatpush1.msra.mxu0 %v4212
    %5079 = vmatprep.subr.mxu0 0.0
    %5080 = vmatpush1.msra.mxu0 %v4213
    %5081 = vmatprep.subr.mxu0 0.0
    %5082 = vmatpush1.msra.mxu0 %v4214
    %5083 = vmatprep.subr.mxu0 0.0
    %5084 = vmatpush1.msra.mxu0 %v4215
    %5085 = vmatprep.subr.mxu0 0.0
    %5086 = vmatpush1.msra.mxu0 0.0
    %5087 = vmatprep.subr.mxu0 0.0
    %5088 = vmatpush1.msra.mxu0 0.0
    %5089 = vmatprep.subr.mxu0 0.0
    %5090 = vmatpush1.msra.mxu0 0.0
    %5091 = vmatprep.subr.mxu0 0.0
    %5092 = vmatpush1.msra.mxu0 0.0
    %5093 = vmatprep.subr.mxu0 0.0
    %5094 = vmatpush1.msra.mxu0 0.0
    %5095 = vmatprep.subr.mxu0 0.0
    %5096 = vmatpush1.msra.mxu0 0.0
    %5097 = vmatprep.subr.mxu0 0.0
    %5098 = vmatpush1.msra.mxu0 0.0
    %5099 = vmatprep.subr.mxu0 0.0
    %5100 = vmatpush1.msra.mxu0 0.0
    %5101 = vmatprep.subr.mxu0 0.0
    %5102 = vmatpush1.msra.mxu0 0.0
    %5103 = vmatprep.subr.mxu0 0.0
    %5104 = vmatpush1.msra.mxu0 0.0
    %5105 = vmatprep.subr.mxu0 0.0
    %5106 = vmatpush1.msra.mxu0 0.0
    %5107 = vmatprep.subr.mxu0 0.0
    %5108 = vmatpush1.msra.mxu0 0.0
    %5109 = vmatprep.subr.mxu0 0.0
    %5110 = vmatpush1.msra.mxu0 0.0
    %5111 = vmatprep.subr.mxu0 0.0
    %5112 = vmatpush1.msra.mxu0 0.0
    %5113 = vmatprep.subr.mxu0 0.0
    %5114 = vmatpush1.msra.mxu0 0.0
    %5115 = vmatprep.subr.mxu0 0.0
    %5116 = vmatpush1.msra.mxu0 0.0
    %5117 = vmatprep.subr.mxu0 0.0
    %5118 = vmatpush1.msra.mxu0 0.0
    %5119 = vmatprep.subr.mxu0 0.0
    %5120 = vmatpush1.msra.mxu0 0.0
    %5121 = vmatprep.subr.mxu0 0.0
    %5122 = vmatpush1.msra.mxu0 0.0
    %5123 = vmatprep.subr.mxu0 0.0
    %5124 = vmatpush1.msra.mxu0 0.0
    %5125 = vmatprep.subr.mxu0 0.0
    %5126 = vmatpush1.msra.mxu0 0.0
    %5127 = vmatprep.subr.mxu0 0.0
    %5128 = vmatpush1.msra.mxu0 0.0
    %5129 = vmatprep.subr.mxu0 0.0
    %5130 = vmatpush1.msra.mxu0 0.0
    %5131 = vmatprep.subr.mxu0 0.0
    %5132 = vmatpush1.msra.mxu0 0.0
    %5133 = vmatprep.subr.mxu0 0.0
    %5134 = vmatpush1.msra.mxu0 0.0
    %5135 = vmatprep.subr.mxu0 0.0
    %5136 = vmatpush1.msra.mxu0 0.0
    %5137 = vmatprep.subr.mxu0 0.0
    %5138 = vmatpush1.msra.mxu0 0.0
    %5139 = vmatprep.subr.mxu0 0.0
    %5140 = vmatpush1.msra.mxu0 0.0
    %5141 = vmatprep.mubr.f32.mxu0 0.0
    %5142 = vmatmul.mubr.f32.gmra.mrb[0].mxu0 %v5075
    %v5143 = vpop.f32.mrb[0].mxu0
    %v5144 = vadd.f32 %v4221, %v5143
    %v5145 = vpop.f32.mrb[0].mxu0
    %5146 = vdwg.mxu0
    %s5147 = scalar_lea.vmem [#allocation20], 4
    %5148 = vst [vmem:[%s5147] sm:$0x3] %v5144
    %5149 = vmatprep.subr.mxu0 0.0
    %5150 = vmatpush1.msra.mxu0 %v4175
    %5151 = vmatprep.subr.mxu0 0.0
    %5152 = vmatpush1.msra.mxu0 %v4176
    %5153 = vmatprep.subr.mxu0 0.0
    %5154 = vmatpush1.msra.mxu0 %v4177
    %5155 = vmatprep.subr.mxu0 0.0
    %5156 = vmatpush1.msra.mxu0 %v4178
    %5157 = vmatprep.subr.mxu0 0.0
    %5158 = vmatpush1.msra.mxu0 0.0
    %5159 = vmatprep.subr.mxu0 0.0
    %5160 = vmatpush1.msra.mxu0 0.0
    %5161 = vmatprep.subr.mxu0 0.0
    %5162 = vmatpush1.msra.mxu0 0.0
    %5163 = vmatprep.subr.mxu0 0.0
    %5164 = vmatpush1.msra.mxu0 0.0
    %5165 = vmatprep.subr.mxu0 0.0
    %5166 = vmatpush1.msra.mxu0 0.0
    %5167 = vmatprep.subr.mxu0 0.0
    %5168 = vmatpush1.msra.mxu0 0.0
    %5169 = vmatprep.subr.mxu0 0.0
    %5170 = vmatpush1.msra.mxu0 0.0
    %5171 = vmatprep.subr.mxu0 0.0
    %5172 = vmatpush1.msra.mxu0 0.0
    %5173 = vmatprep.subr.mxu0 0.0
    %5174 = vmatpush1.msra.mxu0 0.0
    %5175 = vmatprep.subr.mxu0 0.0
    %5176 = vmatpush1.msra.mxu0 0.0
    %5177 = vmatprep.subr.mxu0 0.0
    %5178 = vmatpush1.msra.mxu0 0.0
    %5179 = vmatprep.subr.mxu0 0.0
    %5180 = vmatpush1.msra.mxu0 0.0
    %5181 = vmatprep.subr.mxu0 0.0
    %5182 = vmatpush1.msra.mxu0 0.0
    %5183 = vmatprep.subr.mxu0 0.0
    %5184 = vmatpush1.msra.mxu0 0.0
    %5185 = vmatprep.subr.mxu0 0.0
    %5186 = vmatpush1.msra.mxu0 0.0
    %5187 = vmatprep.subr.mxu0 0.0
    %5188 = vmatpush1.msra.mxu0 0.0
    %5189 = vmatprep.subr.mxu0 0.0
    %5190 = vmatpush1.msra.mxu0 0.0
    %5191 = vmatprep.subr.mxu0 0.0
    %5192 = vmatpush1.msra.mxu0 0.0
    %5193 = vmatprep.subr.mxu0 0.0
    %5194 = vmatpush1.msra.mxu0 0.0
    %5195 = vmatprep.subr.mxu0 0.0
    %5196 = vmatpush1.msra.mxu0 0.0
    %5197 = vmatprep.subr.mxu0 0.0
    %5198 = vmatpush1.msra.mxu0 0.0
    %5199 = vmatprep.subr.mxu0 0.0
    %5200 = vmatpush1.msra.mxu0 0.0
    %5201 = vmatprep.subr.mxu0 0.0
    %5202 = vmatpush1.msra.mxu0 0.0
    %5203 = vmatprep.subr.mxu0 0.0
    %5204 = vmatpush1.msra.mxu0 0.0
    %5205 = vmatprep.subr.mxu0 0.0
    %5206 = vmatpush1.msra.mxu0 0.0
    %5207 = vmatprep.subr.mxu0 0.0
    %5208 = vmatpush1.msra.mxu0 0.0
    %5209 = vmatprep.subr.mxu0 0.0
    %5210 = vmatpush1.msra.mxu0 0.0
    %5211 = vmatprep.subr.mxu0 0.0
    %5212 = vmatpush1.msra.mxu0 0.0
    %5213 = vmatprep.mubr.f32.mxu0 0.0
    %5214 = vmatmul.mubr.f32.gmra.mrb[0].mxu0 %v5075
    %v5215 = vpop.f32.mrb[0].mxu0
    %v5216 = vadd.f32 %v4194, %v5215
    %v5217 = vpop.f32.mrb[0].mxu0
    %5218 = vdwg.mxu0
    %5219 = vmatprep.subr.mxu0 0.0
    %5220 = vmatpush1.msra.mxu0 %v4180
    %5221 = vmatprep.subr.mxu0 0.0
    %5222 = vmatpush1.msra.mxu0 %v4181
    %5223 = vmatprep.subr.mxu0 0.0
    %5224 = vmatpush1.msra.mxu0 %v4182
    %5225 = vmatprep.subr.mxu0 0.0
    %5226 = vmatpush1.msra.mxu0 %v4183
    %5227 = vmatprep.subr.mxu0 0.0
    %5228 = vmatpush1.msra.mxu0 0.0
    %5229 = vmatprep.subr.mxu0 0.0
    %5230 = vmatpush1.msra.mxu0 0.0
    %5231 = vmatprep.subr.mxu0 0.0
    %5232 = vmatpush1.msra.mxu0 0.0
    %5233 = vmatprep.subr.mxu0 0.0
    %5234 = vmatpush1.msra.mxu0 0.0
    %5235 = vmatprep.subr.mxu0 0.0
    %5236 = vmatpush1.msra.mxu0 0.0
    %5237 = vmatprep.subr.mxu0 0.0
    %5238 = vmatpush1.msra.mxu0 0.0
    %5239 = vmatprep.subr.mxu0 0.0
    %5240 = vmatpush1.msra.mxu0 0.0
    %5241 = vmatprep.subr.mxu0 0.0
    %5242 = vmatpush1.msra.mxu0 0.0
    %5243 = vmatprep.subr.mxu0 0.0
    %5244 = vmatpush1.msra.mxu0 0.0
    %5245 = vmatprep.subr.mxu0 0.0
    %5246 = vmatpush1.msra.mxu0 0.0
    %5247 = vmatprep.subr.mxu0 0.0
    %5248 = vmatpush1.msra.mxu0 0.0
    %5249 = vmatprep.subr.mxu0 0.0
    %5250 = vmatpush1.msra.mxu0 0.0
    %5251 = vmatprep.subr.mxu0 0.0
    %5252 = vmatpush1.msra.mxu0 0.0
    %5253 = vmatprep.subr.mxu0 0.0
    %5254 = vmatpush1.msra.mxu0 0.0
    %5255 = vmatprep.subr.mxu0 0.0
    %5256 = vmatpush1.msra.mxu0 0.0
    %5257 = vmatprep.subr.mxu0 0.0
    %5258 = vmatpush1.msra.mxu0 0.0
    %5259 = vmatprep.subr.mxu0 0.0
    %5260 = vmatpush1.msra.mxu0 0.0
    %5261 = vmatprep.subr.mxu0 0.0
    %5262 = vmatpush1.msra.mxu0 0.0
    %5263 = vmatprep.subr.mxu0 0.0
    %5264 = vmatpush1.msra.mxu0 0.0
    %5265 = vmatprep.subr.mxu0 0.0
    %5266 = vmatpush1.msra.mxu0 0.0
    %5267 = vmatprep.subr.mxu0 0.0
    %5268 = vmatpush1.msra.mxu0 0.0
    %5269 = vmatprep.subr.mxu0 0.0
    %5270 = vmatpush1.msra.mxu0 0.0
    %5271 = vmatprep.subr.mxu0 0.0
    %5272 = vmatpush1.msra.mxu0 0.0
    %5273 = vmatprep.subr.mxu0 0.0
    %5274 = vmatpush1.msra.mxu0 0.0
    %5275 = vmatprep.subr.mxu0 0.0
    %5276 = vmatpush1.msra.mxu0 0.0
    %5277 = vmatprep.subr.mxu0 0.0
    %5278 = vmatpush1.msra.mxu0 0.0
    %5279 = vmatprep.subr.mxu0 0.0
    %5280 = vmatpush1.msra.mxu0 0.0
    %5281 = vmatprep.subr.mxu0 0.0
    %5282 = vmatpush1.msra.mxu0 0.0
    %5283 = vmatprep.mubr.f32.mxu0 0.0
    %5284 = vmatmul.mubr.f32.gmra.mrb[0].mxu0 %v5075
    %v5285 = vpop.f32.mrb[0].mxu0
    %v5286 = vadd.f32 %v4202, %v5285
    %v5287 = vpop.f32.mrb[0].mxu0
    %5288 = vdwg.mxu0
    %5289 = vmatprep.subr.mxu0 0.0
    %5290 = vmatpush1.msra.mxu0 %v4185
    %5291 = vmatprep.subr.mxu0 0.0
    %5292 = vmatpush1.msra.mxu0 %v4186
    %5293 = vmatprep.subr.mxu0 0.0
    %5294 = vmatpush1.msra.mxu0 %v4187
    %5295 = vmatprep.subr.mxu0 0.0
    %5296 = vmatpush1.msra.mxu0 %v4188
    %5297 = vmatprep.subr.mxu0 0.0
    %5298 = vmatpush1.msra.mxu0 0.0
    %5299 = vmatprep.subr.mxu0 0.0
    %5300 = vmatpush1.msra.mxu0 0.0
    %5301 = vmatprep.subr.mxu0 0.0
    %5302 = vmatpush1.msra.mxu0 0.0
    %5303 = vmatprep.subr.mxu0 0.0
    %5304 = vmatpush1.msra.mxu0 0.0
    %5305 = vmatprep.subr.mxu0 0.0
    %5306 = vmatpush1.msra.mxu0 0.0
    %5307 = vmatprep.subr.mxu0 0.0
    %5308 = vmatpush1.msra.mxu0 0.0
    %5309 = vmatprep.subr.mxu0 0.0
    %5310 = vmatpush1.msra.mxu0 0.0
    %5311 = vmatprep.subr.mxu0 0.0
    %5312 = vmatpush1.msra.mxu0 0.0
    %5313 = vmatprep.subr.mxu0 0.0
    %5314 = vmatpush1.msra.mxu0 0.0
    %5315 = vmatprep.subr.mxu0 0.0
    %5316 = vmatpush1.msra.mxu0 0.0
    %5317 = vmatprep.subr.mxu0 0.0
    %5318 = vmatpush1.msra.mxu0 0.0
    %5319 = vmatprep.subr.mxu0 0.0
    %5320 = vmatpush1.msra.mxu0 0.0
    %5321 = vmatprep.subr.mxu0 0.0
    %5322 = vmatpush1.msra.mxu0 0.0
    %5323 = vmatprep.subr.mxu0 0.0
    %5324 = vmatpush1.msra.mxu0 0.0
    %5325 = vmatprep.subr.mxu0 0.0
    %5326 = vmatpush1.msra.mxu0 0.0
    %5327 = vmatprep.subr.mxu0 0.0
    %5328 = vmatpush1.msra.mxu0 0.0
    %5329 = vmatprep.subr.mxu0 0.0
    %5330 = vmatpush1.msra.mxu0 0.0
    %5331 = vmatprep.subr.mxu0 0.0
    %5332 = vmatpush1.msra.mxu0 0.0
    %5333 = vmatprep.subr.mxu0 0.0
    %5334 = vmatpush1.msra.mxu0 0.0
    %5335 = vmatprep.subr.mxu0 0.0
    %5336 = vmatpush1.msra.mxu0 0.0
    %5337 = vmatprep.subr.mxu0 0.0
    %5338 = vmatpush1.msra.mxu0 0.0
    %5339 = vmatprep.subr.mxu0 0.0
    %5340 = vmatpush1.msra.mxu0 0.0
    %5341 = vmatprep.subr.mxu0 0.0
    %5342 = vmatpush1.msra.mxu0 0.0
    %5343 = vmatprep.subr.mxu0 0.0
    %5344 = vmatpush1.msra.mxu0 0.0
    %5345 = vmatprep.subr.mxu0 0.0
    %5346 = vmatpush1.msra.mxu0 0.0
    %5347 = vmatprep.subr.mxu0 0.0
    %5348 = vmatpush1.msra.mxu0 0.0
    %5349 = vmatprep.subr.mxu0 0.0
    %5350 = vmatpush1.msra.mxu0 0.0
    %5351 = vmatprep.subr.mxu0 0.0
    %5352 = vmatpush1.msra.mxu0 0.0
    %5353 = vmatprep.mubr.f32.mxu0 0.0
    %5354 = vmatmul.mubr.f32.gmra.mrb[0].mxu0 %v5075
    %v5355 = vpop.f32.mrb[0].mxu0
    %v5356 = vadd.f32 %v4210, %v5355
    %v5357 = vpop.f32.mrb[0].mxu0
    %5358 = vdwg.mxu0
    %v5359 = vld [vmem:[%s2192] sm:$0x3]
    %v5360 = vadd.f32 %v5359, %v5216
    %v5361 = vxor.u32 %v5360, 2147483648
    %v5362 = vmul.f32 %v5361, 1.442695
    %v5363 = vpow.pop %v5362
    %v5364 = vadd.f32 %v5363, 1.0
    %v5365 = vrcp.pop %v5364
    %v5366 = vmul.f32 1.0, %v5365
    %v5367 = vld [vmem:[%s2264] sm:$0x3]
    %v5368 = vadd.f32 %v5367, %v5286
    %v5369 = vxor.u32 %v5368, 2147483648
    %v5370 = vmul.f32 %v5369, 1.442695
    %v5371 = vpow.pop %v5370
    %v5372 = vadd.f32 %v5371, 1.0
    %v5373 = vrcp.pop %v5372
    %v5374 = vmul.f32 1.0, %v5373
    %v5375 = vld [vmem:[%s2336] sm:$0x3]
    %v5376 = vmul.f32 %v5366, %v5356
    %v5377 = vadd.f32 %v5375, %v5376
    %v5378 = vtanh.pop %v5377
    %v5379 = vsub.f32 1.0, %v5374
    %v5380 = vmul.f32 %v5379, %v5378
    %v5381 = vmul.f32 %v5374, %v5073
    %v5382 = vadd.f32 %v5380, %v5381
    %v5384 = vsel %vm500, %v5382, 0
    %5386 = vmatprep.subr.mxu0 0.0
    %5387 = vmatpush1.msra.mxu0 %v4212
    %5388 = vmatprep.subr.mxu0 0.0
    %5389 = vmatpush1.msra.mxu0 %v4213
    %5390 = vmatprep.subr.mxu0 0.0
    %5391 = vmatpush1.msra.mxu0 %v4214
    %5392 = vmatprep.subr.mxu0 0.0
    %5393 = vmatpush1.msra.mxu0 %v4215
    %5394 = vmatprep.subr.mxu0 0.0
    %5395 = vmatpush1.msra.mxu0 0.0
    %5396 = vmatprep.subr.mxu0 0.0
    %5397 = vmatpush1.msra.mxu0 0.0
    %5398 = vmatprep.subr.mxu0 0.0
    %5399 = vmatpush1.msra.mxu0 0.0
    %5400 = vmatprep.subr.mxu0 0.0
    %5401 = vmatpush1.msra.mxu0 0.0
    %5402 = vmatprep.subr.mxu0 0.0
    %5403 = vmatpush1.msra.mxu0 0.0
    %5404 = vmatprep.subr.mxu0 0.0
    %5405 = vmatpush1.msra.mxu0 0.0
    %5406 = vmatprep.subr.mxu0 0.0
    %5407 = vmatpush1.msra.mxu0 0.0
    %5408 = vmatprep.subr.mxu0 0.0
    %5409 = vmatpush1.msra.mxu0 0.0
    %5410 = vmatprep.subr.mxu0 0.0
    %5411 = vmatpush1.msra.mxu0 0.0
    %5412 = vmatprep.subr.mxu0 0.0
    %5413 = vmatpush1.msra.mxu0 0.0
    %5414 = vmatprep.subr.mxu0 0.0
    %5415 = vmatpush1.msra.mxu0 0.0
    %5416 = vmatprep.subr.mxu0 0.0
    %5417 = vmatpush1.msra.mxu0 0.0
    %5418 = vmatprep.subr.mxu0 0.0
    %5419 = vmatpush1.msra.mxu0 0.0
    %5420 = vmatprep.subr.mxu0 0.0
    %5421 = vmatpush1.msra.mxu0 0.0
    %5422 = vmatprep.subr.mxu0 0.0
    %5423 = vmatpush1.msra.mxu0 0.0
    %5424 = vmatprep.subr.mxu0 0.0
    %5425 = vmatpush1.msra.mxu0 0.0
    %5426 = vmatprep.subr.mxu0 0.0
    %5427 = vmatpush1.msra.mxu0 0.0
    %5428 = vmatprep.subr.mxu0 0.0
    %5429 = vmatpush1.msra.mxu0 0.0
    %5430 = vmatprep.subr.mxu0 0.0
    %5431 = vmatpush1.msra.mxu0 0.0
    %5432 = vmatprep.subr.mxu0 0.0
    %5433 = vmatpush1.msra.mxu0 0.0
    %5434 = vmatprep.subr.mxu0 0.0
    %5435 = vmatpush1.msra.mxu0 0.0
    %5436 = vmatprep.subr.mxu0 0.0
    %5437 = vmatpush1.msra.mxu0 0.0
    %5438 = vmatprep.subr.mxu0 0.0
    %5439 = vmatpush1.msra.mxu0 0.0
    %5440 = vmatprep.subr.mxu0 0.0
    %5441 = vmatpush1.msra.mxu0 0.0
    %5442 = vmatprep.subr.mxu0 0.0
    %5443 = vmatpush1.msra.mxu0 0.0
    %5444 = vmatprep.subr.mxu0 0.0
    %5445 = vmatpush1.msra.mxu0 0.0
    %5446 = vmatprep.subr.mxu0 0.0
    %5447 = vmatpush1.msra.mxu0 0.0
    %5448 = vmatprep.subr.mxu0 0.0
    %5449 = vmatpush1.msra.mxu0 0.0
    %5450 = vmatprep.mubr.f32.mxu0 0.0
    %5451 = vmatmul.mubr.f32.gmra.mrb[0].mxu0 %v5384
    %v5452 = vpop.f32.mrb[0].mxu0
    %v5453 = vadd.f32 %v4221, %v5452
    %v5454 = vpop.f32.mrb[0].mxu0
    %5455 = vdwg.mxu0
    %s5456 = scalar_lea.vmem [#allocation20], 6
    %5457 = vst [vmem:[%s5456] sm:$0x3] %v5453
    %5458 = vmatprep.subr.mxu0 0.0
    %5459 = vmatpush1.msra.mxu0 %v4175
    %5460 = vmatprep.subr.mxu0 0.0
    %5461 = vmatpush1.msra.mxu0 %v4176
    %5462 = vmatprep.subr.mxu0 0.0
    %5463 = vmatpush1.msra.mxu0 %v4177
    %5464 = vmatprep.subr.mxu0 0.0
    %5465 = vmatpush1.msra.mxu0 %v4178
    %5466 = vmatprep.subr.mxu0 0.0
    %5467 = vmatpush1.msra.mxu0 0.0
    %5468 = vmatprep.subr.mxu0 0.0
    %5469 = vmatpush1.msra.mxu0 0.0
    %5470 = vmatprep.subr.mxu0 0.0
    %5471 = vmatpush1.msra.mxu0 0.0
    %5472 = vmatprep.subr.mxu0 0.0
    %5473 = vmatpush1.msra.mxu0 0.0
    %5474 = vmatprep.subr.mxu0 0.0
    %5475 = vmatpush1.msra.mxu0 0.0
    %5476 = vmatprep.subr.mxu0 0.0
    %5477 = vmatpush1.msra.mxu0 0.0
    %5478 = vmatprep.subr.mxu0 0.0
    %5479 = vmatpush1.msra.mxu0 0.0
    %5480 = vmatprep.subr.mxu0 0.0
    %5481 = vmatpush1.msra.mxu0 0.0
    %5482 = vmatprep.subr.mxu0 0.0
    %5483 = vmatpush1.msra.mxu0 0.0
    %5484 = vmatprep.subr.mxu0 0.0
    %5485 = vmatpush1.msra.mxu0 0.0
    %5486 = vmatprep.subr.mxu0 0.0
    %5487 = vmatpush1.msra.mxu0 0.0
    %5488 = vmatprep.subr.mxu0 0.0
    %5489 = vmatpush1.msra.mxu0 0.0
    %5490 = vmatprep.subr.mxu0 0.0
    %5491 = vmatpush1.msra.mxu0 0.0
    %5492 = vmatprep.subr.mxu0 0.0
    %5493 = vmatpush1.msra.mxu0 0.0
    %5494 = vmatprep.subr.mxu0 0.0
    %5495 = vmatpush1.msra.mxu0 0.0
    %5496 = vmatprep.subr.mxu0 0.0
    %5497 = vmatpush1.msra.mxu0 0.0
    %5498 = vmatprep.subr.mxu0 0.0
    %5499 = vmatpush1.msra.mxu0 0.0
    %5500 = vmatprep.subr.mxu0 0.0
    %5501 = vmatpush1.msra.mxu0 0.0
    %5502 = vmatprep.subr.mxu0 0.0
    %5503 = vmatpush1.msra.mxu0 0.0
    %5504 = vmatprep.subr.mxu0 0.0
    %5505 = vmatpush1.msra.mxu0 0.0
    %5506 = vmatprep.subr.mxu0 0.0
    %5507 = vmatpush1.msra.mxu0 0.0
    %5508 = vmatprep.subr.mxu0 0.0
    %5509 = vmatpush1.msra.mxu0 0.0
    %5510 = vmatprep.subr.mxu0 0.0
    %5511 = vmatpush1.msra.mxu0 0.0
    %5512 = vmatprep.subr.mxu0 0.0
    %5513 = vmatpush1.msra.mxu0 0.0
    %5514 = vmatprep.subr.mxu0 0.0
    %5515 = vmatpush1.msra.mxu0 0.0
    %5516 = vmatprep.subr.mxu0 0.0
    %5517 = vmatpush1.msra.mxu0 0.0
    %5518 = vmatprep.subr.mxu0 0.0
    %5519 = vmatpush1.msra.mxu0 0.0
    %5520 = vmatprep.subr.mxu0 0.0
    %5521 = vmatpush1.msra.mxu0 0.0
    %5522 = vmatprep.mubr.f32.mxu0 0.0
    %5523 = vmatmul.mubr.f32.gmra.mrb[0].mxu0 %v5384
    %v5524 = vpop.f32.mrb[0].mxu0
    %v5525 = vadd.f32 %v4194, %v5524
    %v5526 = vpop.f32.mrb[0].mxu0
    %5527 = vdwg.mxu0
    %5528 = vmatprep.subr.mxu0 0.0
    %5529 = vmatpush1.msra.mxu0 %v4180
    %5530 = vmatprep.subr.mxu0 0.0
    %5531 = vmatpush1.msra.mxu0 %v4181
    %5532 = vmatprep.subr.mxu0 0.0
    %5533 = vmatpush1.msra.mxu0 %v4182
    %5534 = vmatprep.subr.mxu0 0.0
    %5535 = vmatpush1.msra.mxu0 %v4183
    %5536 = vmatprep.subr.mxu0 0.0
    %5537 = vmatpush1.msra.mxu0 0.0
    %5538 = vmatprep.subr.mxu0 0.0
    %5539 = vmatpush1.msra.mxu0 0.0
    %5540 = vmatprep.subr.mxu0 0.0
    %5541 = vmatpush1.msra.mxu0 0.0
    %5542 = vmatprep.subr.mxu0 0.0
    %5543 = vmatpush1.msra.mxu0 0.0
    %5544 = vmatprep.subr.mxu0 0.0
    %5545 = vmatpush1.msra.mxu0 0.0
    %5546 = vmatprep.subr.mxu0 0.0
    %5547 = vmatpush1.msra.mxu0 0.0
    %5548 = vmatprep.subr.mxu0 0.0
    %5549 = vmatpush1.msra.mxu0 0.0
    %5550 = vmatprep.subr.mxu0 0.0
    %5551 = vmatpush1.msra.mxu0 0.0
    %5552 = vmatprep.subr.mxu0 0.0
    %5553 = vmatpush1.msra.mxu0 0.0
    %5554 = vmatprep.subr.mxu0 0.0
    %5555 = vmatpush1.msra.mxu0 0.0
    %5556 = vmatprep.subr.mxu0 0.0
    %5557 = vmatpush1.msra.mxu0 0.0
    %5558 = vmatprep.subr.mxu0 0.0
    %5559 = vmatpush1.msra.mxu0 0.0
    %5560 = vmatprep.subr.mxu0 0.0
    %5561 = vmatpush1.msra.mxu0 0.0
    %5562 = vmatprep.subr.mxu0 0.0
    %5563 = vmatpush1.msra.mxu0 0.0
    %5564 = vmatprep.subr.mxu0 0.0
    %5565 = vmatpush1.msra.mxu0 0.0
    %5566 = vmatprep.subr.mxu0 0.0
    %5567 = vmatpush1.msra.mxu0 0.0
    %5568 = vmatprep.subr.mxu0 0.0
    %5569 = vmatpush1.msra.mxu0 0.0
    %5570 = vmatprep.subr.mxu0 0.0
    %5571 = vmatpush1.msra.mxu0 0.0
    %5572 = vmatprep.subr.mxu0 0.0
    %5573 = vmatpush1.msra.mxu0 0.0
    %5574 = vmatprep.subr.mxu0 0.0
    %5575 = vmatpush1.msra.mxu0 0.0
    %5576 = vmatprep.subr.mxu0 0.0
    %5577 = vmatpush1.msra.mxu0 0.0
    %5578 = vmatprep.subr.mxu0 0.0
    %5579 = vmatpush1.msra.mxu0 0.0
    %5580 = vmatprep.subr.mxu0 0.0
    %5581 = vmatpush1.msra.mxu0 0.0
    %5582 = vmatprep.subr.mxu0 0.0
    %5583 = vmatpush1.msra.mxu0 0.0
    %5584 = vmatprep.subr.mxu0 0.0
    %5585 = vmatpush1.msra.mxu0 0.0
    %5586 = vmatprep.subr.mxu0 0.0
    %5587 = vmatpush1.msra.mxu0 0.0
    %5588 = vmatprep.subr.mxu0 0.0
    %5589 = vmatpush1.msra.mxu0 0.0
    %5590 = vmatprep.subr.mxu0 0.0
    %5591 = vmatpush1.msra.mxu0 0.0
    %5592 = vmatprep.mubr.f32.mxu0 0.0
    %5593 = vmatmul.mubr.f32.gmra.mrb[0].mxu0 %v5384
    %v5594 = vpop.f32.mrb[0].mxu0
    %v5595 = vadd.f32 %v4202, %v5594
    %v5596 = vpop.f32.mrb[0].mxu0
    %5597 = vdwg.mxu0
    %5598 = vmatprep.subr.mxu0 0.0
    %5599 = vmatpush1.msra.mxu0 %v4185
    %5600 = vmatprep.subr.mxu0 0.0
    %5601 = vmatpush1.msra.mxu0 %v4186
    %5602 = vmatprep.subr.mxu0 0.0
    %5603 = vmatpush1.msra.mxu0 %v4187
    %5604 = vmatprep.subr.mxu0 0.0
    %5605 = vmatpush1.msra.mxu0 %v4188
    %5606 = vmatprep.subr.mxu0 0.0
    %5607 = vmatpush1.msra.mxu0 0.0
    %5608 = vmatprep.subr.mxu0 0.0
    %5609 = vmatpush1.msra.mxu0 0.0
    %5610 = vmatprep.subr.mxu0 0.0
    %5611 = vmatpush1.msra.mxu0 0.0
    %5612 = vmatprep.subr.mxu0 0.0
    %5613 = vmatpush1.msra.mxu0 0.0
    %5614 = vmatprep.subr.mxu0 0.0
    %5615 = vmatpush1.msra.mxu0 0.0
    %5616 = vmatprep.subr.mxu0 0.0
    %5617 = vmatpush1.msra.mxu0 0.0
    %5618 = vmatprep.subr.mxu0 0.0
    %5619 = vmatpush1.msra.mxu0 0.0
    %5620 = vmatprep.subr.mxu0 0.0
    %5621 = vmatpush1.msra.mxu0 0.0
    %5622 = vmatprep.subr.mxu0 0.0
    %5623 = vmatpush1.msra.mxu0 0.0
    %5624 = vmatprep.subr.mxu0 0.0
    %5625 = vmatpush1.msra.mxu0 0.0
    %5626 = vmatprep.subr.mxu0 0.0
    %5627 = vmatpush1.msra.mxu0 0.0
    %5628 = vmatprep.subr.mxu0 0.0
    %5629 = vmatpush1.msra.mxu0 0.0
    %5630 = vmatprep.subr.mxu0 0.0
    %5631 = vmatpush1.msra.mxu0 0.0
    %5632 = vmatprep.subr.mxu0 0.0
    %5633 = vmatpush1.msra.mxu0 0.0
    %5634 = vmatprep.subr.mxu0 0.0
    %5635 = vmatpush1.msra.mxu0 0.0
    %5636 = vmatprep.subr.mxu0 0.0
    %5637 = vmatpush1.msra.mxu0 0.0
    %5638 = vmatprep.subr.mxu0 0.0
    %5639 = vmatpush1.msra.mxu0 0.0
    %5640 = vmatprep.subr.mxu0 0.0
    %5641 = vmatpush1.msra.mxu0 0.0
    %5642 = vmatprep.subr.mxu0 0.0
    %5643 = vmatpush1.msra.mxu0 0.0
    %5644 = vmatprep.subr.mxu0 0.0
    %5645 = vmatpush1.msra.mxu0 0.0
    %5646 = vmatprep.subr.mxu0 0.0
    %5647 = vmatpush1.msra.mxu0 0.0
    %5648 = vmatprep.subr.mxu0 0.0
    %5649 = vmatpush1.msra.mxu0 0.0
    %5650 = vmatprep.subr.mxu0 0.0
    %5651 = vmatpush1.msra.mxu0 0.0
    %5652 = vmatprep.subr.mxu0 0.0
    %5653 = vmatpush1.msra.mxu0 0.0
    %5654 = vmatprep.subr.mxu0 0.0
    %5655 = vmatpush1.msra.mxu0 0.0
    %5656 = vmatprep.subr.mxu0 0.0
    %5657 = vmatpush1.msra.mxu0 0.0
    %5658 = vmatprep.subr.mxu0 0.0
    %5659 = vmatpush1.msra.mxu0 0.0
    %5660 = vmatprep.subr.mxu0 0.0
    %5661 = vmatpush1.msra.mxu0 0.0
    %5662 = vmatprep.mubr.f32.mxu0 0.0
    %5663 = vmatmul.mubr.f32.gmra.mrb[0].mxu0 %v5384
    %v5664 = vpop.f32.mrb[0].mxu0
    %v5665 = vadd.f32 %v4210, %v5664
    %v5666 = vpop.f32.mrb[0].mxu0
    %5667 = vdwg.mxu0
    %v5668 = vld [vmem:[%s2643] sm:$0x3]
    %v5669 = vadd.f32 %v5668, %v5525
    %v5670 = vxor.u32 %v5669, 2147483648
    %v5671 = vmul.f32 %v5670, 1.442695
    %v5672 = vpow.pop %v5671
    %v5673 = vadd.f32 %v5672, 1.0
    %v5674 = vrcp.pop %v5673
    %v5675 = vmul.f32 1.0, %v5674
    %v5676 = vld [vmem:[%s2715] sm:$0x3]
    %v5677 = vadd.f32 %v5676, %v5595
    %v5678 = vxor.u32 %v5677, 2147483648
    %v5679 = vmul.f32 %v5678, 1.442695
    %v5680 = vpow.pop %v5679
    %v5681 = vadd.f32 %v5680, 1.0
    %v5682 = vrcp.pop %v5681
    %v5683 = vmul.f32 1.0, %v5682
    %v5684 = vld [vmem:[%s2787] sm:$0x3]
    %v5685 = vmul.f32 %v5675, %v5665
    %v5686 = vadd.f32 %v5684, %v5685
    %v5687 = vtanh.pop %v5686
    %v5688 = vsub.f32 1.0, %v5683
    %v5689 = vmul.f32 %v5688, %v5687
    %v5690 = vmul.f32 %v5683, %v5382
    %v5691 = vadd.f32 %v5689, %v5690
    %v5693 = vsel %vm500, %v5691, 0
    %5695 = vmatprep.subr.mxu0 0.0
    %5696 = vmatpush1.msra.mxu0 %v4212
    %5697 = vmatprep.subr.mxu0 0.0
    %5698 = vmatpush1.msra.mxu0 %v4213
    %5699 = vmatprep.subr.mxu0 0.0
    %5700 = vmatpush1.msra.mxu0 %v4214
    %5701 = vmatprep.subr.mxu0 0.0
    %5702 = vmatpush1.msra.mxu0 %v4215
    %5703 = vmatprep.subr.mxu0 0.0
    %5704 = vmatpush1.msra.mxu0 0.0
    %5705 = vmatprep.subr.mxu0 0.0
    %5706 = vmatpush1.msra.mxu0 0.0
    %5707 = vmatprep.subr.mxu0 0.0
    %5708 = vmatpush1.msra.mxu0 0.0
    %5709 = vmatprep.subr.mxu0 0.0
    %5710 = vmatpush1.msra.mxu0 0.0
    %5711 = vmatprep.subr.mxu0 0.0
    %5712 = vmatpush1.msra.mxu0 0.0
    %5713 = vmatprep.subr.mxu0 0.0
    %5714 = vmatpush1.msra.mxu0 0.0
    %5715 = vmatprep.subr.mxu0 0.0
    %5716 = vmatpush1.msra.mxu0 0.0
    %5717 = vmatprep.subr.mxu0 0.0
    %5718 = vmatpush1.msra.mxu0 0.0
    %5719 = vmatprep.subr.mxu0 0.0
    %5720 = vmatpush1.msra.mxu0 0.0
    %5721 = vmatprep.subr.mxu0 0.0
    %5722 = vmatpush1.msra.mxu0 0.0
    %5723 = vmatprep.subr.mxu0 0.0
    %5724 = vmatpush1.msra.mxu0 0.0
    %5725 = vmatprep.subr.mxu0 0.0
    %5726 = vmatpush1.msra.mxu0 0.0
    %5727 = vmatprep.subr.mxu0 0.0
    %5728 = vmatpush1.msra.mxu0 0.0
    %5729 = vmatprep.subr.mxu0 0.0
    %5730 = vmatpush1.msra.mxu0 0.0
    %5731 = vmatprep.subr.mxu0 0.0
    %5732 = vmatpush1.msra.mxu0 0.0
    %5733 = vmatprep.subr.mxu0 0.0
    %5734 = vmatpush1.msra.mxu0 0.0
    %5735 = vmatprep.subr.mxu0 0.0
    %5736 = vmatpush1.msra.mxu0 0.0
    %5737 = vmatprep.subr.mxu0 0.0
    %5738 = vmatpush1.msra.mxu0 0.0
    %5739 = vmatprep.subr.mxu0 0.0
    %5740 = vmatpush1.msra.mxu0 0.0
    %5741 = vmatprep.subr.mxu0 0.0
    %5742 = vmatpush1.msra.mxu0 0.0
    %5743 = vmatprep.subr.mxu0 0.0
    %5744 = vmatpush1.msra.mxu0 0.0
    %5745 = vmatprep.subr.mxu0 0.0
    %5746 = vmatpush1.msra.mxu0 0.0
    %5747 = vmatprep.subr.mxu0 0.0
    %5748 = vmatpush1.msra.mxu0 0.0
    %5749 = vmatprep.subr.mxu0 0.0
    %5750 = vmatpush1.msra.mxu0 0.0
    %5751 = vmatprep.subr.mxu0 0.0
    %5752 = vmatpush1.msra.mxu0 0.0
    %5753 = vmatprep.subr.mxu0 0.0
    %5754 = vmatpush1.msra.mxu0 0.0
    %5755 = vmatprep.subr.mxu0 0.0
    %5756 = vmatpush1.msra.mxu0 0.0
    %5757 = vmatprep.subr.mxu0 0.0
    %5758 = vmatpush1.msra.mxu0 0.0
    %5759 = vmatprep.mubr.f32.mxu0 0.0
    %5760 = vmatmul.mubr.f32.gmra.mrb[0].mxu0 %v5693
    %v5761 = vpop.f32.mrb[0].mxu0
    %v5762 = vadd.f32 %v4221, %v5761
    %v5763 = vpop.f32.mrb[0].mxu0
    %5764 = vdwg.mxu0
    %s5765 = scalar_lea.vmem [#allocation20], 8
    %5766 = vst [vmem:[%s5765] sm:$0x3] %v5762
    %5767 = vmatprep.subr.mxu0 0.0
    %5768 = vmatpush1.msra.mxu0 %v4175
    %5769 = vmatprep.subr.mxu0 0.0
    %5770 = vmatpush1.msra.mxu0 %v4176
    %5771 = vmatprep.subr.mxu0 0.0
    %5772 = vmatpush1.msra.mxu0 %v4177
    %5773 = vmatprep.subr.mxu0 0.0
    %5774 = vmatpush1.msra.mxu0 %v4178
    %5775 = vmatprep.subr.mxu0 0.0
    %5776 = vmatpush1.msra.mxu0 0.0
    %5777 = vmatprep.subr.mxu0 0.0
    %5778 = vmatpush1.msra.mxu0 0.0
    %5779 = vmatprep.subr.mxu0 0.0
    %5780 = vmatpush1.msra.mxu0 0.0
    %5781 = vmatprep.subr.mxu0 0.0
    %5782 = vmatpush1.msra.mxu0 0.0
    %5783 = vmatprep.subr.mxu0 0.0
    %5784 = vmatpush1.msra.mxu0 0.0
    %5785 = vmatprep.subr.mxu0 0.0
    %5786 = vmatpush1.msra.mxu0 0.0
    %5787 = vmatprep.subr.mxu0 0.0
    %5788 = vmatpush1.msra.mxu0 0.0
    %5789 = vmatprep.subr.mxu0 0.0
    %5790 = vmatpush1.msra.mxu0 0.0
    %5791 = vmatprep.subr.mxu0 0.0
    %5792 = vmatpush1.msra.mxu0 0.0
    %5793 = vmatprep.subr.mxu0 0.0
    %5794 = vmatpush1.msra.mxu0 0.0
    %5795 = vmatprep.subr.mxu0 0.0
    %5796 = vmatpush1.msra.mxu0 0.0
    %5797 = vmatprep.subr.mxu0 0.0
    %5798 = vmatpush1.msra.mxu0 0.0
    %5799 = vmatprep.subr.mxu0 0.0
    %5800 = vmatpush1.msra.mxu0 0.0
    %5801 = vmatprep.subr.mxu0 0.0
    %5802 = vmatpush1.msra.mxu0 0.0
    %5803 = vmatprep.subr.mxu0 0.0
    %5804 = vmatpush1.msra.mxu0 0.0
    %5805 = vmatprep.subr.mxu0 0.0
    %5806 = vmatpush1.msra.mxu0 0.0
    %5807 = vmatprep.subr.mxu0 0.0
    %5808 = vmatpush1.msra.mxu0 0.0
    %5809 = vmatprep.subr.mxu0 0.0
    %5810 = vmatpush1.msra.mxu0 0.0
    %5811 = vmatprep.subr.mxu0 0.0
    %5812 = vmatpush1.msra.mxu0 0.0
    %5813 = vmatprep.subr.mxu0 0.0
    %5814 = vmatpush1.msra.mxu0 0.0
    %5815 = vmatprep.subr.mxu0 0.0
    %5816 = vmatpush1.msra.mxu0 0.0
    %5817 = vmatprep.subr.mxu0 0.0
    %5818 = vmatpush1.msra.mxu0 0.0
    %5819 = vmatprep.subr.mxu0 0.0
    %5820 = vmatpush1.msra.mxu0 0.0
    %5821 = vmatprep.subr.mxu0 0.0
    %5822 = vmatpush1.msra.mxu0 0.0
    %5823 = vmatprep.subr.mxu0 0.0
    %5824 = vmatpush1.msra.mxu0 0.0
    %5825 = vmatprep.subr.mxu0 0.0
    %5826 = vmatpush1.msra.mxu0 0.0
    %5827 = vmatprep.subr.mxu0 0.0
    %5828 = vmatpush1.msra.mxu0 0.0
    %5829 = vmatprep.subr.mxu0 0.0
    %5830 = vmatpush1.msra.mxu0 0.0
    %5831 = vmatprep.mubr.f32.mxu0 0.0
    %5832 = vmatmul.mubr.f32.gmra.mrb[0].mxu0 %v5693
    %v5833 = vpop.f32.mrb[0].mxu0
    %v5834 = vadd.f32 %v4194, %v5833
    %v5835 = vpop.f32.mrb[0].mxu0
    %5836 = vdwg.mxu0
    %5837 = vmatprep.subr.mxu0 0.0
    %5838 = vmatpush1.msra.mxu0 %v4180
    %5839 = vmatprep.subr.mxu0 0.0
    %5840 = vmatpush1.msra.mxu0 %v4181
    %5841 = vmatprep.subr.mxu0 0.0
    %5842 = vmatpush1.msra.mxu0 %v4182
    %5843 = vmatprep.subr.mxu0 0.0
    %5844 = vmatpush1.msra.mxu0 %v4183
    %5845 = vmatprep.subr.mxu0 0.0
    %5846 = vmatpush1.msra.mxu0 0.0
    %5847 = vmatprep.subr.mxu0 0.0
    %5848 = vmatpush1.msra.mxu0 0.0
    %5849 = vmatprep.subr.mxu0 0.0
    %5850 = vmatpush1.msra.mxu0 0.0
    %5851 = vmatprep.subr.mxu0 0.0
    %5852 = vmatpush1.msra.mxu0 0.0
    %5853 = vmatprep.subr.mxu0 0.0
    %5854 = vmatpush1.msra.mxu0 0.0
    %5855 = vmatprep.subr.mxu0 0.0
    %5856 = vmatpush1.msra.mxu0 0.0
    %5857 = vmatprep.subr.mxu0 0.0
    %5858 = vmatpush1.msra.mxu0 0.0
    %5859 = vmatprep.subr.mxu0 0.0
    %5860 = vmatpush1.msra.mxu0 0.0
    %5861 = vmatprep.subr.mxu0 0.0
    %5862 = vmatpush1.msra.mxu0 0.0
    %5863 = vmatprep.subr.mxu0 0.0
    %5864 = vmatpush1.msra.mxu0 0.0
    %5865 = vmatprep.subr.mxu0 0.0
    %5866 = vmatpush1.msra.mxu0 0.0
    %5867 = vmatprep.subr.mxu0 0.0
    %5868 = vmatpush1.msra.mxu0 0.0
    %5869 = vmatprep.subr.mxu0 0.0
    %5870 = vmatpush1.msra.mxu0 0.0
    %5871 = vmatprep.subr.mxu0 0.0
    %5872 = vmatpush1.msra.mxu0 0.0
    %5873 = vmatprep.subr.mxu0 0.0
    %5874 = vmatpush1.msra.mxu0 0.0
    %5875 = vmatprep.subr.mxu0 0.0
    %5876 = vmatpush1.msra.mxu0 0.0
    %5877 = vmatprep.subr.mxu0 0.0
    %5878 = vmatpush1.msra.mxu0 0.0
    %5879 = vmatprep.subr.mxu0 0.0
    %5880 = vmatpush1.msra.mxu0 0.0
    %5881 = vmatprep.subr.mxu0 0.0
    %5882 = vmatpush1.msra.mxu0 0.0
    %5883 = vmatprep.subr.mxu0 0.0
    %5884 = vmatpush1.msra.mxu0 0.0
    %5885 = vmatprep.subr.mxu0 0.0
    %5886 = vmatpush1.msra.mxu0 0.0
    %5887 = vmatprep.subr.mxu0 0.0
    %5888 = vmatpush1.msra.mxu0 0.0
    %5889 = vmatprep.subr.mxu0 0.0
    %5890 = vmatpush1.msra.mxu0 0.0
    %5891 = vmatprep.subr.mxu0 0.0
    %5892 = vmatpush1.msra.mxu0 0.0
    %5893 = vmatprep.subr.mxu0 0.0
    %5894 = vmatpush1.msra.mxu0 0.0
    %5895 = vmatprep.subr.mxu0 0.0
    %5896 = vmatpush1.msra.mxu0 0.0
    %5897 = vmatprep.subr.mxu0 0.0
    %5898 = vmatpush1.msra.mxu0 0.0
    %5899 = vmatprep.subr.mxu0 0.0
    %5900 = vmatpush1.msra.mxu0 0.0
    %5901 = vmatprep.mubr.f32.mxu0 0.0
    %5902 = vmatmul.mubr.f32.gmra.mrb[0].mxu0 %v5693
    %v5903 = vpop.f32.mrb[0].mxu0
    %v5904 = vadd.f32 %v4202, %v5903
    %v5905 = vpop.f32.mrb[0].mxu0
    %5906 = vdwg.mxu0
    %5907 = vmatprep.subr.mxu0 0.0
    %5908 = vmatpush1.msra.mxu0 %v4185
    %5909 = vmatprep.subr.mxu0 0.0
    %5910 = vmatpush1.msra.mxu0 %v4186
    %5911 = vmatprep.subr.mxu0 0.0
    %5912 = vmatpush1.msra.mxu0 %v4187
    %5913 = vmatprep.subr.mxu0 0.0
    %5914 = vmatpush1.msra.mxu0 %v4188
    %5915 = vmatprep.subr.mxu0 0.0
    %5916 = vmatpush1.msra.mxu0 0.0
    %5917 = vmatprep.subr.mxu0 0.0
    %5918 = vmatpush1.msra.mxu0 0.0
    %5919 = vmatprep.subr.mxu0 0.0
    %5920 = vmatpush1.msra.mxu0 0.0
    %5921 = vmatprep.subr.mxu0 0.0
    %5922 = vmatpush1.msra.mxu0 0.0
    %5923 = vmatprep.subr.mxu0 0.0
    %5924 = vmatpush1.msra.mxu0 0.0
    %5925 = vmatprep.subr.mxu0 0.0
    %5926 = vmatpush1.msra.mxu0 0.0
    %5927 = vmatprep.subr.mxu0 0.0
    %5928 = vmatpush1.msra.mxu0 0.0
    %5929 = vmatprep.subr.mxu0 0.0
    %5930 = vmatpush1.msra.mxu0 0.0
    %5931 = vmatprep.subr.mxu0 0.0
    %5932 = vmatpush1.msra.mxu0 0.0
    %5933 = vmatprep.subr.mxu0 0.0
    %5934 = vmatpush1.msra.mxu0 0.0
    %5935 = vmatprep.subr.mxu0 0.0
    %5936 = vmatpush1.msra.mxu0 0.0
    %5937 = vmatprep.subr.mxu0 0.0
    %5938 = vmatpush1.msra.mxu0 0.0
    %5939 = vmatprep.subr.mxu0 0.0
    %5940 = vmatpush1.msra.mxu0 0.0
    %5941 = vmatprep.subr.mxu0 0.0
    %5942 = vmatpush1.msra.mxu0 0.0
    %5943 = vmatprep.subr.mxu0 0.0
    %5944 = vmatpush1.msra.mxu0 0.0
    %5945 = vmatprep.subr.mxu0 0.0
    %5946 = vmatpush1.msra.mxu0 0.0
    %5947 = vmatprep.subr.mxu0 0.0
    %5948 = vmatpush1.msra.mxu0 0.0
    %5949 = vmatprep.subr.mxu0 0.0
    %5950 = vmatpush1.msra.mxu0 0.0
    %5951 = vmatprep.subr.mxu0 0.0
    %5952 = vmatpush1.msra.mxu0 0.0
    %5953 = vmatprep.subr.mxu0 0.0
    %5954 = vmatpush1.msra.mxu0 0.0
    %5955 = vmatprep.subr.mxu0 0.0
    %5956 = vmatpush1.msra.mxu0 0.0
    %5957 = vmatprep.subr.mxu0 0.0
    %5958 = vmatpush1.msra.mxu0 0.0
    %5959 = vmatprep.subr.mxu0 0.0
    %5960 = vmatpush1.msra.mxu0 0.0
    %5961 = vmatprep.subr.mxu0 0.0
    %5962 = vmatpush1.msra.mxu0 0.0
    %5963 = vmatprep.subr.mxu0 0.0
    %5964 = vmatpush1.msra.mxu0 0.0
    %5965 = vmatprep.subr.mxu0 0.0
    %5966 = vmatpush1.msra.mxu0 0.0
    %5967 = vmatprep.subr.mxu0 0.0
    %5968 = vmatpush1.msra.mxu0 0.0
    %5969 = vmatprep.subr.mxu0 0.0
    %5970 = vmatpush1.msra.mxu0 0.0
    %5971 = vmatprep.mubr.f32.mxu0 0.0
    %5972 = vmatmul.mubr.f32.gmra.mrb[0].mxu0 %v5693
    %v5973 = vpop.f32.mrb[0].mxu0
    %v5974 = vadd.f32 %v4210, %v5973
    %v5975 = vpop.f32.mrb[0].mxu0
    %5976 = vdwg.mxu0
    %v5977 = vld [vmem:[%s3105] sm:$0x3]
    %v5978 = vadd.f32 %v5977, %v5834
    %v5979 = vxor.u32 %v5978, 2147483648
    %v5980 = vmul.f32 %v5979, 1.442695
    %v5981 = vpow.pop %v5980
    %v5982 = vadd.f32 %v5981, 1.0
    %v5983 = vrcp.pop %v5982
    %v5984 = vmul.f32 1.0, %v5983
    %v5985 = vld [vmem:[%s3177] sm:$0x3]
    %v5986 = vadd.f32 %v5985, %v5904
    %v5987 = vxor.u32 %v5986, 2147483648
    %v5988 = vmul.f32 %v5987, 1.442695
    %v5989 = vpow.pop %v5988
    %v5990 = vadd.f32 %v5989, 1.0
    %v5991 = vrcp.pop %v5990
    %v5992 = vmul.f32 1.0, %v5991
    %v5993 = vld [vmem:[%s3249] sm:$0x3]
    %v5994 = vmul.f32 %v5984, %v5974
    %v5995 = vadd.f32 %v5993, %v5994
    %v5996 = vtanh.pop %v5995
    %v5997 = vsub.f32 1.0, %v5992
    %v5998 = vmul.f32 %v5997, %v5996
    %v5999 = vmul.f32 %v5992, %v5691
    %v6000 = vadd.f32 %v5998, %v5999
    %v6002 = vsel %vm500, %v6000, 0
    %6004 = vmatprep.subr.mxu0 0.0
    %6005 = vmatpush1.msra.mxu0 %v4212
    %6006 = vmatprep.subr.mxu0 0.0
    %6007 = vmatpush1.msra.mxu0 %v4213
    %6008 = vmatprep.subr.mxu0 0.0
    %6009 = vmatpush1.msra.mxu0 %v4214
    %6010 = vmatprep.subr.mxu0 0.0
    %6011 = vmatpush1.msra.mxu0 %v4215
    %6012 = vmatprep.subr.mxu0 0.0
    %6013 = vmatpush1.msra.mxu0 0.0
    %6014 = vmatprep.subr.mxu0 0.0
    %6015 = vmatpush1.msra.mxu0 0.0
    %6016 = vmatprep.subr.mxu0 0.0
    %6017 = vmatpush1.msra.mxu0 0.0
    %6018 = vmatprep.subr.mxu0 0.0
    %6019 = vmatpush1.msra.mxu0 0.0
    %6020 = vmatprep.subr.mxu0 0.0
    %6021 = vmatpush1.msra.mxu0 0.0
    %6022 = vmatprep.subr.mxu0 0.0
    %6023 = vmatpush1.msra.mxu0 0.0
    %6024 = vmatprep.subr.mxu0 0.0
    %6025 = vmatpush1.msra.mxu0 0.0
    %6026 = vmatprep.subr.mxu0 0.0
    %6027 = vmatpush1.msra.mxu0 0.0
    %6028 = vmatprep.subr.mxu0 0.0
    %6029 = vmatpush1.msra.mxu0 0.0
    %6030 = vmatprep.subr.mxu0 0.0
    %6031 = vmatpush1.msra.mxu0 0.0
    %6032 = vmatprep.subr.mxu0 0.0
    %6033 = vmatpush1.msra.mxu0 0.0
    %6034 = vmatprep.subr.mxu0 0.0
    %6035 = vmatpush1.msra.mxu0 0.0
    %6036 = vmatprep.subr.mxu0 0.0
    %6037 = vmatpush1.msra.mxu0 0.0
    %6038 = vmatprep.subr.mxu0 0.0
    %6039 = vmatpush1.msra.mxu0 0.0
    %6040 = vmatprep.subr.mxu0 0.0
    %6041 = vmatpush1.msra.mxu0 0.0
    %6042 = vmatprep.subr.mxu0 0.0
    %6043 = vmatpush1.msra.mxu0 0.0
    %6044 = vmatprep.subr.mxu0 0.0
    %6045 = vmatpush1.msra.mxu0 0.0
    %6046 = vmatprep.subr.mxu0 0.0
    %6047 = vmatpush1.msra.mxu0 0.0
    %6048 = vmatprep.subr.mxu0 0.0
    %6049 = vmatpush1.msra.mxu0 0.0
    %6050 = vmatprep.subr.mxu0 0.0
    %6051 = vmatpush1.msra.mxu0 0.0
    %6052 = vmatprep.subr.mxu0 0.0
    %6053 = vmatpush1.msra.mxu0 0.0
    %6054 = vmatprep.subr.mxu0 0.0
    %6055 = vmatpush1.msra.mxu0 0.0
    %6056 = vmatprep.subr.mxu0 0.0
    %6057 = vmatpush1.msra.mxu0 0.0
    %6058 = vmatprep.subr.mxu0 0.0
    %6059 = vmatpush1.msra.mxu0 0.0
    %6060 = vmatprep.subr.mxu0 0.0
    %6061 = vmatpush1.msra.mxu0 0.0
    %6062 = vmatprep.subr.mxu0 0.0
    %6063 = vmatpush1.msra.mxu0 0.0
    %6064 = vmatprep.subr.mxu0 0.0
    %6065 = vmatpush1.msra.mxu0 0.0
    %6066 = vmatprep.subr.mxu0 0.0
    %6067 = vmatpush1.msra.mxu0 0.0
    %6068 = vmatprep.mubr.f32.mxu0 0.0
    %6069 = vmatmul.mubr.f32.gmra.mrb[0].mxu0 %v6002
    %v6070 = vpop.f32.mrb[0].mxu0
    %v6071 = vadd.f32 %v4221, %v6070
    %v6072 = vpop.f32.mrb[0].mxu0
    %6073 = vdwg.mxu0
    %s6074 = scalar_lea.vmem [#allocation20], 10
    %6075 = vst [vmem:[%s6074] sm:$0x3] %v6071
    %6076 = vmatprep.subr.mxu0 0.0
    %6077 = vmatpush1.msra.mxu0 %v4175
    %6078 = vmatprep.subr.mxu0 0.0
    %6079 = vmatpush1.msra.mxu0 %v4176
    %6080 = vmatprep.subr.mxu0 0.0
    %6081 = vmatpush1.msra.mxu0 %v4177
    %6082 = vmatprep.subr.mxu0 0.0
    %6083 = vmatpush1.msra.mxu0 %v4178
    %6084 = vmatprep.subr.mxu0 0.0
    %6085 = vmatpush1.msra.mxu0 0.0
    %6086 = vmatprep.subr.mxu0 0.0
    %6087 = vmatpush1.msra.mxu0 0.0
    %6088 = vmatprep.subr.mxu0 0.0
    %6089 = vmatpush1.msra.mxu0 0.0
    %6090 = vmatprep.subr.mxu0 0.0
    %6091 = vmatpush1.msra.mxu0 0.0
    %6092 = vmatprep.subr.mxu0 0.0
    %6093 = vmatpush1.msra.mxu0 0.0
    %6094 = vmatprep.subr.mxu0 0.0
    %6095 = vmatpush1.msra.mxu0 0.0
    %6096 = vmatprep.subr.mxu0 0.0
    %6097 = vmatpush1.msra.mxu0 0.0
    %6098 = vmatprep.subr.mxu0 0.0
    %6099 = vmatpush1.msra.mxu0 0.0
    %6100 = vmatprep.subr.mxu0 0.0
    %6101 = vmatpush1.msra.mxu0 0.0
    %6102 = vmatprep.subr.mxu0 0.0
    %6103 = vmatpush1.msra.mxu0 0.0
    %6104 = vmatprep.subr.mxu0 0.0
    %6105 = vmatpush1.msra.mxu0 0.0
    %6106 = vmatprep.subr.mxu0 0.0
    %6107 = vmatpush1.msra.mxu0 0.0
    %6108 = vmatprep.subr.mxu0 0.0
    %6109 = vmatpush1.msra.mxu0 0.0
    %6110 = vmatprep.subr.mxu0 0.0
    %6111 = vmatpush1.msra.mxu0 0.0
    %6112 = vmatprep.subr.mxu0 0.0
    %6113 = vmatpush1.msra.mxu0 0.0
    %6114 = vmatprep.subr.mxu0 0.0
    %6115 = vmatpush1.msra.mxu0 0.0
    %6116 = vmatprep.subr.mxu0 0.0
    %6117 = vmatpush1.msra.mxu0 0.0
    %6118 = vmatprep.subr.mxu0 0.0
    %6119 = vmatpush1.msra.mxu0 0.0
    %6120 = vmatprep.subr.mxu0 0.0
    %6121 = vmatpush1.msra.mxu0 0.0
    %6122 = vmatprep.subr.mxu0 0.0
    %6123 = vmatpush1.msra.mxu0 0.0
    %6124 = vmatprep.subr.mxu0 0.0
    %6125 = vmatpush1.msra.mxu0 0.0
    %6126 = vmatprep.subr.mxu0 0.0
    %6127 = vmatpush1.msra.mxu0 0.0
    %6128 = vmatprep.subr.mxu0 0.0
    %6129 = vmatpush1.msra.mxu0 0.0
    %6130 = vmatprep.subr.mxu0 0.0
    %6131 = vmatpush1.msra.mxu0 0.0
    %6132 = vmatprep.subr.mxu0 0.0
    %6133 = vmatpush1.msra.mxu0 0.0
    %6134 = vmatprep.subr.mxu0 0.0
    %6135 = vmatpush1.msra.mxu0 0.0
    %6136 = vmatprep.subr.mxu0 0.0
    %6137 = vmatpush1.msra.mxu0 0.0
    %6138 = vmatprep.subr.mxu0 0.0
    %6139 = vmatpush1.msra.mxu0 0.0
    %6140 = vmatprep.mubr.f32.mxu0 0.0
    %6141 = vmatmul.mubr.f32.gmra.mrb[0].mxu0 %v6002
    %v6142 = vpop.f32.mrb[0].mxu0
    %v6143 = vadd.f32 %v4194, %v6142
    %v6144 = vpop.f32.mrb[0].mxu0
    %6145 = vdwg.mxu0
    %6146 = vmatprep.subr.mxu0 0.0
    %6147 = vmatpush1.msra.mxu0 %v4180
    %6148 = vmatprep.subr.mxu0 0.0
    %6149 = vmatpush1.msra.mxu0 %v4181
    %6150 = vmatprep.subr.mxu0 0.0
    %6151 = vmatpush1.msra.mxu0 %v4182
    %6152 = vmatprep.subr.mxu0 0.0
    %6153 = vmatpush1.msra.mxu0 %v4183
    %6154 = vmatprep.subr.mxu0 0.0
    %6155 = vmatpush1.msra.mxu0 0.0
    %6156 = vmatprep.subr.mxu0 0.0
    %6157 = vmatpush1.msra.mxu0 0.0
    %6158 = vmatprep.subr.mxu0 0.0
    %6159 = vmatpush1.msra.mxu0 0.0
    %6160 = vmatprep.subr.mxu0 0.0
    %6161 = vmatpush1.msra.mxu0 0.0
    %6162 = vmatprep.subr.mxu0 0.0
    %6163 = vmatpush1.msra.mxu0 0.0
    %6164 = vmatprep.subr.mxu0 0.0
    %6165 = vmatpush1.msra.mxu0 0.0
    %6166 = vmatprep.subr.mxu0 0.0
    %6167 = vmatpush1.msra.mxu0 0.0
    %6168 = vmatprep.subr.mxu0 0.0
    %6169 = vmatpush1.msra.mxu0 0.0
    %6170 = vmatprep.subr.mxu0 0.0
    %6171 = vmatpush1.msra.mxu0 0.0
    %6172 = vmatprep.subr.mxu0 0.0
    %6173 = vmatpush1.msra.mxu0 0.0
    %6174 = vmatprep.subr.mxu0 0.0
    %6175 = vmatpush1.msra.mxu0 0.0
    %6176 = vmatprep.subr.mxu0 0.0
    %6177 = vmatpush1.msra.mxu0 0.0
    %6178 = vmatprep.subr.mxu0 0.0
    %6179 = vmatpush1.msra.mxu0 0.0
    %6180 = vmatprep.subr.mxu0 0.0
    %6181 = vmatpush1.msra.mxu0 0.0
    %6182 = vmatprep.subr.mxu0 0.0
    %6183 = vmatpush1.msra.mxu0 0.0
    %6184 = vmatprep.subr.mxu0 0.0
    %6185 = vmatpush1.msra.mxu0 0.0
    %6186 = vmatprep.subr.mxu0 0.0
    %6187 = vmatpush1.msra.mxu0 0.0
    %6188 = vmatprep.subr.mxu0 0.0
    %6189 = vmatpush1.msra.mxu0 0.0
    %6190 = vmatprep.subr.mxu0 0.0
    %6191 = vmatpush1.msra.mxu0 0.0
    %6192 = vmatprep.subr.mxu0 0.0
    %6193 = vmatpush1.msra.mxu0 0.0
    %6194 = vmatprep.subr.mxu0 0.0
    %6195 = vmatpush1.msra.mxu0 0.0
    %6196 = vmatprep.subr.mxu0 0.0
    %6197 = vmatpush1.msra.mxu0 0.0
    %6198 = vmatprep.subr.mxu0 0.0
    %6199 = vmatpush1.msra.mxu0 0.0
    %6200 = vmatprep.subr.mxu0 0.0
    %6201 = vmatpush1.msra.mxu0 0.0
    %6202 = vmatprep.subr.mxu0 0.0
    %6203 = vmatpush1.msra.mxu0 0.0
    %6204 = vmatprep.subr.mxu0 0.0
    %6205 = vmatpush1.msra.mxu0 0.0
    %6206 = vmatprep.subr.mxu0 0.0
    %6207 = vmatpush1.msra.mxu0 0.0
    %6208 = vmatprep.subr.mxu0 0.0
    %6209 = vmatpush1.msra.mxu0 0.0
    %6210 = vmatprep.mubr.f32.mxu0 0.0
    %6211 = vmatmul.mubr.f32.gmra.mrb[0].mxu0 %v6002
    %v6212 = vpop.f32.mrb[0].mxu0
    %v6213 = vadd.f32 %v4202, %v6212
    %v6214 = vpop.f32.mrb[0].mxu0
    %6215 = vdwg.mxu0
    %6216 = vmatprep.subr.mxu0 0.0
    %6217 = vmatpush1.msra.mxu0 %v4185
    %6218 = vmatprep.subr.mxu0 0.0
    %6219 = vmatpush1.msra.mxu0 %v4186
    %6220 = vmatprep.subr.mxu0 0.0
    %6221 = vmatpush1.msra.mxu0 %v4187
    %6222 = vmatprep.subr.mxu0 0.0
    %6223 = vmatpush1.msra.mxu0 %v4188
    %6224 = vmatprep.subr.mxu0 0.0
    %6225 = vmatpush1.msra.mxu0 0.0
    %6226 = vmatprep.subr.mxu0 0.0
    %6227 = vmatpush1.msra.mxu0 0.0
    %6228 = vmatprep.subr.mxu0 0.0
    %6229 = vmatpush1.msra.mxu0 0.0
    %6230 = vmatprep.subr.mxu0 0.0
    %6231 = vmatpush1.msra.mxu0 0.0
    %6232 = vmatprep.subr.mxu0 0.0
    %6233 = vmatpush1.msra.mxu0 0.0
    %6234 = vmatprep.subr.mxu0 0.0
    %6235 = vmatpush1.msra.mxu0 0.0
    %6236 = vmatprep.subr.mxu0 0.0
    %6237 = vmatpush1.msra.mxu0 0.0
    %6238 = vmatprep.subr.mxu0 0.0
    %6239 = vmatpush1.msra.mxu0 0.0
    %6240 = vmatprep.subr.mxu0 0.0
    %6241 = vmatpush1.msra.mxu0 0.0
    %6242 = vmatprep.subr.mxu0 0.0
    %6243 = vmatpush1.msra.mxu0 0.0
    %6244 = vmatprep.subr.mxu0 0.0
    %6245 = vmatpush1.msra.mxu0 0.0
    %6246 = vmatprep.subr.mxu0 0.0
    %6247 = vmatpush1.msra.mxu0 0.0
    %6248 = vmatprep.subr.mxu0 0.0
    %6249 = vmatpush1.msra.mxu0 0.0
    %6250 = vmatprep.subr.mxu0 0.0
    %6251 = vmatpush1.msra.mxu0 0.0
    %6252 = vmatprep.subr.mxu0 0.0
    %6253 = vmatpush1.msra.mxu0 0.0
    %6254 = vmatprep.subr.mxu0 0.0
    %6255 = vmatpush1.msra.mxu0 0.0
    %6256 = vmatprep.subr.mxu0 0.0
    %6257 = vmatpush1.msra.mxu0 0.0
    %6258 = vmatprep.subr.mxu0 0.0
    %6259 = vmatpush1.msra.mxu0 0.0
    %6260 = vmatprep.subr.mxu0 0.0
    %6261 = vmatpush1.msra.mxu0 0.0
    %6262 = vmatprep.subr.mxu0 0.0
    %6263 = vmatpush1.msra.mxu0 0.0
    %6264 = vmatprep.subr.mxu0 0.0
    %6265 = vmatpush1.msra.mxu0 0.0
    %6266 = vmatprep.subr.mxu0 0.0
    %6267 = vmatpush1.msra.mxu0 0.0
    %6268 = vmatprep.subr.mxu0 0.0
    %6269 = vmatpush1.msra.mxu0 0.0
    %6270 = vmatprep.subr.mxu0 0.0
    %6271 = vmatpush1.msra.mxu0 0.0
    %6272 = vmatprep.subr.mxu0 0.0
    %6273 = vmatpush1.msra.mxu0 0.0
    %6274 = vmatprep.subr.mxu0 0.0
    %6275 = vmatpush1.msra.mxu0 0.0
    %6276 = vmatprep.subr.mxu0 0.0
    %6277 = vmatpush1.msra.mxu0 0.0
    %6278 = vmatprep.subr.mxu0 0.0
    %6279 = vmatpush1.msra.mxu0 0.0
    %6280 = vmatprep.mubr.f32.mxu0 0.0
    %6281 = vmatmul.mubr.f32.gmra.mrb[0].mxu0 %v6002
    %v6282 = vpop.f32.mrb[0].mxu0
    %v6283 = vadd.f32 %v4210, %v6282
    %v6284 = vpop.f32.mrb[0].mxu0
    %6285 = vdwg.mxu0
    %v6286 = vld [vmem:[%s3567] sm:$0x3]
    %v6287 = vadd.f32 %v6286, %v6143
    %v6288 = vxor.u32 %v6287, 2147483648
    %v6289 = vmul.f32 %v6288, 1.442695
    %v6290 = vpow.pop %v6289
    %v6291 = vadd.f32 %v6290, 1.0
    %v6292 = vrcp.pop %v6291
    %v6293 = vmul.f32 1.0, %v6292
    %v6294 = vld [vmem:[%s3639] sm:$0x3]
    %v6295 = vadd.f32 %v6294, %v6213
    %v6296 = vxor.u32 %v6295, 2147483648
    %v6297 = vmul.f32 %v6296, 1.442695
    %v6298 = vpow.pop %v6297
    %v6299 = vadd.f32 %v6298, 1.0
    %v6300 = vrcp.pop %v6299
    %v6301 = vmul.f32 1.0, %v6300
    %v6302 = vld [vmem:[%s3711] sm:$0x3]
    %v6303 = vmul.f32 %v6293, %v6283
    %v6304 = vadd.f32 %v6302, %v6303
    %v6305 = vtanh.pop %v6304
    %v6306 = vsub.f32 1.0, %v6301
    %v6307 = vmul.f32 %v6306, %v6305
    %v6308 = vmul.f32 %v6301, %v6000
    %v6309 = vadd.f32 %v6307, %v6308
    %v6311 = vsel %vm500, %v6309, 0
    %6313 = vmatprep.subr.mxu0 0.0
    %6314 = vmatpush1.msra.mxu0 %v4212
    %6315 = vmatprep.subr.mxu0 0.0
    %6316 = vmatpush1.msra.mxu0 %v4213
    %6317 = vmatprep.subr.mxu0 0.0
    %6318 = vmatpush1.msra.mxu0 %v4214
    %6319 = vmatprep.subr.mxu0 0.0
    %6320 = vmatpush1.msra.mxu0 %v4215
    %6321 = vmatprep.subr.mxu0 0.0
    %6322 = vmatpush1.msra.mxu0 0.0
    %6323 = vmatprep.subr.mxu0 0.0
    %6324 = vmatpush1.msra.mxu0 0.0
    %6325 = vmatprep.subr.mxu0 0.0
    %6326 = vmatpush1.msra.mxu0 0.0
    %6327 = vmatprep.subr.mxu0 0.0
    %6328 = vmatpush1.msra.mxu0 0.0
    %6329 = vmatprep.subr.mxu0 0.0
    %6330 = vmatpush1.msra.mxu0 0.0
    %6331 = vmatprep.subr.mxu0 0.0
    %6332 = vmatpush1.msra.mxu0 0.0
    %6333 = vmatprep.subr.mxu0 0.0
    %6334 = vmatpush1.msra.mxu0 0.0
    %6335 = vmatprep.subr.mxu0 0.0
    %6336 = vmatpush1.msra.mxu0 0.0
    %6337 = vmatprep.subr.mxu0 0.0
    %6338 = vmatpush1.msra.mxu0 0.0
    %6339 = vmatprep.subr.mxu0 0.0
    %6340 = vmatpush1.msra.mxu0 0.0
    %6341 = vmatprep.subr.mxu0 0.0
    %6342 = vmatpush1.msra.mxu0 0.0
    %6343 = vmatprep.subr.mxu0 0.0
    %6344 = vmatpush1.msra.mxu0 0.0
    %6345 = vmatprep.subr.mxu0 0.0
    %6346 = vmatpush1.msra.mxu0 0.0
    %6347 = vmatprep.subr.mxu0 0.0
    %6348 = vmatpush1.msra.mxu0 0.0
    %6349 = vmatprep.subr.mxu0 0.0
    %6350 = vmatpush1.msra.mxu0 0.0
    %6351 = vmatprep.subr.mxu0 0.0
    %6352 = vmatpush1.msra.mxu0 0.0
    %6353 = vmatprep.subr.mxu0 0.0
    %6354 = vmatpush1.msra.mxu0 0.0
    %6355 = vmatprep.subr.mxu0 0.0
    %6356 = vmatpush1.msra.mxu0 0.0
    %6357 = vmatprep.subr.mxu0 0.0
    %6358 = vmatpush1.msra.mxu0 0.0
    %6359 = vmatprep.subr.mxu0 0.0
    %6360 = vmatpush1.msra.mxu0 0.0
    %6361 = vmatprep.subr.mxu0 0.0
    %6362 = vmatpush1.msra.mxu0 0.0
    %6363 = vmatprep.subr.mxu0 0.0
    %6364 = vmatpush1.msra.mxu0 0.0
    %6365 = vmatprep.subr.mxu0 0.0
    %6366 = vmatpush1.msra.mxu0 0.0
    %6367 = vmatprep.subr.mxu0 0.0
    %6368 = vmatpush1.msra.mxu0 0.0
    %6369 = vmatprep.subr.mxu0 0.0
    %6370 = vmatpush1.msra.mxu0 0.0
    %6371 = vmatprep.subr.mxu0 0.0
    %6372 = vmatpush1.msra.mxu0 0.0
    %6373 = vmatprep.subr.mxu0 0.0
    %6374 = vmatpush1.msra.mxu0 0.0
    %6375 = vmatprep.subr.mxu0 0.0
    %6376 = vmatpush1.msra.mxu0 0.0
    %6377 = vmatprep.mubr.f32.mxu0 0.0
    %6378 = vmatmul.mubr.f32.gmra.mrb[0].mxu0 %v6311
    %v6379 = vpop.f32.mrb[0].mxu0
    %v6380 = vadd.f32 %v4221, %v6379
    %v6381 = vpop.f32.mrb[0].mxu0
    %6382 = vdwg.mxu0
    %s6383 = scalar_lea.vmem [#allocation20], 12
    %6384 = vst [vmem:[%s6383] sm:$0x3] %v6380
    %6385 = vmatprep.subr.mxu0 0.0
    %6386 = vmatpush1.msra.mxu0 %v4175
    %6387 = vmatprep.subr.mxu0 0.0
    %6388 = vmatpush1.msra.mxu0 %v4176
    %6389 = vmatprep.subr.mxu0 0.0
    %6390 = vmatpush1.msra.mxu0 %v4177
    %6391 = vmatprep.subr.mxu0 0.0
    %6392 = vmatpush1.msra.mxu0 %v4178
    %6393 = vmatprep.subr.mxu0 0.0
    %6394 = vmatpush1.msra.mxu0 0.0
    %6395 = vmatprep.subr.mxu0 0.0
    %6396 = vmatpush1.msra.mxu0 0.0
    %6397 = vmatprep.subr.mxu0 0.0
    %6398 = vmatpush1.msra.mxu0 0.0
    %6399 = vmatprep.subr.mxu0 0.0
    %6400 = vmatpush1.msra.mxu0 0.0
    %6401 = vmatprep.subr.mxu0 0.0
    %6402 = vmatpush1.msra.mxu0 0.0
    %6403 = vmatprep.subr.mxu0 0.0
    %6404 = vmatpush1.msra.mxu0 0.0
    %6405 = vmatprep.subr.mxu0 0.0
    %6406 = vmatpush1.msra.mxu0 0.0
    %6407 = vmatprep.subr.mxu0 0.0
    %6408 = vmatpush1.msra.mxu0 0.0
    %6409 = vmatprep.subr.mxu0 0.0
    %6410 = vmatpush1.msra.mxu0 0.0
    %6411 = vmatprep.subr.mxu0 0.0
    %6412 = vmatpush1.msra.mxu0 0.0
    %6413 = vmatprep.subr.mxu0 0.0
    %6414 = vmatpush1.msra.mxu0 0.0
    %6415 = vmatprep.subr.mxu0 0.0
    %6416 = vmatpush1.msra.mxu0 0.0
    %6417 = vmatprep.subr.mxu0 0.0
    %6418 = vmatpush1.msra.mxu0 0.0
    %6419 = vmatprep.subr.mxu0 0.0
    %6420 = vmatpush1.msra.mxu0 0.0
    %6421 = vmatprep.subr.mxu0 0.0
    %6422 = vmatpush1.msra.mxu0 0.0
    %6423 = vmatprep.subr.mxu0 0.0
    %6424 = vmatpush1.msra.mxu0 0.0
    %6425 = vmatprep.subr.mxu0 0.0
    %6426 = vmatpush1.msra.mxu0 0.0
    %6427 = vmatprep.subr.mxu0 0.0
    %6428 = vmatpush1.msra.mxu0 0.0
    %6429 = vmatprep.subr.mxu0 0.0
    %6430 = vmatpush1.msra.mxu0 0.0
    %6431 = vmatprep.subr.mxu0 0.0
    %6432 = vmatpush1.msra.mxu0 0.0
    %6433 = vmatprep.subr.mxu0 0.0
    %6434 = vmatpush1.msra.mxu0 0.0
    %6435 = vmatprep.subr.mxu0 0.0
    %6436 = vmatpush1.msra.mxu0 0.0
    %6437 = vmatprep.subr.mxu0 0.0
    %6438 = vmatpush1.msra.mxu0 0.0
    %6439 = vmatprep.subr.mxu0 0.0
    %6440 = vmatpush1.msra.mxu0 0.0
    %6441 = vmatprep.subr.mxu0 0.0
    %6442 = vmatpush1.msra.mxu0 0.0
    %6443 = vmatprep.subr.mxu0 0.0
    %6444 = vmatpush1.msra.mxu0 0.0
    %6445 = vmatprep.subr.mxu0 0.0
    %6446 = vmatpush1.msra.mxu0 0.0
    %6447 = vmatprep.subr.mxu0 0.0
    %6448 = vmatpush1.msra.mxu0 0.0
    %6449 = vmatprep.mubr.f32.mxu0 0.0
    %6450 = vmatmul.mubr.f32.gmra.mrb[0].mxu0 %v6311
    %v6451 = vpop.f32.mrb[0].mxu0
    %v6452 = vadd.f32 %v4194, %v6451
    %v6453 = vpop.f32.mrb[0].mxu0
    %6454 = vdwg.mxu0
    %6455 = vmatprep.subr.mxu0 0.0
    %6456 = vmatpush1.msra.mxu0 %v4180
    %6457 = vmatprep.subr.mxu0 0.0
    %6458 = vmatpush1.msra.mxu0 %v4181
    %6459 = vmatprep.subr.mxu0 0.0
    %6460 = vmatpush1.msra.mxu0 %v4182
    %6461 = vmatprep.subr.mxu0 0.0
    %6462 = vmatpush1.msra.mxu0 %v4183
    %6463 = vmatprep.subr.mxu0 0.0
    %6464 = vmatpush1.msra.mxu0 0.0
    %6465 = vmatprep.subr.mxu0 0.0
    %6466 = vmatpush1.msra.mxu0 0.0
    %6467 = vmatprep.subr.mxu0 0.0
    %6468 = vmatpush1.msra.mxu0 0.0
    %6469 = vmatprep.subr.mxu0 0.0
    %6470 = vmatpush1.msra.mxu0 0.0
    %6471 = vmatprep.subr.mxu0 0.0
    %6472 = vmatpush1.msra.mxu0 0.0
    %6473 = vmatprep.subr.mxu0 0.0
    %6474 = vmatpush1.msra.mxu0 0.0
    %6475 = vmatprep.subr.mxu0 0.0
    %6476 = vmatpush1.msra.mxu0 0.0
    %6477 = vmatprep.subr.mxu0 0.0
    %6478 = vmatpush1.msra.mxu0 0.0
    %6479 = vmatprep.subr.mxu0 0.0
    %6480 = vmatpush1.msra.mxu0 0.0
    %6481 = vmatprep.subr.mxu0 0.0
    %6482 = vmatpush1.msra.mxu0 0.0
    %6483 = vmatprep.subr.mxu0 0.0
    %6484 = vmatpush1.msra.mxu0 0.0
    %6485 = vmatprep.subr.mxu0 0.0
    %6486 = vmatpush1.msra.mxu0 0.0
    %6487 = vmatprep.subr.mxu0 0.0
    %6488 = vmatpush1.msra.mxu0 0.0
    %6489 = vmatprep.subr.mxu0 0.0
    %6490 = vmatpush1.msra.mxu0 0.0
    %6491 = vmatprep.subr.mxu0 0.0
    %6492 = vmatpush1.msra.mxu0 0.0
    %6493 = vmatprep.subr.mxu0 0.0
    %6494 = vmatpush1.msra.mxu0 0.0
    %6495 = vmatprep.subr.mxu0 0.0
    %6496 = vmatpush1.msra.mxu0 0.0
    %6497 = vmatprep.subr.mxu0 0.0
    %6498 = vmatpush1.msra.mxu0 0.0
    %6499 = vmatprep.subr.mxu0 0.0
    %6500 = vmatpush1.msra.mxu0 0.0
    %6501 = vmatprep.subr.mxu0 0.0
    %6502 = vmatpush1.msra.mxu0 0.0
    %6503 = vmatprep.subr.mxu0 0.0
    %6504 = vmatpush1.msra.mxu0 0.0
    %6505 = vmatprep.subr.mxu0 0.0
    %6506 = vmatpush1.msra.mxu0 0.0
    %6507 = vmatprep.subr.mxu0 0.0
    %6508 = vmatpush1.msra.mxu0 0.0
    %6509 = vmatprep.subr.mxu0 0.0
    %6510 = vmatpush1.msra.mxu0 0.0
    %6511 = vmatprep.subr.mxu0 0.0
    %6512 = vmatpush1.msra.mxu0 0.0
    %6513 = vmatprep.subr.mxu0 0.0
    %6514 = vmatpush1.msra.mxu0 0.0
    %6515 = vmatprep.subr.mxu0 0.0
    %6516 = vmatpush1.msra.mxu0 0.0
    %6517 = vmatprep.subr.mxu0 0.0
    %6518 = vmatpush1.msra.mxu0 0.0
    %6519 = vmatprep.mubr.f32.mxu0 0.0
    %6520 = vmatmul.mubr.f32.gmra.mrb[0].mxu0 %v6311
    %v6521 = vpop.f32.mrb[0].mxu0
    %v6522 = vadd.f32 %v4202, %v6521
    %v6523 = vpop.f32.mrb[0].mxu0
    %6524 = vdwg.mxu0
    %6525 = vmatprep.subr.mxu0 0.0
    %6526 = vmatpush1.msra.mxu0 %v4185
    %6527 = vmatprep.subr.mxu0 0.0
    %6528 = vmatpush1.msra.mxu0 %v4186
    %6529 = vmatprep.subr.mxu0 0.0
    %6530 = vmatpush1.msra.mxu0 %v4187
    %6531 = vmatprep.subr.mxu0 0.0
    %6532 = vmatpush1.msra.mxu0 %v4188
    %6533 = vmatprep.subr.mxu0 0.0
    %6534 = vmatpush1.msra.mxu0 0.0
    %6535 = vmatprep.subr.mxu0 0.0
    %6536 = vmatpush1.msra.mxu0 0.0
    %6537 = vmatprep.subr.mxu0 0.0
    %6538 = vmatpush1.msra.mxu0 0.0
    %6539 = vmatprep.subr.mxu0 0.0
    %6540 = vmatpush1.msra.mxu0 0.0
    %6541 = vmatprep.subr.mxu0 0.0
    %6542 = vmatpush1.msra.mxu0 0.0
    %6543 = vmatprep.subr.mxu0 0.0
    %6544 = vmatpush1.msra.mxu0 0.0
    %6545 = vmatprep.subr.mxu0 0.0
    %6546 = vmatpush1.msra.mxu0 0.0
    %6547 = vmatprep.subr.mxu0 0.0
    %6548 = vmatpush1.msra.mxu0 0.0
    %6549 = vmatprep.subr.mxu0 0.0
    %6550 = vmatpush1.msra.mxu0 0.0
    %6551 = vmatprep.subr.mxu0 0.0
    %6552 = vmatpush1.msra.mxu0 0.0
    %6553 = vmatprep.subr.mxu0 0.0
    %6554 = vmatpush1.msra.mxu0 0.0
    %6555 = vmatprep.subr.mxu0 0.0
    %6556 = vmatpush1.msra.mxu0 0.0
    %6557 = vmatprep.subr.mxu0 0.0
    %6558 = vmatpush1.msra.mxu0 0.0
    %6559 = vmatprep.subr.mxu0 0.0
    %6560 = vmatpush1.msra.mxu0 0.0
    %6561 = vmatprep.subr.mxu0 0.0
    %6562 = vmatpush1.msra.mxu0 0.0
    %6563 = vmatprep.subr.mxu0 0.0
    %6564 = vmatpush1.msra.mxu0 0.0
    %6565 = vmatprep.subr.mxu0 0.0
    %6566 = vmatpush1.msra.mxu0 0.0
    %6567 = vmatprep.subr.mxu0 0.0
    %6568 = vmatpush1.msra.mxu0 0.0
    %6569 = vmatprep.subr.mxu0 0.0
    %6570 = vmatpush1.msra.mxu0 0.0
    %6571 = vmatprep.subr.mxu0 0.0
    %6572 = vmatpush1.msra.mxu0 0.0
    %6573 = vmatprep.subr.mxu0 0.0
    %6574 = vmatpush1.msra.mxu0 0.0
    %6575 = vmatprep.subr.mxu0 0.0
    %6576 = vmatpush1.msra.mxu0 0.0
    %6577 = vmatprep.subr.mxu0 0.0
    %6578 = vmatpush1.msra.mxu0 0.0
    %6579 = vmatprep.subr.mxu0 0.0
    %6580 = vmatpush1.msra.mxu0 0.0
    %6581 = vmatprep.subr.mxu0 0.0
    %6582 = vmatpush1.msra.mxu0 0.0
    %6583 = vmatprep.subr.mxu0 0.0
    %6584 = vmatpush1.msra.mxu0 0.0
    %6585 = vmatprep.subr.mxu0 0.0
    %6586 = vmatpush1.msra.mxu0 0.0
    %6587 = vmatprep.subr.mxu0 0.0
    %6588 = vmatpush1.msra.mxu0 0.0
    %6589 = vmatprep.mubr.f32.mxu0 0.0
    %6590 = vmatmul.mubr.f32.gmra.mrb[0].mxu0 %v6311
    %v6591 = vpop.f32.mrb[0].mxu0
    %v6592 = vadd.f32 %v4210, %v6591
    %v6593 = vpop.f32.mrb[0].mxu0
    %6594 = vdwg.mxu0
    %v6595 = vld [vmem:[%s4029] sm:$0x3]
    %v6596 = vadd.f32 %v6595, %v6452
    %v6597 = vxor.u32 %v6596, 2147483648
    %v6598 = vmul.f32 %v6597, 1.442695
    %v6599 = vpow.pop %v6598
    %v6600 = vadd.f32 %v6599, 1.0
    %v6601 = vrcp.pop %v6600
    %v6602 = vmul.f32 1.0, %v6601
    %v6603 = vld [vmem:[%s4101] sm:$0x3]
    %v6604 = vadd.f32 %v6603, %v6522
    %v6605 = vxor.u32 %v6604, 2147483648
    %v6606 = vmul.f32 %v6605, 1.442695
    %v6607 = vpow.pop %v6606
    %v6608 = vadd.f32 %v6607, 1.0
    %v6609 = vrcp.pop %v6608
    %v6610 = vmul.f32 1.0, %v6609
    %v6611 = vld [vmem:[%s4173] sm:$0x3]
    %v6612 = vmul.f32 %v6602, %v6592
    %v6613 = vadd.f32 %v6611, %v6612
    %v6614 = vtanh.pop %v6613
    %v6615 = vsub.f32 1.0, %v6610
    %v6616 = vmul.f32 %v6615, %v6614
    %v6617 = vmul.f32 %v6610, %v6309
    %v6618 = vadd.f32 %v6616, %v6617
    %v6620 = vsel %vm500, %v6618, 0
    %6622 = vmatprep.subr.mxu0 0.0
    %6623 = vmatpush1.msra.mxu0 %v4212
    %6624 = vmatprep.subr.mxu0 0.0
    %6625 = vmatpush1.msra.mxu0 %v4213
    %6626 = vmatprep.subr.mxu0 0.0
    %6627 = vmatpush1.msra.mxu0 %v4214
    %6628 = vmatprep.subr.mxu0 0.0
    %6629 = vmatpush1.msra.mxu0 %v4215
    %6630 = vmatprep.subr.mxu0 0.0
    %6631 = vmatpush1.msra.mxu0 0.0
    %6632 = vmatprep.subr.mxu0 0.0
    %6633 = vmatpush1.msra.mxu0 0.0
    %6634 = vmatprep.subr.mxu0 0.0
    %6635 = vmatpush1.msra.mxu0 0.0
    %6636 = vmatprep.subr.mxu0 0.0
    %6637 = vmatpush1.msra.mxu0 0.0
    %6638 = vmatprep.subr.mxu0 0.0
    %6639 = vmatpush1.msra.mxu0 0.0
    %6640 = vmatprep.subr.mxu0 0.0
    %6641 = vmatpush1.msra.mxu0 0.0
    %6642 = vmatprep.subr.mxu0 0.0
    %6643 = vmatpush1.msra.mxu0 0.0
    %6644 = vmatprep.subr.mxu0 0.0
    %6645 = vmatpush1.msra.mxu0 0.0
    %6646 = vmatprep.subr.mxu0 0.0
    %6647 = vmatpush1.msra.mxu0 0.0
    %6648 = vmatprep.subr.mxu0 0.0
    %6649 = vmatpush1.msra.mxu0 0.0
    %6650 = vmatprep.subr.mxu0 0.0
    %6651 = vmatpush1.msra.mxu0 0.0
    %6652 = vmatprep.subr.mxu0 0.0
    %6653 = vmatpush1.msra.mxu0 0.0
    %6654 = vmatprep.subr.mxu0 0.0
    %6655 = vmatpush1.msra.mxu0 0.0
    %6656 = vmatprep.subr.mxu0 0.0
    %6657 = vmatpush1.msra.mxu0 0.0
    %6658 = vmatprep.subr.mxu0 0.0
    %6659 = vmatpush1.msra.mxu0 0.0
    %6660 = vmatprep.subr.mxu0 0.0
    %6661 = vmatpush1.msra.mxu0 0.0
    %6662 = vmatprep.subr.mxu0 0.0
    %6663 = vmatpush1.msra.mxu0 0.0
    %6664 = vmatprep.subr.mxu0 0.0
    %6665 = vmatpush1.msra.mxu0 0.0
    %6666 = vmatprep.subr.mxu0 0.0
    %6667 = vmatpush1.msra.mxu0 0.0
    %6668 = vmatprep.subr.mxu0 0.0
    %6669 = vmatpush1.msra.mxu0 0.0
    %6670 = vmatprep.subr.mxu0 0.0
    %6671 = vmatpush1.msra.mxu0 0.0
    %6672 = vmatprep.subr.mxu0 0.0
    %6673 = vmatpush1.msra.mxu0 0.0
    %6674 = vmatprep.subr.mxu0 0.0
    %6675 = vmatpush1.msra.mxu0 0.0
    %6676 = vmatprep.subr.mxu0 0.0
    %6677 = vmatpush1.msra.mxu0 0.0
    %6678 = vmatprep.subr.mxu0 0.0
    %6679 = vmatpush1.msra.mxu0 0.0
    %6680 = vmatprep.subr.mxu0 0.0
    %6681 = vmatpush1.msra.mxu0 0.0
    %6682 = vmatprep.subr.mxu0 0.0
    %6683 = vmatpush1.msra.mxu0 0.0
    %6684 = vmatprep.subr.mxu0 0.0
    %6685 = vmatpush1.msra.mxu0 0.0
    %6686 = vmatprep.mubr.f32.mxu0 0.0
    %6687 = vmatmul.mubr.f32.gmra.mrb[0].mxu0 %v6620
    %v6688 = vpop.f32.mrb[0].mxu0
    %v6689 = vadd.f32 %v4221, %v6688
    %v6690 = vpop.f32.mrb[0].mxu0
    %6691 = vdwg.mxu0
    %s6692 = scalar_lea.vmem [#allocation20], 14
    %6693 = vst [vmem:[%s6692] sm:$0x3] %v6689
    // Predicated region
    $region82: #{tpu_custom_call.1} parent=1 // pred_check
      _
    $region83: #{tpu_custom_call.1} parent=1 // pred_check_branch
      %6695 = sbr.rel (0) target = $region85
    $region84: #{tpu_custom_call.1} parent=1 // pred_region
      %s6697 = ssub.s32 256, 256
      %6698 = vsyncadd [#allocation7], %s6697
      %s6699 = sshll.u32 [#allocation20], 4
      %s6700 = int_to_ptr.vmem [resolvable:$true] %s6699
      %6705 = dma.vmem_to_hbm [thread:$0]  %s6700, 256, %s11, [#allocation7], 32, 32, 2
    $region85: #{tpu_custom_call.1} parent=1 // pred_fallthru
      _
    // Predicated region
    $region86: #{tpu_custom_call.1} parent=1 // pred_check
      _
    $region87: #{tpu_custom_call.1} parent=1 // pred_check_branch
      %6707 = sbr.rel (0) target = $region89
    $region88: #{tpu_custom_call.1} parent=1 // pred_region
      %6708 = dma.done [#allocation7], 256
    $region89: #{tpu_custom_call.1} parent=1 // pred_fallthru
      _
    %6709 = vsyncpa [#allocation6], 1
    %6710 = vsyncpa [#allocation9], 1
    %6711 = vsyncpa [#allocation12], 1
    %6712 = vsyncpa [#allocation15], 1
    %6713 = vsyncpa [#allocation18], 1
    %6714 = vsyncpa [#allocation7], 1

</llo_original>
